<compile_context>
chip_gen: v5e
topology: v5e:2x2
jax: 0.10.0
libtpu: 0.0.40
codegen_flags: <defaults>
</compile_context>

<pallas_src>
import functools

import jax
import jax.numpy as jnp
from jax.experimental import pallas as pl
from jax.experimental.pallas import tpu as pltpu

D_MODEL = 256
N_HEAD = 4
HEAD_DIM = D_MODEL // N_HEAD
FFN_DIM = 2048          # PyTorch TransformerEncoderLayer default dim_feedforward
NUM_LAYERS = 2
LN_EPS = 1e-5
CLS_PAD = 128           # classifier output padded to one full lane register
MATMUL_DTYPE = jnp.bfloat16


# ----------------------------- in-kernel helpers ----------------------------

def _dot(x, w):
    """MXU matmul with bf16 operands and f32 accumulation."""
    return jnp.dot(x.astype(MATMUL_DTYPE), w.astype(MATMUL_DTYPE),
                   preferred_element_type=jnp.float32)


def _layernorm(x, g, b):
    mean = jnp.mean(x, axis=-1, keepdims=True)
    xc = x - mean
    var = jnp.mean(xc * xc, axis=-1, keepdims=True)
    return xc * jax.lax.rsqrt(var + LN_EPS) * g + b


# ------------------------------- fused kernel -------------------------------

def _model_kernel(x_ref, emb_w_ref, emb_b_ref,
                  inp_w_ref, inp_b_ref, outp_w_ref, outp_b_ref,
                  ln1_g_ref, ln1_b_ref,
                  ff1_w_ref, ff1_b_ref, ff2_w_ref, ff2_b_ref,
                  ln2_g_ref, ln2_b_ref,
                  cls_w_ref, cls_b_ref,
                  out_ref):
    seq = x_ref.shape[1]                       # static sequence length
    scale = 1.0 / float(HEAD_DIM) ** 0.5

    # Embedding Linear(input_dim -> 256) for this batch element.
    h = _dot(x_ref[0], emb_w_ref[...]) + emb_b_ref[...]            # (S, D) f32

    # Two post-norm TransformerEncoderLayers (eval mode -> dropout = identity).
    for l in range(NUM_LAYERS):
        # ---- multi-head self-attention ----
        qkv = _dot(h, inp_w_ref[l]) + inp_b_ref[l]                 # (S, 3D) f32
        w_out = outp_w_ref[l]                                      # (D, D) bf16
        attn = jnp.zeros((seq, D_MODEL), jnp.float32)
        for hd_i in range(N_HEAD):
            lo = hd_i * HEAD_DIM
            hi = lo + HEAD_DIM
            qh = qkv[:, lo:hi].astype(MATMUL_DTYPE)                # (S, hd)
            kh = qkv[:, D_MODEL + lo:D_MODEL + hi].astype(MATMUL_DTYPE)
            vh = qkv[:, 2 * D_MODEL + lo:2 * D_MODEL + hi].astype(MATMUL_DTYPE)
            # scores = q @ k^T / sqrt(hd)   (f32 accumulation)
            s = jax.lax.dot_general(
                qh, kh, (((1,), (1,)), ((), ())),
                preferred_element_type=jnp.float32) * scale        # (S, S)
            # softmax in f32; divide via EUP reciprocal
            s = s - jnp.max(s, axis=-1, keepdims=True)
            p = jnp.exp(s)
            p = p * pl.reciprocal(jnp.sum(p, axis=-1, keepdims=True), approx=True)
            head = jnp.dot(p.astype(MATMUL_DTYPE), vh,
                           preferred_element_type=jnp.float32)     # (S, hd)
            # Head merge fused into the output projection:
            # concat_h(head_h) @ W_out == sum_h head_h @ W_out[h*hd:(h+1)*hd, :]
            attn = attn + jnp.dot(head.astype(MATMUL_DTYPE), w_out[lo:hi, :],
                                  preferred_element_type=jnp.float32)
        attn = attn + outp_b_ref[l]
        h1 = _layernorm(h + attn, ln1_g_ref[l], ln1_b_ref[l])      # (S, D)

        # ---- feed-forward: Linear -> ReLU -> Linear ----
        ff = jnp.maximum(_dot(h1, ff1_w_ref[l]) + ff1_b_ref[l], 0.0)
        ff = _dot(ff, ff2_w_ref[l]) + ff2_b_ref[l]
        h = _layernorm(h1 + ff, ln2_g_ref[l], ln2_b_ref[l])

    # Classifier on every position (lane/sublane-dense (S, 128) store); the
    # wrapper keeps position 0 (== transformer_out[0]) and the first
    # num_classes lanes.
    logits = _dot(h, cls_w_ref[...]) + cls_b_ref[...]              # (S, CLS_PAD)
    out_ref[0] = logits.astype(out_ref.dtype)


# ------------------------------- host wrapper --------------------------------

def _resident_spec(shape):
    """Full-array block that stays on block 0 for every grid step (VMEM-resident)."""
    nd = len(shape)
    return pl.BlockSpec(shape, lambda b, _nd=nd: (0,) * _nd)


@functools.partial(jax.jit, static_argnames=("num_classes",))
def transformer_forward(x, params, num_classes):
    B, S, input_dim = x.shape

    args = (x,
            params["emb_w"], params["emb_b"],
            params["inp_w"], params["inp_b"],
            params["outp_w"], params["outp_b"],
            params["ln1_g"], params["ln1_b"],
            params["ff1_w"], params["ff1_b"],
            params["ff2_w"], params["ff2_b"],
            params["ln2_g"], params["ln2_b"],
            params["cls_w"], params["cls_b"])

    in_specs = [pl.BlockSpec((1, S, input_dim), lambda b: (b, 0, 0))]
    in_specs += [_resident_spec(a.shape) for a in args[1:]]

    out = pl.pallas_call(
        _model_kernel,
        out_shape=jax.ShapeDtypeStruct((B, S, CLS_PAD), jnp.float32),
        grid=(B,),
        in_specs=in_specs,
        out_specs=pl.BlockSpec((1, S, CLS_PAD), lambda b: (b, 0, 0)),
        compiler_params=pltpu.CompilerParams(
            dimension_semantics=("parallel",),        # lets v7x's 2 TCs split batch
            vmem_limit_bytes=32 * 1024 * 1024),
    )(*args)

    # transformer_out[0] -> sequence position 0; drop lane padding.
    return out[:, 0, :num_classes]


# ------------------------------ parameter init -------------------------------

def init_params(key, input_dim, num_classes):
    assert num_classes <= CLS_PAD
    scale = 0.02

    def nrm(k, shape):
        return scale * jax.random.normal(k, shape, dtype=jnp.float32)

    keys = jax.random.split(key, 2 + NUM_LAYERS)

    cls_w = jnp.zeros((D_MODEL, CLS_PAD), jnp.float32)
    cls_w = cls_w.at[:, :num_classes].set(nrm(keys[1], (D_MODEL, num_classes)))

    def layer(k):
        lk = jax.random.split(k, 4)
        return {
            "inp_w": nrm(lk[0], (D_MODEL, 3 * D_MODEL)),
            "inp_b": jnp.zeros((1, 3 * D_MODEL), jnp.float32),
            "outp_w": nrm(lk[1], (D_MODEL, D_MODEL)),
            "outp_b": jnp.zeros((1, D_MODEL), jnp.float32),
            "ln1_g": jnp.ones((1, D_MODEL), jnp.float32),
            "ln1_b": jnp.zeros((1, D_MODEL), jnp.float32),
            "ff1_w": nrm(lk[2], (D_MODEL, FFN_DIM)),
            "ff1_b": jnp.zeros((1, FFN_DIM), jnp.float32),
            "ff2_w": nrm(lk[3], (FFN_DIM, D_MODEL)),
            "ff2_b": jnp.zeros((1, D_MODEL), jnp.float32),
            "ln2_g": jnp.ones((1, D_MODEL), jnp.float32),
            "ln2_b": jnp.zeros((1, D_MODEL), jnp.float32),
        }

    layers = [layer(keys[2 + li]) for li in range(NUM_LAYERS)]

    def stack(name, dtype):
        return jnp.stack([l[name] for l in layers]).astype(dtype)

    return {
        # matmul weights stored in bf16 (halves VMEM/HBM traffic); everything
        # used in elementwise math stays f32.
        "emb_w": nrm(keys[0], (input_dim, D_MODEL)).astype(MATMUL_DTYPE),
        "emb_b": jnp.zeros((1, D_MODEL), jnp.float32),
        "inp_w": stack("inp_w", MATMUL_DTYPE),
        "inp_b": stack("inp_b", jnp.float32),
        "outp_w": stack("outp_w", MATMUL_DTYPE),
        "outp_b": stack("outp_b", jnp.float32),
        "ln1_g": stack("ln1_g", jnp.float32),
        "ln1_b": stack("ln1_b", jnp.float32),
        "ff1_w": stack("ff1_w", MATMUL_DTYPE),
        "ff1_b": stack("ff1_b", jnp.float32),
        "ff2_w": stack("ff2_w", MATMUL_DTYPE),
        "ff2_b": stack("ff2_b", jnp.float32),
        "ln2_g": stack("ln2_g", jnp.float32),
        "ln2_b": stack("ln2_b", jnp.float32),
        "cls_w": cls_w.astype(MATMUL_DTYPE),
        "cls_b": jnp.zeros((1, CLS_PAD), jnp.float32),
    }


# ----------------------------------- main ------------------------------------

if __name__ == "__main__":
    B, S, INPUT_DIM, NUM_CLASSES = 2, 8, 32, 10

    root = jax.random.PRNGKey(0)
    k_x, k_p = jax.random.split(root)
    x = jax.random.normal(k_x, (B, S, INPUT_DIM), dtype=jnp.float32)
    params = init_params(k_p, INPUT_DIM, NUM_CLASSES)

    logits = transformer_forward(x, params, num_classes=NUM_CLASSES)
    logits = jax.block_until_ready(logits)
    assert logits.shape == (B, NUM_CLASSES)
    assert bool(jnp.all(jnp.isfinite(logits)))
    print("KERNEL_OK")
</pallas_src>

<mosaic_0001>
module attributes {stable_mosaic.version = 11 : i64} {
  func.func @_model_kernel(%arg0: i32, %arg1: memref<1x8x32xf32, #tpu.memory_space<vmem>>, %arg2: memref<32x256xbf16, #tpu.memory_space<vmem>>, %arg3: memref<1x256xf32, #tpu.memory_space<vmem>>, %arg4: memref<2x256x768xbf16, #tpu.memory_space<vmem>>, %arg5: memref<2x1x768xf32, #tpu.memory_space<vmem>>, %arg6: memref<2x256x256xbf16, #tpu.memory_space<vmem>>, %arg7: memref<2x1x256xf32, #tpu.memory_space<vmem>>, %arg8: memref<2x1x256xf32, #tpu.memory_space<vmem>>, %arg9: memref<2x1x256xf32, #tpu.memory_space<vmem>>, %arg10: memref<2x256x2048xbf16, #tpu.memory_space<vmem>>, %arg11: memref<2x1x2048xf32, #tpu.memory_space<vmem>>, %arg12: memref<2x2048x256xbf16, #tpu.memory_space<vmem>>, %arg13: memref<2x1x256xf32, #tpu.memory_space<vmem>>, %arg14: memref<2x1x256xf32, #tpu.memory_space<vmem>>, %arg15: memref<2x1x256xf32, #tpu.memory_space<vmem>>, %arg16: memref<256x128xbf16, #tpu.memory_space<vmem>>, %arg17: memref<1x128xf32, #tpu.memory_space<vmem>>, %arg18: memref<1x8x128xf32, #tpu.memory_space<vmem>>) attributes {dimension_semantics = [#tpu.dimension_semantics<parallel>], iteration_bounds = array<i64: 2>, scalar_prefetch = 0 : i64, scratch_operands = 0 : i64, tpu.core_type = #tpu.core_type<tc>, window_params = [{transform_indices = @transform_0, window_bounds = array<i64: 1, 8, 32>}, {pipeline_mode = #tpu.pipeline_mode<synchronous>, transform_indices = @transform_1, window_bounds = array<i64: 32, 256>}, {pipeline_mode = #tpu.pipeline_mode<synchronous>, transform_indices = @transform_2, window_bounds = array<i64: 1, 256>}, {pipeline_mode = #tpu.pipeline_mode<synchronous>, transform_indices = @transform_3, window_bounds = array<i64: 2, 256, 768>}, {pipeline_mode = #tpu.pipeline_mode<synchronous>, transform_indices = @transform_4, window_bounds = array<i64: 2, 1, 768>}, {pipeline_mode = #tpu.pipeline_mode<synchronous>, transform_indices = @transform_5, window_bounds = array<i64: 2, 256, 256>}, {pipeline_mode = #tpu.pipeline_mode<synchronous>, transform_indices = @transform_6, window_bounds = array<i64: 2, 1, 256>}, {pipeline_mode = #tpu.pipeline_mode<synchronous>, transform_indices = @transform_7, window_bounds = array<i64: 2, 1, 256>}, {pipeline_mode = #tpu.pipeline_mode<synchronous>, transform_indices = @transform_8, window_bounds = array<i64: 2, 1, 256>}, {pipeline_mode = #tpu.pipeline_mode<synchronous>, transform_indices = @transform_9, window_bounds = array<i64: 2, 256, 2048>}, {pipeline_mode = #tpu.pipeline_mode<synchronous>, transform_indices = @transform_10, window_bounds = array<i64: 2, 1, 2048>}, {pipeline_mode = #tpu.pipeline_mode<synchronous>, transform_indices = @transform_11, window_bounds = array<i64: 2, 2048, 256>}, {pipeline_mode = #tpu.pipeline_mode<synchronous>, transform_indices = @transform_12, window_bounds = array<i64: 2, 1, 256>}, {pipeline_mode = #tpu.pipeline_mode<synchronous>, transform_indices = @transform_13, window_bounds = array<i64: 2, 1, 256>}, {pipeline_mode = #tpu.pipeline_mode<synchronous>, transform_indices = @transform_14, window_bounds = array<i64: 2, 1, 256>}, {pipeline_mode = #tpu.pipeline_mode<synchronous>, transform_indices = @transform_15, window_bounds = array<i64: 256, 128>}, {pipeline_mode = #tpu.pipeline_mode<synchronous>, transform_indices = @transform_16, window_bounds = array<i64: 1, 128>}, {transform_indices = @transform_17, window_bounds = array<i64: 1, 8, 128>}]} {
    %c0 = arith.constant 0 : index
    %c0_0 = arith.constant 0 : index
    %c0_1 = arith.constant 0 : index
    %0 = vector.load %arg1[%c0, %c0_0, %c0_1] : memref<1x8x32xf32, #tpu.memory_space<vmem>>, vector<1x8x32xf32>
    %1 = vector.shape_cast %0 : vector<1x8x32xf32> to vector<8x32xf32>
    %c0_2 = arith.constant 0 : index
    %c0_3 = arith.constant 0 : index
    %2 = vector.load %arg2[%c0_2, %c0_3] : memref<32x256xbf16, #tpu.memory_space<vmem>>, vector<32x256xbf16>
    %3 = arith.truncf %1 : vector<8x32xf32> to vector<8x32xbf16>
    %cst = arith.constant dense<0.000000e+00> : vector<8x256xf32>
    %4 = tpu.matmul %3, %2, %cst {dimension_numbers = #tpu.dot_dimension_numbers<[1], [0], [0], [1], [0, 0, 1, 1], [], []>} : vector<8x32xbf16>, vector<32x256xbf16>, vector<8x256xf32> -> vector<8x256xf32>
    %c0_4 = arith.constant 0 : index
    %c0_5 = arith.constant 0 : index
    %5 = vector.load %arg3[%c0_4, %c0_5] : memref<1x256xf32, #tpu.memory_space<vmem>>, vector<1x256xf32>
    %6 = vector.broadcast %5 : vector<1x256xf32> to vector<8x256xf32>
    %7 = arith.addf %4, %6 : vector<8x256xf32>
    %c0_6 = arith.constant 0 : index
    %c0_7 = arith.constant 0 : index
    %c0_8 = arith.constant 0 : index
    %8 = vector.load %arg4[%c0_6, %c0_7, %c0_8] : memref<2x256x768xbf16, #tpu.memory_space<vmem>>, vector<1x256x768xbf16>
    %9 = vector.shape_cast %8 : vector<1x256x768xbf16> to vector<256x768xbf16>
    %10 = arith.truncf %7 : vector<8x256xf32> to vector<8x256xbf16>
    %cst_9 = arith.constant dense<0.000000e+00> : vector<8x768xf32>
    %11 = tpu.matmul %10, %9, %cst_9 {dimension_numbers = #tpu.dot_dimension_numbers<[1], [0], [0], [1], [0, 0, 1, 1], [], []>} : vector<8x256xbf16>, vector<256x768xbf16>, vector<8x768xf32> -> vector<8x768xf32>
    %c0_10 = arith.constant 0 : index
    %c0_11 = arith.constant 0 : index
    %c0_12 = arith.constant 0 : index
    %12 = vector.load %arg5[%c0_10, %c0_11, %c0_12] : memref<2x1x768xf32, #tpu.memory_space<vmem>>, vector<1x1x768xf32>
    %13 = vector.shape_cast %12 : vector<1x1x768xf32> to vector<1x768xf32>
    %14 = vector.broadcast %13 : vector<1x768xf32> to vector<8x768xf32>
    %15 = arith.addf %11, %14 : vector<8x768xf32>
    %c0_13 = arith.constant 0 : index
    %c0_14 = arith.constant 0 : index
    %c0_15 = arith.constant 0 : index
    %16 = vector.load %arg6[%c0_13, %c0_14, %c0_15] : memref<2x256x256xbf16, #tpu.memory_space<vmem>>, vector<1x256x256xbf16>
    %17 = vector.shape_cast %16 : vector<1x256x256xbf16> to vector<256x256xbf16>
    %cst_16 = arith.constant 0.000000e+00 : f32
    %18 = vector.broadcast %cst_16 : f32 to vector<8x256xf32>
    %19 = vector.extract_strided_slice %15 {offsets = [0, 0], sizes = [8, 64], strides = [1, 1]} : vector<8x768xf32> to vector<8x64xf32>
    %20 = arith.truncf %19 : vector<8x64xf32> to vector<8x64xbf16>
    %21 = vector.extract_strided_slice %15 {offsets = [0, 256], sizes = [8, 64], strides = [1, 1]} : vector<8x768xf32> to vector<8x64xf32>
    %22 = arith.truncf %21 : vector<8x64xf32> to vector<8x64xbf16>
    %23 = vector.extract_strided_slice %15 {offsets = [0, 512], sizes = [8, 64], strides = [1, 1]} : vector<8x768xf32> to vector<8x64xf32>
    %24 = arith.truncf %23 : vector<8x64xf32> to vector<8x64xbf16>
    %cst_17 = arith.constant dense<0.000000e+00> : vector<8x8xf32>
    %25 = tpu.matmul %20, %22, %cst_17 {dimension_numbers = #tpu.dot_dimension_numbers<[1], [1], [0], [0], [0, 0, 1, 0], [], []>} : vector<8x64xbf16>, vector<8x64xbf16>, vector<8x8xf32> -> vector<8x8xf32>
    %cst_18 = arith.constant 1.250000e-01 : f32
    %26 = vector.broadcast %cst_18 : f32 to vector<8x8xf32>
    %27 = arith.mulf %25, %26 : vector<8x8xf32>
    %cst_19 = arith.constant dense<0xFF800000> : vector<8xf32>
    %28 = vector.multi_reduction <maximumf>, %27, %cst_19 [1] : vector<8x8xf32> to vector<8xf32>
    %29 = vector.shape_cast %28 : vector<8xf32> to vector<8x1xf32>
    %30 = vector.broadcast %29 : vector<8x1xf32> to vector<8x8xf32>
    %31 = arith.subf %27, %30 : vector<8x8xf32>
    %32 = math.exp %31 : vector<8x8xf32>
    %cst_20 = arith.constant dense<0.000000e+00> : vector<8xf32>
    %33 = vector.multi_reduction <add>, %32, %cst_20 [1] : vector<8x8xf32> to vector<8xf32>
    %34 = vector.shape_cast %33 : vector<8xf32> to vector<8x1xf32>
    %35 = tpu.reciprocal %34 {approx = true} : vector<8x1xf32> -> vector<8x1xf32>
    %36 = vector.broadcast %35 : vector<8x1xf32> to vector<8x8xf32>
    %37 = arith.mulf %32, %36 : vector<8x8xf32>
    %38 = arith.truncf %37 : vector<8x8xf32> to vector<8x8xbf16>
    %cst_21 = arith.constant dense<0.000000e+00> : vector<8x64xf32>
    %39 = tpu.matmul %38, %24, %cst_21 {dimension_numbers = #tpu.dot_dimension_numbers<[1], [0], [0], [1], [0, 0, 1, 1], [], []>} : vector<8x8xbf16>, vector<8x64xbf16>, vector<8x64xf32> -> vector<8x64xf32>
    %40 = arith.truncf %39 : vector<8x64xf32> to vector<8x64xbf16>
    %41 = vector.extract_strided_slice %17 {offsets = [0, 0], sizes = [64, 256], strides = [1, 1]} : vector<256x256xbf16> to vector<64x256xbf16>
    %cst_22 = arith.constant dense<0.000000e+00> : vector<8x256xf32>
    %42 = tpu.matmul %40, %41, %cst_22 {dimension_numbers = #tpu.dot_dimension_numbers<[1], [0], [0], [1], [0, 0, 1, 1], [], []>} : vector<8x64xbf16>, vector<64x256xbf16>, vector<8x256xf32> -> vector<8x256xf32>
    %43 = arith.addf %18, %42 : vector<8x256xf32>
    %44 = vector.extract_strided_slice %15 {offsets = [0, 64], sizes = [8, 64], strides = [1, 1]} : vector<8x768xf32> to vector<8x64xf32>
    %45 = arith.truncf %44 : vector<8x64xf32> to vector<8x64xbf16>
    %46 = vector.extract_strided_slice %15 {offsets = [0, 320], sizes = [8, 64], strides = [1, 1]} : vector<8x768xf32> to vector<8x64xf32>
    %47 = arith.truncf %46 : vector<8x64xf32> to vector<8x64xbf16>
    %48 = vector.extract_strided_slice %15 {offsets = [0, 576], sizes = [8, 64], strides = [1, 1]} : vector<8x768xf32> to vector<8x64xf32>
    %49 = arith.truncf %48 : vector<8x64xf32> to vector<8x64xbf16>
    %cst_23 = arith.constant dense<0.000000e+00> : vector<8x8xf32>
    %50 = tpu.matmul %45, %47, %cst_23 {dimension_numbers = #tpu.dot_dimension_numbers<[1], [1], [0], [0], [0, 0, 1, 0], [], []>} : vector<8x64xbf16>, vector<8x64xbf16>, vector<8x8xf32> -> vector<8x8xf32>
    %cst_24 = arith.constant 1.250000e-01 : f32
    %51 = vector.broadcast %cst_24 : f32 to vector<8x8xf32>
    %52 = arith.mulf %50, %51 : vector<8x8xf32>
    %cst_25 = arith.constant dense<0xFF800000> : vector<8xf32>
    %53 = vector.multi_reduction <maximumf>, %52, %cst_25 [1] : vector<8x8xf32> to vector<8xf32>
    %54 = vector.shape_cast %53 : vector<8xf32> to vector<8x1xf32>
    %55 = vector.broadcast %54 : vector<8x1xf32> to vector<8x8xf32>
    %56 = arith.subf %52, %55 : vector<8x8xf32>
    %57 = math.exp %56 : vector<8x8xf32>
    %cst_26 = arith.constant dense<0.000000e+00> : vector<8xf32>
    %58 = vector.multi_reduction <add>, %57, %cst_26 [1] : vector<8x8xf32> to vector<8xf32>
    %59 = vector.shape_cast %58 : vector<8xf32> to vector<8x1xf32>
    %60 = tpu.reciprocal %59 {approx = true} : vector<8x1xf32> -> vector<8x1xf32>
    %61 = vector.broadcast %60 : vector<8x1xf32> to vector<8x8xf32>
    %62 = arith.mulf %57, %61 : vector<8x8xf32>
    %63 = arith.truncf %62 : vector<8x8xf32> to vector<8x8xbf16>
    %cst_27 = arith.constant dense<0.000000e+00> : vector<8x64xf32>
    %64 = tpu.matmul %63, %49, %cst_27 {dimension_numbers = #tpu.dot_dimension_numbers<[1], [0], [0], [1], [0, 0, 1, 1], [], []>} : vector<8x8xbf16>, vector<8x64xbf16>, vector<8x64xf32> -> vector<8x64xf32>
    %65 = arith.truncf %64 : vector<8x64xf32> to vector<8x64xbf16>
    %66 = vector.extract_strided_slice %17 {offsets = [64, 0], sizes = [64, 256], strides = [1, 1]} : vector<256x256xbf16> to vector<64x256xbf16>
    %cst_28 = arith.constant dense<0.000000e+00> : vector<8x256xf32>
    %67 = tpu.matmul %65, %66, %cst_28 {dimension_numbers = #tpu.dot_dimension_numbers<[1], [0], [0], [1], [0, 0, 1, 1], [], []>} : vector<8x64xbf16>, vector<64x256xbf16>, vector<8x256xf32> -> vector<8x256xf32>
    %68 = arith.addf %43, %67 : vector<8x256xf32>
    %69 = vector.extract_strided_slice %15 {offsets = [0, 128], sizes = [8, 64], strides = [1, 1]} : vector<8x768xf32> to vector<8x64xf32>
    %70 = arith.truncf %69 : vector<8x64xf32> to vector<8x64xbf16>
    %71 = vector.extract_strided_slice %15 {offsets = [0, 384], sizes = [8, 64], strides = [1, 1]} : vector<8x768xf32> to vector<8x64xf32>
    %72 = arith.truncf %71 : vector<8x64xf32> to vector<8x64xbf16>
    %73 = vector.extract_strided_slice %15 {offsets = [0, 640], sizes = [8, 64], strides = [1, 1]} : vector<8x768xf32> to vector<8x64xf32>
    %74 = arith.truncf %73 : vector<8x64xf32> to vector<8x64xbf16>
    %cst_29 = arith.constant dense<0.000000e+00> : vector<8x8xf32>
    %75 = tpu.matmul %70, %72, %cst_29 {dimension_numbers = #tpu.dot_dimension_numbers<[1], [1], [0], [0], [0, 0, 1, 0], [], []>} : vector<8x64xbf16>, vector<8x64xbf16>, vector<8x8xf32> -> vector<8x8xf32>
    %cst_30 = arith.constant 1.250000e-01 : f32
    %76 = vector.broadcast %cst_30 : f32 to vector<8x8xf32>
    %77 = arith.mulf %75, %76 : vector<8x8xf32>
    %cst_31 = arith.constant dense<0xFF800000> : vector<8xf32>
    %78 = vector.multi_reduction <maximumf>, %77, %cst_31 [1] : vector<8x8xf32> to vector<8xf32>
    %79 = vector.shape_cast %78 : vector<8xf32> to vector<8x1xf32>
    %80 = vector.broadcast %79 : vector<8x1xf32> to vector<8x8xf32>
    %81 = arith.subf %77, %80 : vector<8x8xf32>
    %82 = math.exp %81 : vector<8x8xf32>
    %cst_32 = arith.constant dense<0.000000e+00> : vector<8xf32>
    %83 = vector.multi_reduction <add>, %82, %cst_32 [1] : vector<8x8xf32> to vector<8xf32>
    %84 = vector.shape_cast %83 : vector<8xf32> to vector<8x1xf32>
    %85 = tpu.reciprocal %84 {approx = true} : vector<8x1xf32> -> vector<8x1xf32>
    %86 = vector.broadcast %85 : vector<8x1xf32> to vector<8x8xf32>
    %87 = arith.mulf %82, %86 : vector<8x8xf32>
    %88 = arith.truncf %87 : vector<8x8xf32> to vector<8x8xbf16>
    %cst_33 = arith.constant dense<0.000000e+00> : vector<8x64xf32>
    %89 = tpu.matmul %88, %74, %cst_33 {dimension_numbers = #tpu.dot_dimension_numbers<[1], [0], [0], [1], [0, 0, 1, 1], [], []>} : vector<8x8xbf16>, vector<8x64xbf16>, vector<8x64xf32> -> vector<8x64xf32>
    %90 = arith.truncf %89 : vector<8x64xf32> to vector<8x64xbf16>
    %91 = vector.extract_strided_slice %17 {offsets = [128, 0], sizes = [64, 256], strides = [1, 1]} : vector<256x256xbf16> to vector<64x256xbf16>
    %cst_34 = arith.constant dense<0.000000e+00> : vector<8x256xf32>
    %92 = tpu.matmul %90, %91, %cst_34 {dimension_numbers = #tpu.dot_dimension_numbers<[1], [0], [0], [1], [0, 0, 1, 1], [], []>} : vector<8x64xbf16>, vector<64x256xbf16>, vector<8x256xf32> -> vector<8x256xf32>
    %93 = arith.addf %68, %92 : vector<8x256xf32>
    %94 = vector.extract_strided_slice %15 {offsets = [0, 192], sizes = [8, 64], strides = [1, 1]} : vector<8x768xf32> to vector<8x64xf32>
    %95 = arith.truncf %94 : vector<8x64xf32> to vector<8x64xbf16>
    %96 = vector.extract_strided_slice %15 {offsets = [0, 448], sizes = [8, 64], strides = [1, 1]} : vector<8x768xf32> to vector<8x64xf32>
    %97 = arith.truncf %96 : vector<8x64xf32> to vector<8x64xbf16>
    %98 = vector.extract_strided_slice %15 {offsets = [0, 704], sizes = [8, 64], strides = [1, 1]} : vector<8x768xf32> to vector<8x64xf32>
    %99 = arith.truncf %98 : vector<8x64xf32> to vector<8x64xbf16>
    %cst_35 = arith.constant dense<0.000000e+00> : vector<8x8xf32>
    %100 = tpu.matmul %95, %97, %cst_35 {dimension_numbers = #tpu.dot_dimension_numbers<[1], [1], [0], [0], [0, 0, 1, 0], [], []>} : vector<8x64xbf16>, vector<8x64xbf16>, vector<8x8xf32> -> vector<8x8xf32>
    %cst_36 = arith.constant 1.250000e-01 : f32
    %101 = vector.broadcast %cst_36 : f32 to vector<8x8xf32>
    %102 = arith.mulf %100, %101 : vector<8x8xf32>
    %cst_37 = arith.constant dense<0xFF800000> : vector<8xf32>
    %103 = vector.multi_reduction <maximumf>, %102, %cst_37 [1] : vector<8x8xf32> to vector<8xf32>
    %104 = vector.shape_cast %103 : vector<8xf32> to vector<8x1xf32>
    %105 = vector.broadcast %104 : vector<8x1xf32> to vector<8x8xf32>
    %106 = arith.subf %102, %105 : vector<8x8xf32>
    %107 = math.exp %106 : vector<8x8xf32>
    %cst_38 = arith.constant dense<0.000000e+00> : vector<8xf32>
    %108 = vector.multi_reduction <add>, %107, %cst_38 [1] : vector<8x8xf32> to vector<8xf32>
    %109 = vector.shape_cast %108 : vector<8xf32> to vector<8x1xf32>
    %110 = tpu.reciprocal %109 {approx = true} : vector<8x1xf32> -> vector<8x1xf32>
    %111 = vector.broadcast %110 : vector<8x1xf32> to vector<8x8xf32>
    %112 = arith.mulf %107, %111 : vector<8x8xf32>
    %113 = arith.truncf %112 : vector<8x8xf32> to vector<8x8xbf16>
    %cst_39 = arith.constant dense<0.000000e+00> : vector<8x64xf32>
    %114 = tpu.matmul %113, %99, %cst_39 {dimension_numbers = #tpu.dot_dimension_numbers<[1], [0], [0], [1], [0, 0, 1, 1], [], []>} : vector<8x8xbf16>, vector<8x64xbf16>, vector<8x64xf32> -> vector<8x64xf32>
    %115 = arith.truncf %114 : vector<8x64xf32> to vector<8x64xbf16>
    %116 = vector.extract_strided_slice %17 {offsets = [192, 0], sizes = [64, 256], strides = [1, 1]} : vector<256x256xbf16> to vector<64x256xbf16>
    %cst_40 = arith.constant dense<0.000000e+00> : vector<8x256xf32>
    %117 = tpu.matmul %115, %116, %cst_40 {dimension_numbers = #tpu.dot_dimension_numbers<[1], [0], [0], [1], [0, 0, 1, 1], [], []>} : vector<8x64xbf16>, vector<64x256xbf16>, vector<8x256xf32> -> vector<8x256xf32>
    %118 = arith.addf %93, %117 : vector<8x256xf32>
    %c0_41 = arith.constant 0 : index
    %c0_42 = arith.constant 0 : index
    %c0_43 = arith.constant 0 : index
    %119 = vector.load %arg7[%c0_41, %c0_42, %c0_43] : memref<2x1x256xf32, #tpu.memory_space<vmem>>, vector<1x1x256xf32>
    %120 = vector.shape_cast %119 : vector<1x1x256xf32> to vector<1x256xf32>
    %121 = vector.broadcast %120 : vector<1x256xf32> to vector<8x256xf32>
    %122 = arith.addf %118, %121 : vector<8x256xf32>
    %123 = arith.addf %7, %122 : vector<8x256xf32>
    %c0_44 = arith.constant 0 : index
    %c0_45 = arith.constant 0 : index
    %c0_46 = arith.constant 0 : index
    %124 = vector.load %arg8[%c0_44, %c0_45, %c0_46] : memref<2x1x256xf32, #tpu.memory_space<vmem>>, vector<1x1x256xf32>
    %125 = vector.shape_cast %124 : vector<1x1x256xf32> to vector<1x256xf32>
    %c0_47 = arith.constant 0 : index
    %c0_48 = arith.constant 0 : index
    %c0_49 = arith.constant 0 : index
    %126 = vector.load %arg9[%c0_47, %c0_48, %c0_49] : memref<2x1x256xf32, #tpu.memory_space<vmem>>, vector<1x1x256xf32>
    %127 = vector.shape_cast %126 : vector<1x1x256xf32> to vector<1x256xf32>
    %cst_50 = arith.constant dense<0.000000e+00> : vector<8xf32>
    %128 = vector.multi_reduction <add>, %123, %cst_50 [1] : vector<8x256xf32> to vector<8xf32>
    %129 = vector.shape_cast %128 : vector<8xf32> to vector<8x1xf32>
    %cst_51 = arith.constant 2.560000e+02 : f32
    %130 = vector.broadcast %cst_51 : f32 to vector<8x1xf32>
    %131 = arith.divf %129, %130 : vector<8x1xf32>
    %132 = vector.broadcast %131 : vector<8x1xf32> to vector<8x256xf32>
    %133 = arith.subf %123, %132 : vector<8x256xf32>
    %134 = arith.mulf %133, %133 : vector<8x256xf32>
    %cst_52 = arith.constant dense<0.000000e+00> : vector<8xf32>
    %135 = vector.multi_reduction <add>, %134, %cst_52 [1] : vector<8x256xf32> to vector<8xf32>
    %136 = vector.shape_cast %135 : vector<8xf32> to vector<8x1xf32>
    %cst_53 = arith.constant 2.560000e+02 : f32
    %137 = vector.broadcast %cst_53 : f32 to vector<8x1xf32>
    %138 = arith.divf %136, %137 : vector<8x1xf32>
    %cst_54 = arith.constant 9.99999974E-6 : f32
    %139 = vector.broadcast %cst_54 : f32 to vector<8x1xf32>
    %140 = arith.addf %138, %139 : vector<8x1xf32>
    %141 = math.rsqrt %140 : vector<8x1xf32>
    %142 = vector.broadcast %141 : vector<8x1xf32> to vector<8x256xf32>
    %143 = arith.mulf %133, %142 : vector<8x256xf32>
    %144 = vector.broadcast %125 : vector<1x256xf32> to vector<8x256xf32>
    %145 = arith.mulf %143, %144 : vector<8x256xf32>
    %146 = vector.broadcast %127 : vector<1x256xf32> to vector<8x256xf32>
    %147 = arith.addf %145, %146 : vector<8x256xf32>
    %c0_55 = arith.constant 0 : index
    %c0_56 = arith.constant 0 : index
    %c0_57 = arith.constant 0 : index
    %148 = vector.load %arg10[%c0_55, %c0_56, %c0_57] : memref<2x256x2048xbf16, #tpu.memory_space<vmem>>, vector<1x256x2048xbf16>
    %149 = vector.shape_cast %148 : vector<1x256x2048xbf16> to vector<256x2048xbf16>
    %150 = arith.truncf %147 : vector<8x256xf32> to vector<8x256xbf16>
    %cst_58 = arith.constant dense<0.000000e+00> : vector<8x2048xf32>
    %151 = tpu.matmul %150, %149, %cst_58 {dimension_numbers = #tpu.dot_dimension_numbers<[1], [0], [0], [1], [0, 0, 1, 1], [], []>} : vector<8x256xbf16>, vector<256x2048xbf16>, vector<8x2048xf32> -> vector<8x2048xf32>
    %c0_59 = arith.constant 0 : index
    %c0_60 = arith.constant 0 : index
    %c0_61 = arith.constant 0 : index
    %152 = vector.load %arg11[%c0_59, %c0_60, %c0_61] : memref<2x1x2048xf32, #tpu.memory_space<vmem>>, vector<1x1x2048xf32>
    %153 = vector.shape_cast %152 : vector<1x1x2048xf32> to vector<1x2048xf32>
    %154 = vector.broadcast %153 : vector<1x2048xf32> to vector<8x2048xf32>
    %155 = arith.addf %151, %154 : vector<8x2048xf32>
    %cst_62 = arith.constant 0.000000e+00 : f32
    %156 = vector.broadcast %cst_62 : f32 to vector<8x2048xf32>
    %157 = arith.maximumf %155, %156 : vector<8x2048xf32>
    %c0_63 = arith.constant 0 : index
    %c0_64 = arith.constant 0 : index
    %c0_65 = arith.constant 0 : index
    %158 = vector.load %arg12[%c0_63, %c0_64, %c0_65] : memref<2x2048x256xbf16, #tpu.memory_space<vmem>>, vector<1x2048x256xbf16>
    %159 = vector.shape_cast %158 : vector<1x2048x256xbf16> to vector<2048x256xbf16>
    %160 = arith.truncf %157 : vector<8x2048xf32> to vector<8x2048xbf16>
    %cst_66 = arith.constant dense<0.000000e+00> : vector<8x256xf32>
    %161 = tpu.matmul %160, %159, %cst_66 {dimension_numbers = #tpu.dot_dimension_numbers<[1], [0], [0], [1], [0, 0, 1, 1], [], []>} : vector<8x2048xbf16>, vector<2048x256xbf16>, vector<8x256xf32> -> vector<8x256xf32>
    %c0_67 = arith.constant 0 : index
    %c0_68 = arith.constant 0 : index
    %c0_69 = arith.constant 0 : index
    %162 = vector.load %arg13[%c0_67, %c0_68, %c0_69] : memref<2x1x256xf32, #tpu.memory_space<vmem>>, vector<1x1x256xf32>
    %163 = vector.shape_cast %162 : vector<1x1x256xf32> to vector<1x256xf32>
    %164 = vector.broadcast %163 : vector<1x256xf32> to vector<8x256xf32>
    %165 = arith.addf %161, %164 : vector<8x256xf32>
    %166 = arith.addf %147, %165 : vector<8x256xf32>
    %c0_70 = arith.constant 0 : index
    %c0_71 = arith.constant 0 : index
    %c0_72 = arith.constant 0 : index
    %167 = vector.load %arg14[%c0_70, %c0_71, %c0_72] : memref<2x1x256xf32, #tpu.memory_space<vmem>>, vector<1x1x256xf32>
    %168 = vector.shape_cast %167 : vector<1x1x256xf32> to vector<1x256xf32>
    %c0_73 = arith.constant 0 : index
    %c0_74 = arith.constant 0 : index
    %c0_75 = arith.constant 0 : index
    %169 = vector.load %arg15[%c0_73, %c0_74, %c0_75] : memref<2x1x256xf32, #tpu.memory_space<vmem>>, vector<1x1x256xf32>
    %170 = vector.shape_cast %169 : vector<1x1x256xf32> to vector<1x256xf32>
    %cst_76 = arith.constant dense<0.000000e+00> : vector<8xf32>
    %171 = vector.multi_reduction <add>, %166, %cst_76 [1] : vector<8x256xf32> to vector<8xf32>
    %172 = vector.shape_cast %171 : vector<8xf32> to vector<8x1xf32>
    %cst_77 = arith.constant 2.560000e+02 : f32
    %173 = vector.broadcast %cst_77 : f32 to vector<8x1xf32>
    %174 = arith.divf %172, %173 : vector<8x1xf32>
    %175 = vector.broadcast %174 : vector<8x1xf32> to vector<8x256xf32>
    %176 = arith.subf %166, %175 : vector<8x256xf32>
    %177 = arith.mulf %176, %176 : vector<8x256xf32>
    %cst_78 = arith.constant dense<0.000000e+00> : vector<8xf32>
    %178 = vector.multi_reduction <add>, %177, %cst_78 [1] : vector<8x256xf32> to vector<8xf32>
    %179 = vector.shape_cast %178 : vector<8xf32> to vector<8x1xf32>
    %cst_79 = arith.constant 2.560000e+02 : f32
    %180 = vector.broadcast %cst_79 : f32 to vector<8x1xf32>
    %181 = arith.divf %179, %180 : vector<8x1xf32>
    %cst_80 = arith.constant 9.99999974E-6 : f32
    %182 = vector.broadcast %cst_80 : f32 to vector<8x1xf32>
    %183 = arith.addf %181, %182 : vector<8x1xf32>
    %184 = math.rsqrt %183 : vector<8x1xf32>
    %185 = vector.broadcast %184 : vector<8x1xf32> to vector<8x256xf32>
    %186 = arith.mulf %176, %185 : vector<8x256xf32>
    %187 = vector.broadcast %168 : vector<1x256xf32> to vector<8x256xf32>
    %188 = arith.mulf %186, %187 : vector<8x256xf32>
    %189 = vector.broadcast %170 : vector<1x256xf32> to vector<8x256xf32>
    %190 = arith.addf %188, %189 : vector<8x256xf32>
    %c1 = arith.constant 1 : index
    %c0_81 = arith.constant 0 : index
    %c0_82 = arith.constant 0 : index
    %191 = vector.load %arg4[%c1, %c0_81, %c0_82] : memref<2x256x768xbf16, #tpu.memory_space<vmem>>, vector<1x256x768xbf16>
    %192 = vector.shape_cast %191 : vector<1x256x768xbf16> to vector<256x768xbf16>
    %193 = arith.truncf %190 : vector<8x256xf32> to vector<8x256xbf16>
    %cst_83 = arith.constant dense<0.000000e+00> : vector<8x768xf32>
    %194 = tpu.matmul %193, %192, %cst_83 {dimension_numbers = #tpu.dot_dimension_numbers<[1], [0], [0], [1], [0, 0, 1, 1], [], []>} : vector<8x256xbf16>, vector<256x768xbf16>, vector<8x768xf32> -> vector<8x768xf32>
    %c1_84 = arith.constant 1 : index
    %c0_85 = arith.constant 0 : index
    %c0_86 = arith.constant 0 : index
    %195 = vector.load %arg5[%c1_84, %c0_85, %c0_86] : memref<2x1x768xf32, #tpu.memory_space<vmem>>, vector<1x1x768xf32>
    %196 = vector.shape_cast %195 : vector<1x1x768xf32> to vector<1x768xf32>
    %197 = vector.broadcast %196 : vector<1x768xf32> to vector<8x768xf32>
    %198 = arith.addf %194, %197 : vector<8x768xf32>
    %c1_87 = arith.constant 1 : index
    %c0_88 = arith.constant 0 : index
    %c0_89 = arith.constant 0 : index
    %199 = vector.load %arg6[%c1_87, %c0_88, %c0_89] : memref<2x256x256xbf16, #tpu.memory_space<vmem>>, vector<1x256x256xbf16>
    %200 = vector.shape_cast %199 : vector<1x256x256xbf16> to vector<256x256xbf16>
    %cst_90 = arith.constant 0.000000e+00 : f32
    %201 = vector.broadcast %cst_90 : f32 to vector<8x256xf32>
    %202 = vector.extract_strided_slice %198 {offsets = [0, 0], sizes = [8, 64], strides = [1, 1]} : vector<8x768xf32> to vector<8x64xf32>
    %203 = arith.truncf %202 : vector<8x64xf32> to vector<8x64xbf16>
    %204 = vector.extract_strided_slice %198 {offsets = [0, 256], sizes = [8, 64], strides = [1, 1]} : vector<8x768xf32> to vector<8x64xf32>
    %205 = arith.truncf %204 : vector<8x64xf32> to vector<8x64xbf16>
    %206 = vector.extract_strided_slice %198 {offsets = [0, 512], sizes = [8, 64], strides = [1, 1]} : vector<8x768xf32> to vector<8x64xf32>
    %207 = arith.truncf %206 : vector<8x64xf32> to vector<8x64xbf16>
    %cst_91 = arith.constant dense<0.000000e+00> : vector<8x8xf32>
    %208 = tpu.matmul %203, %205, %cst_91 {dimension_numbers = #tpu.dot_dimension_numbers<[1], [1], [0], [0], [0, 0, 1, 0], [], []>} : vector<8x64xbf16>, vector<8x64xbf16>, vector<8x8xf32> -> vector<8x8xf32>
    %cst_92 = arith.constant 1.250000e-01 : f32
    %209 = vector.broadcast %cst_92 : f32 to vector<8x8xf32>
    %210 = arith.mulf %208, %209 : vector<8x8xf32>
    %cst_93 = arith.constant dense<0xFF800000> : vector<8xf32>
    %211 = vector.multi_reduction <maximumf>, %210, %cst_93 [1] : vector<8x8xf32> to vector<8xf32>
    %212 = vector.shape_cast %211 : vector<8xf32> to vector<8x1xf32>
    %213 = vector.broadcast %212 : vector<8x1xf32> to vector<8x8xf32>
    %214 = arith.subf %210, %213 : vector<8x8xf32>
    %215 = math.exp %214 : vector<8x8xf32>
    %cst_94 = arith.constant dense<0.000000e+00> : vector<8xf32>
    %216 = vector.multi_reduction <add>, %215, %cst_94 [1] : vector<8x8xf32> to vector<8xf32>
    %217 = vector.shape_cast %216 : vector<8xf32> to vector<8x1xf32>
    %218 = tpu.reciprocal %217 {approx = true} : vector<8x1xf32> -> vector<8x1xf32>
    %219 = vector.broadcast %218 : vector<8x1xf32> to vector<8x8xf32>
    %220 = arith.mulf %215, %219 : vector<8x8xf32>
    %221 = arith.truncf %220 : vector<8x8xf32> to vector<8x8xbf16>
    %cst_95 = arith.constant dense<0.000000e+00> : vector<8x64xf32>
    %222 = tpu.matmul %221, %207, %cst_95 {dimension_numbers = #tpu.dot_dimension_numbers<[1], [0], [0], [1], [0, 0, 1, 1], [], []>} : vector<8x8xbf16>, vector<8x64xbf16>, vector<8x64xf32> -> vector<8x64xf32>
    %223 = arith.truncf %222 : vector<8x64xf32> to vector<8x64xbf16>
    %224 = vector.extract_strided_slice %200 {offsets = [0, 0], sizes = [64, 256], strides = [1, 1]} : vector<256x256xbf16> to vector<64x256xbf16>
    %cst_96 = arith.constant dense<0.000000e+00> : vector<8x256xf32>
    %225 = tpu.matmul %223, %224, %cst_96 {dimension_numbers = #tpu.dot_dimension_numbers<[1], [0], [0], [1], [0, 0, 1, 1], [], []>} : vector<8x64xbf16>, vector<64x256xbf16>, vector<8x256xf32> -> vector<8x256xf32>
    %226 = arith.addf %201, %225 : vector<8x256xf32>
    %227 = vector.extract_strided_slice %198 {offsets = [0, 64], sizes = [8, 64], strides = [1, 1]} : vector<8x768xf32> to vector<8x64xf32>
    %228 = arith.truncf %227 : vector<8x64xf32> to vector<8x64xbf16>
    %229 = vector.extract_strided_slice %198 {offsets = [0, 320], sizes = [8, 64], strides = [1, 1]} : vector<8x768xf32> to vector<8x64xf32>
    %230 = arith.truncf %229 : vector<8x64xf32> to vector<8x64xbf16>
    %231 = vector.extract_strided_slice %198 {offsets = [0, 576], sizes = [8, 64], strides = [1, 1]} : vector<8x768xf32> to vector<8x64xf32>
    %232 = arith.truncf %231 : vector<8x64xf32> to vector<8x64xbf16>
    %cst_97 = arith.constant dense<0.000000e+00> : vector<8x8xf32>
    %233 = tpu.matmul %228, %230, %cst_97 {dimension_numbers = #tpu.dot_dimension_numbers<[1], [1], [0], [0], [0, 0, 1, 0], [], []>} : vector<8x64xbf16>, vector<8x64xbf16>, vector<8x8xf32> -> vector<8x8xf32>
    %cst_98 = arith.constant 1.250000e-01 : f32
    %234 = vector.broadcast %cst_98 : f32 to vector<8x8xf32>
    %235 = arith.mulf %233, %234 : vector<8x8xf32>
    %cst_99 = arith.constant dense<0xFF800000> : vector<8xf32>
    %236 = vector.multi_reduction <maximumf>, %235, %cst_99 [1] : vector<8x8xf32> to vector<8xf32>
    %237 = vector.shape_cast %236 : vector<8xf32> to vector<8x1xf32>
    %238 = vector.broadcast %237 : vector<8x1xf32> to vector<8x8xf32>
    %239 = arith.subf %235, %238 : vector<8x8xf32>
    %240 = math.exp %239 : vector<8x8xf32>
    %cst_100 = arith.constant dense<0.000000e+00> : vector<8xf32>
    %241 = vector.multi_reduction <add>, %240, %cst_100 [1] : vector<8x8xf32> to vector<8xf32>
    %242 = vector.shape_cast %241 : vector<8xf32> to vector<8x1xf32>
    %243 = tpu.reciprocal %242 {approx = true} : vector<8x1xf32> -> vector<8x1xf32>
    %244 = vector.broadcast %243 : vector<8x1xf32> to vector<8x8xf32>
    %245 = arith.mulf %240, %244 : vector<8x8xf32>
    %246 = arith.truncf %245 : vector<8x8xf32> to vector<8x8xbf16>
    %cst_101 = arith.constant dense<0.000000e+00> : vector<8x64xf32>
    %247 = tpu.matmul %246, %232, %cst_101 {dimension_numbers = #tpu.dot_dimension_numbers<[1], [0], [0], [1], [0, 0, 1, 1], [], []>} : vector<8x8xbf16>, vector<8x64xbf16>, vector<8x64xf32> -> vector<8x64xf32>
    %248 = arith.truncf %247 : vector<8x64xf32> to vector<8x64xbf16>
    %249 = vector.extract_strided_slice %200 {offsets = [64, 0], sizes = [64, 256], strides = [1, 1]} : vector<256x256xbf16> to vector<64x256xbf16>
    %cst_102 = arith.constant dense<0.000000e+00> : vector<8x256xf32>
    %250 = tpu.matmul %248, %249, %cst_102 {dimension_numbers = #tpu.dot_dimension_numbers<[1], [0], [0], [1], [0, 0, 1, 1], [], []>} : vector<8x64xbf16>, vector<64x256xbf16>, vector<8x256xf32> -> vector<8x256xf32>
    %251 = arith.addf %226, %250 : vector<8x256xf32>
    %252 = vector.extract_strided_slice %198 {offsets = [0, 128], sizes = [8, 64], strides = [1, 1]} : vector<8x768xf32> to vector<8x64xf32>
    %253 = arith.truncf %252 : vector<8x64xf32> to vector<8x64xbf16>
    %254 = vector.extract_strided_slice %198 {offsets = [0, 384], sizes = [8, 64], strides = [1, 1]} : vector<8x768xf32> to vector<8x64xf32>
    %255 = arith.truncf %254 : vector<8x64xf32> to vector<8x64xbf16>
    %256 = vector.extract_strided_slice %198 {offsets = [0, 640], sizes = [8, 64], strides = [1, 1]} : vector<8x768xf32> to vector<8x64xf32>
    %257 = arith.truncf %256 : vector<8x64xf32> to vector<8x64xbf16>
    %cst_103 = arith.constant dense<0.000000e+00> : vector<8x8xf32>
    %258 = tpu.matmul %253, %255, %cst_103 {dimension_numbers = #tpu.dot_dimension_numbers<[1], [1], [0], [0], [0, 0, 1, 0], [], []>} : vector<8x64xbf16>, vector<8x64xbf16>, vector<8x8xf32> -> vector<8x8xf32>
    %cst_104 = arith.constant 1.250000e-01 : f32
    %259 = vector.broadcast %cst_104 : f32 to vector<8x8xf32>
    %260 = arith.mulf %258, %259 : vector<8x8xf32>
    %cst_105 = arith.constant dense<0xFF800000> : vector<8xf32>
    %261 = vector.multi_reduction <maximumf>, %260, %cst_105 [1] : vector<8x8xf32> to vector<8xf32>
    %262 = vector.shape_cast %261 : vector<8xf32> to vector<8x1xf32>
    %263 = vector.broadcast %262 : vector<8x1xf32> to vector<8x8xf32>
    %264 = arith.subf %260, %263 : vector<8x8xf32>
    %265 = math.exp %264 : vector<8x8xf32>
    %cst_106 = arith.constant dense<0.000000e+00> : vector<8xf32>
    %266 = vector.multi_reduction <add>, %265, %cst_106 [1] : vector<8x8xf32> to vector<8xf32>
    %267 = vector.shape_cast %266 : vector<8xf32> to vector<8x1xf32>
    %268 = tpu.reciprocal %267 {approx = true} : vector<8x1xf32> -> vector<8x1xf32>
    %269 = vector.broadcast %268 : vector<8x1xf32> to vector<8x8xf32>
    %270 = arith.mulf %265, %269 : vector<8x8xf32>
    %271 = arith.truncf %270 : vector<8x8xf32> to vector<8x8xbf16>
    %cst_107 = arith.constant dense<0.000000e+00> : vector<8x64xf32>
    %272 = tpu.matmul %271, %257, %cst_107 {dimension_numbers = #tpu.dot_dimension_numbers<[1], [0], [0], [1], [0, 0, 1, 1], [], []>} : vector<8x8xbf16>, vector<8x64xbf16>, vector<8x64xf32> -> vector<8x64xf32>
    %273 = arith.truncf %272 : vector<8x64xf32> to vector<8x64xbf16>
    %274 = vector.extract_strided_slice %200 {offsets = [128, 0], sizes = [64, 256], strides = [1, 1]} : vector<256x256xbf16> to vector<64x256xbf16>
    %cst_108 = arith.constant dense<0.000000e+00> : vector<8x256xf32>
    %275 = tpu.matmul %273, %274, %cst_108 {dimension_numbers = #tpu.dot_dimension_numbers<[1], [0], [0], [1], [0, 0, 1, 1], [], []>} : vector<8x64xbf16>, vector<64x256xbf16>, vector<8x256xf32> -> vector<8x256xf32>
    %276 = arith.addf %251, %275 : vector<8x256xf32>
    %277 = vector.extract_strided_slice %198 {offsets = [0, 192], sizes = [8, 64], strides = [1, 1]} : vector<8x768xf32> to vector<8x64xf32>
    %278 = arith.truncf %277 : vector<8x64xf32> to vector<8x64xbf16>
    %279 = vector.extract_strided_slice %198 {offsets = [0, 448], sizes = [8, 64], strides = [1, 1]} : vector<8x768xf32> to vector<8x64xf32>
    %280 = arith.truncf %279 : vector<8x64xf32> to vector<8x64xbf16>
    %281 = vector.extract_strided_slice %198 {offsets = [0, 704], sizes = [8, 64], strides = [1, 1]} : vector<8x768xf32> to vector<8x64xf32>
    %282 = arith.truncf %281 : vector<8x64xf32> to vector<8x64xbf16>
    %cst_109 = arith.constant dense<0.000000e+00> : vector<8x8xf32>
    %283 = tpu.matmul %278, %280, %cst_109 {dimension_numbers = #tpu.dot_dimension_numbers<[1], [1], [0], [0], [0, 0, 1, 0], [], []>} : vector<8x64xbf16>, vector<8x64xbf16>, vector<8x8xf32> -> vector<8x8xf32>
    %cst_110 = arith.constant 1.250000e-01 : f32
    %284 = vector.broadcast %cst_110 : f32 to vector<8x8xf32>
    %285 = arith.mulf %283, %284 : vector<8x8xf32>
    %cst_111 = arith.constant dense<0xFF800000> : vector<8xf32>
    %286 = vector.multi_reduction <maximumf>, %285, %cst_111 [1] : vector<8x8xf32> to vector<8xf32>
    %287 = vector.shape_cast %286 : vector<8xf32> to vector<8x1xf32>
    %288 = vector.broadcast %287 : vector<8x1xf32> to vector<8x8xf32>
    %289 = arith.subf %285, %288 : vector<8x8xf32>
    %290 = math.exp %289 : vector<8x8xf32>
    %cst_112 = arith.constant dense<0.000000e+00> : vector<8xf32>
    %291 = vector.multi_reduction <add>, %290, %cst_112 [1] : vector<8x8xf32> to vector<8xf32>
    %292 = vector.shape_cast %291 : vector<8xf32> to vector<8x1xf32>
    %293 = tpu.reciprocal %292 {approx = true} : vector<8x1xf32> -> vector<8x1xf32>
    %294 = vector.broadcast %293 : vector<8x1xf32> to vector<8x8xf32>
    %295 = arith.mulf %290, %294 : vector<8x8xf32>
    %296 = arith.truncf %295 : vector<8x8xf32> to vector<8x8xbf16>
    %cst_113 = arith.constant dense<0.000000e+00> : vector<8x64xf32>
    %297 = tpu.matmul %296, %282, %cst_113 {dimension_numbers = #tpu.dot_dimension_numbers<[1], [0], [0], [1], [0, 0, 1, 1], [], []>} : vector<8x8xbf16>, vector<8x64xbf16>, vector<8x64xf32> -> vector<8x64xf32>
    %298 = arith.truncf %297 : vector<8x64xf32> to vector<8x64xbf16>
    %299 = vector.extract_strided_slice %200 {offsets = [192, 0], sizes = [64, 256], strides = [1, 1]} : vector<256x256xbf16> to vector<64x256xbf16>
    %cst_114 = arith.constant dense<0.000000e+00> : vector<8x256xf32>
    %300 = tpu.matmul %298, %299, %cst_114 {dimension_numbers = #tpu.dot_dimension_numbers<[1], [0], [0], [1], [0, 0, 1, 1], [], []>} : vector<8x64xbf16>, vector<64x256xbf16>, vector<8x256xf32> -> vector<8x256xf32>
    %301 = arith.addf %276, %300 : vector<8x256xf32>
    %c1_115 = arith.constant 1 : index
    %c0_116 = arith.constant 0 : index
    %c0_117 = arith.constant 0 : index
    %302 = vector.load %arg7[%c1_115, %c0_116, %c0_117] : memref<2x1x256xf32, #tpu.memory_space<vmem>>, vector<1x1x256xf32>
    %303 = vector.shape_cast %302 : vector<1x1x256xf32> to vector<1x256xf32>
    %304 = vector.broadcast %303 : vector<1x256xf32> to vector<8x256xf32>
    %305 = arith.addf %301, %304 : vector<8x256xf32>
    %306 = arith.addf %190, %305 : vector<8x256xf32>
    %c1_118 = arith.constant 1 : index
    %c0_119 = arith.constant 0 : index
    %c0_120 = arith.constant 0 : index
    %307 = vector.load %arg8[%c1_118, %c0_119, %c0_120] : memref<2x1x256xf32, #tpu.memory_space<vmem>>, vector<1x1x256xf32>
    %308 = vector.shape_cast %307 : vector<1x1x256xf32> to vector<1x256xf32>
    %c1_121 = arith.constant 1 : index
    %c0_122 = arith.constant 0 : index
    %c0_123 = arith.constant 0 : index
    %309 = vector.load %arg9[%c1_121, %c0_122, %c0_123] : memref<2x1x256xf32, #tpu.memory_space<vmem>>, vector<1x1x256xf32>
    %310 = vector.shape_cast %309 : vector<1x1x256xf32> to vector<1x256xf32>
    %cst_124 = arith.constant dense<0.000000e+00> : vector<8xf32>
    %311 = vector.multi_reduction <add>, %306, %cst_124 [1] : vector<8x256xf32> to vector<8xf32>
    %312 = vector.shape_cast %311 : vector<8xf32> to vector<8x1xf32>
    %cst_125 = arith.constant 2.560000e+02 : f32
    %313 = vector.broadcast %cst_125 : f32 to vector<8x1xf32>
    %314 = arith.divf %312, %313 : vector<8x1xf32>
    %315 = vector.broadcast %314 : vector<8x1xf32> to vector<8x256xf32>
    %316 = arith.subf %306, %315 : vector<8x256xf32>
    %317 = arith.mulf %316, %316 : vector<8x256xf32>
    %cst_126 = arith.constant dense<0.000000e+00> : vector<8xf32>
    %318 = vector.multi_reduction <add>, %317, %cst_126 [1] : vector<8x256xf32> to vector<8xf32>
    %319 = vector.shape_cast %318 : vector<8xf32> to vector<8x1xf32>
    %cst_127 = arith.constant 2.560000e+02 : f32
    %320 = vector.broadcast %cst_127 : f32 to vector<8x1xf32>
    %321 = arith.divf %319, %320 : vector<8x1xf32>
    %cst_128 = arith.constant 9.99999974E-6 : f32
    %322 = vector.broadcast %cst_128 : f32 to vector<8x1xf32>
    %323 = arith.addf %321, %322 : vector<8x1xf32>
    %324 = math.rsqrt %323 : vector<8x1xf32>
    %325 = vector.broadcast %324 : vector<8x1xf32> to vector<8x256xf32>
    %326 = arith.mulf %316, %325 : vector<8x256xf32>
    %327 = vector.broadcast %308 : vector<1x256xf32> to vector<8x256xf32>
    %328 = arith.mulf %326, %327 : vector<8x256xf32>
    %329 = vector.broadcast %310 : vector<1x256xf32> to vector<8x256xf32>
    %330 = arith.addf %328, %329 : vector<8x256xf32>
    %c1_129 = arith.constant 1 : index
    %c0_130 = arith.constant 0 : index
    %c0_131 = arith.constant 0 : index
    %331 = vector.load %arg10[%c1_129, %c0_130, %c0_131] : memref<2x256x2048xbf16, #tpu.memory_space<vmem>>, vector<1x256x2048xbf16>
    %332 = vector.shape_cast %331 : vector<1x256x2048xbf16> to vector<256x2048xbf16>
    %333 = arith.truncf %330 : vector<8x256xf32> to vector<8x256xbf16>
    %cst_132 = arith.constant dense<0.000000e+00> : vector<8x2048xf32>
    %334 = tpu.matmul %333, %332, %cst_132 {dimension_numbers = #tpu.dot_dimension_numbers<[1], [0], [0], [1], [0, 0, 1, 1], [], []>} : vector<8x256xbf16>, vector<256x2048xbf16>, vector<8x2048xf32> -> vector<8x2048xf32>
    %c1_133 = arith.constant 1 : index
    %c0_134 = arith.constant 0 : index
    %c0_135 = arith.constant 0 : index
    %335 = vector.load %arg11[%c1_133, %c0_134, %c0_135] : memref<2x1x2048xf32, #tpu.memory_space<vmem>>, vector<1x1x2048xf32>
    %336 = vector.shape_cast %335 : vector<1x1x2048xf32> to vector<1x2048xf32>
    %337 = vector.broadcast %336 : vector<1x2048xf32> to vector<8x2048xf32>
    %338 = arith.addf %334, %337 : vector<8x2048xf32>
    %cst_136 = arith.constant 0.000000e+00 : f32
    %339 = vector.broadcast %cst_136 : f32 to vector<8x2048xf32>
    %340 = arith.maximumf %338, %339 : vector<8x2048xf32>
    %c1_137 = arith.constant 1 : index
    %c0_138 = arith.constant 0 : index
    %c0_139 = arith.constant 0 : index
    %341 = vector.load %arg12[%c1_137, %c0_138, %c0_139] : memref<2x2048x256xbf16, #tpu.memory_space<vmem>>, vector<1x2048x256xbf16>
    %342 = vector.shape_cast %341 : vector<1x2048x256xbf16> to vector<2048x256xbf16>
    %343 = arith.truncf %340 : vector<8x2048xf32> to vector<8x2048xbf16>
    %cst_140 = arith.constant dense<0.000000e+00> : vector<8x256xf32>
    %344 = tpu.matmul %343, %342, %cst_140 {dimension_numbers = #tpu.dot_dimension_numbers<[1], [0], [0], [1], [0, 0, 1, 1], [], []>} : vector<8x2048xbf16>, vector<2048x256xbf16>, vector<8x256xf32> -> vector<8x256xf32>
    %c1_141 = arith.constant 1 : index
    %c0_142 = arith.constant 0 : index
    %c0_143 = arith.constant 0 : index
    %345 = vector.load %arg13[%c1_141, %c0_142, %c0_143] : memref<2x1x256xf32, #tpu.memory_space<vmem>>, vector<1x1x256xf32>
    %346 = vector.shape_cast %345 : vector<1x1x256xf32> to vector<1x256xf32>
    %347 = vector.broadcast %346 : vector<1x256xf32> to vector<8x256xf32>
    %348 = arith.addf %344, %347 : vector<8x256xf32>
    %349 = arith.addf %330, %348 : vector<8x256xf32>
    %c1_144 = arith.constant 1 : index
    %c0_145 = arith.constant 0 : index
    %c0_146 = arith.constant 0 : index
    %350 = vector.load %arg14[%c1_144, %c0_145, %c0_146] : memref<2x1x256xf32, #tpu.memory_space<vmem>>, vector<1x1x256xf32>
    %351 = vector.shape_cast %350 : vector<1x1x256xf32> to vector<1x256xf32>
    %c1_147 = arith.constant 1 : index
    %c0_148 = arith.constant 0 : index
    %c0_149 = arith.constant 0 : index
    %352 = vector.load %arg15[%c1_147, %c0_148, %c0_149] : memref<2x1x256xf32, #tpu.memory_space<vmem>>, vector<1x1x256xf32>
    %353 = vector.shape_cast %352 : vector<1x1x256xf32> to vector<1x256xf32>
    %cst_150 = arith.constant dense<0.000000e+00> : vector<8xf32>
    %354 = vector.multi_reduction <add>, %349, %cst_150 [1] : vector<8x256xf32> to vector<8xf32>
    %355 = vector.shape_cast %354 : vector<8xf32> to vector<8x1xf32>
    %cst_151 = arith.constant 2.560000e+02 : f32
    %356 = vector.broadcast %cst_151 : f32 to vector<8x1xf32>
    %357 = arith.divf %355, %356 : vector<8x1xf32>
    %358 = vector.broadcast %357 : vector<8x1xf32> to vector<8x256xf32>
    %359 = arith.subf %349, %358 : vector<8x256xf32>
    %360 = arith.mulf %359, %359 : vector<8x256xf32>
    %cst_152 = arith.constant dense<0.000000e+00> : vector<8xf32>
    %361 = vector.multi_reduction <add>, %360, %cst_152 [1] : vector<8x256xf32> to vector<8xf32>
    %362 = vector.shape_cast %361 : vector<8xf32> to vector<8x1xf32>
    %cst_153 = arith.constant 2.560000e+02 : f32
    %363 = vector.broadcast %cst_153 : f32 to vector<8x1xf32>
    %364 = arith.divf %362, %363 : vector<8x1xf32>
    %cst_154 = arith.constant 9.99999974E-6 : f32
    %365 = vector.broadcast %cst_154 : f32 to vector<8x1xf32>
    %366 = arith.addf %364, %365 : vector<8x1xf32>
    %367 = math.rsqrt %366 : vector<8x1xf32>
    %368 = vector.broadcast %367 : vector<8x1xf32> to vector<8x256xf32>
    %369 = arith.mulf %359, %368 : vector<8x256xf32>
    %370 = vector.broadcast %351 : vector<1x256xf32> to vector<8x256xf32>
    %371 = arith.mulf %369, %370 : vector<8x256xf32>
    %372 = vector.broadcast %353 : vector<1x256xf32> to vector<8x256xf32>
    %373 = arith.addf %371, %372 : vector<8x256xf32>
    %c0_155 = arith.constant 0 : index
    %c0_156 = arith.constant 0 : index
    %374 = vector.load %arg16[%c0_155, %c0_156] : memref<256x128xbf16, #tpu.memory_space<vmem>>, vector<256x128xbf16>
    %375 = arith.truncf %373 : vector<8x256xf32> to vector<8x256xbf16>
    %cst_157 = arith.constant dense<0.000000e+00> : vector<8x128xf32>
    %376 = tpu.matmul %375, %374, %cst_157 {dimension_numbers = #tpu.dot_dimension_numbers<[1], [0], [0], [1], [0, 0, 1, 1], [], []>} : vector<8x256xbf16>, vector<256x128xbf16>, vector<8x128xf32> -> vector<8x128xf32>
    %c0_158 = arith.constant 0 : index
    %c0_159 = arith.constant 0 : index
    %377 = vector.load %arg17[%c0_158, %c0_159] : memref<1x128xf32, #tpu.memory_space<vmem>>, vector<1x128xf32>
    %378 = vector.broadcast %377 : vector<1x128xf32> to vector<8x128xf32>
    %379 = arith.addf %376, %378 : vector<8x128xf32>
    %c0_160 = arith.constant 0 : index
    %c0_161 = arith.constant 0 : index
    %c0_162 = arith.constant 0 : index
    %380 = vector.load %arg18[%c0_160, %c0_161, %c0_162] : memref<1x8x128xf32, #tpu.memory_space<vmem>>, vector<1x8x128xf32>
    %381 = vector.shape_cast %380 : vector<1x8x128xf32> to vector<8x128xf32>
    %382 = vector.shape_cast %379 : vector<8x128xf32> to vector<1x8x128xf32>
    tpu.vector_store %arg18[%c0_160, %c0_161, %c0_162], %382 {strides = array<i32>} : memref<1x8x128xf32, #tpu.memory_space<vmem>>, vector<1x8x128xf32>,
    return
  }
  func.func @transform_0(%arg0: i32) -> (i32, i32, i32) {
    %c0_i32 = arith.constant 0 : i32
    %c0_i32_0 = arith.constant 0 : i32
    %c0_i32_1 = arith.constant 0 : i32
    return %arg0, %c0_i32, %c0_i32_0 : i32, i32, i32
  }
  func.func @transform_1(%arg0: i32) -> (i32, i32) {
    %c0_i32 = arith.constant 0 : i32
    %c0_i32_0 = arith.constant 0 : i32
    %c0_i32_1 = arith.constant 0 : i32
    return %c0_i32, %c0_i32_0 : i32, i32
  }
  func.func @transform_2(%arg0: i32) -> (i32, i32) {
    %c0_i32 = arith.constant 0 : i32
    %c0_i32_0 = arith.constant 0 : i32
    %c0_i32_1 = arith.constant 0 : i32
    return %c0_i32, %c0_i32_0 : i32, i32
  }
  func.func @transform_3(%arg0: i32) -> (i32, i32, i32) {
    %c0_i32 = arith.constant 0 : i32
    %c0_i32_0 = arith.constant 0 : i32
    %c0_i32_1 = arith.constant 0 : i32
    %c0_i32_2 = arith.constant 0 : i32
    return %c0_i32, %c0_i32_0, %c0_i32_1 : i32, i32, i32
  }
  func.func @transform_4(%arg0: i32) -> (i32, i32, i32) {
    %c0_i32 = arith.constant 0 : i32
    %c0_i32_0 = arith.constant 0 : i32
    %c0_i32_1 = arith.constant 0 : i32
    %c0_i32_2 = arith.constant 0 : i32
    return %c0_i32, %c0_i32_0, %c0_i32_1 : i32, i32, i32
  }
  func.func @transform_5(%arg0: i32) -> (i32, i32, i32) {
    %c0_i32 = arith.constant 0 : i32
    %c0_i32_0 = arith.constant 0 : i32
    %c0_i32_1 = arith.constant 0 : i32
    %c0_i32_2 = arith.constant 0 : i32
    return %c0_i32, %c0_i32_0, %c0_i32_1 : i32, i32, i32
  }
  func.func @transform_6(%arg0: i32) -> (i32, i32, i32) {
    %c0_i32 = arith.constant 0 : i32
    %c0_i32_0 = arith.constant 0 : i32
    %c0_i32_1 = arith.constant 0 : i32
    %c0_i32_2 = arith.constant 0 : i32
    return %c0_i32, %c0_i32_0, %c0_i32_1 : i32, i32, i32
  }
  func.func @transform_7(%arg0: i32) -> (i32, i32, i32) {
    %c0_i32 = arith.constant 0 : i32
    %c0_i32_0 = arith.constant 0 : i32
    %c0_i32_1 = arith.constant 0 : i32
    %c0_i32_2 = arith.constant 0 : i32
    return %c0_i32, %c0_i32_0, %c0_i32_1 : i32, i32, i32
  }
  func.func @transform_8(%arg0: i32) -> (i32, i32, i32) {
    %c0_i32 = arith.constant 0 : i32
    %c0_i32_0 = arith.constant 0 : i32
    %c0_i32_1 = arith.constant 0 : i32
    %c0_i32_2 = arith.constant 0 : i32
    return %c0_i32, %c0_i32_0, %c0_i32_1 : i32, i32, i32
  }
  func.func @transform_9(%arg0: i32) -> (i32, i32, i32) {
    %c0_i32 = arith.constant 0 : i32
    %c0_i32_0 = arith.constant 0 : i32
    %c0_i32_1 = arith.constant 0 : i32
    %c0_i32_2 = arith.constant 0 : i32
    return %c0_i32, %c0_i32_0, %c0_i32_1 : i32, i32, i32
  }
  func.func @transform_10(%arg0: i32) -> (i32, i32, i32) {
    %c0_i32 = arith.constant 0 : i32
    %c0_i32_0 = arith.constant 0 : i32
    %c0_i32_1 = arith.constant 0 : i32
    %c0_i32_2 = arith.constant 0 : i32
    return %c0_i32, %c0_i32_0, %c0_i32_1 : i32, i32, i32
  }
  func.func @transform_11(%arg0: i32) -> (i32, i32, i32) {
    %c0_i32 = arith.constant 0 : i32
    %c0_i32_0 = arith.constant 0 : i32
    %c0_i32_1 = arith.constant 0 : i32
    %c0_i32_2 = arith.constant 0 : i32
    return %c0_i32, %c0_i32_0, %c0_i32_1 : i32, i32, i32
  }
  func.func @transform_12(%arg0: i32) -> (i32, i32, i32) {
    %c0_i32 = arith.constant 0 : i32
    %c0_i32_0 = arith.constant 0 : i32
    %c0_i32_1 = arith.constant 0 : i32
    %c0_i32_2 = arith.constant 0 : i32
    return %c0_i32, %c0_i32_0, %c0_i32_1 : i32, i32, i32
  }
  func.func @transform_13(%arg0: i32) -> (i32, i32, i32) {
    %c0_i32 = arith.constant 0 : i32
    %c0_i32_0 = arith.constant 0 : i32
    %c0_i32_1 = arith.constant 0 : i32
    %c0_i32_2 = arith.constant 0 : i32
    return %c0_i32, %c0_i32_0, %c0_i32_1 : i32, i32, i32
  }
  func.func @transform_14(%arg0: i32) -> (i32, i32, i32) {
    %c0_i32 = arith.constant 0 : i32
    %c0_i32_0 = arith.constant 0 : i32
    %c0_i32_1 = arith.constant 0 : i32
    %c0_i32_2 = arith.constant 0 : i32
    return %c0_i32, %c0_i32_0, %c0_i32_1 : i32, i32, i32
  }
  func.func @transform_15(%arg0: i32) -> (i32, i32) {
    %c0_i32 = arith.constant 0 : i32
    %c0_i32_0 = arith.constant 0 : i32
    %c0_i32_1 = arith.constant 0 : i32
    return %c0_i32, %c0_i32_0 : i32, i32
  }
  func.func @transform_16(%arg0: i32) -> (i32, i32) {
    %c0_i32 = arith.constant 0 : i32
    %c0_i32_0 = arith.constant 0 : i32
    %c0_i32_1 = arith.constant 0 : i32
    return %c0_i32, %c0_i32_0 : i32, i32
  }
  func.func @transform_17(%arg0: i32) -> (i32, i32, i32) {
    %c0_i32 = arith.constant 0 : i32
    %c0_i32_0 = arith.constant 0 : i32
    %c0_i32_1 = arith.constant 0 : i32
    return %arg0, %c0_i32, %c0_i32_0 : i32, i32, i32
  }
}

</mosaic_0001>

<llo_original>
// kernel: transformer_forward.1
$region0: #{transformer_forward.1}
  #allocation0 [shape = 'u32[]', space=smem, size = 0x4, offset = 0x4, fixed_abs, tag = 'smem constant byte address 0x4 - core index']
  #allocation1 [shape = 'u32[72,128]{1,0:T(1,128)}', space=vmem, size = 0x9000, scoped, tag = 'internal scratch']
  %s0 = inlined_call_operand.hbm [shape: f32[2,8,32], index: 0, kind: input, shape index: {}]
  %s1 = inlined_call_operand.hbm [shape: bf16[32,256], index: 1, kind: input, shape index: {}]
  %s2 = inlined_call_operand.hbm [shape: f32[1,256], index: 2, kind: input, shape index: {}]
  %s3 = inlined_call_operand.hbm [shape: bf16[2,256,768], index: 3, kind: input, shape index: {}]
  %s4 = inlined_call_operand.hbm [shape: f32[2,1,768], index: 4, kind: input, shape index: {}]
  %s5 = inlined_call_operand.hbm [shape: bf16[2,256,256], index: 5, kind: input, shape index: {}]
  %s6 = inlined_call_operand.hbm [shape: f32[2,1,256], index: 6, kind: input, shape index: {}]
  %s7 = inlined_call_operand.hbm [shape: f32[2,1,256], index: 7, kind: input, shape index: {}]
  %s8 = inlined_call_operand.hbm [shape: f32[2,1,256], index: 8, kind: input, shape index: {}]
  %s9 = inlined_call_operand.hbm [shape: bf16[2,256,2048], index: 9, kind: input, shape index: {}]
  %s10 = inlined_call_operand.hbm [shape: f32[2,1,2048], index: 10, kind: input, shape index: {}]
  %s11 = inlined_call_operand.hbm [shape: bf16[2,2048,256], index: 11, kind: input, shape index: {}]
  %s12 = inlined_call_operand.hbm [shape: f32[2,1,256], index: 12, kind: input, shape index: {}]
  %s13 = inlined_call_operand.hbm [shape: f32[2,1,256], index: 13, kind: input, shape index: {}]
  %s14 = inlined_call_operand.hbm [shape: f32[2,1,256], index: 14, kind: input, shape index: {}]
  %s15 = inlined_call_operand.hbm [shape: bf16[256,128], index: 15, kind: input, shape index: {}]
  %s16 = inlined_call_operand.hbm [shape: f32[1,128], index: 16, kind: input, shape index: {}]
  %s17 = inlined_call_operand.vmem [shape: f32[2,8,128], index: 17, kind: output, shape index: {}]
  %s18 = sld [smem:[#allocation0]]
  $region169: #{transformer_forward.1} parent=0
    _
  %s20 = ssub.s32 1, %s18
  %s21 = scalar_select 0, %s20, %s18
  $region1: #{transformer_forward.1} parent=0
    #allocation2 [shape = 'u8[8192]{0}', space=vmem, size = 0x2000, scoped, tag = 'input window, operand 0']
    #allocation3 [shape = 's32[2]{0}', space=sflag, size = 0x8, scoped, tag = 'scoped memory for transformer_forward.1']
    #allocation4 [shape = 'u8[16384]{0}', space=vmem, size = 0x4000, scoped, tag = 'input window, operand 1, single buffered']
    #allocation5 [shape = 's32[1]{0}', space=sflag, size = 0x4, scoped, tag = 'scoped memory for transformer_forward.1']
    #allocation6 [shape = 'u8[1024]{0}', space=vmem, size = 0x400, scoped, tag = 'input window, operand 2, single buffered']
    #allocation7 [shape = 'u8[786432]{0}', space=vmem, size = 0xc0000, scoped, tag = 'input window, operand 3, single buffered']
    #allocation8 [shape = 's32[1]{0}', space=sflag, size = 0x4, scoped, tag = 'scoped memory for transformer_forward.1']
    #allocation9 [shape = 'u8[6144]{0}', space=vmem, size = 0x1800, scoped, tag = 'input window, operand 4, single buffered']
    #allocation10 [shape = 'u8[262144]{0}', space=vmem, size = 0x40000, scoped, tag = 'input window, operand 5, single buffered']
    #allocation11 [shape = 's32[1]{0}', space=sflag, size = 0x4, scoped, tag = 'scoped memory for transformer_forward.1']
    #allocation12 [shape = 'u8[2048]{0}', space=vmem, size = 0x800, scoped, tag = 'input window, operand 6, single buffered']
    #allocation13 [shape = 'u8[2048]{0}', space=vmem, size = 0x800, scoped, tag = 'input window, operand 7, single buffered']
    #allocation14 [shape = 's32[1]{0}', space=sflag, size = 0x4, scoped, tag = 'scoped memory for transformer_forward.1']
    #allocation15 [shape = 'u8[2048]{0}', space=vmem, size = 0x800, scoped, tag = 'input window, operand 8, single buffered']
    #allocation16 [shape = 'u8[2097152]{0}', space=vmem, size = 0x200000, scoped, tag = 'input window, operand 9, single buffered']
    #allocation17 [shape = 's32[1]{0}', space=sflag, size = 0x4, scoped, tag = 'scoped memory for transformer_forward.1']
    #allocation18 [shape = 'u8[16384]{0}', space=vmem, size = 0x4000, scoped, tag = 'input window, operand 10, single buffered']
    #allocation19 [shape = 'u8[2097152]{0}', space=vmem, size = 0x200000, scoped, tag = 'input window, operand 11, single buffered']
    #allocation20 [shape = 's32[1]{0}', space=sflag, size = 0x4, scoped, tag = 'scoped memory for transformer_forward.1']
    #allocation21 [shape = 'u8[2048]{0}', space=vmem, size = 0x800, scoped, tag = 'input window, operand 12, single buffered']
    #allocation22 [shape = 'u8[2048]{0}', space=vmem, size = 0x800, scoped, tag = 'input window, operand 13, single buffered']
    #allocation23 [shape = 's32[1]{0}', space=sflag, size = 0x4, scoped, tag = 'scoped memory for transformer_forward.1']
    #allocation24 [shape = 'u8[2048]{0}', space=vmem, size = 0x800, scoped, tag = 'input window, operand 14, single buffered']
    #allocation25 [shape = 'u8[65536]{0}', space=vmem, size = 0x10000, scoped, tag = 'input window, operand 15, single buffered']
    #allocation26 [shape = 's32[1]{0}', space=sflag, size = 0x4, scoped, tag = 'scoped memory for transformer_forward.1']
    #allocation27 [shape = 'u8[512]{0}', space=vmem, size = 0x400, scoped, tag = 'input window, operand 16, single buffered']
    %22 = vsyncpa [#allocation3], 0
    %s23 = scalar_lea.sflag [#allocation3], 1
    %24 = vsyncpa %s23, 0
    %25 = vsyncpa [#allocation5], 0
    %26 = vsyncpa [#allocation8], 0
    %27 = vsyncpa [#allocation11], 0
    %28 = vsyncpa [#allocation14], 0
    %29 = vsyncpa [#allocation17], 0
    %30 = vsyncpa [#allocation20], 0
    %31 = vsyncpa [#allocation23], 0
    %32 = vsyncpa [#allocation26], 0
    loop: start=0, step=1, limit=4
    $region2: #{transformer_forward.1} parent=1 // loop_pre_header
      _
    $region3: #{transformer_forward.1} parent=1 // loop_header
      %s34 = sphi 0, %s38
      %p35 = scmp.ge.s32.totalorder %s34, 4
      %s44 = sphi 0, %s46
      %s47 = sphi 0, %s44
      %s48 = sphi 0, %s47
      %s64 = sphi 0, %s48
      %s68 = sphi 0, %s68
      %s70 = sphi 0, %s68
      %s71 = sphi 0, %s70
      %s85 = sphi 0, %s71
      %s89 = sphi 0, %s89
      %s91 = sphi 0, %s89
      %s92 = sphi 0, %s91
      %s106 = sphi 0, %s92
      %s110 = sphi 0, %s110
      %s112 = sphi 0, %s110
      %s113 = sphi 0, %s112
      %s127 = sphi 0, %s113
      %s131 = sphi 0, %s131
      %s133 = sphi 0, %s131
      %s134 = sphi 0, %s133
      %s148 = sphi 0, %s134
      %s152 = sphi 0, %s152
      %s154 = sphi 0, %s152
      %s155 = sphi 0, %s154
      %s169 = sphi 0, %s155
      %s173 = sphi 0, %s173
      %s175 = sphi 0, %s173
      %s176 = sphi 0, %s175
      %s190 = sphi 0, %s176
      %s194 = sphi 0, %s194
      %s196 = sphi 0, %s194
      %s197 = sphi 0, %s196
      %s211 = sphi 0, %s197
      %s215 = sphi 0, %s215
      %s217 = sphi 0, %s215
      %s218 = sphi 0, %s217
      %s232 = sphi 0, %s218
      %s236 = sphi 0, %s236
      %s238 = sphi 0, %s236
      %s239 = sphi 0, %s238
      %s253 = sphi 0, %s239
      %s257 = sphi 0, %s257
      %s259 = sphi 0, %s257
      %s260 = sphi 0, %s259
      %s274 = sphi 0, %s260
      %s278 = sphi 0, %s278
      %s280 = sphi 0, %s278
      %s281 = sphi 0, %s280
      %s295 = sphi 0, %s281
      %s299 = sphi 0, %s299
      %s301 = sphi 0, %s299
      %s302 = sphi 0, %s301
      %s316 = sphi 0, %s302
      %s320 = sphi 0, %s320
      %s322 = sphi 0, %s320
      %s323 = sphi 0, %s322
      %s337 = sphi 0, %s323
      %s341 = sphi 0, %s341
      %s343 = sphi 0, %s341
      %s344 = sphi 0, %s343
      %s358 = sphi 0, %s344
      %s362 = sphi 0, %s362
      %s364 = sphi 0, %s362
      %s365 = sphi 0, %s364
      %s379 = sphi 0, %s365
      %s383 = sphi 0, %s383
      %s385 = sphi 0, %s383
      %s386 = sphi 0, %s385
      %s400 = sphi 0, %s386
      %s406 = sphi 0, %s408
      %s409 = sphi 0, %s406
      %s410 = sphi 0, %s409
      %s426 = sphi 0, %s410
    $region4: #{transformer_forward.1} parent=1 // loop_header_branch
      %37 = sbr.rel (%p35) target = $region8
    $region5: #{transformer_forward.1} parent=1 // loop_body
      %s39 = ssub.s32 %s34, 1
      %s40 = ssub.s32 %s34, 2
      %s41 = sadd.s32 %s34, 1
      %s42 = ssub.s32 %s34, %s41
      %p43 = scmp.eq.s32.totalorder %s42, 0
      %s45 = sadd.s32 %s44, 1
      %s46 = scalar_select %p43, %s44, %s45
      %p49 = pneg %p43
      %p50 = scmp.eq.s32.totalorder %s34, 1
      %p51 = por %p49, %p50
      %p52 = scmp.ne.s32.totalorder %s44, %s47
      %p53 = scmp.eq.s32.totalorder %s34, 0
      %p54 = por %p52, %p53
      %p55 = scmp.ne.s32.totalorder %s44, %s47
      %p56 = scmp.eq.s32.totalorder %s39, 1
      %p57 = por %p55, %p56
      %p58 = scmp.ne.s32.totalorder %s47, %s48
      %p59 = scmp.eq.s32.totalorder %s39, 0
      %p60 = por %p58, %p59
      %p61 = scmp.ne.s32.totalorder %s47, %s48
      %p62 = scmp.eq.s32.totalorder %s40, 1
      %p63 = por %p61, %p62
      %p65 = scmp.ne.s32.totalorder %s48, %s64
      %p66 = scmp.eq.s32.totalorder %s40, 0
      %p67 = por %p65, %p66
      %s69 = sadd.s32 %s68, 1
      %p72 = scmp.eq.s32.totalorder %s34, 1
      %p73 = scmp.ne.s32.totalorder %s68, %s70
      %p74 = scmp.eq.s32.totalorder %s34, 0
      %p75 = por %p73, %p74
      %p76 = scmp.ne.s32.totalorder %s68, %s70
      %p77 = scmp.eq.s32.totalorder %s39, 1
      %p78 = por %p76, %p77
      %p79 = scmp.ne.s32.totalorder %s70, %s71
      %p80 = scmp.eq.s32.totalorder %s39, 0
      %p81 = por %p79, %p80
      %p82 = scmp.ne.s32.totalorder %s70, %s71
      %p83 = scmp.eq.s32.totalorder %s40, 1
      %p84 = por %p82, %p83
      %p86 = scmp.ne.s32.totalorder %s71, %s85
      %p87 = scmp.eq.s32.totalorder %s40, 0
      %p88 = por %p86, %p87
      %s90 = sadd.s32 %s89, 1
      %p93 = scmp.eq.s32.totalorder %s34, 1
      %p94 = scmp.ne.s32.totalorder %s89, %s91
      %p95 = scmp.eq.s32.totalorder %s34, 0
      %p96 = por %p94, %p95
      %p97 = scmp.ne.s32.totalorder %s89, %s91
      %p98 = scmp.eq.s32.totalorder %s39, 1
      %p99 = por %p97, %p98
      %p100 = scmp.ne.s32.totalorder %s91, %s92
      %p101 = scmp.eq.s32.totalorder %s39, 0
      %p102 = por %p100, %p101
      %p103 = scmp.ne.s32.totalorder %s91, %s92
      %p104 = scmp.eq.s32.totalorder %s40, 1
      %p105 = por %p103, %p104
      %p107 = scmp.ne.s32.totalorder %s92, %s106
      %p108 = scmp.eq.s32.totalorder %s40, 0
      %p109 = por %p107, %p108
      %s111 = sadd.s32 %s110, 1
      %p114 = scmp.eq.s32.totalorder %s34, 1
      %p115 = scmp.ne.s32.totalorder %s110, %s112
      %p116 = scmp.eq.s32.totalorder %s34, 0
      %p117 = por %p115, %p116
      %p118 = scmp.ne.s32.totalorder %s110, %s112
      %p119 = scmp.eq.s32.totalorder %s39, 1
      %p120 = por %p118, %p119
      %p121 = scmp.ne.s32.totalorder %s112, %s113
      %p122 = scmp.eq.s32.totalorder %s39, 0
      %p123 = por %p121, %p122
      %p124 = scmp.ne.s32.totalorder %s112, %s113
      %p125 = scmp.eq.s32.totalorder %s40, 1
      %p126 = por %p124, %p125
      %p128 = scmp.ne.s32.totalorder %s113, %s127
      %p129 = scmp.eq.s32.totalorder %s40, 0
      %p130 = por %p128, %p129
      %s132 = sadd.s32 %s131, 1
      %p135 = scmp.eq.s32.totalorder %s34, 1
      %p136 = scmp.ne.s32.totalorder %s131, %s133
      %p137 = scmp.eq.s32.totalorder %s34, 0
      %p138 = por %p136, %p137
      %p139 = scmp.ne.s32.totalorder %s131, %s133
      %p140 = scmp.eq.s32.totalorder %s39, 1
      %p141 = por %p139, %p140
      %p142 = scmp.ne.s32.totalorder %s133, %s134
      %p143 = scmp.eq.s32.totalorder %s39, 0
      %p144 = por %p142, %p143
      %p145 = scmp.ne.s32.totalorder %s133, %s134
      %p146 = scmp.eq.s32.totalorder %s40, 1
      %p147 = por %p145, %p146
      %p149 = scmp.ne.s32.totalorder %s134, %s148
      %p150 = scmp.eq.s32.totalorder %s40, 0
      %p151 = por %p149, %p150
      %s153 = sadd.s32 %s152, 1
      %p156 = scmp.eq.s32.totalorder %s34, 1
      %p157 = scmp.ne.s32.totalorder %s152, %s154
      %p158 = scmp.eq.s32.totalorder %s34, 0
      %p159 = por %p157, %p158
      %p160 = scmp.ne.s32.totalorder %s152, %s154
      %p161 = scmp.eq.s32.totalorder %s39, 1
      %p162 = por %p160, %p161
      %p163 = scmp.ne.s32.totalorder %s154, %s155
      %p164 = scmp.eq.s32.totalorder %s39, 0
      %p165 = por %p163, %p164
      %p166 = scmp.ne.s32.totalorder %s154, %s155
      %p167 = scmp.eq.s32.totalorder %s40, 1
      %p168 = por %p166, %p167
      %p170 = scmp.ne.s32.totalorder %s155, %s169
      %p171 = scmp.eq.s32.totalorder %s40, 0
      %p172 = por %p170, %p171
      %s174 = sadd.s32 %s173, 1
      %p177 = scmp.eq.s32.totalorder %s34, 1
      %p178 = scmp.ne.s32.totalorder %s173, %s175
      %p179 = scmp.eq.s32.totalorder %s34, 0
      %p180 = por %p178, %p179
      %p181 = scmp.ne.s32.totalorder %s173, %s175
      %p182 = scmp.eq.s32.totalorder %s39, 1
      %p183 = por %p181, %p182
      %p184 = scmp.ne.s32.totalorder %s175, %s176
      %p185 = scmp.eq.s32.totalorder %s39, 0
      %p186 = por %p184, %p185
      %p187 = scmp.ne.s32.totalorder %s175, %s176
      %p188 = scmp.eq.s32.totalorder %s40, 1
      %p189 = por %p187, %p188
      %p191 = scmp.ne.s32.totalorder %s176, %s190
      %p192 = scmp.eq.s32.totalorder %s40, 0
      %p193 = por %p191, %p192
      %s195 = sadd.s32 %s194, 1
      %p198 = scmp.eq.s32.totalorder %s34, 1
      %p199 = scmp.ne.s32.totalorder %s194, %s196
      %p200 = scmp.eq.s32.totalorder %s34, 0
      %p201 = por %p199, %p200
      %p202 = scmp.ne.s32.totalorder %s194, %s196
      %p203 = scmp.eq.s32.totalorder %s39, 1
      %p204 = por %p202, %p203
      %p205 = scmp.ne.s32.totalorder %s196, %s197
      %p206 = scmp.eq.s32.totalorder %s39, 0
      %p207 = por %p205, %p206
      %p208 = scmp.ne.s32.totalorder %s196, %s197
      %p209 = scmp.eq.s32.totalorder %s40, 1
      %p210 = por %p208, %p209
      %p212 = scmp.ne.s32.totalorder %s197, %s211
      %p213 = scmp.eq.s32.totalorder %s40, 0
      %p214 = por %p212, %p213
      %s216 = sadd.s32 %s215, 1
      %p219 = scmp.eq.s32.totalorder %s34, 1
      %p220 = scmp.ne.s32.totalorder %s215, %s217
      %p221 = scmp.eq.s32.totalorder %s34, 0
      %p222 = por %p220, %p221
      %p223 = scmp.ne.s32.totalorder %s215, %s217
      %p224 = scmp.eq.s32.totalorder %s39, 1
      %p225 = por %p223, %p224
      %p226 = scmp.ne.s32.totalorder %s217, %s218
      %p227 = scmp.eq.s32.totalorder %s39, 0
      %p228 = por %p226, %p227
      %p229 = scmp.ne.s32.totalorder %s217, %s218
      %p230 = scmp.eq.s32.totalorder %s40, 1
      %p231 = por %p229, %p230
      %p233 = scmp.ne.s32.totalorder %s218, %s232
      %p234 = scmp.eq.s32.totalorder %s40, 0
      %p235 = por %p233, %p234
      %s237 = sadd.s32 %s236, 1
      %p240 = scmp.eq.s32.totalorder %s34, 1
      %p241 = scmp.ne.s32.totalorder %s236, %s238
      %p242 = scmp.eq.s32.totalorder %s34, 0
      %p243 = por %p241, %p242
      %p244 = scmp.ne.s32.totalorder %s236, %s238
      %p245 = scmp.eq.s32.totalorder %s39, 1
      %p246 = por %p244, %p245
      %p247 = scmp.ne.s32.totalorder %s238, %s239
      %p248 = scmp.eq.s32.totalorder %s39, 0
      %p249 = por %p247, %p248
      %p250 = scmp.ne.s32.totalorder %s238, %s239
      %p251 = scmp.eq.s32.totalorder %s40, 1
      %p252 = por %p250, %p251
      %p254 = scmp.ne.s32.totalorder %s239, %s253
      %p255 = scmp.eq.s32.totalorder %s40, 0
      %p256 = por %p254, %p255
      %s258 = sadd.s32 %s257, 1
      %p261 = scmp.eq.s32.totalorder %s34, 1
      %p262 = scmp.ne.s32.totalorder %s257, %s259
      %p263 = scmp.eq.s32.totalorder %s34, 0
      %p264 = por %p262, %p263
      %p265 = scmp.ne.s32.totalorder %s257, %s259
      %p266 = scmp.eq.s32.totalorder %s39, 1
      %p267 = por %p265, %p266
      %p268 = scmp.ne.s32.totalorder %s259, %s260
      %p269 = scmp.eq.s32.totalorder %s39, 0
      %p270 = por %p268, %p269
      %p271 = scmp.ne.s32.totalorder %s259, %s260
      %p272 = scmp.eq.s32.totalorder %s40, 1
      %p273 = por %p271, %p272
      %p275 = scmp.ne.s32.totalorder %s260, %s274
      %p276 = scmp.eq.s32.totalorder %s40, 0
      %p277 = por %p275, %p276
      %s279 = sadd.s32 %s278, 1
      %p282 = scmp.eq.s32.totalorder %s34, 1
      %p283 = scmp.ne.s32.totalorder %s278, %s280
      %p284 = scmp.eq.s32.totalorder %s34, 0
      %p285 = por %p283, %p284
      %p286 = scmp.ne.s32.totalorder %s278, %s280
      %p287 = scmp.eq.s32.totalorder %s39, 1
      %p288 = por %p286, %p287
      %p289 = scmp.ne.s32.totalorder %s280, %s281
      %p290 = scmp.eq.s32.totalorder %s39, 0
      %p291 = por %p289, %p290
      %p292 = scmp.ne.s32.totalorder %s280, %s281
      %p293 = scmp.eq.s32.totalorder %s40, 1
      %p294 = por %p292, %p293
      %p296 = scmp.ne.s32.totalorder %s281, %s295
      %p297 = scmp.eq.s32.totalorder %s40, 0
      %p298 = por %p296, %p297
      %s300 = sadd.s32 %s299, 1
      %p303 = scmp.eq.s32.totalorder %s34, 1
      %p304 = scmp.ne.s32.totalorder %s299, %s301
      %p305 = scmp.eq.s32.totalorder %s34, 0
      %p306 = por %p304, %p305
      %p307 = scmp.ne.s32.totalorder %s299, %s301
      %p308 = scmp.eq.s32.totalorder %s39, 1
      %p309 = por %p307, %p308
      %p310 = scmp.ne.s32.totalorder %s301, %s302
      %p311 = scmp.eq.s32.totalorder %s39, 0
      %p312 = por %p310, %p311
      %p313 = scmp.ne.s32.totalorder %s301, %s302
      %p314 = scmp.eq.s32.totalorder %s40, 1
      %p315 = por %p313, %p314
      %p317 = scmp.ne.s32.totalorder %s302, %s316
      %p318 = scmp.eq.s32.totalorder %s40, 0
      %p319 = por %p317, %p318
      %s321 = sadd.s32 %s320, 1
      %p324 = scmp.eq.s32.totalorder %s34, 1
      %p325 = scmp.ne.s32.totalorder %s320, %s322
      %p326 = scmp.eq.s32.totalorder %s34, 0
      %p327 = por %p325, %p326
      %p328 = scmp.ne.s32.totalorder %s320, %s322
      %p329 = scmp.eq.s32.totalorder %s39, 1
      %p330 = por %p328, %p329
      %p331 = scmp.ne.s32.totalorder %s322, %s323
      %p332 = scmp.eq.s32.totalorder %s39, 0
      %p333 = por %p331, %p332
      %p334 = scmp.ne.s32.totalorder %s322, %s323
      %p335 = scmp.eq.s32.totalorder %s40, 1
      %p336 = por %p334, %p335
      %p338 = scmp.ne.s32.totalorder %s323, %s337
      %p339 = scmp.eq.s32.totalorder %s40, 0
      %p340 = por %p338, %p339
      %s342 = sadd.s32 %s341, 1
      %p345 = scmp.eq.s32.totalorder %s34, 1
      %p346 = scmp.ne.s32.totalorder %s341, %s343
      %p347 = scmp.eq.s32.totalorder %s34, 0
      %p348 = por %p346, %p347
      %p349 = scmp.ne.s32.totalorder %s341, %s343
      %p350 = scmp.eq.s32.totalorder %s39, 1
      %p351 = por %p349, %p350
      %p352 = scmp.ne.s32.totalorder %s343, %s344
      %p353 = scmp.eq.s32.totalorder %s39, 0
      %p354 = por %p352, %p353
      %p355 = scmp.ne.s32.totalorder %s343, %s344
      %p356 = scmp.eq.s32.totalorder %s40, 1
      %p357 = por %p355, %p356
      %p359 = scmp.ne.s32.totalorder %s344, %s358
      %p360 = scmp.eq.s32.totalorder %s40, 0
      %p361 = por %p359, %p360
      %s363 = sadd.s32 %s362, 1
      %p366 = scmp.eq.s32.totalorder %s34, 1
      %p367 = scmp.ne.s32.totalorder %s362, %s364
      %p368 = scmp.eq.s32.totalorder %s34, 0
      %p369 = por %p367, %p368
      %p370 = scmp.ne.s32.totalorder %s362, %s364
      %p371 = scmp.eq.s32.totalorder %s39, 1
      %p372 = por %p370, %p371
      %p373 = scmp.ne.s32.totalorder %s364, %s365
      %p374 = scmp.eq.s32.totalorder %s39, 0
      %p375 = por %p373, %p374
      %p376 = scmp.ne.s32.totalorder %s364, %s365
      %p377 = scmp.eq.s32.totalorder %s40, 1
      %p378 = por %p376, %p377
      %p380 = scmp.ne.s32.totalorder %s365, %s379
      %p381 = scmp.eq.s32.totalorder %s40, 0
      %p382 = por %p380, %p381
      %s384 = sadd.s32 %s383, 1
      %p387 = scmp.eq.s32.totalorder %s34, 1
      %p388 = scmp.ne.s32.totalorder %s383, %s385
      %p389 = scmp.eq.s32.totalorder %s34, 0
      %p390 = por %p388, %p389
      %p391 = scmp.ne.s32.totalorder %s383, %s385
      %p392 = scmp.eq.s32.totalorder %s39, 1
      %p393 = por %p391, %p392
      %p394 = scmp.ne.s32.totalorder %s385, %s386
      %p395 = scmp.eq.s32.totalorder %s39, 0
      %p396 = por %p394, %p395
      %p397 = scmp.ne.s32.totalorder %s385, %s386
      %p398 = scmp.eq.s32.totalorder %s40, 1
      %p399 = por %p397, %p398
      %p401 = scmp.ne.s32.totalorder %s386, %s400
      %p402 = scmp.eq.s32.totalorder %s40, 0
      %p403 = por %p401, %p402
      %s404 = ssub.s32 %s34, %s41
      %p405 = scmp.eq.s32.totalorder %s404, 0
      %s407 = sadd.s32 %s406, 1
      %s408 = scalar_select %p405, %s406, %s407
      %p411 = pneg %p405
      %p412 = scmp.eq.s32.totalorder %s34, 1
      %p413 = por %p411, %p412
      %p414 = scmp.ne.s32.totalorder %s406, %s409
      %p415 = scmp.eq.s32.totalorder %s34, 0
      %p416 = por %p414, %p415
      %p417 = scmp.ne.s32.totalorder %s406, %s409
      %p418 = scmp.eq.s32.totalorder %s39, 1
      %p419 = por %p417, %p418
      %p420 = scmp.ne.s32.totalorder %s409, %s410
      %p421 = scmp.eq.s32.totalorder %s39, 0
      %p422 = por %p420, %p421
      %p423 = scmp.ne.s32.totalorder %s409, %s410
      %p424 = scmp.eq.s32.totalorder %s40, 1
      %p425 = por %p423, %p424
      %p427 = scmp.ne.s32.totalorder %s410, %s426
      %p428 = scmp.eq.s32.totalorder %s40, 0
      %p429 = por %p427, %p428
      %p430 = scmp.le.s32.totalorder 1, %s34
      %p431 = scmp.lt.s32.totalorder %s34, 3
      %p432 = pnand %p430, %p431
      %p433 = pneg %p432
      // Predicated region
      $region9: #{transformer_forward.1} parent=5 // pred_check
        _
      $region10: #{transformer_forward.1} parent=5 // pred_check_branch
        %435 = sbr.rel (%p432) target = $region12
      $region11: #{transformer_forward.1} parent=5 // pred_region
        %s436 = ssub.s32 %s34, 1
        // Predicated region
        $region13: #{transformer_forward.1} parent=11 // pred_check
          %p437 = pneg %p81
        $region14: #{transformer_forward.1} parent=11 // pred_check_branch
          %439 = sbr.rel (%p437) target = $region16
        $region15: #{transformer_forward.1} parent=11 // pred_region
          %441 = vsyncadd [#allocation5], 0
          %s442 = sshll.u32 %s1, 4
          %s443 = int_to_ptr.hbm [resolvable:$true] %s442
          %s444 = sshll.u32 [#allocation4], 4
          %s445 = int_to_ptr.vmem [resolvable:$true] %s444
          %450 = dma.hbm_to_vmem [thread:$0]  %s443, 512, %s445, [#allocation5], 128, 128, 8
        $region16: #{transformer_forward.1} parent=11 // pred_fallthru
          _
        // Predicated region
        $region17: #{transformer_forward.1} parent=11 // pred_check
          %p451 = pneg %p102
        $region18: #{transformer_forward.1} parent=11 // pred_check_branch
          %453 = sbr.rel (%p451) target = $region20
        $region19: #{transformer_forward.1} parent=11 // pred_region
          %455 = vsyncadd [#allocation5], 0
          %s457 = sshll.u32 %s2, 4
          %s458 = int_to_ptr.hbm [resolvable:$true] %s457
          %s459 = sshll.u32 [#allocation6], 4
          %s460 = int_to_ptr.vmem [resolvable:$true] %s459
          %462 = dma.hbm_to_vmem [thread:$0]  %s458, 32, %s460, [#allocation5]
        $region20: #{transformer_forward.1} parent=11 // pred_fallthru
          _
        // Predicated region
        $region21: #{transformer_forward.1} parent=11 // pred_check
          %p463 = pneg %p123
        $region22: #{transformer_forward.1} parent=11 // pred_check_branch
          %465 = sbr.rel (%p463) target = $region24
        $region23: #{transformer_forward.1} parent=11 // pred_region
          %467 = vsyncadd [#allocation8], 0
          %s468 = sshll.u32 %s3, 4
          %s469 = int_to_ptr.hbm [resolvable:$true] %s468
          %s470 = sshll.u32 [#allocation7], 4
          %s471 = int_to_ptr.vmem [resolvable:$true] %s470
          %476 = dma.hbm_to_vmem [thread:$0]  %s469, 24576, %s471, [#allocation8], 384, 384, 24
        $region24: #{transformer_forward.1} parent=11 // pred_fallthru
          _
        // Predicated region
        $region25: #{transformer_forward.1} parent=11 // pred_check
          %p477 = pneg %p144
        $region26: #{transformer_forward.1} parent=11 // pred_check_branch
          %479 = sbr.rel (%p477) target = $region28
        $region27: #{transformer_forward.1} parent=11 // pred_region
          %481 = vsyncadd [#allocation8], 0
          %s482 = sshll.u32 %s4, 4
          %s483 = int_to_ptr.hbm [resolvable:$true] %s482
          %s484 = sshll.u32 [#allocation9], 4
          %s485 = int_to_ptr.vmem [resolvable:$true] %s484
          %490 = dma.hbm_to_vmem [thread:$0]  %s483, 192, %s485, [#allocation8], 96, 96, 6
        $region28: #{transformer_forward.1} parent=11 // pred_fallthru
          _
        // Predicated region
        $region29: #{transformer_forward.1} parent=11 // pred_check
          %p491 = pneg %p165
        $region30: #{transformer_forward.1} parent=11 // pred_check_branch
          %493 = sbr.rel (%p491) target = $region32
        $region31: #{transformer_forward.1} parent=11 // pred_region
          %495 = vsyncadd [#allocation11], 0
          %s496 = sshll.u32 %s5, 4
          %s497 = int_to_ptr.hbm [resolvable:$true] %s496
          %s498 = sshll.u32 [#allocation10], 4
          %s499 = int_to_ptr.vmem [resolvable:$true] %s498
          %504 = dma.hbm_to_vmem [thread:$0]  %s497, 8192, %s499, [#allocation11], 128, 128, 8
        $region32: #{transformer_forward.1} parent=11 // pred_fallthru
          _
        // Predicated region
        $region33: #{transformer_forward.1} parent=11 // pred_check
          %p505 = pneg %p186
        $region34: #{transformer_forward.1} parent=11 // pred_check_branch
          %507 = sbr.rel (%p505) target = $region36
        $region35: #{transformer_forward.1} parent=11 // pred_region
          %509 = vsyncadd [#allocation11], 0
          %s510 = sshll.u32 %s6, 4
          %s511 = int_to_ptr.hbm [resolvable:$true] %s510
          %s512 = sshll.u32 [#allocation12], 4
          %s513 = int_to_ptr.vmem [resolvable:$true] %s512
          %518 = dma.hbm_to_vmem [thread:$0]  %s511, 64, %s513, [#allocation11], 32, 32, 2
        $region36: #{transformer_forward.1} parent=11 // pred_fallthru
          _
        // Predicated region
        $region37: #{transformer_forward.1} parent=11 // pred_check
          %p519 = pneg %p207
        $region38: #{transformer_forward.1} parent=11 // pred_check_branch
          %521 = sbr.rel (%p519) target = $region40
        $region39: #{transformer_forward.1} parent=11 // pred_region
          %523 = vsyncadd [#allocation14], 0
          %s524 = sshll.u32 %s7, 4
          %s525 = int_to_ptr.hbm [resolvable:$true] %s524
          %s526 = sshll.u32 [#allocation13], 4
          %s527 = int_to_ptr.vmem [resolvable:$true] %s526
          %532 = dma.hbm_to_vmem [thread:$0]  %s525, 64, %s527, [#allocation14], 32, 32, 2
        $region40: #{transformer_forward.1} parent=11 // pred_fallthru
          _
        // Predicated region
        $region41: #{transformer_forward.1} parent=11 // pred_check
          %p533 = pneg %p228
        $region42: #{transformer_forward.1} parent=11 // pred_check_branch
          %535 = sbr.rel (%p533) target = $region44
        $region43: #{transformer_forward.1} parent=11 // pred_region
          %537 = vsyncadd [#allocation14], 0
          %s538 = sshll.u32 %s8, 4
          %s539 = int_to_ptr.hbm [resolvable:$true] %s538
          %s540 = sshll.u32 [#allocation15], 4
          %s541 = int_to_ptr.vmem [resolvable:$true] %s540
          %546 = dma.hbm_to_vmem [thread:$0]  %s539, 64, %s541, [#allocation14], 32, 32, 2
        $region44: #{transformer_forward.1} parent=11 // pred_fallthru
          _
        // Predicated region
        $region45: #{transformer_forward.1} parent=11 // pred_check
          %p547 = pneg %p249
        $region46: #{transformer_forward.1} parent=11 // pred_check_branch
          %549 = sbr.rel (%p547) target = $region48
        $region47: #{transformer_forward.1} parent=11 // pred_region
          %551 = vsyncadd [#allocation17], 0
          %s552 = sshll.u32 %s9, 4
          %s553 = int_to_ptr.hbm [resolvable:$true] %s552
          %s554 = sshll.u32 [#allocation16], 4
          %s555 = int_to_ptr.vmem [resolvable:$true] %s554
          %560 = dma.hbm_to_vmem [thread:$0]  %s553, 65536, %s555, [#allocation17], 1024, 1024, 64
        $region48: #{transformer_forward.1} parent=11 // pred_fallthru
          _
        // Predicated region
        $region49: #{transformer_forward.1} parent=11 // pred_check
          %p561 = pneg %p270
        $region50: #{transformer_forward.1} parent=11 // pred_check_branch
          %563 = sbr.rel (%p561) target = $region52
        $region51: #{transformer_forward.1} parent=11 // pred_region
          %565 = vsyncadd [#allocation17], 0
          %s566 = sshll.u32 %s10, 4
          %s567 = int_to_ptr.hbm [resolvable:$true] %s566
          %s568 = sshll.u32 [#allocation18], 4
          %s569 = int_to_ptr.vmem [resolvable:$true] %s568
          %574 = dma.hbm_to_vmem [thread:$0]  %s567, 512, %s569, [#allocation17], 256, 256, 16
        $region52: #{transformer_forward.1} parent=11 // pred_fallthru
          _
        // Predicated region
        $region53: #{transformer_forward.1} parent=11 // pred_check
          %p575 = pneg %p291
        $region54: #{transformer_forward.1} parent=11 // pred_check_branch
          %577 = sbr.rel (%p575) target = $region56
        $region55: #{transformer_forward.1} parent=11 // pred_region
          %579 = vsyncadd [#allocation20], 0
          %s580 = sshll.u32 %s11, 4
          %s581 = int_to_ptr.hbm [resolvable:$true] %s580
          %s582 = sshll.u32 [#allocation19], 4
          %s583 = int_to_ptr.vmem [resolvable:$true] %s582
          %588 = dma.hbm_to_vmem [thread:$0]  %s581, 65536, %s583, [#allocation20], 128, 128, 8
        $region56: #{transformer_forward.1} parent=11 // pred_fallthru
          _
        // Predicated region
        $region57: #{transformer_forward.1} parent=11 // pred_check
          %p589 = pneg %p312
        $region58: #{transformer_forward.1} parent=11 // pred_check_branch
          %591 = sbr.rel (%p589) target = $region60
        $region59: #{transformer_forward.1} parent=11 // pred_region
          %593 = vsyncadd [#allocation20], 0
          %s594 = sshll.u32 %s12, 4
          %s595 = int_to_ptr.hbm [resolvable:$true] %s594
          %s596 = sshll.u32 [#allocation21], 4
          %s597 = int_to_ptr.vmem [resolvable:$true] %s596
          %602 = dma.hbm_to_vmem [thread:$0]  %s595, 64, %s597, [#allocation20], 32, 32, 2
        $region60: #{transformer_forward.1} parent=11 // pred_fallthru
          _
        // Predicated region
        $region61: #{transformer_forward.1} parent=11 // pred_check
          %p603 = pneg %p333
        $region62: #{transformer_forward.1} parent=11 // pred_check_branch
          %605 = sbr.rel (%p603) target = $region64
        $region63: #{transformer_forward.1} parent=11 // pred_region
          %607 = vsyncadd [#allocation23], 0
          %s608 = sshll.u32 %s13, 4
          %s609 = int_to_ptr.hbm [resolvable:$true] %s608
          %s610 = sshll.u32 [#allocation22], 4
          %s611 = int_to_ptr.vmem [resolvable:$true] %s610
          %616 = dma.hbm_to_vmem [thread:$0]  %s609, 64, %s611, [#allocation23], 32, 32, 2
        $region64: #{transformer_forward.1} parent=11 // pred_fallthru
          _
        // Predicated region
        $region65: #{transformer_forward.1} parent=11 // pred_check
          %p617 = pneg %p354
        $region66: #{transformer_forward.1} parent=11 // pred_check_branch
          %619 = sbr.rel (%p617) target = $region68
        $region67: #{transformer_forward.1} parent=11 // pred_region
          %621 = vsyncadd [#allocation23], 0
          %s622 = sshll.u32 %s14, 4
          %s623 = int_to_ptr.hbm [resolvable:$true] %s622
          %s624 = sshll.u32 [#allocation24], 4
          %s625 = int_to_ptr.vmem [resolvable:$true] %s624
          %630 = dma.hbm_to_vmem [thread:$0]  %s623, 64, %s625, [#allocation23], 32, 32, 2
        $region68: #{transformer_forward.1} parent=11 // pred_fallthru
          _
        // Predicated region
        $region69: #{transformer_forward.1} parent=11 // pred_check
          %p631 = pneg %p375
        $region70: #{transformer_forward.1} parent=11 // pred_check_branch
          %633 = sbr.rel (%p631) target = $region72
        $region71: #{transformer_forward.1} parent=11 // pred_region
          %635 = vsyncadd [#allocation26], 0
          %s636 = sshll.u32 %s15, 4
          %s637 = int_to_ptr.hbm [resolvable:$true] %s636
          %s638 = sshll.u32 [#allocation25], 4
          %s639 = int_to_ptr.vmem [resolvable:$true] %s638
          %644 = dma.hbm_to_vmem [thread:$0]  %s637, 2048, %s639, [#allocation26], 64, 64, 4
        $region72: #{transformer_forward.1} parent=11 // pred_fallthru
          _
        // Predicated region
        $region73: #{transformer_forward.1} parent=11 // pred_check
          %p645 = pneg %p396
        $region74: #{transformer_forward.1} parent=11 // pred_check_branch
          %647 = sbr.rel (%p645) target = $region76
        $region75: #{transformer_forward.1} parent=11 // pred_region
          %649 = vsyncadd [#allocation26], 0
          %s651 = sshll.u32 %s16, 4
          %s652 = int_to_ptr.hbm [resolvable:$true] %s651
          %s653 = sshll.u32 [#allocation27], 4
          %s654 = int_to_ptr.vmem [resolvable:$true] %s653
          %656 = dma.hbm_to_vmem [thread:$0]  %s652, 16, %s654, [#allocation26]
        $region76: #{transformer_forward.1} parent=11 // pred_fallthru
          _
      $region12: #{transformer_forward.1} parent=5 // pred_fallthru
        _
      %p657 = scmp.lt.s32.totalorder %s34, 2
      // Predicated region
      $region77: #{transformer_forward.1} parent=5 // pred_check
        %p658 = pneg %p657
      $region78: #{transformer_forward.1} parent=5 // pred_check_branch
        %660 = sbr.rel (%p658) target = $region80
      $region79: #{transformer_forward.1} parent=5 // pred_region
        // Predicated region
        $region81: #{transformer_forward.1} parent=79 // pred_check
          %p661 = pneg %p54
        $region82: #{transformer_forward.1} parent=79 // pred_check_branch
          %663 = sbr.rel (%p661) target = $region84
        $region83: #{transformer_forward.1} parent=79 // pred_region
          %s664 = sand.u32 %s44, 1
          %s665 = scalar_lea.sflag [#allocation3], %s664
          %s666 = sand.u32 %s44, 1
          %s667 = smul.addr %s666, 8
          %s668 = scalar_lea.vmem [#allocation2], %s667
          %670 = vsyncadd %s665, 0
          %s671 = smul.addr %s34, 8
          %s672 = scalar_lea.hbm %s0, %s671
          %s674 = sshll.u32 %s672, 4
          %s675 = int_to_ptr.hbm [resolvable:$true] %s674
          %s676 = sshll.u32 %s668, 4
          %s677 = int_to_ptr.vmem [resolvable:$true] %s676
          %679 = dma.hbm_to_vmem [thread:$0]  %s675, 128, %s677, %s665
        $region84: #{transformer_forward.1} parent=79 // pred_fallthru
          _
      $region80: #{transformer_forward.1} parent=5 // pred_fallthru
        _
      %p680 = scmp.le.s32.totalorder 1, %s34
      %p681 = scmp.lt.s32.totalorder %s34, 3
      %p682 = pnand %p680, %p681
      %p683 = pneg %p682
      // Predicated region
      $region85: #{transformer_forward.1} parent=5 // pred_check
        _
      $region86: #{transformer_forward.1} parent=5 // pred_check_branch
        %685 = sbr.rel (%p682) target = $region88
      $region87: #{transformer_forward.1} parent=5 // pred_region
        %s686 = ssub.s32 %s34, 1
        %s687 = sand.u32 %s47, 1
        %s688 = scalar_lea.sflag [#allocation3], %s687
        %s689 = sand.u32 %s47, 1
        %s690 = smul.addr %s689, 8
        %s691 = scalar_lea.vmem [#allocation2], %s690
        // Predicated region
        $region89: #{transformer_forward.1} parent=87 // pred_check
          %p692 = pneg %p60
        $region90: #{transformer_forward.1} parent=87 // pred_check_branch
          %694 = sbr.rel (%p692) target = $region92
        $region91: #{transformer_forward.1} parent=87 // pred_region
          %696 = dma.done %s688, 128
        $region92: #{transformer_forward.1} parent=87 // pred_fallthru
          _
        // Predicated region
        $region93: #{transformer_forward.1} parent=87 // pred_check
          %p697 = pneg %p81
        $region94: #{transformer_forward.1} parent=87 // pred_check_branch
          %699 = sbr.rel (%p697) target = $region96
        $region95: #{transformer_forward.1} parent=87 // pred_region
          %701 = dma.done [#allocation5], 512
        $region96: #{transformer_forward.1} parent=87 // pred_fallthru
          _
        // Predicated region
        $region97: #{transformer_forward.1} parent=87 // pred_check
          %p702 = pneg %p102
        $region98: #{transformer_forward.1} parent=87 // pred_check_branch
          %704 = sbr.rel (%p702) target = $region100
        $region99: #{transformer_forward.1} parent=87 // pred_region
          %706 = dma.done [#allocation5], 32
        $region100: #{transformer_forward.1} parent=87 // pred_fallthru
          _
        // Predicated region
        $region101: #{transformer_forward.1} parent=87 // pred_check
          %p707 = pneg %p123
        $region102: #{transformer_forward.1} parent=87 // pred_check_branch
          %709 = sbr.rel (%p707) target = $region104
        $region103: #{transformer_forward.1} parent=87 // pred_region
          %711 = dma.done [#allocation8], 24576
        $region104: #{transformer_forward.1} parent=87 // pred_fallthru
          _
        // Predicated region
        $region105: #{transformer_forward.1} parent=87 // pred_check
          %p712 = pneg %p144
        $region106: #{transformer_forward.1} parent=87 // pred_check_branch
          %714 = sbr.rel (%p712) target = $region108
        $region107: #{transformer_forward.1} parent=87 // pred_region
          %716 = dma.done [#allocation8], 192
        $region108: #{transformer_forward.1} parent=87 // pred_fallthru
          _
        // Predicated region
        $region109: #{transformer_forward.1} parent=87 // pred_check
          %p717 = pneg %p165
        $region110: #{transformer_forward.1} parent=87 // pred_check_branch
          %719 = sbr.rel (%p717) target = $region112
        $region111: #{transformer_forward.1} parent=87 // pred_region
          %721 = dma.done [#allocation11], 8192
        $region112: #{transformer_forward.1} parent=87 // pred_fallthru
          _
        // Predicated region
        $region113: #{transformer_forward.1} parent=87 // pred_check
          %p722 = pneg %p186
        $region114: #{transformer_forward.1} parent=87 // pred_check_branch
          %724 = sbr.rel (%p722) target = $region116
        $region115: #{transformer_forward.1} parent=87 // pred_region
          %726 = dma.done [#allocation11], 64
        $region116: #{transformer_forward.1} parent=87 // pred_fallthru
          _
        // Predicated region
        $region117: #{transformer_forward.1} parent=87 // pred_check
          %p727 = pneg %p207
        $region118: #{transformer_forward.1} parent=87 // pred_check_branch
          %729 = sbr.rel (%p727) target = $region120
        $region119: #{transformer_forward.1} parent=87 // pred_region
          %731 = dma.done [#allocation14], 64
        $region120: #{transformer_forward.1} parent=87 // pred_fallthru
          _
        // Predicated region
        $region121: #{transformer_forward.1} parent=87 // pred_check
          %p732 = pneg %p228
        $region122: #{transformer_forward.1} parent=87 // pred_check_branch
          %734 = sbr.rel (%p732) target = $region124
        $region123: #{transformer_forward.1} parent=87 // pred_region
          %736 = dma.done [#allocation14], 64
        $region124: #{transformer_forward.1} parent=87 // pred_fallthru
          _
        // Predicated region
        $region125: #{transformer_forward.1} parent=87 // pred_check
          %p737 = pneg %p249
        $region126: #{transformer_forward.1} parent=87 // pred_check_branch
          %739 = sbr.rel (%p737) target = $region128
        $region127: #{transformer_forward.1} parent=87 // pred_region
          %741 = dma.done [#allocation17], 65536
        $region128: #{transformer_forward.1} parent=87 // pred_fallthru
          _
        // Predicated region
        $region129: #{transformer_forward.1} parent=87 // pred_check
          %p742 = pneg %p270
        $region130: #{transformer_forward.1} parent=87 // pred_check_branch
          %744 = sbr.rel (%p742) target = $region132
        $region131: #{transformer_forward.1} parent=87 // pred_region
          %746 = dma.done [#allocation17], 512
        $region132: #{transformer_forward.1} parent=87 // pred_fallthru
          _
        // Predicated region
        $region133: #{transformer_forward.1} parent=87 // pred_check
          %p747 = pneg %p291
        $region134: #{transformer_forward.1} parent=87 // pred_check_branch
          %749 = sbr.rel (%p747) target = $region136
        $region135: #{transformer_forward.1} parent=87 // pred_region
          %751 = dma.done [#allocation20], 65536
        $region136: #{transformer_forward.1} parent=87 // pred_fallthru
          _
        // Predicated region
        $region137: #{transformer_forward.1} parent=87 // pred_check
          %p752 = pneg %p312
        $region138: #{transformer_forward.1} parent=87 // pred_check_branch
          %754 = sbr.rel (%p752) target = $region140
        $region139: #{transformer_forward.1} parent=87 // pred_region
          %756 = dma.done [#allocation20], 64
        $region140: #{transformer_forward.1} parent=87 // pred_fallthru
          _
        // Predicated region
        $region141: #{transformer_forward.1} parent=87 // pred_check
          %p757 = pneg %p333
        $region142: #{transformer_forward.1} parent=87 // pred_check_branch
          %759 = sbr.rel (%p757) target = $region144
        $region143: #{transformer_forward.1} parent=87 // pred_region
          %761 = dma.done [#allocation23], 64
        $region144: #{transformer_forward.1} parent=87 // pred_fallthru
          _
        // Predicated region
        $region145: #{transformer_forward.1} parent=87 // pred_check
          %p762 = pneg %p354
        $region146: #{transformer_forward.1} parent=87 // pred_check_branch
          %764 = sbr.rel (%p762) target = $region148
        $region147: #{transformer_forward.1} parent=87 // pred_region
          %766 = dma.done [#allocation23], 64
        $region148: #{transformer_forward.1} parent=87 // pred_fallthru
          _
        // Predicated region
        $region149: #{transformer_forward.1} parent=87 // pred_check
          %p767 = pneg %p375
        $region150: #{transformer_forward.1} parent=87 // pred_check_branch
          %769 = sbr.rel (%p767) target = $region152
        $region151: #{transformer_forward.1} parent=87 // pred_region
          %771 = dma.done [#allocation26], 2048
        $region152: #{transformer_forward.1} parent=87 // pred_fallthru
          _
        // Predicated region
        $region153: #{transformer_forward.1} parent=87 // pred_check
          %p772 = pneg %p396
        $region154: #{transformer_forward.1} parent=87 // pred_check_branch
          %774 = sbr.rel (%p772) target = $region156
        $region155: #{transformer_forward.1} parent=87 // pred_region
          %776 = dma.done [#allocation26], 16
        $region156: #{transformer_forward.1} parent=87 // pred_fallthru
          _
        %s777 = sand.u32 %s47, 1
        %s778 = scalar_lea.sflag [#allocation3], %s777
        %s779 = sand.u32 %s47, 1
        %s780 = smul.addr %s779, 8
        %s781 = scalar_lea.vmem [#allocation2], %s780
        %p782 = pneg %p60
        %p783 = pneg %p57
        %p784 = pneg %p81
        %p785 = pneg %p78
        %p786 = pneg %p102
        %p787 = pneg %p99
        %p788 = pneg %p123
        %p789 = pneg %p120
        %p790 = pneg %p144
        %p791 = pneg %p141
        %p792 = pneg %p165
        %p793 = pneg %p162
        %p794 = pneg %p186
        %p795 = pneg %p183
        %p796 = pneg %p207
        %p797 = pneg %p204
        %p798 = pneg %p228
        %p799 = pneg %p225
        %p800 = pneg %p249
        %p801 = pneg %p246
        %p802 = pneg %p270
        %p803 = pneg %p267
        %p804 = pneg %p291
        %p805 = pneg %p288
        %p806 = pneg %p312
        %p807 = pneg %p309
        %p808 = pneg %p333
        %p809 = pneg %p330
        %p810 = pneg %p354
        %p811 = pneg %p351
        %p812 = pneg %p375
        %p813 = pneg %p372
        %p814 = pneg %p396
        %p815 = pneg %p393
        %p816 = pneg %p422
        %p817 = pneg %p419
        %p818 = scmp.lt.s32.totalorder %s39, 1
        %s819 = scalar_select %p818, %s39, 1
        %s820 = smul.addr %s819, 8
        %s821 = scalar_lea.vmem %s17, %s820
        %p822 = scmp.lt.s32.totalorder %s39, 1
        %s823 = scalar_select %p822, %s39, 1
        %s824 = smul.addr %s823, 8
        %s825 = scalar_lea.vmem %s17, %s824
        %v827 = vld [vmem:[%s691] sm:$0xff]
        %v828 = vld [vmem:[#allocation4] sm:$0xff]
        %v829 = vld [vmem:[#allocation4 + $0x8] sm:$0xff]
        %v830 = vld [vmem:[#allocation4 + $0x10] sm:$0xff]
        %v831 = vld [vmem:[#allocation4 + $0x18] sm:$0xff]
        %v832 = vpack.c.bf16 %v827, %v827
        %v833 = vld [vmem:[#allocation6] sm:$0x3]
        %v835 = vperm.slane %v833, 0
        %v836 = vperm.slane %v833, 1
        %v843 = vunpack.c.l.b16 %v828
        %v844 = vunpack.c.h.b16 %v828
        %v845 = vunpack.c.l.b16 %v829
        %v846 = vunpack.c.h.b16 %v829
        %v847 = vunpack.c.l.b16 %v830
        %v848 = vunpack.c.h.b16 %v830
        %v849 = vunpack.c.l.b16 %v831
        %v850 = vunpack.c.h.b16 %v831
        %v851 = vpack.c.b16 %v845, %v843
        %v852 = vpack.c.b16 %v846, %v844
        %v853 = vpack.c.b16 %v849, %v847
        %v854 = vpack.c.b16 %v850, %v848
        %vm859 = vcmask 261120
        %v861 = vsel %vm859, %v832, 0
        %863 = vmatpush.bf16.msra.mxu0 0
        %864 = vmatpush.bf16.msra.mxu0 0
        %865 = vmatpush.bf16.msra.mxu0 0
        %866 = vmatpush.bf16.msra.mxu0 0
        %867 = vmatpush.bf16.msra.mxu0 0
        %868 = vmatpush.bf16.msra.mxu0 0
        %869 = vmatpush.bf16.msra.mxu0 %v853
        %870 = vmatpush.bf16.msra.mxu0 %v851
        %871 = vmatmul.bf16.gmra.mxu0 %v861
        %v872 = vpop.f32.mrf.mxu0
        %v873 = vadd.f32 %v835, %v872
        %v874 = vpop.f32.mrf.mxu0
        %875 = vdwg.mxu0
        %876 = vmatpush.bf16.msra.mxu0 0
        %877 = vmatpush.bf16.msra.mxu0 0
        %878 = vmatpush.bf16.msra.mxu0 0
        %879 = vmatpush.bf16.msra.mxu0 0
        %880 = vmatpush.bf16.msra.mxu0 0
        %881 = vmatpush.bf16.msra.mxu0 0
        %882 = vmatpush.bf16.msra.mxu0 %v854
        %883 = vmatpush.bf16.msra.mxu0 %v852
        %884 = vmatmul.bf16.gmra.mxu0 %v861
        %v885 = vpop.f32.mrf.mxu0
        %v886 = vadd.f32 %v836, %v885
        %v887 = vpop.f32.mrf.mxu0
        %888 = vdwg.mxu0
        %v889 = vld [vmem:[#allocation7] sm:$0xff]
        %v890 = vld [vmem:[#allocation7 + $0x8] sm:$0xff]
        %v891 = vld [vmem:[#allocation7 + $0x10] sm:$0xff]
        %v892 = vld [vmem:[#allocation7 + $0x18] sm:$0xff]
        %v893 = vld [vmem:[#allocation7 + $0x20] sm:$0xff]
        %v894 = vld [vmem:[#allocation7 + $0x28] sm:$0xff]
        %v895 = vld [vmem:[#allocation7 + $0x30] sm:$0xff]
        %v896 = vld [vmem:[#allocation7 + $0x38] sm:$0xff]
        %v897 = vld [vmem:[#allocation7 + $0x40] sm:$0xff]
        %v898 = vld [vmem:[#allocation7 + $0x48] sm:$0xff]
        %v899 = vld [vmem:[#allocation7 + $0x50] sm:$0xff]
        %v900 = vld [vmem:[#allocation7 + $0x58] sm:$0xff]
        %v901 = vld [vmem:[#allocation7 + $0x60] sm:$0xff]
        %v902 = vld [vmem:[#allocation7 + $0x68] sm:$0xff]
        %v903 = vld [vmem:[#allocation7 + $0x70] sm:$0xff]
        %v904 = vld [vmem:[#allocation7 + $0x78] sm:$0xff]
        %v905 = vld [vmem:[#allocation7 + $0x80] sm:$0xff]
        %v906 = vld [vmem:[#allocation7 + $0x88] sm:$0xff]
        %v907 = vld [vmem:[#allocation7 + $0x90] sm:$0xff]
        %v908 = vld [vmem:[#allocation7 + $0x98] sm:$0xff]
        %v909 = vld [vmem:[#allocation7 + $0xa0] sm:$0xff]
        %v910 = vld [vmem:[#allocation7 + $0xa8] sm:$0xff]
        %v911 = vld [vmem:[#allocation7 + $0xb0] sm:$0xff]
        %v912 = vld [vmem:[#allocation7 + $0xb8] sm:$0xff]
        %v913 = vld [vmem:[#allocation7 + $0xc0] sm:$0xff]
        %v914 = vld [vmem:[#allocation7 + $0xc8] sm:$0xff]
        %v915 = vld [vmem:[#allocation7 + $0xd0] sm:$0xff]
        %v916 = vld [vmem:[#allocation7 + $0xd8] sm:$0xff]
        %v917 = vld [vmem:[#allocation7 + $0xe0] sm:$0xff]
        %v918 = vld [vmem:[#allocation7 + $0xe8] sm:$0xff]
        %v919 = vld [vmem:[#allocation7 + $0xf0] sm:$0xff]
        %v920 = vld [vmem:[#allocation7 + $0xf8] sm:$0xff]
        %v921 = vld [vmem:[#allocation7 + $0x100] sm:$0xff]
        %v922 = vld [vmem:[#allocation7 + $0x108] sm:$0xff]
        %v923 = vld [vmem:[#allocation7 + $0x110] sm:$0xff]
        %v924 = vld [vmem:[#allocation7 + $0x118] sm:$0xff]
        %v925 = vld [vmem:[#allocation7 + $0x120] sm:$0xff]
        %v926 = vld [vmem:[#allocation7 + $0x128] sm:$0xff]
        %v927 = vld [vmem:[#allocation7 + $0x130] sm:$0xff]
        %v928 = vld [vmem:[#allocation7 + $0x138] sm:$0xff]
        %v929 = vld [vmem:[#allocation7 + $0x140] sm:$0xff]
        %v930 = vld [vmem:[#allocation7 + $0x148] sm:$0xff]
        %v931 = vld [vmem:[#allocation7 + $0x150] sm:$0xff]
        %v932 = vld [vmem:[#allocation7 + $0x158] sm:$0xff]
        %v933 = vld [vmem:[#allocation7 + $0x160] sm:$0xff]
        %v934 = vld [vmem:[#allocation7 + $0x168] sm:$0xff]
        %v935 = vld [vmem:[#allocation7 + $0x170] sm:$0xff]
        %v936 = vld [vmem:[#allocation7 + $0x178] sm:$0xff]
        %v937 = vld [vmem:[#allocation7 + $0x180] sm:$0xff]
        %v938 = vld [vmem:[#allocation7 + $0x188] sm:$0xff]
        %v939 = vld [vmem:[#allocation7 + $0x190] sm:$0xff]
        %v940 = vld [vmem:[#allocation7 + $0x198] sm:$0xff]
        %v941 = vld [vmem:[#allocation7 + $0x1a0] sm:$0xff]
        %v942 = vld [vmem:[#allocation7 + $0x1a8] sm:$0xff]
        %v943 = vld [vmem:[#allocation7 + $0x1b0] sm:$0xff]
        %v944 = vld [vmem:[#allocation7 + $0x1b8] sm:$0xff]
        %v945 = vld [vmem:[#allocation7 + $0x1c0] sm:$0xff]
        %v946 = vld [vmem:[#allocation7 + $0x1c8] sm:$0xff]
        %v947 = vld [vmem:[#allocation7 + $0x1d0] sm:$0xff]
        %v948 = vld [vmem:[#allocation7 + $0x1d8] sm:$0xff]
        %v949 = vld [vmem:[#allocation7 + $0x1e0] sm:$0xff]
        %v950 = vld [vmem:[#allocation7 + $0x1e8] sm:$0xff]
        %v951 = vld [vmem:[#allocation7 + $0x1f0] sm:$0xff]
        %v952 = vld [vmem:[#allocation7 + $0x1f8] sm:$0xff]
        %v953 = vld [vmem:[#allocation7 + $0x200] sm:$0xff]
        %v954 = vld [vmem:[#allocation7 + $0x208] sm:$0xff]
        %v955 = vld [vmem:[#allocation7 + $0x210] sm:$0xff]
        %v956 = vld [vmem:[#allocation7 + $0x218] sm:$0xff]
        %v957 = vld [vmem:[#allocation7 + $0x220] sm:$0xff]
        %v958 = vld [vmem:[#allocation7 + $0x228] sm:$0xff]
        %v959 = vld [vmem:[#allocation7 + $0x230] sm:$0xff]
        %v960 = vld [vmem:[#allocation7 + $0x238] sm:$0xff]
        %v961 = vld [vmem:[#allocation7 + $0x240] sm:$0xff]
        %v962 = vld [vmem:[#allocation7 + $0x248] sm:$0xff]
        %v963 = vld [vmem:[#allocation7 + $0x250] sm:$0xff]
        %v964 = vld [vmem:[#allocation7 + $0x258] sm:$0xff]
        %v965 = vld [vmem:[#allocation7 + $0x260] sm:$0xff]
        %v966 = vld [vmem:[#allocation7 + $0x268] sm:$0xff]
        %v967 = vld [vmem:[#allocation7 + $0x270] sm:$0xff]
        %v968 = vld [vmem:[#allocation7 + $0x278] sm:$0xff]
        %v969 = vld [vmem:[#allocation7 + $0x280] sm:$0xff]
        %v970 = vld [vmem:[#allocation7 + $0x288] sm:$0xff]
        %v971 = vld [vmem:[#allocation7 + $0x290] sm:$0xff]
        %v972 = vld [vmem:[#allocation7 + $0x298] sm:$0xff]
        %v973 = vld [vmem:[#allocation7 + $0x2a0] sm:$0xff]
        %v974 = vld [vmem:[#allocation7 + $0x2a8] sm:$0xff]
        %v975 = vld [vmem:[#allocation7 + $0x2b0] sm:$0xff]
        %v976 = vld [vmem:[#allocation7 + $0x2b8] sm:$0xff]
        %v977 = vld [vmem:[#allocation7 + $0x2c0] sm:$0xff]
        %v978 = vld [vmem:[#allocation7 + $0x2c8] sm:$0xff]
        %v979 = vld [vmem:[#allocation7 + $0x2d0] sm:$0xff]
        %v980 = vld [vmem:[#allocation7 + $0x2d8] sm:$0xff]
        %v981 = vld [vmem:[#allocation7 + $0x2e0] sm:$0xff]
        %v982 = vld [vmem:[#allocation7 + $0x2e8] sm:$0xff]
        %v983 = vld [vmem:[#allocation7 + $0x2f0] sm:$0xff]
        %v984 = vld [vmem:[#allocation7 + $0x2f8] sm:$0xff]
        %v985 = vpack.c.bf16 %v873, %v873
        %v986 = vpack.c.bf16 %v886, %v886
        %v987 = vld [vmem:[#allocation9] sm:$0x3f]
        %v989 = vperm.slane %v987, 0
        %v990 = vperm.slane %v987, 1
        %v991 = vperm.slane %v987, 2
        %v992 = vperm.slane %v987, 3
        %v993 = vperm.slane %v987, 4
        %v994 = vperm.slane %v987, 5
        %v1097 = vunpack.c.l.b16 %v889
        %v1098 = vunpack.c.h.b16 %v889
        %v1099 = vunpack.c.l.b16 %v890
        %v1100 = vunpack.c.h.b16 %v890
        %v1101 = vunpack.c.l.b16 %v891
        %v1102 = vunpack.c.h.b16 %v891
        %v1103 = vunpack.c.l.b16 %v892
        %v1104 = vunpack.c.h.b16 %v892
        %v1105 = vunpack.c.l.b16 %v893
        %v1106 = vunpack.c.h.b16 %v893
        %v1107 = vunpack.c.l.b16 %v894
        %v1108 = vunpack.c.h.b16 %v894
        %v1109 = vunpack.c.l.b16 %v895
        %v1110 = vunpack.c.h.b16 %v895
        %v1111 = vunpack.c.l.b16 %v896
        %v1112 = vunpack.c.h.b16 %v896
        %v1113 = vunpack.c.l.b16 %v897
        %v1114 = vunpack.c.h.b16 %v897
        %v1115 = vunpack.c.l.b16 %v898
        %v1116 = vunpack.c.h.b16 %v898
        %v1117 = vunpack.c.l.b16 %v899
        %v1118 = vunpack.c.h.b16 %v899
        %v1119 = vunpack.c.l.b16 %v900
        %v1120 = vunpack.c.h.b16 %v900
        %v1121 = vunpack.c.l.b16 %v901
        %v1122 = vunpack.c.h.b16 %v901
        %v1123 = vunpack.c.l.b16 %v902
        %v1124 = vunpack.c.h.b16 %v902
        %v1125 = vunpack.c.l.b16 %v903
        %v1126 = vunpack.c.h.b16 %v903
        %v1127 = vunpack.c.l.b16 %v904
        %v1128 = vunpack.c.h.b16 %v904
        %v1129 = vunpack.c.l.b16 %v905
        %v1130 = vunpack.c.h.b16 %v905
        %v1131 = vunpack.c.l.b16 %v906
        %v1132 = vunpack.c.h.b16 %v906
        %v1133 = vunpack.c.l.b16 %v907
        %v1134 = vunpack.c.h.b16 %v907
        %v1135 = vunpack.c.l.b16 %v908
        %v1136 = vunpack.c.h.b16 %v908
        %v1137 = vunpack.c.l.b16 %v909
        %v1138 = vunpack.c.h.b16 %v909
        %v1139 = vunpack.c.l.b16 %v910
        %v1140 = vunpack.c.h.b16 %v910
        %v1141 = vunpack.c.l.b16 %v911
        %v1142 = vunpack.c.h.b16 %v911
        %v1143 = vunpack.c.l.b16 %v912
        %v1144 = vunpack.c.h.b16 %v912
        %v1145 = vunpack.c.l.b16 %v913
        %v1146 = vunpack.c.h.b16 %v913
        %v1147 = vunpack.c.l.b16 %v914
        %v1148 = vunpack.c.h.b16 %v914
        %v1149 = vunpack.c.l.b16 %v915
        %v1150 = vunpack.c.h.b16 %v915
        %v1151 = vunpack.c.l.b16 %v916
        %v1152 = vunpack.c.h.b16 %v916
        %v1153 = vunpack.c.l.b16 %v917
        %v1154 = vunpack.c.h.b16 %v917
        %v1155 = vunpack.c.l.b16 %v918
        %v1156 = vunpack.c.h.b16 %v918
        %v1157 = vunpack.c.l.b16 %v919
        %v1158 = vunpack.c.h.b16 %v919
        %v1159 = vunpack.c.l.b16 %v920
        %v1160 = vunpack.c.h.b16 %v920
        %v1161 = vunpack.c.l.b16 %v921
        %v1162 = vunpack.c.h.b16 %v921
        %v1163 = vunpack.c.l.b16 %v922
        %v1164 = vunpack.c.h.b16 %v922
        %v1165 = vunpack.c.l.b16 %v923
        %v1166 = vunpack.c.h.b16 %v923
        %v1167 = vunpack.c.l.b16 %v924
        %v1168 = vunpack.c.h.b16 %v924
        %v1169 = vunpack.c.l.b16 %v925
        %v1170 = vunpack.c.h.b16 %v925
        %v1171 = vunpack.c.l.b16 %v926
        %v1172 = vunpack.c.h.b16 %v926
        %v1173 = vunpack.c.l.b16 %v927
        %v1174 = vunpack.c.h.b16 %v927
        %v1175 = vunpack.c.l.b16 %v928
        %v1176 = vunpack.c.h.b16 %v928
        %v1177 = vunpack.c.l.b16 %v929
        %v1178 = vunpack.c.h.b16 %v929
        %v1179 = vunpack.c.l.b16 %v930
        %v1180 = vunpack.c.h.b16 %v930
        %v1181 = vunpack.c.l.b16 %v931
        %v1182 = vunpack.c.h.b16 %v931
        %v1183 = vunpack.c.l.b16 %v932
        %v1184 = vunpack.c.h.b16 %v932
        %v1185 = vunpack.c.l.b16 %v933
        %v1186 = vunpack.c.h.b16 %v933
        %v1187 = vunpack.c.l.b16 %v934
        %v1188 = vunpack.c.h.b16 %v934
        %v1189 = vunpack.c.l.b16 %v935
        %v1190 = vunpack.c.h.b16 %v935
        %v1191 = vunpack.c.l.b16 %v936
        %v1192 = vunpack.c.h.b16 %v936
        %v1193 = vunpack.c.l.b16 %v937
        %v1194 = vunpack.c.h.b16 %v937
        %v1195 = vunpack.c.l.b16 %v938
        %v1196 = vunpack.c.h.b16 %v938
        %v1197 = vunpack.c.l.b16 %v939
        %v1198 = vunpack.c.h.b16 %v939
        %v1199 = vunpack.c.l.b16 %v940
        %v1200 = vunpack.c.h.b16 %v940
        %v1201 = vunpack.c.l.b16 %v941
        %v1202 = vunpack.c.h.b16 %v941
        %v1203 = vunpack.c.l.b16 %v942
        %v1204 = vunpack.c.h.b16 %v942
        %v1205 = vunpack.c.l.b16 %v943
        %v1206 = vunpack.c.h.b16 %v943
        %v1207 = vunpack.c.l.b16 %v944
        %v1208 = vunpack.c.h.b16 %v944
        %v1209 = vunpack.c.l.b16 %v945
        %v1210 = vunpack.c.h.b16 %v945
        %v1211 = vunpack.c.l.b16 %v946
        %v1212 = vunpack.c.h.b16 %v946
        %v1213 = vunpack.c.l.b16 %v947
        %v1214 = vunpack.c.h.b16 %v947
        %v1215 = vunpack.c.l.b16 %v948
        %v1216 = vunpack.c.h.b16 %v948
        %v1217 = vunpack.c.l.b16 %v949
        %v1218 = vunpack.c.h.b16 %v949
        %v1219 = vunpack.c.l.b16 %v950
        %v1220 = vunpack.c.h.b16 %v950
        %v1221 = vunpack.c.l.b16 %v951
        %v1222 = vunpack.c.h.b16 %v951
        %v1223 = vunpack.c.l.b16 %v952
        %v1224 = vunpack.c.h.b16 %v952
        %v1225 = vunpack.c.l.b16 %v953
        %v1226 = vunpack.c.h.b16 %v953
        %v1227 = vunpack.c.l.b16 %v954
        %v1228 = vunpack.c.h.b16 %v954
        %v1229 = vunpack.c.l.b16 %v955
        %v1230 = vunpack.c.h.b16 %v955
        %v1231 = vunpack.c.l.b16 %v956
        %v1232 = vunpack.c.h.b16 %v956
        %v1233 = vunpack.c.l.b16 %v957
        %v1234 = vunpack.c.h.b16 %v957
        %v1235 = vunpack.c.l.b16 %v958
        %v1236 = vunpack.c.h.b16 %v958
        %v1237 = vunpack.c.l.b16 %v959
        %v1238 = vunpack.c.h.b16 %v959
        %v1239 = vunpack.c.l.b16 %v960
        %v1240 = vunpack.c.h.b16 %v960
        %v1241 = vunpack.c.l.b16 %v961
        %v1242 = vunpack.c.h.b16 %v961
        %v1243 = vunpack.c.l.b16 %v962
        %v1244 = vunpack.c.h.b16 %v962
        %v1245 = vunpack.c.l.b16 %v963
        %v1246 = vunpack.c.h.b16 %v963
        %v1247 = vunpack.c.l.b16 %v964
        %v1248 = vunpack.c.h.b16 %v964
        %v1249 = vunpack.c.l.b16 %v965
        %v1250 = vunpack.c.h.b16 %v965
        %v1251 = vunpack.c.l.b16 %v966
        %v1252 = vunpack.c.h.b16 %v966
        %v1253 = vunpack.c.l.b16 %v967
        %v1254 = vunpack.c.h.b16 %v967
        %v1255 = vunpack.c.l.b16 %v968
        %v1256 = vunpack.c.h.b16 %v968
        %v1257 = vunpack.c.l.b16 %v969
        %v1258 = vunpack.c.h.b16 %v969
        %v1259 = vunpack.c.l.b16 %v970
        %v1260 = vunpack.c.h.b16 %v970
        %v1261 = vunpack.c.l.b16 %v971
        %v1262 = vunpack.c.h.b16 %v971
        %v1263 = vunpack.c.l.b16 %v972
        %v1264 = vunpack.c.h.b16 %v972
        %v1265 = vunpack.c.l.b16 %v973
        %v1266 = vunpack.c.h.b16 %v973
        %v1267 = vunpack.c.l.b16 %v974
        %v1268 = vunpack.c.h.b16 %v974
        %v1269 = vunpack.c.l.b16 %v975
        %v1270 = vunpack.c.h.b16 %v975
        %v1271 = vunpack.c.l.b16 %v976
        %v1272 = vunpack.c.h.b16 %v976
        %v1273 = vunpack.c.l.b16 %v977
        %v1274 = vunpack.c.h.b16 %v977
        %v1275 = vunpack.c.l.b16 %v978
        %v1276 = vunpack.c.h.b16 %v978
        %v1277 = vunpack.c.l.b16 %v979
        %v1278 = vunpack.c.h.b16 %v979
        %v1279 = vunpack.c.l.b16 %v980
        %v1280 = vunpack.c.h.b16 %v980
        %v1281 = vunpack.c.l.b16 %v981
        %v1282 = vunpack.c.h.b16 %v981
        %v1283 = vunpack.c.l.b16 %v982
        %v1284 = vunpack.c.h.b16 %v982
        %v1285 = vunpack.c.l.b16 %v983
        %v1286 = vunpack.c.h.b16 %v983
        %v1287 = vunpack.c.l.b16 %v984
        %v1288 = vunpack.c.h.b16 %v984
        %v1289 = vpack.c.b16 %v1103, %v1097
        %v1290 = vpack.c.b16 %v1104, %v1098
        %v1291 = vpack.c.b16 %v1105, %v1099
        %v1292 = vpack.c.b16 %v1106, %v1100
        %v1293 = vpack.c.b16 %v1107, %v1101
        %v1294 = vpack.c.b16 %v1108, %v1102
        %v1295 = vpack.c.b16 %v1115, %v1109
        %v1296 = vpack.c.b16 %v1116, %v1110
        %v1297 = vpack.c.b16 %v1117, %v1111
        %v1298 = vpack.c.b16 %v1118, %v1112
        %v1299 = vpack.c.b16 %v1119, %v1113
        %v1300 = vpack.c.b16 %v1120, %v1114
        %v1301 = vpack.c.b16 %v1127, %v1121
        %v1302 = vpack.c.b16 %v1128, %v1122
        %v1303 = vpack.c.b16 %v1129, %v1123
        %v1304 = vpack.c.b16 %v1130, %v1124
        %v1305 = vpack.c.b16 %v1131, %v1125
        %v1306 = vpack.c.b16 %v1132, %v1126
        %v1307 = vpack.c.b16 %v1139, %v1133
        %v1308 = vpack.c.b16 %v1140, %v1134
        %v1309 = vpack.c.b16 %v1141, %v1135
        %v1310 = vpack.c.b16 %v1142, %v1136
        %v1311 = vpack.c.b16 %v1143, %v1137
        %v1312 = vpack.c.b16 %v1144, %v1138
        %v1313 = vpack.c.b16 %v1151, %v1145
        %v1314 = vpack.c.b16 %v1152, %v1146
        %v1315 = vpack.c.b16 %v1153, %v1147
        %v1316 = vpack.c.b16 %v1154, %v1148
        %v1317 = vpack.c.b16 %v1155, %v1149
        %v1318 = vpack.c.b16 %v1156, %v1150
        %v1319 = vpack.c.b16 %v1163, %v1157
        %v1320 = vpack.c.b16 %v1164, %v1158
        %v1321 = vpack.c.b16 %v1165, %v1159
        %v1322 = vpack.c.b16 %v1166, %v1160
        %v1323 = vpack.c.b16 %v1167, %v1161
        %v1324 = vpack.c.b16 %v1168, %v1162
        %v1325 = vpack.c.b16 %v1175, %v1169
        %v1326 = vpack.c.b16 %v1176, %v1170
        %v1327 = vpack.c.b16 %v1177, %v1171
        %v1328 = vpack.c.b16 %v1178, %v1172
        %v1329 = vpack.c.b16 %v1179, %v1173
        %v1330 = vpack.c.b16 %v1180, %v1174
        %v1331 = vpack.c.b16 %v1187, %v1181
        %v1332 = vpack.c.b16 %v1188, %v1182
        %v1333 = vpack.c.b16 %v1189, %v1183
        %v1334 = vpack.c.b16 %v1190, %v1184
        %v1335 = vpack.c.b16 %v1191, %v1185
        %v1336 = vpack.c.b16 %v1192, %v1186
        %v1337 = vpack.c.b16 %v1199, %v1193
        %v1338 = vpack.c.b16 %v1200, %v1194
        %v1339 = vpack.c.b16 %v1201, %v1195
        %v1340 = vpack.c.b16 %v1202, %v1196
        %v1341 = vpack.c.b16 %v1203, %v1197
        %v1342 = vpack.c.b16 %v1204, %v1198
        %v1343 = vpack.c.b16 %v1211, %v1205
        %v1344 = vpack.c.b16 %v1212, %v1206
        %v1345 = vpack.c.b16 %v1213, %v1207
        %v1346 = vpack.c.b16 %v1214, %v1208
        %v1347 = vpack.c.b16 %v1215, %v1209
        %v1348 = vpack.c.b16 %v1216, %v1210
        %v1349 = vpack.c.b16 %v1223, %v1217
        %v1350 = vpack.c.b16 %v1224, %v1218
        %v1351 = vpack.c.b16 %v1225, %v1219
        %v1352 = vpack.c.b16 %v1226, %v1220
        %v1353 = vpack.c.b16 %v1227, %v1221
        %v1354 = vpack.c.b16 %v1228, %v1222
        %v1355 = vpack.c.b16 %v1235, %v1229
        %v1356 = vpack.c.b16 %v1236, %v1230
        %v1357 = vpack.c.b16 %v1237, %v1231
        %v1358 = vpack.c.b16 %v1238, %v1232
        %v1359 = vpack.c.b16 %v1239, %v1233
        %v1360 = vpack.c.b16 %v1240, %v1234
        %v1361 = vpack.c.b16 %v1247, %v1241
        %v1362 = vpack.c.b16 %v1248, %v1242
        %v1363 = vpack.c.b16 %v1249, %v1243
        %v1364 = vpack.c.b16 %v1250, %v1244
        %v1365 = vpack.c.b16 %v1251, %v1245
        %v1366 = vpack.c.b16 %v1252, %v1246
        %v1367 = vpack.c.b16 %v1259, %v1253
        %v1368 = vpack.c.b16 %v1260, %v1254
        %v1369 = vpack.c.b16 %v1261, %v1255
        %v1370 = vpack.c.b16 %v1262, %v1256
        %v1371 = vpack.c.b16 %v1263, %v1257
        %v1372 = vpack.c.b16 %v1264, %v1258
        %v1373 = vpack.c.b16 %v1271, %v1265
        %v1374 = vpack.c.b16 %v1272, %v1266
        %v1375 = vpack.c.b16 %v1273, %v1267
        %v1376 = vpack.c.b16 %v1274, %v1268
        %v1377 = vpack.c.b16 %v1275, %v1269
        %v1378 = vpack.c.b16 %v1276, %v1270
        %v1379 = vpack.c.b16 %v1283, %v1277
        %v1380 = vpack.c.b16 %v1284, %v1278
        %v1381 = vpack.c.b16 %v1285, %v1279
        %v1382 = vpack.c.b16 %v1286, %v1280
        %v1383 = vpack.c.b16 %v1287, %v1281
        %v1384 = vpack.c.b16 %v1288, %v1282
        %1481 = vmatpush.bf16.msra.mxu0 %v1331
        %1482 = vmatpush.bf16.msra.mxu0 %v1325
        %1483 = vmatpush.bf16.msra.mxu0 %v1319
        %1484 = vmatpush.bf16.msra.mxu0 %v1313
        %1485 = vmatpush.bf16.msra.mxu0 %v1307
        %1486 = vmatpush.bf16.msra.mxu0 %v1301
        %1487 = vmatpush.bf16.msra.mxu0 %v1295
        %1488 = vmatpush.bf16.msra.mxu0 %v1289
        %1489 = vmatmul.bf16.gmra.mxu0 %v985
        %v1490 = vpop.f32.mrf.mxu0
        %v1491 = vadd.f32 %v989, %v1490
        %v1492 = vpop.f32.mrf.mxu0
        %1493 = vdwg.mxu0
        %1494 = vmatpush.bf16.msra.mxu0 %v1379
        %1495 = vmatpush.bf16.msra.mxu0 %v1373
        %1496 = vmatpush.bf16.msra.mxu0 %v1367
        %1497 = vmatpush.bf16.msra.mxu0 %v1361
        %1498 = vmatpush.bf16.msra.mxu0 %v1355
        %1499 = vmatpush.bf16.msra.mxu0 %v1349
        %1500 = vmatpush.bf16.msra.mxu0 %v1343
        %1501 = vmatpush.bf16.msra.mxu0 %v1337
        %1502 = vmatmul.bf16.gmra.mxu0 %v986
        %v1503 = vpop.f32.mrf.mxu0
        %v1504 = vadd.f32 %v1491, %v1503
        %v1505 = vpop.f32.mrf.mxu0
        %1506 = vdwg.mxu0
        %1507 = vmatpush.bf16.msra.mxu0 %v1332
        %1508 = vmatpush.bf16.msra.mxu0 %v1326
        %1509 = vmatpush.bf16.msra.mxu0 %v1320
        %1510 = vmatpush.bf16.msra.mxu0 %v1314
        %1511 = vmatpush.bf16.msra.mxu0 %v1308
        %1512 = vmatpush.bf16.msra.mxu0 %v1302
        %1513 = vmatpush.bf16.msra.mxu0 %v1296
        %1514 = vmatpush.bf16.msra.mxu0 %v1290
        %1515 = vmatmul.bf16.gmra.mxu0 %v985
        %v1516 = vpop.f32.mrf.mxu0
        %v1517 = vadd.f32 %v990, %v1516
        %v1518 = vpop.f32.mrf.mxu0
        %1519 = vdwg.mxu0
        %1520 = vmatpush.bf16.msra.mxu0 %v1380
        %1521 = vmatpush.bf16.msra.mxu0 %v1374
        %1522 = vmatpush.bf16.msra.mxu0 %v1368
        %1523 = vmatpush.bf16.msra.mxu0 %v1362
        %1524 = vmatpush.bf16.msra.mxu0 %v1356
        %1525 = vmatpush.bf16.msra.mxu0 %v1350
        %1526 = vmatpush.bf16.msra.mxu0 %v1344
        %1527 = vmatpush.bf16.msra.mxu0 %v1338
        %1528 = vmatmul.bf16.gmra.mxu0 %v986
        %v1529 = vpop.f32.mrf.mxu0
        %v1530 = vadd.f32 %v1517, %v1529
        %v1531 = vpop.f32.mrf.mxu0
        %1532 = vdwg.mxu0
        %1533 = vmatpush.bf16.msra.mxu0 %v1333
        %1534 = vmatpush.bf16.msra.mxu0 %v1327
        %1535 = vmatpush.bf16.msra.mxu0 %v1321
        %1536 = vmatpush.bf16.msra.mxu0 %v1315
        %1537 = vmatpush.bf16.msra.mxu0 %v1309
        %1538 = vmatpush.bf16.msra.mxu0 %v1303
        %1539 = vmatpush.bf16.msra.mxu0 %v1297
        %1540 = vmatpush.bf16.msra.mxu0 %v1291
        %1541 = vmatmul.bf16.gmra.mxu0 %v985
        %v1542 = vpop.f32.mrf.mxu0
        %v1543 = vadd.f32 %v991, %v1542
        %v1544 = vpop.f32.mrf.mxu0
        %1545 = vdwg.mxu0
        %1546 = vmatpush.bf16.msra.mxu0 %v1381
        %1547 = vmatpush.bf16.msra.mxu0 %v1375
        %1548 = vmatpush.bf16.msra.mxu0 %v1369
        %1549 = vmatpush.bf16.msra.mxu0 %v1363
        %1550 = vmatpush.bf16.msra.mxu0 %v1357
        %1551 = vmatpush.bf16.msra.mxu0 %v1351
        %1552 = vmatpush.bf16.msra.mxu0 %v1345
        %1553 = vmatpush.bf16.msra.mxu0 %v1339
        %1554 = vmatmul.bf16.gmra.mxu0 %v986
        %v1555 = vpop.f32.mrf.mxu0
        %v1556 = vadd.f32 %v1543, %v1555
        %v1557 = vpop.f32.mrf.mxu0
        %1558 = vdwg.mxu0
        %1559 = vmatpush.bf16.msra.mxu0 %v1334
        %1560 = vmatpush.bf16.msra.mxu0 %v1328
        %1561 = vmatpush.bf16.msra.mxu0 %v1322
        %1562 = vmatpush.bf16.msra.mxu0 %v1316
        %1563 = vmatpush.bf16.msra.mxu0 %v1310
        %1564 = vmatpush.bf16.msra.mxu0 %v1304
        %1565 = vmatpush.bf16.msra.mxu0 %v1298
        %1566 = vmatpush.bf16.msra.mxu0 %v1292
        %1567 = vmatmul.bf16.gmra.mxu0 %v985
        %v1568 = vpop.f32.mrf.mxu0
        %v1569 = vadd.f32 %v992, %v1568
        %v1570 = vpop.f32.mrf.mxu0
        %1571 = vdwg.mxu0
        %1572 = vmatpush.bf16.msra.mxu0 %v1382
        %1573 = vmatpush.bf16.msra.mxu0 %v1376
        %1574 = vmatpush.bf16.msra.mxu0 %v1370
        %1575 = vmatpush.bf16.msra.mxu0 %v1364
        %1576 = vmatpush.bf16.msra.mxu0 %v1358
        %1577 = vmatpush.bf16.msra.mxu0 %v1352
        %1578 = vmatpush.bf16.msra.mxu0 %v1346
        %1579 = vmatpush.bf16.msra.mxu0 %v1340
        %1580 = vmatmul.bf16.gmra.mxu0 %v986
        %v1581 = vpop.f32.mrf.mxu0
        %v1582 = vadd.f32 %v1569, %v1581
        %v1583 = vpop.f32.mrf.mxu0
        %1584 = vdwg.mxu0
        %1585 = vmatpush.bf16.msra.mxu0 %v1335
        %1586 = vmatpush.bf16.msra.mxu0 %v1329
        %1587 = vmatpush.bf16.msra.mxu0 %v1323
        %1588 = vmatpush.bf16.msra.mxu0 %v1317
        %1589 = vmatpush.bf16.msra.mxu0 %v1311
        %1590 = vmatpush.bf16.msra.mxu0 %v1305
        %1591 = vmatpush.bf16.msra.mxu0 %v1299
        %1592 = vmatpush.bf16.msra.mxu0 %v1293
        %1593 = vmatmul.bf16.gmra.mxu0 %v985
        %v1594 = vpop.f32.mrf.mxu0
        %v1595 = vadd.f32 %v993, %v1594
        %v1596 = vpop.f32.mrf.mxu0
        %1597 = vdwg.mxu0
        %1598 = vmatpush.bf16.msra.mxu0 %v1383
        %1599 = vmatpush.bf16.msra.mxu0 %v1377
        %1600 = vmatpush.bf16.msra.mxu0 %v1371
        %1601 = vmatpush.bf16.msra.mxu0 %v1365
        %1602 = vmatpush.bf16.msra.mxu0 %v1359
        %1603 = vmatpush.bf16.msra.mxu0 %v1353
        %1604 = vmatpush.bf16.msra.mxu0 %v1347
        %1605 = vmatpush.bf16.msra.mxu0 %v1341
        %1606 = vmatmul.bf16.gmra.mxu0 %v986
        %v1607 = vpop.f32.mrf.mxu0
        %v1608 = vadd.f32 %v1595, %v1607
        %v1609 = vpop.f32.mrf.mxu0
        %1610 = vdwg.mxu0
        %1611 = vmatpush.bf16.msra.mxu0 %v1336
        %1612 = vmatpush.bf16.msra.mxu0 %v1330
        %1613 = vmatpush.bf16.msra.mxu0 %v1324
        %1614 = vmatpush.bf16.msra.mxu0 %v1318
        %1615 = vmatpush.bf16.msra.mxu0 %v1312
        %1616 = vmatpush.bf16.msra.mxu0 %v1306
        %1617 = vmatpush.bf16.msra.mxu0 %v1300
        %1618 = vmatpush.bf16.msra.mxu0 %v1294
        %1619 = vmatmul.bf16.gmra.mxu0 %v985
        %v1620 = vpop.f32.mrf.mxu0
        %v1621 = vadd.f32 %v994, %v1620
        %v1622 = vpop.f32.mrf.mxu0
        %1623 = vdwg.mxu0
        %1624 = vmatpush.bf16.msra.mxu0 %v1384
        %1625 = vmatpush.bf16.msra.mxu0 %v1378
        %1626 = vmatpush.bf16.msra.mxu0 %v1372
        %1627 = vmatpush.bf16.msra.mxu0 %v1366
        %1628 = vmatpush.bf16.msra.mxu0 %v1360
        %1629 = vmatpush.bf16.msra.mxu0 %v1354
        %1630 = vmatpush.bf16.msra.mxu0 %v1348
        %1631 = vmatpush.bf16.msra.mxu0 %v1342
        %1632 = vmatmul.bf16.gmra.mxu0 %v986
        %v1633 = vpop.f32.mrf.mxu0
        %v1634 = vadd.f32 %v1621, %v1633
        %v1635 = vpop.f32.mrf.mxu0
        %1636 = vdwg.mxu0
        %v1637 = vld [vmem:[#allocation10] sm:$0xff]
        %v1638 = vld [vmem:[#allocation10 + $0x8] sm:$0xff]
        %v1639 = vld [vmem:[#allocation10 + $0x10] sm:$0xff]
        %v1640 = vld [vmem:[#allocation10 + $0x18] sm:$0xff]
        %v1641 = vld [vmem:[#allocation10 + $0x20] sm:$0xff]
        %v1642 = vld [vmem:[#allocation10 + $0x28] sm:$0xff]
        %v1643 = vld [vmem:[#allocation10 + $0x30] sm:$0xff]
        %v1644 = vld [vmem:[#allocation10 + $0x38] sm:$0xff]
        %v1645 = vld [vmem:[#allocation10 + $0x40] sm:$0xff]
        %v1646 = vld [vmem:[#allocation10 + $0x48] sm:$0xff]
        %v1647 = vld [vmem:[#allocation10 + $0x50] sm:$0xff]
        %v1648 = vld [vmem:[#allocation10 + $0x58] sm:$0xff]
        %v1649 = vld [vmem:[#allocation10 + $0x60] sm:$0xff]
        %v1650 = vld [vmem:[#allocation10 + $0x68] sm:$0xff]
        %v1651 = vld [vmem:[#allocation10 + $0x70] sm:$0xff]
        %v1652 = vld [vmem:[#allocation10 + $0x78] sm:$0xff]
        %v1653 = vld [vmem:[#allocation10 + $0x80] sm:$0xff]
        %v1654 = vld [vmem:[#allocation10 + $0x88] sm:$0xff]
        %v1655 = vld [vmem:[#allocation10 + $0x90] sm:$0xff]
        %v1656 = vld [vmem:[#allocation10 + $0x98] sm:$0xff]
        %v1657 = vld [vmem:[#allocation10 + $0xa0] sm:$0xff]
        %v1658 = vld [vmem:[#allocation10 + $0xa8] sm:$0xff]
        %v1659 = vld [vmem:[#allocation10 + $0xb0] sm:$0xff]
        %v1660 = vld [vmem:[#allocation10 + $0xb8] sm:$0xff]
        %v1661 = vld [vmem:[#allocation10 + $0xc0] sm:$0xff]
        %v1662 = vld [vmem:[#allocation10 + $0xc8] sm:$0xff]
        %v1663 = vld [vmem:[#allocation10 + $0xd0] sm:$0xff]
        %v1664 = vld [vmem:[#allocation10 + $0xd8] sm:$0xff]
        %v1665 = vld [vmem:[#allocation10 + $0xe0] sm:$0xff]
        %v1666 = vld [vmem:[#allocation10 + $0xe8] sm:$0xff]
        %v1667 = vld [vmem:[#allocation10 + $0xf0] sm:$0xff]
        %v1668 = vld [vmem:[#allocation10 + $0xf8] sm:$0xff]
        %v1669 = vpack.c.bf16 %v1504, %v1504
        %v1670 = vpack.c.bf16 %v1556, %v1556
        %v1671 = vpack.c.bf16 %v1608, %v1608
        %vm1672 = vcmask 523264
        %v1674 = vsel %vm1672, %v1669, 0
        %v1677 = vsel %vm1672, %v1670, 0
        %1679 = vmatpush.bf16.xpose.msra.mxu0 0
        %1680 = vmatpush.bf16.xpose.msra.mxu0 0
        %1681 = vmatpush.bf16.xpose.msra.mxu0 0
        %1682 = vmatpush.bf16.xpose.msra.mxu0 0
        %1683 = vmatpush.bf16.xpose.msra.mxu0 0
        %1684 = vmatpush.bf16.xpose.msra.mxu0 0
        %1685 = vmatpush.bf16.xpose.msra.mxu0 0
        %1686 = vmatpush.bf16.xpose.msra.mxu0 %v1677
        %1687 = vmatmul.bf16.gmra.mxu0 %v1674
        %v1688 = vpop.f32.mrf.mxu0
        %v1689 = vadd.f32 0.0, %v1688
        %v1690 = vpop.f32.mrf.mxu0
        %1691 = vdwg.mxu0
        %v1692 = vmul.f32 %v1689, 0.125
        %vm1693 = vcmask 64512
        %v1694 = vsel %vm1693, %v1692, -inf
        %1695 = vmax.xlane.f32.xlu0 %v1694
        %v1696 = vpop.xlane.xlu0 %1695
        %v1697 = vsub.f32 %v1692, %v1696
        %v1698 = vmul.f32 %v1697, 1.442695
        %v1699 = vpow.pop %v1698
        %v1700 = vsel %vm1693, %v1699, 0.0
        %1701 = vadd.xlane.f32.xlu0 %v1700
        %v1702 = vpop.xlane.xlu0 %1701
        %v1703 = vrcp.pop %v1702
        %v1704 = vmul.f32 %v1699, %v1703
        %v1705 = vpack.c.bf16 %v1704, %v1704
        %v1707 = vsel %vm1693, %v1705, 0
        %vm1709 = vcmask 1043456
        %v1711 = vsel %vm1709, %v1671, 0
        %1713 = vmatpush.bf16.msra.mxu0 0
        %1714 = vmatpush.bf16.msra.mxu0 0
        %1715 = vmatpush.bf16.msra.mxu0 0
        %1716 = vmatpush.bf16.msra.mxu0 0
        %1717 = vmatpush.bf16.msra.mxu0 0
        %1718 = vmatpush.bf16.msra.mxu0 0
        %1719 = vmatpush.bf16.msra.mxu0 0
        %1720 = vmatpush.bf16.msra.mxu0 %v1711
        %1721 = vmatmul.bf16.gmra.mxu0 %v1707
        %v1722 = vpop.f32.mrf.mxu0
        %v1723 = vadd.f32 0.0, %v1722
        %v1724 = vpop.f32.mrf.mxu0
        %1725 = vdwg.mxu0
        %v1726 = vpack.c.bf16 %v1723, %v1723
        %1728 = vrot.lane.b32.xlu0 %v1669, 64
        %v1729 = vpop.permute.xlu0 %1728
        %1731 = vrot.lane.b32.xlu0 %v1670, 64
        %v1732 = vpop.permute.xlu0 %1731
        %v1734 = vsel %vm1672, %v1729, 0
        %v1737 = vsel %vm1672, %v1732, 0
        %1739 = vmatpush.bf16.xpose.msra.mxu0 0
        %1740 = vmatpush.bf16.xpose.msra.mxu0 0
        %1741 = vmatpush.bf16.xpose.msra.mxu0 0
        %1742 = vmatpush.bf16.xpose.msra.mxu0 0
        %1743 = vmatpush.bf16.xpose.msra.mxu0 0
        %1744 = vmatpush.bf16.xpose.msra.mxu0 0
        %1745 = vmatpush.bf16.xpose.msra.mxu0 0
        %1746 = vmatpush.bf16.xpose.msra.mxu0 %v1737
        %1747 = vmatmul.bf16.gmra.mxu0 %v1734
        %v1748 = vpop.f32.mrf.mxu0
        %v1749 = vadd.f32 0.0, %v1748
        %v1750 = vpop.f32.mrf.mxu0
        %1751 = vdwg.mxu0
        %v1752 = vmul.f32 %v1749, 0.125
        %v1753 = vsel %vm1693, %v1752, -inf
        %1754 = vmax.xlane.f32.xlu0 %v1753
        %v1755 = vpop.xlane.xlu0 %1754
        %v1756 = vsub.f32 %v1752, %v1755
        %v1757 = vmul.f32 %v1756, 1.442695
        %v1758 = vpow.pop %v1757
        %v1759 = vsel %vm1693, %v1758, 0.0
        %1760 = vadd.xlane.f32.xlu0 %v1759
        %v1761 = vpop.xlane.xlu0 %1760
        %v1762 = vrcp.pop %v1761
        %v1763 = vmul.f32 %v1758, %v1762
        %v1764 = vpack.c.bf16 %v1763, %v1763
        %1766 = vrot.lane.b32.xlu0 %v1671, 64
        %v1767 = vpop.permute.xlu0 %1766
        %v1769 = vsel %vm1693, %v1764, 0
        %v1772 = vsel %vm1709, %v1767, 0
        %1774 = vmatpush.bf16.msra.mxu0 0
        %1775 = vmatpush.bf16.msra.mxu0 0
        %1776 = vmatpush.bf16.msra.mxu0 0
        %1777 = vmatpush.bf16.msra.mxu0 0
        %1778 = vmatpush.bf16.msra.mxu0 0
        %1779 = vmatpush.bf16.msra.mxu0 0
        %1780 = vmatpush.bf16.msra.mxu0 0
        %1781 = vmatpush.bf16.msra.mxu0 %v1772
        %1782 = vmatmul.bf16.gmra.mxu0 %v1769
        %v1783 = vpop.f32.mrf.mxu0
        %v1784 = vadd.f32 0.0, %v1783
        %v1785 = vpop.f32.mrf.mxu0
        %1786 = vdwg.mxu0
        %v1787 = vpack.c.bf16 %v1784, %v1784
        %v1796 = vunpack.c.l.b16 %v1645
        %v1797 = vunpack.c.h.b16 %v1645
        %v1798 = vunpack.c.l.b16 %v1646
        %v1799 = vunpack.c.h.b16 %v1646
        %v1800 = vunpack.c.l.b16 %v1647
        %v1801 = vunpack.c.h.b16 %v1647
        %v1802 = vunpack.c.l.b16 %v1648
        %v1803 = vunpack.c.h.b16 %v1648
        %v1804 = vunpack.c.l.b16 %v1649
        %v1805 = vunpack.c.h.b16 %v1649
        %v1806 = vunpack.c.l.b16 %v1650
        %v1807 = vunpack.c.h.b16 %v1650
        %v1808 = vunpack.c.l.b16 %v1651
        %v1809 = vunpack.c.h.b16 %v1651
        %v1810 = vunpack.c.l.b16 %v1652
        %v1811 = vunpack.c.h.b16 %v1652
        %v1812 = vpack.c.b16 %v1798, %v1796
        %v1813 = vpack.c.b16 %v1799, %v1797
        %v1814 = vpack.c.b16 %v1802, %v1800
        %v1815 = vpack.c.b16 %v1803, %v1801
        %v1816 = vpack.c.b16 %v1806, %v1804
        %v1817 = vpack.c.b16 %v1807, %v1805
        %v1818 = vpack.c.b16 %v1810, %v1808
        %v1819 = vpack.c.b16 %v1811, %v1809
        %v1829 = vsel %vm1672, %v1787, 0
        %1831 = vmatpush.bf16.msra.mxu0 0
        %1832 = vmatpush.bf16.msra.mxu0 0
        %1833 = vmatpush.bf16.msra.mxu0 0
        %1834 = vmatpush.bf16.msra.mxu0 0
        %1835 = vmatpush.bf16.msra.mxu0 %v1818
        %1836 = vmatpush.bf16.msra.mxu0 %v1816
        %1837 = vmatpush.bf16.msra.mxu0 %v1814
        %1838 = vmatpush.bf16.msra.mxu0 %v1812
        %1839 = vmatmul.bf16.gmra.mxu0 %v1829
        %v1840 = vpop.f32.mrf.mxu0
        %v1841 = vadd.f32 0.0, %v1840
        %v1842 = vpop.f32.mrf.mxu0
        %1843 = vdwg.mxu0
        %1844 = vmatpush.bf16.msra.mxu0 0
        %1845 = vmatpush.bf16.msra.mxu0 0
        %1846 = vmatpush.bf16.msra.mxu0 0
        %1847 = vmatpush.bf16.msra.mxu0 0
        %1848 = vmatpush.bf16.msra.mxu0 %v1819
        %1849 = vmatpush.bf16.msra.mxu0 %v1817
        %1850 = vmatpush.bf16.msra.mxu0 %v1815
        %1851 = vmatpush.bf16.msra.mxu0 %v1813
        %1852 = vmatmul.bf16.gmra.mxu0 %v1829
        %v1853 = vpop.f32.mrf.mxu0
        %v1854 = vadd.f32 0.0, %v1853
        %v1855 = vpop.f32.mrf.mxu0
        %1856 = vdwg.mxu0
        %v1865 = vunpack.c.l.b16 %v1637
        %v1866 = vunpack.c.h.b16 %v1637
        %v1867 = vunpack.c.l.b16 %v1638
        %v1868 = vunpack.c.h.b16 %v1638
        %v1869 = vunpack.c.l.b16 %v1639
        %v1870 = vunpack.c.h.b16 %v1639
        %v1871 = vunpack.c.l.b16 %v1640
        %v1872 = vunpack.c.h.b16 %v1640
        %v1873 = vunpack.c.l.b16 %v1641
        %v1874 = vunpack.c.h.b16 %v1641
        %v1875 = vunpack.c.l.b16 %v1642
        %v1876 = vunpack.c.h.b16 %v1642
        %v1877 = vunpack.c.l.b16 %v1643
        %v1878 = vunpack.c.h.b16 %v1643
        %v1879 = vunpack.c.l.b16 %v1644
        %v1880 = vunpack.c.h.b16 %v1644
        %v1881 = vpack.c.b16 %v1867, %v1865
        %v1882 = vpack.c.b16 %v1868, %v1866
        %v1883 = vpack.c.b16 %v1871, %v1869
        %v1884 = vpack.c.b16 %v1872, %v1870
        %v1885 = vpack.c.b16 %v1875, %v1873
        %v1886 = vpack.c.b16 %v1876, %v1874
        %v1887 = vpack.c.b16 %v1879, %v1877
        %v1888 = vpack.c.b16 %v1880, %v1878
        %v1898 = vsel %vm1672, %v1726, 0
        %1900 = vmatpush.bf16.msra.mxu0 0
        %1901 = vmatpush.bf16.msra.mxu0 0
        %1902 = vmatpush.bf16.msra.mxu0 0
        %1903 = vmatpush.bf16.msra.mxu0 0
        %1904 = vmatpush.bf16.msra.mxu0 %v1887
        %1905 = vmatpush.bf16.msra.mxu0 %v1885
        %1906 = vmatpush.bf16.msra.mxu0 %v1883
        %1907 = vmatpush.bf16.msra.mxu0 %v1881
        %1908 = vmatmul.bf16.gmra.mxu0 %v1898
        %v1909 = vpop.f32.mrf.mxu0
        %v1910 = vadd.f32 %v1841, %v1909
        %v1911 = vpop.f32.mrf.mxu0
        %1912 = vdwg.mxu0
        %1913 = vmatpush.bf16.msra.mxu0 0
        %1914 = vmatpush.bf16.msra.mxu0 0
        %1915 = vmatpush.bf16.msra.mxu0 0
        %1916 = vmatpush.bf16.msra.mxu0 0
        %1917 = vmatpush.bf16.msra.mxu0 %v1888
        %1918 = vmatpush.bf16.msra.mxu0 %v1886
        %1919 = vmatpush.bf16.msra.mxu0 %v1884
        %1920 = vmatpush.bf16.msra.mxu0 %v1882
        %1921 = vmatmul.bf16.gmra.mxu0 %v1898
        %v1922 = vpop.f32.mrf.mxu0
        %v1923 = vadd.f32 %v1854, %v1922
        %v1924 = vpop.f32.mrf.mxu0
        %1925 = vdwg.mxu0
        %v1926 = vpack.c.bf16 %v1530, %v1530
        %v1927 = vpack.c.bf16 %v1582, %v1582
        %v1928 = vpack.c.bf16 %v1634, %v1634
        %v1930 = vsel %vm1672, %v1926, 0
        %v1933 = vsel %vm1672, %v1927, 0
        %1935 = vmatpush.bf16.xpose.msra.mxu0 0
        %1936 = vmatpush.bf16.xpose.msra.mxu0 0
        %1937 = vmatpush.bf16.xpose.msra.mxu0 0
        %1938 = vmatpush.bf16.xpose.msra.mxu0 0
        %1939 = vmatpush.bf16.xpose.msra.mxu0 0
        %1940 = vmatpush.bf16.xpose.msra.mxu0 0
        %1941 = vmatpush.bf16.xpose.msra.mxu0 0
        %1942 = vmatpush.bf16.xpose.msra.mxu0 %v1933
        %1943 = vmatmul.bf16.gmra.mxu0 %v1930
        %v1944 = vpop.f32.mrf.mxu0
        %v1945 = vadd.f32 0.0, %v1944
        %v1946 = vpop.f32.mrf.mxu0
        %1947 = vdwg.mxu0
        %v1948 = vmul.f32 %v1945, 0.125
        %v1949 = vsel %vm1693, %v1948, -inf
        %1950 = vmax.xlane.f32.xlu0 %v1949
        %v1951 = vpop.xlane.xlu0 %1950
        %v1952 = vsub.f32 %v1948, %v1951
        %v1953 = vmul.f32 %v1952, 1.442695
        %v1954 = vpow.pop %v1953
        %v1955 = vsel %vm1693, %v1954, 0.0
        %1956 = vadd.xlane.f32.xlu0 %v1955
        %v1957 = vpop.xlane.xlu0 %1956
        %v1958 = vrcp.pop %v1957
        %v1959 = vmul.f32 %v1954, %v1958
        %v1960 = vpack.c.bf16 %v1959, %v1959
        %v1962 = vsel %vm1693, %v1960, 0
        %v1965 = vsel %vm1709, %v1928, 0
        %1967 = vmatpush.bf16.msra.mxu0 0
        %1968 = vmatpush.bf16.msra.mxu0 0
        %1969 = vmatpush.bf16.msra.mxu0 0
        %1970 = vmatpush.bf16.msra.mxu0 0
        %1971 = vmatpush.bf16.msra.mxu0 0
        %1972 = vmatpush.bf16.msra.mxu0 0
        %1973 = vmatpush.bf16.msra.mxu0 0
        %1974 = vmatpush.bf16.msra.mxu0 %v1965
        %1975 = vmatmul.bf16.gmra.mxu0 %v1962
        %v1976 = vpop.f32.mrf.mxu0
        %v1977 = vadd.f32 0.0, %v1976
        %v1978 = vpop.f32.mrf.mxu0
        %1979 = vdwg.mxu0
        %v1980 = vpack.c.bf16 %v1977, %v1977
        %v1989 = vunpack.c.l.b16 %v1653
        %v1990 = vunpack.c.h.b16 %v1653
        %v1991 = vunpack.c.l.b16 %v1654
        %v1992 = vunpack.c.h.b16 %v1654
        %v1993 = vunpack.c.l.b16 %v1655
        %v1994 = vunpack.c.h.b16 %v1655
        %v1995 = vunpack.c.l.b16 %v1656
        %v1996 = vunpack.c.h.b16 %v1656
        %v1997 = vunpack.c.l.b16 %v1657
        %v1998 = vunpack.c.h.b16 %v1657
        %v1999 = vunpack.c.l.b16 %v1658
        %v2000 = vunpack.c.h.b16 %v1658
        %v2001 = vunpack.c.l.b16 %v1659
        %v2002 = vunpack.c.h.b16 %v1659
        %v2003 = vunpack.c.l.b16 %v1660
        %v2004 = vunpack.c.h.b16 %v1660
        %v2005 = vpack.c.b16 %v1991, %v1989
        %v2006 = vpack.c.b16 %v1992, %v1990
        %v2007 = vpack.c.b16 %v1995, %v1993
        %v2008 = vpack.c.b16 %v1996, %v1994
        %v2009 = vpack.c.b16 %v1999, %v1997
        %v2010 = vpack.c.b16 %v2000, %v1998
        %v2011 = vpack.c.b16 %v2003, %v2001
        %v2012 = vpack.c.b16 %v2004, %v2002
        %v2022 = vsel %vm1672, %v1980, 0
        %2024 = vmatpush.bf16.msra.mxu0 0
        %2025 = vmatpush.bf16.msra.mxu0 0
        %2026 = vmatpush.bf16.msra.mxu0 0
        %2027 = vmatpush.bf16.msra.mxu0 0
        %2028 = vmatpush.bf16.msra.mxu0 %v2011
        %2029 = vmatpush.bf16.msra.mxu0 %v2009
        %2030 = vmatpush.bf16.msra.mxu0 %v2007
        %2031 = vmatpush.bf16.msra.mxu0 %v2005
        %2032 = vmatmul.bf16.gmra.mxu0 %v2022
        %v2033 = vpop.f32.mrf.mxu0
        %v2034 = vadd.f32 0.0, %v2033
        %v2035 = vpop.f32.mrf.mxu0
        %2036 = vdwg.mxu0
        %2037 = vmatpush.bf16.msra.mxu0 0
        %2038 = vmatpush.bf16.msra.mxu0 0
        %2039 = vmatpush.bf16.msra.mxu0 0
        %2040 = vmatpush.bf16.msra.mxu0 0
        %2041 = vmatpush.bf16.msra.mxu0 %v2012
        %2042 = vmatpush.bf16.msra.mxu0 %v2010
        %2043 = vmatpush.bf16.msra.mxu0 %v2008
        %2044 = vmatpush.bf16.msra.mxu0 %v2006
        %2045 = vmatmul.bf16.gmra.mxu0 %v2022
        %v2046 = vpop.f32.mrf.mxu0
        %v2047 = vadd.f32 0.0, %v2046
        %v2048 = vpop.f32.mrf.mxu0
        %2049 = vdwg.mxu0
        %v2050 = vadd.f32 %v1910, %v2034
        %v2051 = vadd.f32 %v1923, %v2047
        %2053 = vrot.lane.b32.xlu0 %v1926, 64
        %v2054 = vpop.permute.xlu0 %2053
        %2056 = vrot.lane.b32.xlu0 %v1927, 64
        %v2057 = vpop.permute.xlu0 %2056
        %v2059 = vsel %vm1672, %v2054, 0
        %v2062 = vsel %vm1672, %v2057, 0
        %2064 = vmatpush.bf16.xpose.msra.mxu0 0
        %2065 = vmatpush.bf16.xpose.msra.mxu0 0
        %2066 = vmatpush.bf16.xpose.msra.mxu0 0
        %2067 = vmatpush.bf16.xpose.msra.mxu0 0
        %2068 = vmatpush.bf16.xpose.msra.mxu0 0
        %2069 = vmatpush.bf16.xpose.msra.mxu0 0
        %2070 = vmatpush.bf16.xpose.msra.mxu0 0
        %2071 = vmatpush.bf16.xpose.msra.mxu0 %v2062
        %2072 = vmatmul.bf16.gmra.mxu0 %v2059
        %v2073 = vpop.f32.mrf.mxu0
        %v2074 = vadd.f32 0.0, %v2073
        %v2075 = vpop.f32.mrf.mxu0
        %2076 = vdwg.mxu0
        %v2077 = vmul.f32 %v2074, 0.125
        %v2078 = vsel %vm1693, %v2077, -inf
        %2079 = vmax.xlane.f32.xlu0 %v2078
        %v2080 = vpop.xlane.xlu0 %2079
        %v2081 = vsub.f32 %v2077, %v2080
        %v2082 = vmul.f32 %v2081, 1.442695
        %v2083 = vpow.pop %v2082
        %v2084 = vsel %vm1693, %v2083, 0.0
        %2085 = vadd.xlane.f32.xlu0 %v2084
        %v2086 = vpop.xlane.xlu0 %2085
        %v2087 = vrcp.pop %v2086
        %v2088 = vmul.f32 %v2083, %v2087
        %v2089 = vpack.c.bf16 %v2088, %v2088
        %2091 = vrot.lane.b32.xlu0 %v1928, 64
        %v2092 = vpop.permute.xlu0 %2091
        %v2094 = vsel %vm1693, %v2089, 0
        %v2097 = vsel %vm1709, %v2092, 0
        %2099 = vmatpush.bf16.msra.mxu0 0
        %2100 = vmatpush.bf16.msra.mxu0 0
        %2101 = vmatpush.bf16.msra.mxu0 0
        %2102 = vmatpush.bf16.msra.mxu0 0
        %2103 = vmatpush.bf16.msra.mxu0 0
        %2104 = vmatpush.bf16.msra.mxu0 0
        %2105 = vmatpush.bf16.msra.mxu0 0
        %2106 = vmatpush.bf16.msra.mxu0 %v2097
        %2107 = vmatmul.bf16.gmra.mxu0 %v2094
        %v2108 = vpop.f32.mrf.mxu0
        %v2109 = vadd.f32 0.0, %v2108
        %v2110 = vpop.f32.mrf.mxu0
        %2111 = vdwg.mxu0
        %v2112 = vpack.c.bf16 %v2109, %v2109
        %v2121 = vunpack.c.l.b16 %v1661
        %v2122 = vunpack.c.h.b16 %v1661
        %v2123 = vunpack.c.l.b16 %v1662
        %v2124 = vunpack.c.h.b16 %v1662
        %v2125 = vunpack.c.l.b16 %v1663
        %v2126 = vunpack.c.h.b16 %v1663
        %v2127 = vunpack.c.l.b16 %v1664
        %v2128 = vunpack.c.h.b16 %v1664
        %v2129 = vunpack.c.l.b16 %v1665
        %v2130 = vunpack.c.h.b16 %v1665
        %v2131 = vunpack.c.l.b16 %v1666
        %v2132 = vunpack.c.h.b16 %v1666
        %v2133 = vunpack.c.l.b16 %v1667
        %v2134 = vunpack.c.h.b16 %v1667
        %v2135 = vunpack.c.l.b16 %v1668
        %v2136 = vunpack.c.h.b16 %v1668
        %v2137 = vpack.c.b16 %v2123, %v2121
        %v2138 = vpack.c.b16 %v2124, %v2122
        %v2139 = vpack.c.b16 %v2127, %v2125
        %v2140 = vpack.c.b16 %v2128, %v2126
        %v2141 = vpack.c.b16 %v2131, %v2129
        %v2142 = vpack.c.b16 %v2132, %v2130
        %v2143 = vpack.c.b16 %v2135, %v2133
        %v2144 = vpack.c.b16 %v2136, %v2134
        %v2154 = vsel %vm1672, %v2112, 0
        %2156 = vmatpush.bf16.msra.mxu0 0
        %2157 = vmatpush.bf16.msra.mxu0 0
        %2158 = vmatpush.bf16.msra.mxu0 0
        %2159 = vmatpush.bf16.msra.mxu0 0
        %2160 = vmatpush.bf16.msra.mxu0 %v2143
        %2161 = vmatpush.bf16.msra.mxu0 %v2141
        %2162 = vmatpush.bf16.msra.mxu0 %v2139
        %2163 = vmatpush.bf16.msra.mxu0 %v2137
        %2164 = vmatmul.bf16.gmra.mxu0 %v2154
        %v2165 = vpop.f32.mrf.mxu0
        %v2166 = vadd.f32 0.0, %v2165
        %v2167 = vpop.f32.mrf.mxu0
        %2168 = vdwg.mxu0
        %2169 = vmatpush.bf16.msra.mxu0 0
        %2170 = vmatpush.bf16.msra.mxu0 0
        %2171 = vmatpush.bf16.msra.mxu0 0
        %2172 = vmatpush.bf16.msra.mxu0 0
        %2173 = vmatpush.bf16.msra.mxu0 %v2144
        %2174 = vmatpush.bf16.msra.mxu0 %v2142
        %2175 = vmatpush.bf16.msra.mxu0 %v2140
        %2176 = vmatpush.bf16.msra.mxu0 %v2138
        %2177 = vmatmul.bf16.gmra.mxu0 %v2154
        %v2178 = vpop.f32.mrf.mxu0
        %v2179 = vadd.f32 0.0, %v2178
        %v2180 = vpop.f32.mrf.mxu0
        %2181 = vdwg.mxu0
        %v2182 = vadd.f32 %v2050, %v2166
        %v2183 = vadd.f32 %v2051, %v2179
        %v2184 = vld [vmem:[#allocation12] sm:$0x3]
        %v2186 = vperm.slane %v2184, 0
        %v2187 = vperm.slane %v2184, 1
        %v2190 = vadd.f32 %v2182, %v2186
        %v2191 = vadd.f32 %v2183, %v2187
        %v2192 = vadd.f32 %v873, %v2190
        %v2193 = vadd.f32 %v886, %v2191
        %v2194 = vld [vmem:[#allocation13] sm:$0x3]
        %v2195 = vld [vmem:[#allocation15] sm:$0x3]
        %v2196 = vadd.f32 %v2192, %v2193
        %2197 = vadd.xlane.f32.xlu0 %v2196
        %v2198 = vpop.xlane.xlu0 %2197
        %v2199 = vrcp.pop 256.0
        %v2200 = vmul.f32 256.0, %v2199
        %v2201 = vsub.f32 1.0, %v2200
        %v2202 = vmul.f32 %v2199, %v2201
        %v2203 = vadd.f32 %v2199, %v2202
        %vm2204 = vweird.f32 %v2199
        %v2205 = vsel %vm2204, %v2199, %v2203
        %v2206 = vmul.f32 %v2198, %v2205
        %v2207 = vsub.f32 %v2192, %v2206
        %v2208 = vsub.f32 %v2193, %v2206
        %v2209 = vmul.f32 %v2207, %v2207
        %v2210 = vmul.f32 %v2208, %v2208
        %v2211 = vadd.f32 %v2209, %v2210
        %2212 = vadd.xlane.f32.xlu0 %v2211
        %v2213 = vpop.xlane.xlu0 %2212
        %v2214 = vmul.f32 %v2213, %v2205
        %v2215 = vadd.f32 %v2214, 1e-05
        %v2216 = vrsqrt.pop %v2215
        %v2217 = vmul.f32 %v2216, %v2215
        %v2218 = vmul.f32 %v2217, %v2216
        %v2219 = vmul.f32 0.5, %v2218
        %v2220 = vsub.f32 1.5, %v2219
        %v2221 = vmul.f32 %v2216, %v2220
        %vm2222 = vweird.f32 %v2215
        %vm2223 = vweird.f32 %v2216
        %vm2224 = vmor %vm2222, %vm2223
        %v2225 = vsel %vm2224, %v2216, %v2221
        %v2226 = vmul.f32 %v2207, %v2225
        %v2227 = vmul.f32 %v2208, %v2225
        %v2229 = vperm.slane %v2194, 0
        %v2230 = vperm.slane %v2194, 1
        %v2233 = vmul.f32 %v2226, %v2229
        %v2234 = vmul.f32 %v2227, %v2230
        %v2236 = vperm.slane %v2195, 0
        %v2237 = vperm.slane %v2195, 1
        %v2240 = vadd.f32 %v2233, %v2236
        %v2241 = vadd.f32 %v2234, %v2237
        %v2242 = vld [vmem:[#allocation16] sm:$0xff]
        %v2243 = vld [vmem:[#allocation16 + $0x8] sm:$0xff]
        %v2244 = vld [vmem:[#allocation16 + $0x10] sm:$0xff]
        %v2245 = vld [vmem:[#allocation16 + $0x18] sm:$0xff]
        %v2246 = vld [vmem:[#allocation16 + $0x20] sm:$0xff]
        %v2247 = vld [vmem:[#allocation16 + $0x28] sm:$0xff]
        %v2248 = vld [vmem:[#allocation16 + $0x30] sm:$0xff]
        %v2249 = vld [vmem:[#allocation16 + $0x38] sm:$0xff]
        %v2250 = vld [vmem:[#allocation16 + $0x40] sm:$0xff]
        %v2251 = vld [vmem:[#allocation16 + $0x48] sm:$0xff]
        %v2252 = vld [vmem:[#allocation16 + $0x50] sm:$0xff]
        %v2253 = vld [vmem:[#allocation16 + $0x58] sm:$0xff]
        %v2254 = vld [vmem:[#allocation16 + $0x60] sm:$0xff]
        %v2255 = vld [vmem:[#allocation16 + $0x68] sm:$0xff]
        %v2256 = vld [vmem:[#allocation16 + $0x70] sm:$0xff]
        %v2257 = vld [vmem:[#allocation16 + $0x78] sm:$0xff]
        %v2258 = vld [vmem:[#allocation16 + $0x80] sm:$0xff]
        %v2259 = vld [vmem:[#allocation16 + $0x88] sm:$0xff]
        %v2260 = vld [vmem:[#allocation16 + $0x90] sm:$0xff]
        %v2261 = vld [vmem:[#allocation16 + $0x98] sm:$0xff]
        %v2262 = vld [vmem:[#allocation16 + $0xa0] sm:$0xff]
        %v2263 = vld [vmem:[#allocation16 + $0xa8] sm:$0xff]
        %v2264 = vld [vmem:[#allocation16 + $0xb0] sm:$0xff]
        %v2265 = vld [vmem:[#allocation16 + $0xb8] sm:$0xff]
        %v2266 = vld [vmem:[#allocation16 + $0xc0] sm:$0xff]
        %v2267 = vld [vmem:[#allocation16 + $0xc8] sm:$0xff]
        %v2268 = vld [vmem:[#allocation16 + $0xd0] sm:$0xff]
        %v2269 = vld [vmem:[#allocation16 + $0xd8] sm:$0xff]
        %v2270 = vld [vmem:[#allocation16 + $0xe0] sm:$0xff]
        %v2271 = vld [vmem:[#allocation16 + $0xe8] sm:$0xff]
        %v2272 = vld [vmem:[#allocation16 + $0xf0] sm:$0xff]
        %v2273 = vld [vmem:[#allocation16 + $0xf8] sm:$0xff]
        %v2274 = vld [vmem:[#allocation16 + $0x100] sm:$0xff]
        %v2275 = vld [vmem:[#allocation16 + $0x108] sm:$0xff]
        %v2276 = vld [vmem:[#allocation16 + $0x110] sm:$0xff]
        %v2277 = vld [vmem:[#allocation16 + $0x118] sm:$0xff]
        %v2278 = vld [vmem:[#allocation16 + $0x120] sm:$0xff]
        %v2279 = vld [vmem:[#allocation16 + $0x128] sm:$0xff]
        %v2280 = vld [vmem:[#allocation16 + $0x130] sm:$0xff]
        %v2281 = vld [vmem:[#allocation16 + $0x138] sm:$0xff]
        %v2282 = vld [vmem:[#allocation16 + $0x140] sm:$0xff]
        %v2283 = vld [vmem:[#allocation16 + $0x148] sm:$0xff]
        %v2284 = vld [vmem:[#allocation16 + $0x150] sm:$0xff]
        %v2285 = vld [vmem:[#allocation16 + $0x158] sm:$0xff]
        %v2286 = vld [vmem:[#allocation16 + $0x160] sm:$0xff]
        %v2287 = vld [vmem:[#allocation16 + $0x168] sm:$0xff]
        %v2288 = vld [vmem:[#allocation16 + $0x170] sm:$0xff]
        %v2289 = vld [vmem:[#allocation16 + $0x178] sm:$0xff]
        %v2290 = vld [vmem:[#allocation16 + $0x180] sm:$0xff]
        %v2291 = vld [vmem:[#allocation16 + $0x188] sm:$0xff]
        %v2292 = vld [vmem:[#allocation16 + $0x190] sm:$0xff]
        %v2293 = vld [vmem:[#allocation16 + $0x198] sm:$0xff]
        %v2294 = vld [vmem:[#allocation16 + $0x1a0] sm:$0xff]
        %v2295 = vld [vmem:[#allocation16 + $0x1a8] sm:$0xff]
        %v2296 = vld [vmem:[#allocation16 + $0x1b0] sm:$0xff]
        %v2297 = vld [vmem:[#allocation16 + $0x1b8] sm:$0xff]
        %v2298 = vld [vmem:[#allocation16 + $0x1c0] sm:$0xff]
        %v2299 = vld [vmem:[#allocation16 + $0x1c8] sm:$0xff]
        %v2300 = vld [vmem:[#allocation16 + $0x1d0] sm:$0xff]
        %v2301 = vld [vmem:[#allocation16 + $0x1d8] sm:$0xff]
        %v2302 = vld [vmem:[#allocation16 + $0x1e0] sm:$0xff]
        %v2303 = vld [vmem:[#allocation16 + $0x1e8] sm:$0xff]
        %v2304 = vld [vmem:[#allocation16 + $0x1f0] sm:$0xff]
        %v2305 = vld [vmem:[#allocation16 + $0x1f8] sm:$0xff]
        %v2306 = vld [vmem:[#allocation16 + $0x200] sm:$0xff]
        %v2307 = vld [vmem:[#allocation16 + $0x208] sm:$0xff]
        %v2308 = vld [vmem:[#allocation16 + $0x210] sm:$0xff]
        %v2309 = vld [vmem:[#allocation16 + $0x218] sm:$0xff]
        %v2310 = vld [vmem:[#allocation16 + $0x220] sm:$0xff]
        %v2311 = vld [vmem:[#allocation16 + $0x228] sm:$0xff]
        %v2312 = vld [vmem:[#allocation16 + $0x230] sm:$0xff]
        %v2313 = vld [vmem:[#allocation16 + $0x238] sm:$0xff]
        %v2314 = vld [vmem:[#allocation16 + $0x240] sm:$0xff]
        %v2315 = vld [vmem:[#allocation16 + $0x248] sm:$0xff]
        %v2316 = vld [vmem:[#allocation16 + $0x250] sm:$0xff]
        %v2317 = vld [vmem:[#allocation16 + $0x258] sm:$0xff]
        %v2318 = vld [vmem:[#allocation16 + $0x260] sm:$0xff]
        %v2319 = vld [vmem:[#allocation16 + $0x268] sm:$0xff]
        %v2320 = vld [vmem:[#allocation16 + $0x270] sm:$0xff]
        %v2321 = vld [vmem:[#allocation16 + $0x278] sm:$0xff]
        %v2322 = vld [vmem:[#allocation16 + $0x280] sm:$0xff]
        %v2323 = vld [vmem:[#allocation16 + $0x288] sm:$0xff]
        %v2324 = vld [vmem:[#allocation16 + $0x290] sm:$0xff]
        %v2325 = vld [vmem:[#allocation16 + $0x298] sm:$0xff]
        %v2326 = vld [vmem:[#allocation16 + $0x2a0] sm:$0xff]
        %v2327 = vld [vmem:[#allocation16 + $0x2a8] sm:$0xff]
        %v2328 = vld [vmem:[#allocation16 + $0x2b0] sm:$0xff]
        %v2329 = vld [vmem:[#allocation16 + $0x2b8] sm:$0xff]
        %v2330 = vld [vmem:[#allocation16 + $0x2c0] sm:$0xff]
        %v2331 = vld [vmem:[#allocation16 + $0x2c8] sm:$0xff]
        %v2332 = vld [vmem:[#allocation16 + $0x2d0] sm:$0xff]
        %v2333 = vld [vmem:[#allocation16 + $0x2d8] sm:$0xff]
        %v2334 = vld [vmem:[#allocation16 + $0x2e0] sm:$0xff]
        %v2335 = vld [vmem:[#allocation16 + $0x2e8] sm:$0xff]
        %v2336 = vld [vmem:[#allocation16 + $0x2f0] sm:$0xff]
        %v2337 = vld [vmem:[#allocation16 + $0x2f8] sm:$0xff]
        %v2338 = vld [vmem:[#allocation16 + $0x300] sm:$0xff]
        %v2339 = vld [vmem:[#allocation16 + $0x308] sm:$0xff]
        %v2340 = vld [vmem:[#allocation16 + $0x310] sm:$0xff]
        %v2341 = vld [vmem:[#allocation16 + $0x318] sm:$0xff]
        %v2342 = vld [vmem:[#allocation16 + $0x320] sm:$0xff]
        %v2343 = vld [vmem:[#allocation16 + $0x328] sm:$0xff]
        %v2344 = vld [vmem:[#allocation16 + $0x330] sm:$0xff]
        %v2345 = vld [vmem:[#allocation16 + $0x338] sm:$0xff]
        %v2346 = vld [vmem:[#allocation16 + $0x340] sm:$0xff]
        %v2347 = vld [vmem:[#allocation16 + $0x348] sm:$0xff]
        %v2348 = vld [vmem:[#allocation16 + $0x350] sm:$0xff]
        %v2349 = vld [vmem:[#allocation16 + $0x358] sm:$0xff]
        %v2350 = vld [vmem:[#allocation16 + $0x360] sm:$0xff]
        %v2351 = vld [vmem:[#allocation16 + $0x368] sm:$0xff]
        %v2352 = vld [vmem:[#allocation16 + $0x370] sm:$0xff]
        %v2353 = vld [vmem:[#allocation16 + $0x378] sm:$0xff]
        %v2354 = vld [vmem:[#allocation16 + $0x380] sm:$0xff]
        %v2355 = vld [vmem:[#allocation16 + $0x388] sm:$0xff]
        %v2356 = vld [vmem:[#allocation16 + $0x390] sm:$0xff]
        %v2357 = vld [vmem:[#allocation16 + $0x398] sm:$0xff]
        %v2358 = vld [vmem:[#allocation16 + $0x3a0] sm:$0xff]
        %v2359 = vld [vmem:[#allocation16 + $0x3a8] sm:$0xff]
        %v2360 = vld [vmem:[#allocation16 + $0x3b0] sm:$0xff]
        %v2361 = vld [vmem:[#allocation16 + $0x3b8] sm:$0xff]
        %v2362 = vld [vmem:[#allocation16 + $0x3c0] sm:$0xff]
        %v2363 = vld [vmem:[#allocation16 + $0x3c8] sm:$0xff]
        %v2364 = vld [vmem:[#allocation16 + $0x3d0] sm:$0xff]
        %v2365 = vld [vmem:[#allocation16 + $0x3d8] sm:$0xff]
        %v2366 = vld [vmem:[#allocation16 + $0x3e0] sm:$0xff]
        %v2367 = vld [vmem:[#allocation16 + $0x3e8] sm:$0xff]
        %v2368 = vld [vmem:[#allocation16 + $0x3f0] sm:$0xff]
        %v2369 = vld [vmem:[#allocation16 + $0x3f8] sm:$0xff]
        %v2370 = vld [vmem:[#allocation16 + $0x400] sm:$0xff]
        %v2371 = vld [vmem:[#allocation16 + $0x408] sm:$0xff]
        %v2372 = vld [vmem:[#allocation16 + $0x410] sm:$0xff]
        %v2373 = vld [vmem:[#allocation16 + $0x418] sm:$0xff]
        %v2374 = vld [vmem:[#allocation16 + $0x420] sm:$0xff]
        %v2375 = vld [vmem:[#allocation16 + $0x428] sm:$0xff]
        %v2376 = vld [vmem:[#allocation16 + $0x430] sm:$0xff]
        %v2377 = vld [vmem:[#allocation16 + $0x438] sm:$0xff]
        %v2378 = vld [vmem:[#allocation16 + $0x440] sm:$0xff]
        %v2379 = vld [vmem:[#allocation16 + $0x448] sm:$0xff]
        %v2380 = vld [vmem:[#allocation16 + $0x450] sm:$0xff]
        %v2381 = vld [vmem:[#allocation16 + $0x458] sm:$0xff]
        %v2382 = vld [vmem:[#allocation16 + $0x460] sm:$0xff]
        %v2383 = vld [vmem:[#allocation16 + $0x468] sm:$0xff]
        %v2384 = vld [vmem:[#allocation16 + $0x470] sm:$0xff]
        %v2385 = vld [vmem:[#allocation16 + $0x478] sm:$0xff]
        %v2386 = vld [vmem:[#allocation16 + $0x480] sm:$0xff]
        %v2387 = vld [vmem:[#allocation16 + $0x488] sm:$0xff]
        %v2388 = vld [vmem:[#allocation16 + $0x490] sm:$0xff]
        %v2389 = vld [vmem:[#allocation16 + $0x498] sm:$0xff]
        %v2390 = vld [vmem:[#allocation16 + $0x4a0] sm:$0xff]
        %v2391 = vld [vmem:[#allocation16 + $0x4a8] sm:$0xff]
        %v2392 = vld [vmem:[#allocation16 + $0x4b0] sm:$0xff]
        %v2393 = vld [vmem:[#allocation16 + $0x4b8] sm:$0xff]
        %v2394 = vld [vmem:[#allocation16 + $0x4c0] sm:$0xff]
        %v2395 = vld [vmem:[#allocation16 + $0x4c8] sm:$0xff]
        %v2396 = vld [vmem:[#allocation16 + $0x4d0] sm:$0xff]
        %v2397 = vld [vmem:[#allocation16 + $0x4d8] sm:$0xff]
        %v2398 = vld [vmem:[#allocation16 + $0x4e0] sm:$0xff]
        %v2399 = vld [vmem:[#allocation16 + $0x4e8] sm:$0xff]
        %v2400 = vld [vmem:[#allocation16 + $0x4f0] sm:$0xff]
        %v2401 = vld [vmem:[#allocation16 + $0x4f8] sm:$0xff]
        %v2402 = vld [vmem:[#allocation16 + $0x500] sm:$0xff]
        %v2403 = vld [vmem:[#allocation16 + $0x508] sm:$0xff]
        %v2404 = vld [vmem:[#allocation16 + $0x510] sm:$0xff]
        %v2405 = vld [vmem:[#allocation16 + $0x518] sm:$0xff]
        %v2406 = vld [vmem:[#allocation16 + $0x520] sm:$0xff]
        %v2407 = vld [vmem:[#allocation16 + $0x528] sm:$0xff]
        %v2408 = vld [vmem:[#allocation16 + $0x530] sm:$0xff]
        %v2409 = vld [vmem:[#allocation16 + $0x538] sm:$0xff]
        %v2410 = vld [vmem:[#allocation16 + $0x540] sm:$0xff]
        %v2411 = vld [vmem:[#allocation16 + $0x548] sm:$0xff]
        %v2412 = vld [vmem:[#allocation16 + $0x550] sm:$0xff]
        %v2413 = vld [vmem:[#allocation16 + $0x558] sm:$0xff]
        %v2414 = vld [vmem:[#allocation16 + $0x560] sm:$0xff]
        %v2415 = vld [vmem:[#allocation16 + $0x568] sm:$0xff]
        %v2416 = vld [vmem:[#allocation16 + $0x570] sm:$0xff]
        %v2417 = vld [vmem:[#allocation16 + $0x578] sm:$0xff]
        %v2418 = vld [vmem:[#allocation16 + $0x580] sm:$0xff]
        %v2419 = vld [vmem:[#allocation16 + $0x588] sm:$0xff]
        %v2420 = vld [vmem:[#allocation16 + $0x590] sm:$0xff]
        %v2421 = vld [vmem:[#allocation16 + $0x598] sm:$0xff]
        %v2422 = vld [vmem:[#allocation16 + $0x5a0] sm:$0xff]
        %v2423 = vld [vmem:[#allocation16 + $0x5a8] sm:$0xff]
        %v2424 = vld [vmem:[#allocation16 + $0x5b0] sm:$0xff]
        %v2425 = vld [vmem:[#allocation16 + $0x5b8] sm:$0xff]
        %v2426 = vld [vmem:[#allocation16 + $0x5c0] sm:$0xff]
        %v2427 = vld [vmem:[#allocation16 + $0x5c8] sm:$0xff]
        %v2428 = vld [vmem:[#allocation16 + $0x5d0] sm:$0xff]
        %v2429 = vld [vmem:[#allocation16 + $0x5d8] sm:$0xff]
        %v2430 = vld [vmem:[#allocation16 + $0x5e0] sm:$0xff]
        %v2431 = vld [vmem:[#allocation16 + $0x5e8] sm:$0xff]
        %v2432 = vld [vmem:[#allocation16 + $0x5f0] sm:$0xff]
        %v2433 = vld [vmem:[#allocation16 + $0x5f8] sm:$0xff]
        %v2434 = vld [vmem:[#allocation16 + $0x600] sm:$0xff]
        %v2435 = vld [vmem:[#allocation16 + $0x608] sm:$0xff]
        %v2436 = vld [vmem:[#allocation16 + $0x610] sm:$0xff]
        %v2437 = vld [vmem:[#allocation16 + $0x618] sm:$0xff]
        %v2438 = vld [vmem:[#allocation16 + $0x620] sm:$0xff]
        %v2439 = vld [vmem:[#allocation16 + $0x628] sm:$0xff]
        %v2440 = vld [vmem:[#allocation16 + $0x630] sm:$0xff]
        %v2441 = vld [vmem:[#allocation16 + $0x638] sm:$0xff]
        %v2442 = vld [vmem:[#allocation16 + $0x640] sm:$0xff]
        %v2443 = vld [vmem:[#allocation16 + $0x648] sm:$0xff]
        %v2444 = vld [vmem:[#allocation16 + $0x650] sm:$0xff]
        %v2445 = vld [vmem:[#allocation16 + $0x658] sm:$0xff]
        %v2446 = vld [vmem:[#allocation16 + $0x660] sm:$0xff]
        %v2447 = vld [vmem:[#allocation16 + $0x668] sm:$0xff]
        %v2448 = vld [vmem:[#allocation16 + $0x670] sm:$0xff]
        %v2449 = vld [vmem:[#allocation16 + $0x678] sm:$0xff]
        %v2450 = vld [vmem:[#allocation16 + $0x680] sm:$0xff]
        %v2451 = vld [vmem:[#allocation16 + $0x688] sm:$0xff]
        %v2452 = vld [vmem:[#allocation16 + $0x690] sm:$0xff]
        %v2453 = vld [vmem:[#allocation16 + $0x698] sm:$0xff]
        %v2454 = vld [vmem:[#allocation16 + $0x6a0] sm:$0xff]
        %v2455 = vld [vmem:[#allocation16 + $0x6a8] sm:$0xff]
        %v2456 = vld [vmem:[#allocation16 + $0x6b0] sm:$0xff]
        %v2457 = vld [vmem:[#allocation16 + $0x6b8] sm:$0xff]
        %v2458 = vld [vmem:[#allocation16 + $0x6c0] sm:$0xff]
        %v2459 = vld [vmem:[#allocation16 + $0x6c8] sm:$0xff]
        %v2460 = vld [vmem:[#allocation16 + $0x6d0] sm:$0xff]
        %v2461 = vld [vmem:[#allocation16 + $0x6d8] sm:$0xff]
        %v2462 = vld [vmem:[#allocation16 + $0x6e0] sm:$0xff]
        %v2463 = vld [vmem:[#allocation16 + $0x6e8] sm:$0xff]
        %v2464 = vld [vmem:[#allocation16 + $0x6f0] sm:$0xff]
        %v2465 = vld [vmem:[#allocation16 + $0x6f8] sm:$0xff]
        %v2466 = vld [vmem:[#allocation16 + $0x700] sm:$0xff]
        %v2467 = vld [vmem:[#allocation16 + $0x708] sm:$0xff]
        %v2468 = vld [vmem:[#allocation16 + $0x710] sm:$0xff]
        %v2469 = vld [vmem:[#allocation16 + $0x718] sm:$0xff]
        %v2470 = vld [vmem:[#allocation16 + $0x720] sm:$0xff]
        %v2471 = vld [vmem:[#allocation16 + $0x728] sm:$0xff]
        %v2472 = vld [vmem:[#allocation16 + $0x730] sm:$0xff]
        %v2473 = vld [vmem:[#allocation16 + $0x738] sm:$0xff]
        %v2474 = vld [vmem:[#allocation16 + $0x740] sm:$0xff]
        %v2475 = vld [vmem:[#allocation16 + $0x748] sm:$0xff]
        %v2476 = vld [vmem:[#allocation16 + $0x750] sm:$0xff]
        %v2477 = vld [vmem:[#allocation16 + $0x758] sm:$0xff]
        %v2478 = vld [vmem:[#allocation16 + $0x760] sm:$0xff]
        %v2479 = vld [vmem:[#allocation16 + $0x768] sm:$0xff]
        %v2480 = vld [vmem:[#allocation16 + $0x770] sm:$0xff]
        %v2481 = vld [vmem:[#allocation16 + $0x778] sm:$0xff]
        %v2482 = vld [vmem:[#allocation16 + $0x780] sm:$0xff]
        %v2483 = vld [vmem:[#allocation16 + $0x788] sm:$0xff]
        %v2484 = vld [vmem:[#allocation16 + $0x790] sm:$0xff]
        %v2485 = vld [vmem:[#allocation16 + $0x798] sm:$0xff]
        %v2486 = vld [vmem:[#allocation16 + $0x7a0] sm:$0xff]
        %v2487 = vld [vmem:[#allocation16 + $0x7a8] sm:$0xff]
        %v2488 = vld [vmem:[#allocation16 + $0x7b0] sm:$0xff]
        %v2489 = vld [vmem:[#allocation16 + $0x7b8] sm:$0xff]
        %v2490 = vld [vmem:[#allocation16 + $0x7c0] sm:$0xff]
        %v2491 = vld [vmem:[#allocation16 + $0x7c8] sm:$0xff]
        %v2492 = vld [vmem:[#allocation16 + $0x7d0] sm:$0xff]
        %v2493 = vld [vmem:[#allocation16 + $0x7d8] sm:$0xff]
        %v2494 = vld [vmem:[#allocation16 + $0x7e0] sm:$0xff]
        %v2495 = vld [vmem:[#allocation16 + $0x7e8] sm:$0xff]
        %v2496 = vld [vmem:[#allocation16 + $0x7f0] sm:$0xff]
        %v2497 = vld [vmem:[#allocation16 + $0x7f8] sm:$0xff]
        %v2498 = vpack.c.bf16 %v2240, %v2240
        %v2499 = vpack.c.bf16 %v2241, %v2241
        %v2500 = vld [vmem:[#allocation18] sm:$0xff]
        %v2501 = vld [vmem:[#allocation18 + $0x8] sm:$0xff]
        %v2504 = vperm.slane %v2500, 0
        %v2505 = vperm.slane %v2500, 1
        %v2506 = vperm.slane %v2500, 2
        %v2507 = vperm.slane %v2500, 3
        %v2508 = vperm.slane %v2500, 4
        %v2509 = vperm.slane %v2500, 5
        %v2510 = vperm.slane %v2500, 6
        %v2511 = vperm.slane %v2500, 7
        %v2512 = vperm.slane %v2501, 0
        %v2513 = vperm.slane %v2501, 1
        %v2514 = vperm.slane %v2501, 2
        %v2515 = vperm.slane %v2501, 3
        %v2516 = vperm.slane %v2501, 4
        %v2517 = vperm.slane %v2501, 5
        %v2518 = vperm.slane %v2501, 6
        %v2519 = vperm.slane %v2501, 7
        %v2792 = vunpack.c.l.b16 %v2242
        %v2793 = vunpack.c.h.b16 %v2242
        %v2794 = vunpack.c.l.b16 %v2243
        %v2795 = vunpack.c.h.b16 %v2243
        %v2796 = vunpack.c.l.b16 %v2244
        %v2797 = vunpack.c.h.b16 %v2244
        %v2798 = vunpack.c.l.b16 %v2245
        %v2799 = vunpack.c.h.b16 %v2245
        %v2800 = vunpack.c.l.b16 %v2246
        %v2801 = vunpack.c.h.b16 %v2246
        %v2802 = vunpack.c.l.b16 %v2247
        %v2803 = vunpack.c.h.b16 %v2247
        %v2804 = vunpack.c.l.b16 %v2248
        %v2805 = vunpack.c.h.b16 %v2248
        %v2806 = vunpack.c.l.b16 %v2249
        %v2807 = vunpack.c.h.b16 %v2249
        %v2808 = vunpack.c.l.b16 %v2250
        %v2809 = vunpack.c.h.b16 %v2250
        %v2810 = vunpack.c.l.b16 %v2251
        %v2811 = vunpack.c.h.b16 %v2251
        %v2812 = vunpack.c.l.b16 %v2252
        %v2813 = vunpack.c.h.b16 %v2252
        %v2814 = vunpack.c.l.b16 %v2253
        %v2815 = vunpack.c.h.b16 %v2253
        %v2816 = vunpack.c.l.b16 %v2254
        %v2817 = vunpack.c.h.b16 %v2254
        %v2818 = vunpack.c.l.b16 %v2255
        %v2819 = vunpack.c.h.b16 %v2255
        %v2820 = vunpack.c.l.b16 %v2256
        %v2821 = vunpack.c.h.b16 %v2256
        %v2822 = vunpack.c.l.b16 %v2257
        %v2823 = vunpack.c.h.b16 %v2257
        %v2824 = vunpack.c.l.b16 %v2258
        %v2825 = vunpack.c.h.b16 %v2258
        %v2826 = vunpack.c.l.b16 %v2259
        %v2827 = vunpack.c.h.b16 %v2259
        %v2828 = vunpack.c.l.b16 %v2260
        %v2829 = vunpack.c.h.b16 %v2260
        %v2830 = vunpack.c.l.b16 %v2261
        %v2831 = vunpack.c.h.b16 %v2261
        %v2832 = vunpack.c.l.b16 %v2262
        %v2833 = vunpack.c.h.b16 %v2262
        %v2834 = vunpack.c.l.b16 %v2263
        %v2835 = vunpack.c.h.b16 %v2263
        %v2836 = vunpack.c.l.b16 %v2264
        %v2837 = vunpack.c.h.b16 %v2264
        %v2838 = vunpack.c.l.b16 %v2265
        %v2839 = vunpack.c.h.b16 %v2265
        %v2840 = vunpack.c.l.b16 %v2266
        %v2841 = vunpack.c.h.b16 %v2266
        %v2842 = vunpack.c.l.b16 %v2267
        %v2843 = vunpack.c.h.b16 %v2267
        %v2844 = vunpack.c.l.b16 %v2268
        %v2845 = vunpack.c.h.b16 %v2268
        %v2846 = vunpack.c.l.b16 %v2269
        %v2847 = vunpack.c.h.b16 %v2269
        %v2848 = vunpack.c.l.b16 %v2270
        %v2849 = vunpack.c.h.b16 %v2270
        %v2850 = vunpack.c.l.b16 %v2271
        %v2851 = vunpack.c.h.b16 %v2271
        %v2852 = vunpack.c.l.b16 %v2272
        %v2853 = vunpack.c.h.b16 %v2272
        %v2854 = vunpack.c.l.b16 %v2273
        %v2855 = vunpack.c.h.b16 %v2273
        %v2856 = vunpack.c.l.b16 %v2274
        %v2857 = vunpack.c.h.b16 %v2274
        %v2858 = vunpack.c.l.b16 %v2275
        %v2859 = vunpack.c.h.b16 %v2275
        %v2860 = vunpack.c.l.b16 %v2276
        %v2861 = vunpack.c.h.b16 %v2276
        %v2862 = vunpack.c.l.b16 %v2277
        %v2863 = vunpack.c.h.b16 %v2277
        %v2864 = vunpack.c.l.b16 %v2278
        %v2865 = vunpack.c.h.b16 %v2278
        %v2866 = vunpack.c.l.b16 %v2279
        %v2867 = vunpack.c.h.b16 %v2279
        %v2868 = vunpack.c.l.b16 %v2280
        %v2869 = vunpack.c.h.b16 %v2280
        %v2870 = vunpack.c.l.b16 %v2281
        %v2871 = vunpack.c.h.b16 %v2281
        %v2872 = vunpack.c.l.b16 %v2282
        %v2873 = vunpack.c.h.b16 %v2282
        %v2874 = vunpack.c.l.b16 %v2283
        %v2875 = vunpack.c.h.b16 %v2283
        %v2876 = vunpack.c.l.b16 %v2284
        %v2877 = vunpack.c.h.b16 %v2284
        %v2878 = vunpack.c.l.b16 %v2285
        %v2879 = vunpack.c.h.b16 %v2285
        %v2880 = vunpack.c.l.b16 %v2286
        %v2881 = vunpack.c.h.b16 %v2286
        %v2882 = vunpack.c.l.b16 %v2287
        %v2883 = vunpack.c.h.b16 %v2287
        %v2884 = vunpack.c.l.b16 %v2288
        %v2885 = vunpack.c.h.b16 %v2288
        %v2886 = vunpack.c.l.b16 %v2289
        %v2887 = vunpack.c.h.b16 %v2289
        %v2888 = vunpack.c.l.b16 %v2290
        %v2889 = vunpack.c.h.b16 %v2290
        %v2890 = vunpack.c.l.b16 %v2291
        %v2891 = vunpack.c.h.b16 %v2291
        %v2892 = vunpack.c.l.b16 %v2292
        %v2893 = vunpack.c.h.b16 %v2292
        %v2894 = vunpack.c.l.b16 %v2293
        %v2895 = vunpack.c.h.b16 %v2293
        %v2896 = vunpack.c.l.b16 %v2294
        %v2897 = vunpack.c.h.b16 %v2294
        %v2898 = vunpack.c.l.b16 %v2295
        %v2899 = vunpack.c.h.b16 %v2295
        %v2900 = vunpack.c.l.b16 %v2296
        %v2901 = vunpack.c.h.b16 %v2296
        %v2902 = vunpack.c.l.b16 %v2297
        %v2903 = vunpack.c.h.b16 %v2297
        %v2904 = vunpack.c.l.b16 %v2298
        %v2905 = vunpack.c.h.b16 %v2298
        %v2906 = vunpack.c.l.b16 %v2299
        %v2907 = vunpack.c.h.b16 %v2299
        %v2908 = vunpack.c.l.b16 %v2300
        %v2909 = vunpack.c.h.b16 %v2300
        %v2910 = vunpack.c.l.b16 %v2301
        %v2911 = vunpack.c.h.b16 %v2301
        %v2912 = vunpack.c.l.b16 %v2302
        %v2913 = vunpack.c.h.b16 %v2302
        %v2914 = vunpack.c.l.b16 %v2303
        %v2915 = vunpack.c.h.b16 %v2303
        %v2916 = vunpack.c.l.b16 %v2304
        %v2917 = vunpack.c.h.b16 %v2304
        %v2918 = vunpack.c.l.b16 %v2305
        %v2919 = vunpack.c.h.b16 %v2305
        %v2920 = vunpack.c.l.b16 %v2306
        %v2921 = vunpack.c.h.b16 %v2306
        %v2922 = vunpack.c.l.b16 %v2307
        %v2923 = vunpack.c.h.b16 %v2307
        %v2924 = vunpack.c.l.b16 %v2308
        %v2925 = vunpack.c.h.b16 %v2308
        %v2926 = vunpack.c.l.b16 %v2309
        %v2927 = vunpack.c.h.b16 %v2309
        %v2928 = vunpack.c.l.b16 %v2310
        %v2929 = vunpack.c.h.b16 %v2310
        %v2930 = vunpack.c.l.b16 %v2311
        %v2931 = vunpack.c.h.b16 %v2311
        %v2932 = vunpack.c.l.b16 %v2312
        %v2933 = vunpack.c.h.b16 %v2312
        %v2934 = vunpack.c.l.b16 %v2313
        %v2935 = vunpack.c.h.b16 %v2313
        %v2936 = vunpack.c.l.b16 %v2314
        %v2937 = vunpack.c.h.b16 %v2314
        %v2938 = vunpack.c.l.b16 %v2315
        %v2939 = vunpack.c.h.b16 %v2315
        %v2940 = vunpack.c.l.b16 %v2316
        %v2941 = vunpack.c.h.b16 %v2316
        %v2942 = vunpack.c.l.b16 %v2317
        %v2943 = vunpack.c.h.b16 %v2317
        %v2944 = vunpack.c.l.b16 %v2318
        %v2945 = vunpack.c.h.b16 %v2318
        %v2946 = vunpack.c.l.b16 %v2319
        %v2947 = vunpack.c.h.b16 %v2319
        %v2948 = vunpack.c.l.b16 %v2320
        %v2949 = vunpack.c.h.b16 %v2320
        %v2950 = vunpack.c.l.b16 %v2321
        %v2951 = vunpack.c.h.b16 %v2321
        %v2952 = vunpack.c.l.b16 %v2322
        %v2953 = vunpack.c.h.b16 %v2322
        %v2954 = vunpack.c.l.b16 %v2323
        %v2955 = vunpack.c.h.b16 %v2323
        %v2956 = vunpack.c.l.b16 %v2324
        %v2957 = vunpack.c.h.b16 %v2324
        %v2958 = vunpack.c.l.b16 %v2325
        %v2959 = vunpack.c.h.b16 %v2325
        %v2960 = vunpack.c.l.b16 %v2326
        %v2961 = vunpack.c.h.b16 %v2326
        %v2962 = vunpack.c.l.b16 %v2327
        %v2963 = vunpack.c.h.b16 %v2327
        %v2964 = vunpack.c.l.b16 %v2328
        %v2965 = vunpack.c.h.b16 %v2328
        %v2966 = vunpack.c.l.b16 %v2329
        %v2967 = vunpack.c.h.b16 %v2329
        %v2968 = vunpack.c.l.b16 %v2330
        %v2969 = vunpack.c.h.b16 %v2330
        %v2970 = vunpack.c.l.b16 %v2331
        %v2971 = vunpack.c.h.b16 %v2331
        %v2972 = vunpack.c.l.b16 %v2332
        %v2973 = vunpack.c.h.b16 %v2332
        %v2974 = vunpack.c.l.b16 %v2333
        %v2975 = vunpack.c.h.b16 %v2333
        %v2976 = vunpack.c.l.b16 %v2334
        %v2977 = vunpack.c.h.b16 %v2334
        %v2978 = vunpack.c.l.b16 %v2335
        %v2979 = vunpack.c.h.b16 %v2335
        %v2980 = vunpack.c.l.b16 %v2336
        %v2981 = vunpack.c.h.b16 %v2336
        %v2982 = vunpack.c.l.b16 %v2337
        %v2983 = vunpack.c.h.b16 %v2337
        %v2984 = vunpack.c.l.b16 %v2338
        %v2985 = vunpack.c.h.b16 %v2338
        %v2986 = vunpack.c.l.b16 %v2339
        %v2987 = vunpack.c.h.b16 %v2339
        %v2988 = vunpack.c.l.b16 %v2340
        %v2989 = vunpack.c.h.b16 %v2340
        %v2990 = vunpack.c.l.b16 %v2341
        %v2991 = vunpack.c.h.b16 %v2341
        %v2992 = vunpack.c.l.b16 %v2342
        %v2993 = vunpack.c.h.b16 %v2342
        %v2994 = vunpack.c.l.b16 %v2343
        %v2995 = vunpack.c.h.b16 %v2343
        %v2996 = vunpack.c.l.b16 %v2344
        %v2997 = vunpack.c.h.b16 %v2344
        %v2998 = vunpack.c.l.b16 %v2345
        %v2999 = vunpack.c.h.b16 %v2345
        %v3000 = vunpack.c.l.b16 %v2346
        %v3001 = vunpack.c.h.b16 %v2346
        %v3002 = vunpack.c.l.b16 %v2347
        %v3003 = vunpack.c.h.b16 %v2347
        %v3004 = vunpack.c.l.b16 %v2348
        %v3005 = vunpack.c.h.b16 %v2348
        %v3006 = vunpack.c.l.b16 %v2349
        %v3007 = vunpack.c.h.b16 %v2349
        %v3008 = vunpack.c.l.b16 %v2350
        %v3009 = vunpack.c.h.b16 %v2350
        %v3010 = vunpack.c.l.b16 %v2351
        %v3011 = vunpack.c.h.b16 %v2351
        %v3012 = vunpack.c.l.b16 %v2352
        %v3013 = vunpack.c.h.b16 %v2352
        %v3014 = vunpack.c.l.b16 %v2353
        %v3015 = vunpack.c.h.b16 %v2353
        %v3016 = vunpack.c.l.b16 %v2354
        %v3017 = vunpack.c.h.b16 %v2354
        %v3018 = vunpack.c.l.b16 %v2355
        %v3019 = vunpack.c.h.b16 %v2355
        %v3020 = vunpack.c.l.b16 %v2356
        %v3021 = vunpack.c.h.b16 %v2356
        %v3022 = vunpack.c.l.b16 %v2357
        %v3023 = vunpack.c.h.b16 %v2357
        %v3024 = vunpack.c.l.b16 %v2358
        %v3025 = vunpack.c.h.b16 %v2358
        %v3026 = vunpack.c.l.b16 %v2359
        %v3027 = vunpack.c.h.b16 %v2359
        %v3028 = vunpack.c.l.b16 %v2360
        %v3029 = vunpack.c.h.b16 %v2360
        %v3030 = vunpack.c.l.b16 %v2361
        %v3031 = vunpack.c.h.b16 %v2361
        %v3032 = vunpack.c.l.b16 %v2362
        %v3033 = vunpack.c.h.b16 %v2362
        %v3034 = vunpack.c.l.b16 %v2363
        %v3035 = vunpack.c.h.b16 %v2363
        %v3036 = vunpack.c.l.b16 %v2364
        %v3037 = vunpack.c.h.b16 %v2364
        %v3038 = vunpack.c.l.b16 %v2365
        %v3039 = vunpack.c.h.b16 %v2365
        %v3040 = vunpack.c.l.b16 %v2366
        %v3041 = vunpack.c.h.b16 %v2366
        %v3042 = vunpack.c.l.b16 %v2367
        %v3043 = vunpack.c.h.b16 %v2367
        %v3044 = vunpack.c.l.b16 %v2368
        %v3045 = vunpack.c.h.b16 %v2368
        %v3046 = vunpack.c.l.b16 %v2369
        %v3047 = vunpack.c.h.b16 %v2369
        %v3048 = vunpack.c.l.b16 %v2370
        %v3049 = vunpack.c.h.b16 %v2370
        %v3050 = vunpack.c.l.b16 %v2371
        %v3051 = vunpack.c.h.b16 %v2371
        %v3052 = vunpack.c.l.b16 %v2372
        %v3053 = vunpack.c.h.b16 %v2372
        %v3054 = vunpack.c.l.b16 %v2373
        %v3055 = vunpack.c.h.b16 %v2373
        %v3056 = vunpack.c.l.b16 %v2374
        %v3057 = vunpack.c.h.b16 %v2374
        %v3058 = vunpack.c.l.b16 %v2375
        %v3059 = vunpack.c.h.b16 %v2375
        %v3060 = vunpack.c.l.b16 %v2376
        %v3061 = vunpack.c.h.b16 %v2376
        %v3062 = vunpack.c.l.b16 %v2377
        %v3063 = vunpack.c.h.b16 %v2377
        %v3064 = vunpack.c.l.b16 %v2378
        %v3065 = vunpack.c.h.b16 %v2378
        %v3066 = vunpack.c.l.b16 %v2379
        %v3067 = vunpack.c.h.b16 %v2379
        %v3068 = vunpack.c.l.b16 %v2380
        %v3069 = vunpack.c.h.b16 %v2380
        %v3070 = vunpack.c.l.b16 %v2381
        %v3071 = vunpack.c.h.b16 %v2381
        %v3072 = vunpack.c.l.b16 %v2382
        %v3073 = vunpack.c.h.b16 %v2382
        %v3074 = vunpack.c.l.b16 %v2383
        %v3075 = vunpack.c.h.b16 %v2383
        %v3076 = vunpack.c.l.b16 %v2384
        %v3077 = vunpack.c.h.b16 %v2384
        %v3078 = vunpack.c.l.b16 %v2385
        %v3079 = vunpack.c.h.b16 %v2385
        %v3080 = vunpack.c.l.b16 %v2386
        %v3081 = vunpack.c.h.b16 %v2386
        %v3082 = vunpack.c.l.b16 %v2387
        %v3083 = vunpack.c.h.b16 %v2387
        %v3084 = vunpack.c.l.b16 %v2388
        %v3085 = vunpack.c.h.b16 %v2388
        %v3086 = vunpack.c.l.b16 %v2389
        %v3087 = vunpack.c.h.b16 %v2389
        %v3088 = vunpack.c.l.b16 %v2390
        %v3089 = vunpack.c.h.b16 %v2390
        %v3090 = vunpack.c.l.b16 %v2391
        %v3091 = vunpack.c.h.b16 %v2391
        %v3092 = vunpack.c.l.b16 %v2392
        %v3093 = vunpack.c.h.b16 %v2392
        %v3094 = vunpack.c.l.b16 %v2393
        %v3095 = vunpack.c.h.b16 %v2393
        %v3096 = vunpack.c.l.b16 %v2394
        %v3097 = vunpack.c.h.b16 %v2394
        %v3098 = vunpack.c.l.b16 %v2395
        %v3099 = vunpack.c.h.b16 %v2395
        %v3100 = vunpack.c.l.b16 %v2396
        %v3101 = vunpack.c.h.b16 %v2396
        %v3102 = vunpack.c.l.b16 %v2397
        %v3103 = vunpack.c.h.b16 %v2397
        %v3104 = vunpack.c.l.b16 %v2398
        %v3105 = vunpack.c.h.b16 %v2398
        %v3106 = vunpack.c.l.b16 %v2399
        %v3107 = vunpack.c.h.b16 %v2399
        %v3108 = vunpack.c.l.b16 %v2400
        %v3109 = vunpack.c.h.b16 %v2400
        %v3110 = vunpack.c.l.b16 %v2401
        %v3111 = vunpack.c.h.b16 %v2401
        %v3112 = vunpack.c.l.b16 %v2402
        %v3113 = vunpack.c.h.b16 %v2402
        %v3114 = vunpack.c.l.b16 %v2403
        %v3115 = vunpack.c.h.b16 %v2403
        %v3116 = vunpack.c.l.b16 %v2404
        %v3117 = vunpack.c.h.b16 %v2404
        %v3118 = vunpack.c.l.b16 %v2405
        %v3119 = vunpack.c.h.b16 %v2405
        %v3120 = vunpack.c.l.b16 %v2406
        %v3121 = vunpack.c.h.b16 %v2406
        %v3122 = vunpack.c.l.b16 %v2407
        %v3123 = vunpack.c.h.b16 %v2407
        %v3124 = vunpack.c.l.b16 %v2408
        %v3125 = vunpack.c.h.b16 %v2408
        %v3126 = vunpack.c.l.b16 %v2409
        %v3127 = vunpack.c.h.b16 %v2409
        %v3128 = vunpack.c.l.b16 %v2410
        %v3129 = vunpack.c.h.b16 %v2410
        %v3130 = vunpack.c.l.b16 %v2411
        %v3131 = vunpack.c.h.b16 %v2411
        %v3132 = vunpack.c.l.b16 %v2412
        %v3133 = vunpack.c.h.b16 %v2412
        %v3134 = vunpack.c.l.b16 %v2413
        %v3135 = vunpack.c.h.b16 %v2413
        %v3136 = vunpack.c.l.b16 %v2414
        %v3137 = vunpack.c.h.b16 %v2414
        %v3138 = vunpack.c.l.b16 %v2415
        %v3139 = vunpack.c.h.b16 %v2415
        %v3140 = vunpack.c.l.b16 %v2416
        %v3141 = vunpack.c.h.b16 %v2416
        %v3142 = vunpack.c.l.b16 %v2417
        %v3143 = vunpack.c.h.b16 %v2417
        %v3144 = vunpack.c.l.b16 %v2418
        %v3145 = vunpack.c.h.b16 %v2418
        %v3146 = vunpack.c.l.b16 %v2419
        %v3147 = vunpack.c.h.b16 %v2419
        %v3148 = vunpack.c.l.b16 %v2420
        %v3149 = vunpack.c.h.b16 %v2420
        %v3150 = vunpack.c.l.b16 %v2421
        %v3151 = vunpack.c.h.b16 %v2421
        %v3152 = vunpack.c.l.b16 %v2422
        %v3153 = vunpack.c.h.b16 %v2422
        %v3154 = vunpack.c.l.b16 %v2423
        %v3155 = vunpack.c.h.b16 %v2423
        %v3156 = vunpack.c.l.b16 %v2424
        %v3157 = vunpack.c.h.b16 %v2424
        %v3158 = vunpack.c.l.b16 %v2425
        %v3159 = vunpack.c.h.b16 %v2425
        %v3160 = vunpack.c.l.b16 %v2426
        %v3161 = vunpack.c.h.b16 %v2426
        %v3162 = vunpack.c.l.b16 %v2427
        %v3163 = vunpack.c.h.b16 %v2427
        %v3164 = vunpack.c.l.b16 %v2428
        %v3165 = vunpack.c.h.b16 %v2428
        %v3166 = vunpack.c.l.b16 %v2429
        %v3167 = vunpack.c.h.b16 %v2429
        %v3168 = vunpack.c.l.b16 %v2430
        %v3169 = vunpack.c.h.b16 %v2430
        %v3170 = vunpack.c.l.b16 %v2431
        %v3171 = vunpack.c.h.b16 %v2431
        %v3172 = vunpack.c.l.b16 %v2432
        %v3173 = vunpack.c.h.b16 %v2432
        %v3174 = vunpack.c.l.b16 %v2433
        %v3175 = vunpack.c.h.b16 %v2433
        %v3176 = vunpack.c.l.b16 %v2434
        %v3177 = vunpack.c.h.b16 %v2434
        %v3178 = vunpack.c.l.b16 %v2435
        %v3179 = vunpack.c.h.b16 %v2435
        %v3180 = vunpack.c.l.b16 %v2436
        %v3181 = vunpack.c.h.b16 %v2436
        %v3182 = vunpack.c.l.b16 %v2437
        %v3183 = vunpack.c.h.b16 %v2437
        %v3184 = vunpack.c.l.b16 %v2438
        %v3185 = vunpack.c.h.b16 %v2438
        %v3186 = vunpack.c.l.b16 %v2439
        %v3187 = vunpack.c.h.b16 %v2439
        %v3188 = vunpack.c.l.b16 %v2440
        %v3189 = vunpack.c.h.b16 %v2440
        %v3190 = vunpack.c.l.b16 %v2441
        %v3191 = vunpack.c.h.b16 %v2441
        %v3192 = vunpack.c.l.b16 %v2442
        %v3193 = vunpack.c.h.b16 %v2442
        %v3194 = vunpack.c.l.b16 %v2443
        %v3195 = vunpack.c.h.b16 %v2443
        %v3196 = vunpack.c.l.b16 %v2444
        %v3197 = vunpack.c.h.b16 %v2444
        %v3198 = vunpack.c.l.b16 %v2445
        %v3199 = vunpack.c.h.b16 %v2445
        %v3200 = vunpack.c.l.b16 %v2446
        %v3201 = vunpack.c.h.b16 %v2446
        %v3202 = vunpack.c.l.b16 %v2447
        %v3203 = vunpack.c.h.b16 %v2447
        %v3204 = vunpack.c.l.b16 %v2448
        %v3205 = vunpack.c.h.b16 %v2448
        %v3206 = vunpack.c.l.b16 %v2449
        %v3207 = vunpack.c.h.b16 %v2449
        %v3208 = vunpack.c.l.b16 %v2450
        %v3209 = vunpack.c.h.b16 %v2450
        %v3210 = vunpack.c.l.b16 %v2451
        %v3211 = vunpack.c.h.b16 %v2451
        %v3212 = vunpack.c.l.b16 %v2452
        %v3213 = vunpack.c.h.b16 %v2452
        %v3214 = vunpack.c.l.b16 %v2453
        %v3215 = vunpack.c.h.b16 %v2453
        %v3216 = vunpack.c.l.b16 %v2454
        %v3217 = vunpack.c.h.b16 %v2454
        %v3218 = vunpack.c.l.b16 %v2455
        %v3219 = vunpack.c.h.b16 %v2455
        %v3220 = vunpack.c.l.b16 %v2456
        %v3221 = vunpack.c.h.b16 %v2456
        %v3222 = vunpack.c.l.b16 %v2457
        %v3223 = vunpack.c.h.b16 %v2457
        %v3224 = vunpack.c.l.b16 %v2458
        %v3225 = vunpack.c.h.b16 %v2458
        %v3226 = vunpack.c.l.b16 %v2459
        %v3227 = vunpack.c.h.b16 %v2459
        %v3228 = vunpack.c.l.b16 %v2460
        %v3229 = vunpack.c.h.b16 %v2460
        %v3230 = vunpack.c.l.b16 %v2461
        %v3231 = vunpack.c.h.b16 %v2461
        %v3232 = vunpack.c.l.b16 %v2462
        %v3233 = vunpack.c.h.b16 %v2462
        %v3234 = vunpack.c.l.b16 %v2463
        %v3235 = vunpack.c.h.b16 %v2463
        %v3236 = vunpack.c.l.b16 %v2464
        %v3237 = vunpack.c.h.b16 %v2464
        %v3238 = vunpack.c.l.b16 %v2465
        %v3239 = vunpack.c.h.b16 %v2465
        %v3240 = vunpack.c.l.b16 %v2466
        %v3241 = vunpack.c.h.b16 %v2466
        %v3242 = vunpack.c.l.b16 %v2467
        %v3243 = vunpack.c.h.b16 %v2467
        %v3244 = vunpack.c.l.b16 %v2468
        %v3245 = vunpack.c.h.b16 %v2468
        %v3246 = vunpack.c.l.b16 %v2469
        %v3247 = vunpack.c.h.b16 %v2469
        %v3248 = vunpack.c.l.b16 %v2470
        %v3249 = vunpack.c.h.b16 %v2470
        %v3250 = vunpack.c.l.b16 %v2471
        %v3251 = vunpack.c.h.b16 %v2471
        %v3252 = vunpack.c.l.b16 %v2472
        %v3253 = vunpack.c.h.b16 %v2472
        %v3254 = vunpack.c.l.b16 %v2473
        %v3255 = vunpack.c.h.b16 %v2473
        %v3256 = vunpack.c.l.b16 %v2474
        %v3257 = vunpack.c.h.b16 %v2474
        %v3258 = vunpack.c.l.b16 %v2475
        %v3259 = vunpack.c.h.b16 %v2475
        %v3260 = vunpack.c.l.b16 %v2476
        %v3261 = vunpack.c.h.b16 %v2476
        %v3262 = vunpack.c.l.b16 %v2477
        %v3263 = vunpack.c.h.b16 %v2477
        %v3264 = vunpack.c.l.b16 %v2478
        %v3265 = vunpack.c.h.b16 %v2478
        %v3266 = vunpack.c.l.b16 %v2479
        %v3267 = vunpack.c.h.b16 %v2479
        %v3268 = vunpack.c.l.b16 %v2480
        %v3269 = vunpack.c.h.b16 %v2480
        %v3270 = vunpack.c.l.b16 %v2481
        %v3271 = vunpack.c.h.b16 %v2481
        %v3272 = vunpack.c.l.b16 %v2482
        %v3273 = vunpack.c.h.b16 %v2482
        %v3274 = vunpack.c.l.b16 %v2483
        %v3275 = vunpack.c.h.b16 %v2483
        %v3276 = vunpack.c.l.b16 %v2484
        %v3277 = vunpack.c.h.b16 %v2484
        %v3278 = vunpack.c.l.b16 %v2485
        %v3279 = vunpack.c.h.b16 %v2485
        %v3280 = vunpack.c.l.b16 %v2486
        %v3281 = vunpack.c.h.b16 %v2486
        %v3282 = vunpack.c.l.b16 %v2487
        %v3283 = vunpack.c.h.b16 %v2487
        %v3284 = vunpack.c.l.b16 %v2488
        %v3285 = vunpack.c.h.b16 %v2488
        %v3286 = vunpack.c.l.b16 %v2489
        %v3287 = vunpack.c.h.b16 %v2489
        %v3288 = vunpack.c.l.b16 %v2490
        %v3289 = vunpack.c.h.b16 %v2490
        %v3290 = vunpack.c.l.b16 %v2491
        %v3291 = vunpack.c.h.b16 %v2491
        %v3292 = vunpack.c.l.b16 %v2492
        %v3293 = vunpack.c.h.b16 %v2492
        %v3294 = vunpack.c.l.b16 %v2493
        %v3295 = vunpack.c.h.b16 %v2493
        %v3296 = vunpack.c.l.b16 %v2494
        %v3297 = vunpack.c.h.b16 %v2494
        %v3298 = vunpack.c.l.b16 %v2495
        %v3299 = vunpack.c.h.b16 %v2495
        %v3300 = vunpack.c.l.b16 %v2496
        %v3301 = vunpack.c.h.b16 %v2496
        %v3302 = vunpack.c.l.b16 %v2497
        %v3303 = vunpack.c.h.b16 %v2497
        %v3304 = vpack.c.b16 %v2808, %v2792
        %v3305 = vpack.c.b16 %v2809, %v2793
        %v3306 = vpack.c.b16 %v2810, %v2794
        %v3307 = vpack.c.b16 %v2811, %v2795
        %v3308 = vpack.c.b16 %v2812, %v2796
        %v3309 = vpack.c.b16 %v2813, %v2797
        %v3310 = vpack.c.b16 %v2814, %v2798
        %v3311 = vpack.c.b16 %v2815, %v2799
        %v3312 = vpack.c.b16 %v2816, %v2800
        %v3313 = vpack.c.b16 %v2817, %v2801
        %v3314 = vpack.c.b16 %v2818, %v2802
        %v3315 = vpack.c.b16 %v2819, %v2803
        %v3316 = vpack.c.b16 %v2820, %v2804
        %v3317 = vpack.c.b16 %v2821, %v2805
        %v3318 = vpack.c.b16 %v2822, %v2806
        %v3319 = vpack.c.b16 %v2823, %v2807
        %v3320 = vpack.c.b16 %v2840, %v2824
        %v3321 = vpack.c.b16 %v2841, %v2825
        %v3322 = vpack.c.b16 %v2842, %v2826
        %v3323 = vpack.c.b16 %v2843, %v2827
        %v3324 = vpack.c.b16 %v2844, %v2828
        %v3325 = vpack.c.b16 %v2845, %v2829
        %v3326 = vpack.c.b16 %v2846, %v2830
        %v3327 = vpack.c.b16 %v2847, %v2831
        %v3328 = vpack.c.b16 %v2848, %v2832
        %v3329 = vpack.c.b16 %v2849, %v2833
        %v3330 = vpack.c.b16 %v2850, %v2834
        %v3331 = vpack.c.b16 %v2851, %v2835
        %v3332 = vpack.c.b16 %v2852, %v2836
        %v3333 = vpack.c.b16 %v2853, %v2837
        %v3334 = vpack.c.b16 %v2854, %v2838
        %v3335 = vpack.c.b16 %v2855, %v2839
        %v3336 = vpack.c.b16 %v2872, %v2856
        %v3337 = vpack.c.b16 %v2873, %v2857
        %v3338 = vpack.c.b16 %v2874, %v2858
        %v3339 = vpack.c.b16 %v2875, %v2859
        %v3340 = vpack.c.b16 %v2876, %v2860
        %v3341 = vpack.c.b16 %v2877, %v2861
        %v3342 = vpack.c.b16 %v2878, %v2862
        %v3343 = vpack.c.b16 %v2879, %v2863
        %v3344 = vpack.c.b16 %v2880, %v2864
        %v3345 = vpack.c.b16 %v2881, %v2865
        %v3346 = vpack.c.b16 %v2882, %v2866
        %v3347 = vpack.c.b16 %v2883, %v2867
        %v3348 = vpack.c.b16 %v2884, %v2868
        %v3349 = vpack.c.b16 %v2885, %v2869
        %v3350 = vpack.c.b16 %v2886, %v2870
        %v3351 = vpack.c.b16 %v2887, %v2871
        %v3352 = vpack.c.b16 %v2904, %v2888
        %v3353 = vpack.c.b16 %v2905, %v2889
        %v3354 = vpack.c.b16 %v2906, %v2890
        %v3355 = vpack.c.b16 %v2907, %v2891
        %v3356 = vpack.c.b16 %v2908, %v2892
        %v3357 = vpack.c.b16 %v2909, %v2893
        %v3358 = vpack.c.b16 %v2910, %v2894
        %v3359 = vpack.c.b16 %v2911, %v2895
        %v3360 = vpack.c.b16 %v2912, %v2896
        %v3361 = vpack.c.b16 %v2913, %v2897
        %v3362 = vpack.c.b16 %v2914, %v2898
        %v3363 = vpack.c.b16 %v2915, %v2899
        %v3364 = vpack.c.b16 %v2916, %v2900
        %v3365 = vpack.c.b16 %v2917, %v2901
        %v3366 = vpack.c.b16 %v2918, %v2902
        %v3367 = vpack.c.b16 %v2919, %v2903
        %v3368 = vpack.c.b16 %v2936, %v2920
        %v3369 = vpack.c.b16 %v2937, %v2921
        %v3370 = vpack.c.b16 %v2938, %v2922
        %v3371 = vpack.c.b16 %v2939, %v2923
        %v3372 = vpack.c.b16 %v2940, %v2924
        %v3373 = vpack.c.b16 %v2941, %v2925
        %v3374 = vpack.c.b16 %v2942, %v2926
        %v3375 = vpack.c.b16 %v2943, %v2927
        %v3376 = vpack.c.b16 %v2944, %v2928
        %v3377 = vpack.c.b16 %v2945, %v2929
        %v3378 = vpack.c.b16 %v2946, %v2930
        %v3379 = vpack.c.b16 %v2947, %v2931
        %v3380 = vpack.c.b16 %v2948, %v2932
        %v3381 = vpack.c.b16 %v2949, %v2933
        %v3382 = vpack.c.b16 %v2950, %v2934
        %v3383 = vpack.c.b16 %v2951, %v2935
        %v3384 = vpack.c.b16 %v2968, %v2952
        %v3385 = vpack.c.b16 %v2969, %v2953
        %v3386 = vpack.c.b16 %v2970, %v2954
        %v3387 = vpack.c.b16 %v2971, %v2955
        %v3388 = vpack.c.b16 %v2972, %v2956
        %v3389 = vpack.c.b16 %v2973, %v2957
        %v3390 = vpack.c.b16 %v2974, %v2958
        %v3391 = vpack.c.b16 %v2975, %v2959
        %v3392 = vpack.c.b16 %v2976, %v2960
        %v3393 = vpack.c.b16 %v2977, %v2961
        %v3394 = vpack.c.b16 %v2978, %v2962
        %v3395 = vpack.c.b16 %v2979, %v2963
        %v3396 = vpack.c.b16 %v2980, %v2964
        %v3397 = vpack.c.b16 %v2981, %v2965
        %v3398 = vpack.c.b16 %v2982, %v2966
        %v3399 = vpack.c.b16 %v2983, %v2967
        %v3400 = vpack.c.b16 %v3000, %v2984
        %v3401 = vpack.c.b16 %v3001, %v2985
        %v3402 = vpack.c.b16 %v3002, %v2986
        %v3403 = vpack.c.b16 %v3003, %v2987
        %v3404 = vpack.c.b16 %v3004, %v2988
        %v3405 = vpack.c.b16 %v3005, %v2989
        %v3406 = vpack.c.b16 %v3006, %v2990
        %v3407 = vpack.c.b16 %v3007, %v2991
        %v3408 = vpack.c.b16 %v3008, %v2992
        %v3409 = vpack.c.b16 %v3009, %v2993
        %v3410 = vpack.c.b16 %v3010, %v2994
        %v3411 = vpack.c.b16 %v3011, %v2995
        %v3412 = vpack.c.b16 %v3012, %v2996
        %v3413 = vpack.c.b16 %v3013, %v2997
        %v3414 = vpack.c.b16 %v3014, %v2998
        %v3415 = vpack.c.b16 %v3015, %v2999
        %v3416 = vpack.c.b16 %v3032, %v3016
        %v3417 = vpack.c.b16 %v3033, %v3017
        %v3418 = vpack.c.b16 %v3034, %v3018
        %v3419 = vpack.c.b16 %v3035, %v3019
        %v3420 = vpack.c.b16 %v3036, %v3020
        %v3421 = vpack.c.b16 %v3037, %v3021
        %v3422 = vpack.c.b16 %v3038, %v3022
        %v3423 = vpack.c.b16 %v3039, %v3023
        %v3424 = vpack.c.b16 %v3040, %v3024
        %v3425 = vpack.c.b16 %v3041, %v3025
        %v3426 = vpack.c.b16 %v3042, %v3026
        %v3427 = vpack.c.b16 %v3043, %v3027
        %v3428 = vpack.c.b16 %v3044, %v3028
        %v3429 = vpack.c.b16 %v3045, %v3029
        %v3430 = vpack.c.b16 %v3046, %v3030
        %v3431 = vpack.c.b16 %v3047, %v3031
        %v3432 = vpack.c.b16 %v3064, %v3048
        %v3433 = vpack.c.b16 %v3065, %v3049
        %v3434 = vpack.c.b16 %v3066, %v3050
        %v3435 = vpack.c.b16 %v3067, %v3051
        %v3436 = vpack.c.b16 %v3068, %v3052
        %v3437 = vpack.c.b16 %v3069, %v3053
        %v3438 = vpack.c.b16 %v3070, %v3054
        %v3439 = vpack.c.b16 %v3071, %v3055
        %v3440 = vpack.c.b16 %v3072, %v3056
        %v3441 = vpack.c.b16 %v3073, %v3057
        %v3442 = vpack.c.b16 %v3074, %v3058
        %v3443 = vpack.c.b16 %v3075, %v3059
        %v3444 = vpack.c.b16 %v3076, %v3060
        %v3445 = vpack.c.b16 %v3077, %v3061
        %v3446 = vpack.c.b16 %v3078, %v3062
        %v3447 = vpack.c.b16 %v3079, %v3063
        %v3448 = vpack.c.b16 %v3096, %v3080
        %v3449 = vpack.c.b16 %v3097, %v3081
        %v3450 = vpack.c.b16 %v3098, %v3082
        %v3451 = vpack.c.b16 %v3099, %v3083
        %v3452 = vpack.c.b16 %v3100, %v3084
        %v3453 = vpack.c.b16 %v3101, %v3085
        %v3454 = vpack.c.b16 %v3102, %v3086
        %v3455 = vpack.c.b16 %v3103, %v3087
        %v3456 = vpack.c.b16 %v3104, %v3088
        %v3457 = vpack.c.b16 %v3105, %v3089
        %v3458 = vpack.c.b16 %v3106, %v3090
        %v3459 = vpack.c.b16 %v3107, %v3091
        %v3460 = vpack.c.b16 %v3108, %v3092
        %v3461 = vpack.c.b16 %v3109, %v3093
        %v3462 = vpack.c.b16 %v3110, %v3094
        %v3463 = vpack.c.b16 %v3111, %v3095
        %v3464 = vpack.c.b16 %v3128, %v3112
        %v3465 = vpack.c.b16 %v3129, %v3113
        %v3466 = vpack.c.b16 %v3130, %v3114
        %v3467 = vpack.c.b16 %v3131, %v3115
        %v3468 = vpack.c.b16 %v3132, %v3116
        %v3469 = vpack.c.b16 %v3133, %v3117
        %v3470 = vpack.c.b16 %v3134, %v3118
        %v3471 = vpack.c.b16 %v3135, %v3119
        %v3472 = vpack.c.b16 %v3136, %v3120
        %v3473 = vpack.c.b16 %v3137, %v3121
        %v3474 = vpack.c.b16 %v3138, %v3122
        %v3475 = vpack.c.b16 %v3139, %v3123
        %v3476 = vpack.c.b16 %v3140, %v3124
        %v3477 = vpack.c.b16 %v3141, %v3125
        %v3478 = vpack.c.b16 %v3142, %v3126
        %v3479 = vpack.c.b16 %v3143, %v3127
        %v3480 = vpack.c.b16 %v3160, %v3144
        %v3481 = vpack.c.b16 %v3161, %v3145
        %v3482 = vpack.c.b16 %v3162, %v3146
        %v3483 = vpack.c.b16 %v3163, %v3147
        %v3484 = vpack.c.b16 %v3164, %v3148
        %v3485 = vpack.c.b16 %v3165, %v3149
        %v3486 = vpack.c.b16 %v3166, %v3150
        %v3487 = vpack.c.b16 %v3167, %v3151
        %v3488 = vpack.c.b16 %v3168, %v3152
        %v3489 = vpack.c.b16 %v3169, %v3153
        %v3490 = vpack.c.b16 %v3170, %v3154
        %v3491 = vpack.c.b16 %v3171, %v3155
        %v3492 = vpack.c.b16 %v3172, %v3156
        %v3493 = vpack.c.b16 %v3173, %v3157
        %v3494 = vpack.c.b16 %v3174, %v3158
        %v3495 = vpack.c.b16 %v3175, %v3159
        %v3496 = vpack.c.b16 %v3192, %v3176
        %v3497 = vpack.c.b16 %v3193, %v3177
        %v3498 = vpack.c.b16 %v3194, %v3178
        %v3499 = vpack.c.b16 %v3195, %v3179
        %v3500 = vpack.c.b16 %v3196, %v3180
        %v3501 = vpack.c.b16 %v3197, %v3181
        %v3502 = vpack.c.b16 %v3198, %v3182
        %v3503 = vpack.c.b16 %v3199, %v3183
        %v3504 = vpack.c.b16 %v3200, %v3184
        %v3505 = vpack.c.b16 %v3201, %v3185
        %v3506 = vpack.c.b16 %v3202, %v3186
        %v3507 = vpack.c.b16 %v3203, %v3187
        %v3508 = vpack.c.b16 %v3204, %v3188
        %v3509 = vpack.c.b16 %v3205, %v3189
        %v3510 = vpack.c.b16 %v3206, %v3190
        %v3511 = vpack.c.b16 %v3207, %v3191
        %v3512 = vpack.c.b16 %v3224, %v3208
        %v3513 = vpack.c.b16 %v3225, %v3209
        %v3514 = vpack.c.b16 %v3226, %v3210
        %v3515 = vpack.c.b16 %v3227, %v3211
        %v3516 = vpack.c.b16 %v3228, %v3212
        %v3517 = vpack.c.b16 %v3229, %v3213
        %v3518 = vpack.c.b16 %v3230, %v3214
        %v3519 = vpack.c.b16 %v3231, %v3215
        %v3520 = vpack.c.b16 %v3232, %v3216
        %v3521 = vpack.c.b16 %v3233, %v3217
        %v3522 = vpack.c.b16 %v3234, %v3218
        %v3523 = vpack.c.b16 %v3235, %v3219
        %v3524 = vpack.c.b16 %v3236, %v3220
        %v3525 = vpack.c.b16 %v3237, %v3221
        %v3526 = vpack.c.b16 %v3238, %v3222
        %v3527 = vpack.c.b16 %v3239, %v3223
        %v3528 = vpack.c.b16 %v3256, %v3240
        %v3529 = vpack.c.b16 %v3257, %v3241
        %v3530 = vpack.c.b16 %v3258, %v3242
        %v3531 = vpack.c.b16 %v3259, %v3243
        %v3532 = vpack.c.b16 %v3260, %v3244
        %v3533 = vpack.c.b16 %v3261, %v3245
        %v3534 = vpack.c.b16 %v3262, %v3246
        %v3535 = vpack.c.b16 %v3263, %v3247
        %v3536 = vpack.c.b16 %v3264, %v3248
        %v3537 = vpack.c.b16 %v3265, %v3249
        %v3538 = vpack.c.b16 %v3266, %v3250
        %v3539 = vpack.c.b16 %v3267, %v3251
        %v3540 = vpack.c.b16 %v3268, %v3252
        %v3541 = vpack.c.b16 %v3269, %v3253
        %v3542 = vpack.c.b16 %v3270, %v3254
        %v3543 = vpack.c.b16 %v3271, %v3255
        %v3544 = vpack.c.b16 %v3288, %v3272
        %v3545 = vpack.c.b16 %v3289, %v3273
        %v3546 = vpack.c.b16 %v3290, %v3274
        %v3547 = vpack.c.b16 %v3291, %v3275
        %v3548 = vpack.c.b16 %v3292, %v3276
        %v3549 = vpack.c.b16 %v3293, %v3277
        %v3550 = vpack.c.b16 %v3294, %v3278
        %v3551 = vpack.c.b16 %v3295, %v3279
        %v3552 = vpack.c.b16 %v3296, %v3280
        %v3553 = vpack.c.b16 %v3297, %v3281
        %v3554 = vpack.c.b16 %v3298, %v3282
        %v3555 = vpack.c.b16 %v3299, %v3283
        %v3556 = vpack.c.b16 %v3300, %v3284
        %v3557 = vpack.c.b16 %v3301, %v3285
        %v3558 = vpack.c.b16 %v3302, %v3286
        %v3559 = vpack.c.b16 %v3303, %v3287
        %3816 = vmatpush.bf16.msra.mxu0 %v3416
        %3817 = vmatpush.bf16.msra.mxu0 %v3400
        %3818 = vmatpush.bf16.msra.mxu0 %v3384
        %3819 = vmatpush.bf16.msra.mxu0 %v3368
        %3820 = vmatpush.bf16.msra.mxu0 %v3352
        %3821 = vmatpush.bf16.msra.mxu0 %v3336
        %3822 = vmatpush.bf16.msra.mxu0 %v3320
        %3823 = vmatpush.bf16.msra.mxu0 %v3304
        %3824 = vmatmul.bf16.gmra.mxu0 %v2498
        %v3825 = vpop.f32.mrf.mxu0
        %v3826 = vadd.f32 %v2504, %v3825
        %v3827 = vpop.f32.mrf.mxu0
        %3828 = vdwg.mxu0
        %3829 = vmatpush.bf16.msra.mxu0 %v3544
        %3830 = vmatpush.bf16.msra.mxu0 %v3528
        %3831 = vmatpush.bf16.msra.mxu0 %v3512
        %3832 = vmatpush.bf16.msra.mxu0 %v3496
        %3833 = vmatpush.bf16.msra.mxu0 %v3480
        %3834 = vmatpush.bf16.msra.mxu0 %v3464
        %3835 = vmatpush.bf16.msra.mxu0 %v3448
        %3836 = vmatpush.bf16.msra.mxu0 %v3432
        %3837 = vmatmul.bf16.gmra.mxu0 %v2499
        %v3838 = vpop.f32.mrf.mxu0
        %v3839 = vadd.f32 %v3826, %v3838
        %v3840 = vpop.f32.mrf.mxu0
        %3841 = vdwg.mxu0
        %3842 = vmatpush.bf16.msra.mxu0 %v3417
        %3843 = vmatpush.bf16.msra.mxu0 %v3401
        %3844 = vmatpush.bf16.msra.mxu0 %v3385
        %3845 = vmatpush.bf16.msra.mxu0 %v3369
        %3846 = vmatpush.bf16.msra.mxu0 %v3353
        %3847 = vmatpush.bf16.msra.mxu0 %v3337
        %3848 = vmatpush.bf16.msra.mxu0 %v3321
        %3849 = vmatpush.bf16.msra.mxu0 %v3305
        %3850 = vmatmul.bf16.gmra.mxu0 %v2498
        %v3851 = vpop.f32.mrf.mxu0
        %v3852 = vadd.f32 %v2505, %v3851
        %v3853 = vpop.f32.mrf.mxu0
        %3854 = vdwg.mxu0
        %3855 = vmatpush.bf16.msra.mxu0 %v3545
        %3856 = vmatpush.bf16.msra.mxu0 %v3529
        %3857 = vmatpush.bf16.msra.mxu0 %v3513
        %3858 = vmatpush.bf16.msra.mxu0 %v3497
        %3859 = vmatpush.bf16.msra.mxu0 %v3481
        %3860 = vmatpush.bf16.msra.mxu0 %v3465
        %3861 = vmatpush.bf16.msra.mxu0 %v3449
        %3862 = vmatpush.bf16.msra.mxu0 %v3433
        %3863 = vmatmul.bf16.gmra.mxu0 %v2499
        %v3864 = vpop.f32.mrf.mxu0
        %v3865 = vadd.f32 %v3852, %v3864
        %v3866 = vpop.f32.mrf.mxu0
        %3867 = vdwg.mxu0
        %3868 = vmatpush.bf16.msra.mxu0 %v3418
        %3869 = vmatpush.bf16.msra.mxu0 %v3402
        %3870 = vmatpush.bf16.msra.mxu0 %v3386
        %3871 = vmatpush.bf16.msra.mxu0 %v3370
        %3872 = vmatpush.bf16.msra.mxu0 %v3354
        %3873 = vmatpush.bf16.msra.mxu0 %v3338
        %3874 = vmatpush.bf16.msra.mxu0 %v3322
        %3875 = vmatpush.bf16.msra.mxu0 %v3306
        %3876 = vmatmul.bf16.gmra.mxu0 %v2498
        %v3877 = vpop.f32.mrf.mxu0
        %v3878 = vadd.f32 %v2506, %v3877
        %v3879 = vpop.f32.mrf.mxu0
        %3880 = vdwg.mxu0
        %3881 = vmatpush.bf16.msra.mxu0 %v3546
        %3882 = vmatpush.bf16.msra.mxu0 %v3530
        %3883 = vmatpush.bf16.msra.mxu0 %v3514
        %3884 = vmatpush.bf16.msra.mxu0 %v3498
        %3885 = vmatpush.bf16.msra.mxu0 %v3482
        %3886 = vmatpush.bf16.msra.mxu0 %v3466
        %3887 = vmatpush.bf16.msra.mxu0 %v3450
        %3888 = vmatpush.bf16.msra.mxu0 %v3434
        %3889 = vmatmul.bf16.gmra.mxu0 %v2499
        %v3890 = vpop.f32.mrf.mxu0
        %v3891 = vadd.f32 %v3878, %v3890
        %v3892 = vpop.f32.mrf.mxu0
        %3893 = vdwg.mxu0
        %3894 = vmatpush.bf16.msra.mxu0 %v3419
        %3895 = vmatpush.bf16.msra.mxu0 %v3403
        %3896 = vmatpush.bf16.msra.mxu0 %v3387
        %3897 = vmatpush.bf16.msra.mxu0 %v3371
        %3898 = vmatpush.bf16.msra.mxu0 %v3355
        %3899 = vmatpush.bf16.msra.mxu0 %v3339
        %3900 = vmatpush.bf16.msra.mxu0 %v3323
        %3901 = vmatpush.bf16.msra.mxu0 %v3307
        %3902 = vmatmul.bf16.gmra.mxu0 %v2498
        %v3903 = vpop.f32.mrf.mxu0
        %v3904 = vadd.f32 %v2507, %v3903
        %v3905 = vpop.f32.mrf.mxu0
        %3906 = vdwg.mxu0
        %3907 = vmatpush.bf16.msra.mxu0 %v3547
        %3908 = vmatpush.bf16.msra.mxu0 %v3531
        %3909 = vmatpush.bf16.msra.mxu0 %v3515
        %3910 = vmatpush.bf16.msra.mxu0 %v3499
        %3911 = vmatpush.bf16.msra.mxu0 %v3483
        %3912 = vmatpush.bf16.msra.mxu0 %v3467
        %3913 = vmatpush.bf16.msra.mxu0 %v3451
        %3914 = vmatpush.bf16.msra.mxu0 %v3435
        %3915 = vmatmul.bf16.gmra.mxu0 %v2499
        %v3916 = vpop.f32.mrf.mxu0
        %v3917 = vadd.f32 %v3904, %v3916
        %v3918 = vpop.f32.mrf.mxu0
        %3919 = vdwg.mxu0
        %3920 = vmatpush.bf16.msra.mxu0 %v3420
        %3921 = vmatpush.bf16.msra.mxu0 %v3404
        %3922 = vmatpush.bf16.msra.mxu0 %v3388
        %3923 = vmatpush.bf16.msra.mxu0 %v3372
        %3924 = vmatpush.bf16.msra.mxu0 %v3356
        %3925 = vmatpush.bf16.msra.mxu0 %v3340
        %3926 = vmatpush.bf16.msra.mxu0 %v3324
        %3927 = vmatpush.bf16.msra.mxu0 %v3308
        %3928 = vmatmul.bf16.gmra.mxu0 %v2498
        %v3929 = vpop.f32.mrf.mxu0
        %v3930 = vadd.f32 %v2508, %v3929
        %v3931 = vpop.f32.mrf.mxu0
        %3932 = vdwg.mxu0
        %3933 = vmatpush.bf16.msra.mxu0 %v3548
        %3934 = vmatpush.bf16.msra.mxu0 %v3532
        %3935 = vmatpush.bf16.msra.mxu0 %v3516
        %3936 = vmatpush.bf16.msra.mxu0 %v3500
        %3937 = vmatpush.bf16.msra.mxu0 %v3484
        %3938 = vmatpush.bf16.msra.mxu0 %v3468
        %3939 = vmatpush.bf16.msra.mxu0 %v3452
        %3940 = vmatpush.bf16.msra.mxu0 %v3436
        %3941 = vmatmul.bf16.gmra.mxu0 %v2499
        %v3942 = vpop.f32.mrf.mxu0
        %v3943 = vadd.f32 %v3930, %v3942
        %v3944 = vpop.f32.mrf.mxu0
        %3945 = vdwg.mxu0
        %3946 = vmatpush.bf16.msra.mxu0 %v3421
        %3947 = vmatpush.bf16.msra.mxu0 %v3405
        %3948 = vmatpush.bf16.msra.mxu0 %v3389
        %3949 = vmatpush.bf16.msra.mxu0 %v3373
        %3950 = vmatpush.bf16.msra.mxu0 %v3357
        %3951 = vmatpush.bf16.msra.mxu0 %v3341
        %3952 = vmatpush.bf16.msra.mxu0 %v3325
        %3953 = vmatpush.bf16.msra.mxu0 %v3309
        %3954 = vmatmul.bf16.gmra.mxu0 %v2498
        %v3955 = vpop.f32.mrf.mxu0
        %v3956 = vadd.f32 %v2509, %v3955
        %v3957 = vpop.f32.mrf.mxu0
        %3958 = vdwg.mxu0
        %3959 = vmatpush.bf16.msra.mxu0 %v3549
        %3960 = vmatpush.bf16.msra.mxu0 %v3533
        %3961 = vmatpush.bf16.msra.mxu0 %v3517
        %3962 = vmatpush.bf16.msra.mxu0 %v3501
        %3963 = vmatpush.bf16.msra.mxu0 %v3485
        %3964 = vmatpush.bf16.msra.mxu0 %v3469
        %3965 = vmatpush.bf16.msra.mxu0 %v3453
        %3966 = vmatpush.bf16.msra.mxu0 %v3437
        %3967 = vmatmul.bf16.gmra.mxu0 %v2499
        %v3968 = vpop.f32.mrf.mxu0
        %v3969 = vadd.f32 %v3956, %v3968
        %v3970 = vpop.f32.mrf.mxu0
        %3971 = vdwg.mxu0
        %3972 = vmatpush.bf16.msra.mxu0 %v3422
        %3973 = vmatpush.bf16.msra.mxu0 %v3406
        %3974 = vmatpush.bf16.msra.mxu0 %v3390
        %3975 = vmatpush.bf16.msra.mxu0 %v3374
        %3976 = vmatpush.bf16.msra.mxu0 %v3358
        %3977 = vmatpush.bf16.msra.mxu0 %v3342
        %3978 = vmatpush.bf16.msra.mxu0 %v3326
        %3979 = vmatpush.bf16.msra.mxu0 %v3310
        %3980 = vmatmul.bf16.gmra.mxu0 %v2498
        %v3981 = vpop.f32.mrf.mxu0
        %v3982 = vadd.f32 %v2510, %v3981
        %v3983 = vpop.f32.mrf.mxu0
        %3984 = vdwg.mxu0
        %3985 = vmatpush.bf16.msra.mxu0 %v3550
        %3986 = vmatpush.bf16.msra.mxu0 %v3534
        %3987 = vmatpush.bf16.msra.mxu0 %v3518
        %3988 = vmatpush.bf16.msra.mxu0 %v3502
        %3989 = vmatpush.bf16.msra.mxu0 %v3486
        %3990 = vmatpush.bf16.msra.mxu0 %v3470
        %3991 = vmatpush.bf16.msra.mxu0 %v3454
        %3992 = vmatpush.bf16.msra.mxu0 %v3438
        %3993 = vmatmul.bf16.gmra.mxu0 %v2499
        %v3994 = vpop.f32.mrf.mxu0
        %v3995 = vadd.f32 %v3982, %v3994
        %v3996 = vpop.f32.mrf.mxu0
        %3997 = vdwg.mxu0
        %3998 = vmatpush.bf16.msra.mxu0 %v3423
        %3999 = vmatpush.bf16.msra.mxu0 %v3407
        %4000 = vmatpush.bf16.msra.mxu0 %v3391
        %4001 = vmatpush.bf16.msra.mxu0 %v3375
        %4002 = vmatpush.bf16.msra.mxu0 %v3359
        %4003 = vmatpush.bf16.msra.mxu0 %v3343
        %4004 = vmatpush.bf16.msra.mxu0 %v3327
        %4005 = vmatpush.bf16.msra.mxu0 %v3311
        %4006 = vmatmul.bf16.gmra.mxu0 %v2498
        %v4007 = vpop.f32.mrf.mxu0
        %v4008 = vadd.f32 %v2511, %v4007
        %v4009 = vpop.f32.mrf.mxu0
        %4010 = vdwg.mxu0
        %4011 = vmatpush.bf16.msra.mxu0 %v3551
        %4012 = vmatpush.bf16.msra.mxu0 %v3535
        %4013 = vmatpush.bf16.msra.mxu0 %v3519
        %4014 = vmatpush.bf16.msra.mxu0 %v3503
        %4015 = vmatpush.bf16.msra.mxu0 %v3487
        %4016 = vmatpush.bf16.msra.mxu0 %v3471
        %4017 = vmatpush.bf16.msra.mxu0 %v3455
        %4018 = vmatpush.bf16.msra.mxu0 %v3439
        %4019 = vmatmul.bf16.gmra.mxu0 %v2499
        %v4020 = vpop.f32.mrf.mxu0
        %v4021 = vadd.f32 %v4008, %v4020
        %v4022 = vpop.f32.mrf.mxu0
        %4023 = vdwg.mxu0
        %4024 = vmatpush.bf16.msra.mxu0 %v3424
        %4025 = vmatpush.bf16.msra.mxu0 %v3408
        %4026 = vmatpush.bf16.msra.mxu0 %v3392
        %4027 = vmatpush.bf16.msra.mxu0 %v3376
        %4028 = vmatpush.bf16.msra.mxu0 %v3360
        %4029 = vmatpush.bf16.msra.mxu0 %v3344
        %4030 = vmatpush.bf16.msra.mxu0 %v3328
        %4031 = vmatpush.bf16.msra.mxu0 %v3312
        %4032 = vmatmul.bf16.gmra.mxu0 %v2498
        %v4033 = vpop.f32.mrf.mxu0
        %v4034 = vadd.f32 %v2512, %v4033
        %v4035 = vpop.f32.mrf.mxu0
        %4036 = vdwg.mxu0
        %4037 = vmatpush.bf16.msra.mxu0 %v3552
        %4038 = vmatpush.bf16.msra.mxu0 %v3536
        %4039 = vmatpush.bf16.msra.mxu0 %v3520
        %4040 = vmatpush.bf16.msra.mxu0 %v3504
        %4041 = vmatpush.bf16.msra.mxu0 %v3488
        %4042 = vmatpush.bf16.msra.mxu0 %v3472
        %4043 = vmatpush.bf16.msra.mxu0 %v3456
        %4044 = vmatpush.bf16.msra.mxu0 %v3440
        %4045 = vmatmul.bf16.gmra.mxu0 %v2499
        %v4046 = vpop.f32.mrf.mxu0
        %v4047 = vadd.f32 %v4034, %v4046
        %v4048 = vpop.f32.mrf.mxu0
        %4049 = vdwg.mxu0
        %4050 = vmatpush.bf16.msra.mxu0 %v3425
        %4051 = vmatpush.bf16.msra.mxu0 %v3409
        %4052 = vmatpush.bf16.msra.mxu0 %v3393
        %4053 = vmatpush.bf16.msra.mxu0 %v3377
        %4054 = vmatpush.bf16.msra.mxu0 %v3361
        %4055 = vmatpush.bf16.msra.mxu0 %v3345
        %4056 = vmatpush.bf16.msra.mxu0 %v3329
        %4057 = vmatpush.bf16.msra.mxu0 %v3313
        %4058 = vmatmul.bf16.gmra.mxu0 %v2498
        %v4059 = vpop.f32.mrf.mxu0
        %v4060 = vadd.f32 %v2513, %v4059
        %v4061 = vpop.f32.mrf.mxu0
        %4062 = vdwg.mxu0
        %4063 = vmatpush.bf16.msra.mxu0 %v3553
        %4064 = vmatpush.bf16.msra.mxu0 %v3537
        %4065 = vmatpush.bf16.msra.mxu0 %v3521
        %4066 = vmatpush.bf16.msra.mxu0 %v3505
        %4067 = vmatpush.bf16.msra.mxu0 %v3489
        %4068 = vmatpush.bf16.msra.mxu0 %v3473
        %4069 = vmatpush.bf16.msra.mxu0 %v3457
        %4070 = vmatpush.bf16.msra.mxu0 %v3441
        %4071 = vmatmul.bf16.gmra.mxu0 %v2499
        %v4072 = vpop.f32.mrf.mxu0
        %v4073 = vadd.f32 %v4060, %v4072
        %v4074 = vpop.f32.mrf.mxu0
        %4075 = vdwg.mxu0
        %4076 = vmatpush.bf16.msra.mxu0 %v3426
        %4077 = vmatpush.bf16.msra.mxu0 %v3410
        %4078 = vmatpush.bf16.msra.mxu0 %v3394
        %4079 = vmatpush.bf16.msra.mxu0 %v3378
        %4080 = vmatpush.bf16.msra.mxu0 %v3362
        %4081 = vmatpush.bf16.msra.mxu0 %v3346
        %4082 = vmatpush.bf16.msra.mxu0 %v3330
        %4083 = vmatpush.bf16.msra.mxu0 %v3314
        %4084 = vmatmul.bf16.gmra.mxu0 %v2498
        %v4085 = vpop.f32.mrf.mxu0
        %v4086 = vadd.f32 %v2514, %v4085
        %v4087 = vpop.f32.mrf.mxu0
        %4088 = vdwg.mxu0
        %4089 = vmatpush.bf16.msra.mxu0 %v3554
        %4090 = vmatpush.bf16.msra.mxu0 %v3538
        %4091 = vmatpush.bf16.msra.mxu0 %v3522
        %4092 = vmatpush.bf16.msra.mxu0 %v3506
        %4093 = vmatpush.bf16.msra.mxu0 %v3490
        %4094 = vmatpush.bf16.msra.mxu0 %v3474
        %4095 = vmatpush.bf16.msra.mxu0 %v3458
        %4096 = vmatpush.bf16.msra.mxu0 %v3442
        %4097 = vmatmul.bf16.gmra.mxu0 %v2499
        %v4098 = vpop.f32.mrf.mxu0
        %v4099 = vadd.f32 %v4086, %v4098
        %v4100 = vpop.f32.mrf.mxu0
        %4101 = vdwg.mxu0
        %4102 = vmatpush.bf16.msra.mxu0 %v3427
        %4103 = vmatpush.bf16.msra.mxu0 %v3411
        %4104 = vmatpush.bf16.msra.mxu0 %v3395
        %4105 = vmatpush.bf16.msra.mxu0 %v3379
        %4106 = vmatpush.bf16.msra.mxu0 %v3363
        %4107 = vmatpush.bf16.msra.mxu0 %v3347
        %4108 = vmatpush.bf16.msra.mxu0 %v3331
        %4109 = vmatpush.bf16.msra.mxu0 %v3315
        %4110 = vmatmul.bf16.gmra.mxu0 %v2498
        %v4111 = vpop.f32.mrf.mxu0
        %v4112 = vadd.f32 %v2515, %v4111
        %v4113 = vpop.f32.mrf.mxu0
        %4114 = vdwg.mxu0
        %4115 = vmatpush.bf16.msra.mxu0 %v3555
        %4116 = vmatpush.bf16.msra.mxu0 %v3539
        %4117 = vmatpush.bf16.msra.mxu0 %v3523
        %4118 = vmatpush.bf16.msra.mxu0 %v3507
        %4119 = vmatpush.bf16.msra.mxu0 %v3491
        %4120 = vmatpush.bf16.msra.mxu0 %v3475
        %4121 = vmatpush.bf16.msra.mxu0 %v3459
        %4122 = vmatpush.bf16.msra.mxu0 %v3443
        %4123 = vmatmul.bf16.gmra.mxu0 %v2499
        %v4124 = vpop.f32.mrf.mxu0
        %v4125 = vadd.f32 %v4112, %v4124
        %v4126 = vpop.f32.mrf.mxu0
        %4127 = vdwg.mxu0
        %4128 = vmatpush.bf16.msra.mxu0 %v3428
        %4129 = vmatpush.bf16.msra.mxu0 %v3412
        %4130 = vmatpush.bf16.msra.mxu0 %v3396
        %4131 = vmatpush.bf16.msra.mxu0 %v3380
        %4132 = vmatpush.bf16.msra.mxu0 %v3364
        %4133 = vmatpush.bf16.msra.mxu0 %v3348
        %4134 = vmatpush.bf16.msra.mxu0 %v3332
        %4135 = vmatpush.bf16.msra.mxu0 %v3316
        %4136 = vmatmul.bf16.gmra.mxu0 %v2498
        %v4137 = vpop.f32.mrf.mxu0
        %v4138 = vadd.f32 %v2516, %v4137
        %v4139 = vpop.f32.mrf.mxu0
        %4140 = vdwg.mxu0
        %4141 = vmatpush.bf16.msra.mxu0 %v3556
        %4142 = vmatpush.bf16.msra.mxu0 %v3540
        %4143 = vmatpush.bf16.msra.mxu0 %v3524
        %4144 = vmatpush.bf16.msra.mxu0 %v3508
        %4145 = vmatpush.bf16.msra.mxu0 %v3492
        %4146 = vmatpush.bf16.msra.mxu0 %v3476
        %4147 = vmatpush.bf16.msra.mxu0 %v3460
        %4148 = vmatpush.bf16.msra.mxu0 %v3444
        %4149 = vmatmul.bf16.gmra.mxu0 %v2499
        %v4150 = vpop.f32.mrf.mxu0
        %v4151 = vadd.f32 %v4138, %v4150
        %v4152 = vpop.f32.mrf.mxu0
        %4153 = vdwg.mxu0
        %4154 = vmatpush.bf16.msra.mxu0 %v3429
        %4155 = vmatpush.bf16.msra.mxu0 %v3413
        %4156 = vmatpush.bf16.msra.mxu0 %v3397
        %4157 = vmatpush.bf16.msra.mxu0 %v3381
        %4158 = vmatpush.bf16.msra.mxu0 %v3365
        %4159 = vmatpush.bf16.msra.mxu0 %v3349
        %4160 = vmatpush.bf16.msra.mxu0 %v3333
        %4161 = vmatpush.bf16.msra.mxu0 %v3317
        %4162 = vmatmul.bf16.gmra.mxu0 %v2498
        %v4163 = vpop.f32.mrf.mxu0
        %v4164 = vadd.f32 %v2517, %v4163
        %v4165 = vpop.f32.mrf.mxu0
        %4166 = vdwg.mxu0
        %4167 = vmatpush.bf16.msra.mxu0 %v3557
        %4168 = vmatpush.bf16.msra.mxu0 %v3541
        %4169 = vmatpush.bf16.msra.mxu0 %v3525
        %4170 = vmatpush.bf16.msra.mxu0 %v3509
        %4171 = vmatpush.bf16.msra.mxu0 %v3493
        %4172 = vmatpush.bf16.msra.mxu0 %v3477
        %4173 = vmatpush.bf16.msra.mxu0 %v3461
        %4174 = vmatpush.bf16.msra.mxu0 %v3445
        %4175 = vmatmul.bf16.gmra.mxu0 %v2499
        %v4176 = vpop.f32.mrf.mxu0
        %v4177 = vadd.f32 %v4164, %v4176
        %v4178 = vpop.f32.mrf.mxu0
        %4179 = vdwg.mxu0
        %4180 = vmatpush.bf16.msra.mxu0 %v3430
        %4181 = vmatpush.bf16.msra.mxu0 %v3414
        %4182 = vmatpush.bf16.msra.mxu0 %v3398
        %4183 = vmatpush.bf16.msra.mxu0 %v3382
        %4184 = vmatpush.bf16.msra.mxu0 %v3366
        %4185 = vmatpush.bf16.msra.mxu0 %v3350
        %4186 = vmatpush.bf16.msra.mxu0 %v3334
        %4187 = vmatpush.bf16.msra.mxu0 %v3318
        %4188 = vmatmul.bf16.gmra.mxu0 %v2498
        %v4189 = vpop.f32.mrf.mxu0
        %v4190 = vadd.f32 %v2518, %v4189
        %v4191 = vpop.f32.mrf.mxu0
        %4192 = vdwg.mxu0
        %4193 = vmatpush.bf16.msra.mxu0 %v3558
        %4194 = vmatpush.bf16.msra.mxu0 %v3542
        %4195 = vmatpush.bf16.msra.mxu0 %v3526
        %4196 = vmatpush.bf16.msra.mxu0 %v3510
        %4197 = vmatpush.bf16.msra.mxu0 %v3494
        %4198 = vmatpush.bf16.msra.mxu0 %v3478
        %4199 = vmatpush.bf16.msra.mxu0 %v3462
        %4200 = vmatpush.bf16.msra.mxu0 %v3446
        %4201 = vmatmul.bf16.gmra.mxu0 %v2499
        %v4202 = vpop.f32.mrf.mxu0
        %v4203 = vadd.f32 %v4190, %v4202
        %v4204 = vpop.f32.mrf.mxu0
        %4205 = vdwg.mxu0
        %4206 = vmatpush.bf16.msra.mxu0 %v3431
        %4207 = vmatpush.bf16.msra.mxu0 %v3415
        %4208 = vmatpush.bf16.msra.mxu0 %v3399
        %4209 = vmatpush.bf16.msra.mxu0 %v3383
        %4210 = vmatpush.bf16.msra.mxu0 %v3367
        %4211 = vmatpush.bf16.msra.mxu0 %v3351
        %4212 = vmatpush.bf16.msra.mxu0 %v3335
        %4213 = vmatpush.bf16.msra.mxu0 %v3319
        %4214 = vmatmul.bf16.gmra.mxu0 %v2498
        %v4215 = vpop.f32.mrf.mxu0
        %v4216 = vadd.f32 %v2519, %v4215
        %v4217 = vpop.f32.mrf.mxu0
        %4218 = vdwg.mxu0
        %4219 = vmatpush.bf16.msra.mxu0 %v3559
        %4220 = vmatpush.bf16.msra.mxu0 %v3543
        %4221 = vmatpush.bf16.msra.mxu0 %v3527
        %4222 = vmatpush.bf16.msra.mxu0 %v3511
        %4223 = vmatpush.bf16.msra.mxu0 %v3495
        %4224 = vmatpush.bf16.msra.mxu0 %v3479
        %4225 = vmatpush.bf16.msra.mxu0 %v3463
        %4226 = vmatpush.bf16.msra.mxu0 %v3447
        %4227 = vmatmul.bf16.gmra.mxu0 %v2499
        %v4228 = vpop.f32.mrf.mxu0
        %v4229 = vadd.f32 %v4216, %v4228
        %v4230 = vpop.f32.mrf.mxu0
        %4231 = vdwg.mxu0
        %v4232 = vmax.f32 %v3839, 0.0
        %v4233 = vmax.f32 %v3865, 0.0
        %v4234 = vmax.f32 %v3891, 0.0
        %v4235 = vmax.f32 %v3917, 0.0
        %v4236 = vmax.f32 %v3943, 0.0
        %v4237 = vmax.f32 %v3969, 0.0
        %v4238 = vmax.f32 %v3995, 0.0
        %v4239 = vmax.f32 %v4021, 0.0
        %v4240 = vmax.f32 %v4047, 0.0
        %v4241 = vmax.f32 %v4073, 0.0
        %v4242 = vmax.f32 %v4099, 0.0
        %v4243 = vmax.f32 %v4125, 0.0
        %v4244 = vmax.f32 %v4151, 0.0
        %v4245 = vmax.f32 %v4177, 0.0
        %v4246 = vmax.f32 %v4203, 0.0
        %v4247 = vmax.f32 %v4229, 0.0
        %v4248 = vld [vmem:[#allocation19] sm:$0xff]
        %v4249 = vld [vmem:[#allocation19 + $0x8] sm:$0xff]
        %v4250 = vld [vmem:[#allocation19 + $0x10] sm:$0xff]
        %v4251 = vld [vmem:[#allocation19 + $0x18] sm:$0xff]
        %v4252 = vld [vmem:[#allocation19 + $0x20] sm:$0xff]
        %v4253 = vld [vmem:[#allocation19 + $0x28] sm:$0xff]
        %v4254 = vld [vmem:[#allocation19 + $0x30] sm:$0xff]
        %v4255 = vld [vmem:[#allocation19 + $0x38] sm:$0xff]
        %v4256 = vld [vmem:[#allocation19 + $0x40] sm:$0xff]
        %v4257 = vld [vmem:[#allocation19 + $0x48] sm:$0xff]
        %v4258 = vld [vmem:[#allocation19 + $0x50] sm:$0xff]
        %v4259 = vld [vmem:[#allocation19 + $0x58] sm:$0xff]
        %v4260 = vld [vmem:[#allocation19 + $0x60] sm:$0xff]
        %v4261 = vld [vmem:[#allocation19 + $0x68] sm:$0xff]
        %v4262 = vld [vmem:[#allocation19 + $0x70] sm:$0xff]
        %v4263 = vld [vmem:[#allocation19 + $0x78] sm:$0xff]
        %v4264 = vld [vmem:[#allocation19 + $0x80] sm:$0xff]
        %v4265 = vld [vmem:[#allocation19 + $0x88] sm:$0xff]
        %v4266 = vld [vmem:[#allocation19 + $0x90] sm:$0xff]
        %v4267 = vld [vmem:[#allocation19 + $0x98] sm:$0xff]
        %v4268 = vld [vmem:[#allocation19 + $0xa0] sm:$0xff]
        %v4269 = vld [vmem:[#allocation19 + $0xa8] sm:$0xff]
        %v4270 = vld [vmem:[#allocation19 + $0xb0] sm:$0xff]
        %v4271 = vld [vmem:[#allocation19 + $0xb8] sm:$0xff]
        %v4272 = vld [vmem:[#allocation19 + $0xc0] sm:$0xff]
        %v4273 = vld [vmem:[#allocation19 + $0xc8] sm:$0xff]
        %v4274 = vld [vmem:[#allocation19 + $0xd0] sm:$0xff]
        %v4275 = vld [vmem:[#allocation19 + $0xd8] sm:$0xff]
        %v4276 = vld [vmem:[#allocation19 + $0xe0] sm:$0xff]
        %v4277 = vld [vmem:[#allocation19 + $0xe8] sm:$0xff]
        %v4278 = vld [vmem:[#allocation19 + $0xf0] sm:$0xff]
        %v4279 = vld [vmem:[#allocation19 + $0xf8] sm:$0xff]
        %v4280 = vld [vmem:[#allocation19 + $0x100] sm:$0xff]
        %v4281 = vld [vmem:[#allocation19 + $0x108] sm:$0xff]
        %v4282 = vld [vmem:[#allocation19 + $0x110] sm:$0xff]
        %v4283 = vld [vmem:[#allocation19 + $0x118] sm:$0xff]
        %v4284 = vld [vmem:[#allocation19 + $0x120] sm:$0xff]
        %v4285 = vld [vmem:[#allocation19 + $0x128] sm:$0xff]
        %v4286 = vld [vmem:[#allocation19 + $0x130] sm:$0xff]
        %v4287 = vld [vmem:[#allocation19 + $0x138] sm:$0xff]
        %v4288 = vld [vmem:[#allocation19 + $0x140] sm:$0xff]
        %v4289 = vld [vmem:[#allocation19 + $0x148] sm:$0xff]
        %v4290 = vld [vmem:[#allocation19 + $0x150] sm:$0xff]
        %v4291 = vld [vmem:[#allocation19 + $0x158] sm:$0xff]
        %v4292 = vld [vmem:[#allocation19 + $0x160] sm:$0xff]
        %v4293 = vld [vmem:[#allocation19 + $0x168] sm:$0xff]
        %v4294 = vld [vmem:[#allocation19 + $0x170] sm:$0xff]
        %v4295 = vld [vmem:[#allocation19 + $0x178] sm:$0xff]
        %v4296 = vld [vmem:[#allocation19 + $0x180] sm:$0xff]
        %v4297 = vld [vmem:[#allocation19 + $0x188] sm:$0xff]
        %v4298 = vld [vmem:[#allocation19 + $0x190] sm:$0xff]
        %v4299 = vld [vmem:[#allocation19 + $0x198] sm:$0xff]
        %v4300 = vld [vmem:[#allocation19 + $0x1a0] sm:$0xff]
        %v4301 = vld [vmem:[#allocation19 + $0x1a8] sm:$0xff]
        %v4302 = vld [vmem:[#allocation19 + $0x1b0] sm:$0xff]
        %v4303 = vld [vmem:[#allocation19 + $0x1b8] sm:$0xff]
        %v4304 = vld [vmem:[#allocation19 + $0x1c0] sm:$0xff]
        %v4305 = vld [vmem:[#allocation19 + $0x1c8] sm:$0xff]
        %v4306 = vld [vmem:[#allocation19 + $0x1d0] sm:$0xff]
        %v4307 = vld [vmem:[#allocation19 + $0x1d8] sm:$0xff]
        %v4308 = vld [vmem:[#allocation19 + $0x1e0] sm:$0xff]
        %v4309 = vld [vmem:[#allocation19 + $0x1e8] sm:$0xff]
        %v4310 = vld [vmem:[#allocation19 + $0x1f0] sm:$0xff]
        %v4311 = vld [vmem:[#allocation19 + $0x1f8] sm:$0xff]
        %v4312 = vld [vmem:[#allocation19 + $0x200] sm:$0xff]
        %v4313 = vld [vmem:[#allocation19 + $0x208] sm:$0xff]
        %v4314 = vld [vmem:[#allocation19 + $0x210] sm:$0xff]
        %v4315 = vld [vmem:[#allocation19 + $0x218] sm:$0xff]
        %v4316 = vld [vmem:[#allocation19 + $0x220] sm:$0xff]
        %v4317 = vld [vmem:[#allocation19 + $0x228] sm:$0xff]
        %v4318 = vld [vmem:[#allocation19 + $0x230] sm:$0xff]
        %v4319 = vld [vmem:[#allocation19 + $0x238] sm:$0xff]
        %v4320 = vld [vmem:[#allocation19 + $0x240] sm:$0xff]
        %v4321 = vld [vmem:[#allocation19 + $0x248] sm:$0xff]
        %v4322 = vld [vmem:[#allocation19 + $0x250] sm:$0xff]
        %v4323 = vld [vmem:[#allocation19 + $0x258] sm:$0xff]
        %v4324 = vld [vmem:[#allocation19 + $0x260] sm:$0xff]
        %v4325 = vld [vmem:[#allocation19 + $0x268] sm:$0xff]
        %v4326 = vld [vmem:[#allocation19 + $0x270] sm:$0xff]
        %v4327 = vld [vmem:[#allocation19 + $0x278] sm:$0xff]
        %v4328 = vld [vmem:[#allocation19 + $0x280] sm:$0xff]
        %v4329 = vld [vmem:[#allocation19 + $0x288] sm:$0xff]
        %v4330 = vld [vmem:[#allocation19 + $0x290] sm:$0xff]
        %v4331 = vld [vmem:[#allocation19 + $0x298] sm:$0xff]
        %v4332 = vld [vmem:[#allocation19 + $0x2a0] sm:$0xff]
        %v4333 = vld [vmem:[#allocation19 + $0x2a8] sm:$0xff]
        %v4334 = vld [vmem:[#allocation19 + $0x2b0] sm:$0xff]
        %v4335 = vld [vmem:[#allocation19 + $0x2b8] sm:$0xff]
        %v4336 = vld [vmem:[#allocation19 + $0x2c0] sm:$0xff]
        %v4337 = vld [vmem:[#allocation19 + $0x2c8] sm:$0xff]
        %v4338 = vld [vmem:[#allocation19 + $0x2d0] sm:$0xff]
        %v4339 = vld [vmem:[#allocation19 + $0x2d8] sm:$0xff]
        %v4340 = vld [vmem:[#allocation19 + $0x2e0] sm:$0xff]
        %v4341 = vld [vmem:[#allocation19 + $0x2e8] sm:$0xff]
        %v4342 = vld [vmem:[#allocation19 + $0x2f0] sm:$0xff]
        %v4343 = vld [vmem:[#allocation19 + $0x2f8] sm:$0xff]
        %v4344 = vld [vmem:[#allocation19 + $0x300] sm:$0xff]
        %v4345 = vld [vmem:[#allocation19 + $0x308] sm:$0xff]
        %v4346 = vld [vmem:[#allocation19 + $0x310] sm:$0xff]
        %v4347 = vld [vmem:[#allocation19 + $0x318] sm:$0xff]
        %v4348 = vld [vmem:[#allocation19 + $0x320] sm:$0xff]
        %v4349 = vld [vmem:[#allocation19 + $0x328] sm:$0xff]
        %v4350 = vld [vmem:[#allocation19 + $0x330] sm:$0xff]
        %v4351 = vld [vmem:[#allocation19 + $0x338] sm:$0xff]
        %v4352 = vld [vmem:[#allocation19 + $0x340] sm:$0xff]
        %v4353 = vld [vmem:[#allocation19 + $0x348] sm:$0xff]
        %v4354 = vld [vmem:[#allocation19 + $0x350] sm:$0xff]
        %v4355 = vld [vmem:[#allocation19 + $0x358] sm:$0xff]
        %v4356 = vld [vmem:[#allocation19 + $0x360] sm:$0xff]
        %v4357 = vld [vmem:[#allocation19 + $0x368] sm:$0xff]
        %v4358 = vld [vmem:[#allocation19 + $0x370] sm:$0xff]
        %v4359 = vld [vmem:[#allocation19 + $0x378] sm:$0xff]
        %v4360 = vld [vmem:[#allocation19 + $0x380] sm:$0xff]
        %v4361 = vld [vmem:[#allocation19 + $0x388] sm:$0xff]
        %v4362 = vld [vmem:[#allocation19 + $0x390] sm:$0xff]
        %v4363 = vld [vmem:[#allocation19 + $0x398] sm:$0xff]
        %v4364 = vld [vmem:[#allocation19 + $0x3a0] sm:$0xff]
        %v4365 = vld [vmem:[#allocation19 + $0x3a8] sm:$0xff]
        %v4366 = vld [vmem:[#allocation19 + $0x3b0] sm:$0xff]
        %v4367 = vld [vmem:[#allocation19 + $0x3b8] sm:$0xff]
        %v4368 = vld [vmem:[#allocation19 + $0x3c0] sm:$0xff]
        %v4369 = vld [vmem:[#allocation19 + $0x3c8] sm:$0xff]
        %v4370 = vld [vmem:[#allocation19 + $0x3d0] sm:$0xff]
        %v4371 = vld [vmem:[#allocation19 + $0x3d8] sm:$0xff]
        %v4372 = vld [vmem:[#allocation19 + $0x3e0] sm:$0xff]
        %v4373 = vld [vmem:[#allocation19 + $0x3e8] sm:$0xff]
        %v4374 = vld [vmem:[#allocation19 + $0x3f0] sm:$0xff]
        %v4375 = vld [vmem:[#allocation19 + $0x3f8] sm:$0xff]
        %v4376 = vld [vmem:[#allocation19 + $0x400] sm:$0xff]
        %v4377 = vld [vmem:[#allocation19 + $0x408] sm:$0xff]
        %v4378 = vld [vmem:[#allocation19 + $0x410] sm:$0xff]
        %v4379 = vld [vmem:[#allocation19 + $0x418] sm:$0xff]
        %v4380 = vld [vmem:[#allocation19 + $0x420] sm:$0xff]
        %v4381 = vld [vmem:[#allocation19 + $0x428] sm:$0xff]
        %v4382 = vld [vmem:[#allocation19 + $0x430] sm:$0xff]
        %v4383 = vld [vmem:[#allocation19 + $0x438] sm:$0xff]
        %v4384 = vld [vmem:[#allocation19 + $0x440] sm:$0xff]
        %v4385 = vld [vmem:[#allocation19 + $0x448] sm:$0xff]
        %v4386 = vld [vmem:[#allocation19 + $0x450] sm:$0xff]
        %v4387 = vld [vmem:[#allocation19 + $0x458] sm:$0xff]
        %v4388 = vld [vmem:[#allocation19 + $0x460] sm:$0xff]
        %v4389 = vld [vmem:[#allocation19 + $0x468] sm:$0xff]
        %v4390 = vld [vmem:[#allocation19 + $0x470] sm:$0xff]
        %v4391 = vld [vmem:[#allocation19 + $0x478] sm:$0xff]
        %v4392 = vld [vmem:[#allocation19 + $0x480] sm:$0xff]
        %v4393 = vld [vmem:[#allocation19 + $0x488] sm:$0xff]
        %v4394 = vld [vmem:[#allocation19 + $0x490] sm:$0xff]
        %v4395 = vld [vmem:[#allocation19 + $0x498] sm:$0xff]
        %v4396 = vld [vmem:[#allocation19 + $0x4a0] sm:$0xff]
        %v4397 = vld [vmem:[#allocation19 + $0x4a8] sm:$0xff]
        %v4398 = vld [vmem:[#allocation19 + $0x4b0] sm:$0xff]
        %v4399 = vld [vmem:[#allocation19 + $0x4b8] sm:$0xff]
        %v4400 = vld [vmem:[#allocation19 + $0x4c0] sm:$0xff]
        %v4401 = vld [vmem:[#allocation19 + $0x4c8] sm:$0xff]
        %v4402 = vld [vmem:[#allocation19 + $0x4d0] sm:$0xff]
        %v4403 = vld [vmem:[#allocation19 + $0x4d8] sm:$0xff]
        %v4404 = vld [vmem:[#allocation19 + $0x4e0] sm:$0xff]
        %v4405 = vld [vmem:[#allocation19 + $0x4e8] sm:$0xff]
        %v4406 = vld [vmem:[#allocation19 + $0x4f0] sm:$0xff]
        %v4407 = vld [vmem:[#allocation19 + $0x4f8] sm:$0xff]
        %v4408 = vld [vmem:[#allocation19 + $0x500] sm:$0xff]
        %v4409 = vld [vmem:[#allocation19 + $0x508] sm:$0xff]
        %v4410 = vld [vmem:[#allocation19 + $0x510] sm:$0xff]
        %v4411 = vld [vmem:[#allocation19 + $0x518] sm:$0xff]
        %v4412 = vld [vmem:[#allocation19 + $0x520] sm:$0xff]
        %v4413 = vld [vmem:[#allocation19 + $0x528] sm:$0xff]
        %v4414 = vld [vmem:[#allocation19 + $0x530] sm:$0xff]
        %v4415 = vld [vmem:[#allocation19 + $0x538] sm:$0xff]
        %v4416 = vld [vmem:[#allocation19 + $0x540] sm:$0xff]
        %v4417 = vld [vmem:[#allocation19 + $0x548] sm:$0xff]
        %v4418 = vld [vmem:[#allocation19 + $0x550] sm:$0xff]
        %v4419 = vld [vmem:[#allocation19 + $0x558] sm:$0xff]
        %v4420 = vld [vmem:[#allocation19 + $0x560] sm:$0xff]
        %v4421 = vld [vmem:[#allocation19 + $0x568] sm:$0xff]
        %v4422 = vld [vmem:[#allocation19 + $0x570] sm:$0xff]
        %v4423 = vld [vmem:[#allocation19 + $0x578] sm:$0xff]
        %v4424 = vld [vmem:[#allocation19 + $0x580] sm:$0xff]
        %v4425 = vld [vmem:[#allocation19 + $0x588] sm:$0xff]
        %v4426 = vld [vmem:[#allocation19 + $0x590] sm:$0xff]
        %v4427 = vld [vmem:[#allocation19 + $0x598] sm:$0xff]
        %v4428 = vld [vmem:[#allocation19 + $0x5a0] sm:$0xff]
        %v4429 = vld [vmem:[#allocation19 + $0x5a8] sm:$0xff]
        %v4430 = vld [vmem:[#allocation19 + $0x5b0] sm:$0xff]
        %v4431 = vld [vmem:[#allocation19 + $0x5b8] sm:$0xff]
        %v4432 = vld [vmem:[#allocation19 + $0x5c0] sm:$0xff]
        %v4433 = vld [vmem:[#allocation19 + $0x5c8] sm:$0xff]
        %v4434 = vld [vmem:[#allocation19 + $0x5d0] sm:$0xff]
        %v4435 = vld [vmem:[#allocation19 + $0x5d8] sm:$0xff]
        %v4436 = vld [vmem:[#allocation19 + $0x5e0] sm:$0xff]
        %v4437 = vld [vmem:[#allocation19 + $0x5e8] sm:$0xff]
        %v4438 = vld [vmem:[#allocation19 + $0x5f0] sm:$0xff]
        %v4439 = vld [vmem:[#allocation19 + $0x5f8] sm:$0xff]
        %v4440 = vld [vmem:[#allocation19 + $0x600] sm:$0xff]
        %v4441 = vld [vmem:[#allocation19 + $0x608] sm:$0xff]
        %v4442 = vld [vmem:[#allocation19 + $0x610] sm:$0xff]
        %v4443 = vld [vmem:[#allocation19 + $0x618] sm:$0xff]
        %v4444 = vld [vmem:[#allocation19 + $0x620] sm:$0xff]
        %v4445 = vld [vmem:[#allocation19 + $0x628] sm:$0xff]
        %v4446 = vld [vmem:[#allocation19 + $0x630] sm:$0xff]
        %v4447 = vld [vmem:[#allocation19 + $0x638] sm:$0xff]
        %v4448 = vld [vmem:[#allocation19 + $0x640] sm:$0xff]
        %v4449 = vld [vmem:[#allocation19 + $0x648] sm:$0xff]
        %v4450 = vld [vmem:[#allocation19 + $0x650] sm:$0xff]
        %v4451 = vld [vmem:[#allocation19 + $0x658] sm:$0xff]
        %v4452 = vld [vmem:[#allocation19 + $0x660] sm:$0xff]
        %v4453 = vld [vmem:[#allocation19 + $0x668] sm:$0xff]
        %v4454 = vld [vmem:[#allocation19 + $0x670] sm:$0xff]
        %v4455 = vld [vmem:[#allocation19 + $0x678] sm:$0xff]
        %v4456 = vld [vmem:[#allocation19 + $0x680] sm:$0xff]
        %v4457 = vld [vmem:[#allocation19 + $0x688] sm:$0xff]
        %v4458 = vld [vmem:[#allocation19 + $0x690] sm:$0xff]
        %v4459 = vld [vmem:[#allocation19 + $0x698] sm:$0xff]
        %v4460 = vld [vmem:[#allocation19 + $0x6a0] sm:$0xff]
        %v4461 = vld [vmem:[#allocation19 + $0x6a8] sm:$0xff]
        %v4462 = vld [vmem:[#allocation19 + $0x6b0] sm:$0xff]
        %v4463 = vld [vmem:[#allocation19 + $0x6b8] sm:$0xff]
        %v4464 = vld [vmem:[#allocation19 + $0x6c0] sm:$0xff]
        %v4465 = vld [vmem:[#allocation19 + $0x6c8] sm:$0xff]
        %v4466 = vld [vmem:[#allocation19 + $0x6d0] sm:$0xff]
        %v4467 = vld [vmem:[#allocation19 + $0x6d8] sm:$0xff]
        %v4468 = vld [vmem:[#allocation19 + $0x6e0] sm:$0xff]
        %v4469 = vld [vmem:[#allocation19 + $0x6e8] sm:$0xff]
        %v4470 = vld [vmem:[#allocation19 + $0x6f0] sm:$0xff]
        %v4471 = vld [vmem:[#allocation19 + $0x6f8] sm:$0xff]
        %v4472 = vld [vmem:[#allocation19 + $0x700] sm:$0xff]
        %v4473 = vld [vmem:[#allocation19 + $0x708] sm:$0xff]
        %v4474 = vld [vmem:[#allocation19 + $0x710] sm:$0xff]
        %v4475 = vld [vmem:[#allocation19 + $0x718] sm:$0xff]
        %v4476 = vld [vmem:[#allocation19 + $0x720] sm:$0xff]
        %v4477 = vld [vmem:[#allocation19 + $0x728] sm:$0xff]
        %v4478 = vld [vmem:[#allocation19 + $0x730] sm:$0xff]
        %v4479 = vld [vmem:[#allocation19 + $0x738] sm:$0xff]
        %v4480 = vld [vmem:[#allocation19 + $0x740] sm:$0xff]
        %v4481 = vld [vmem:[#allocation19 + $0x748] sm:$0xff]
        %v4482 = vld [vmem:[#allocation19 + $0x750] sm:$0xff]
        %v4483 = vld [vmem:[#allocation19 + $0x758] sm:$0xff]
        %v4484 = vld [vmem:[#allocation19 + $0x760] sm:$0xff]
        %v4485 = vld [vmem:[#allocation19 + $0x768] sm:$0xff]
        %v4486 = vld [vmem:[#allocation19 + $0x770] sm:$0xff]
        %v4487 = vld [vmem:[#allocation19 + $0x778] sm:$0xff]
        %v4488 = vld [vmem:[#allocation19 + $0x780] sm:$0xff]
        %v4489 = vld [vmem:[#allocation19 + $0x788] sm:$0xff]
        %v4490 = vld [vmem:[#allocation19 + $0x790] sm:$0xff]
        %v4491 = vld [vmem:[#allocation19 + $0x798] sm:$0xff]
        %v4492 = vld [vmem:[#allocation19 + $0x7a0] sm:$0xff]
        %v4493 = vld [vmem:[#allocation19 + $0x7a8] sm:$0xff]
        %v4494 = vld [vmem:[#allocation19 + $0x7b0] sm:$0xff]
        %v4495 = vld [vmem:[#allocation19 + $0x7b8] sm:$0xff]
        %v4496 = vld [vmem:[#allocation19 + $0x7c0] sm:$0xff]
        %v4497 = vld [vmem:[#allocation19 + $0x7c8] sm:$0xff]
        %v4498 = vld [vmem:[#allocation19 + $0x7d0] sm:$0xff]
        %v4499 = vld [vmem:[#allocation19 + $0x7d8] sm:$0xff]
        %v4500 = vld [vmem:[#allocation19 + $0x7e0] sm:$0xff]
        %v4501 = vld [vmem:[#allocation19 + $0x7e8] sm:$0xff]
        %v4502 = vld [vmem:[#allocation19 + $0x7f0] sm:$0xff]
        %v4503 = vld [vmem:[#allocation19 + $0x7f8] sm:$0xff]
        %v4504 = vpack.c.bf16 %v4232, %v4232
        %v4505 = vpack.c.bf16 %v4233, %v4233
        %v4506 = vpack.c.bf16 %v4234, %v4234
        %v4507 = vpack.c.bf16 %v4235, %v4235
        %v4508 = vpack.c.bf16 %v4236, %v4236
        %v4509 = vpack.c.bf16 %v4237, %v4237
        %v4510 = vpack.c.bf16 %v4238, %v4238
        %v4511 = vpack.c.bf16 %v4239, %v4239
        %v4512 = vpack.c.bf16 %v4240, %v4240
        %v4513 = vpack.c.bf16 %v4241, %v4241
        %v4514 = vpack.c.bf16 %v4242, %v4242
        %v4515 = vpack.c.bf16 %v4243, %v4243
        %v4516 = vpack.c.bf16 %v4244, %v4244
        %v4517 = vpack.c.bf16 %v4245, %v4245
        %v4518 = vpack.c.bf16 %v4246, %v4246
        %v4519 = vpack.c.bf16 %v4247, %v4247
        %v4520 = vld [vmem:[#allocation21] sm:$0x3]
        %v4522 = vperm.slane %v4520, 0
        %v4523 = vperm.slane %v4520, 1
        %v4782 = vunpack.c.l.b16 %v4248
        %v4783 = vunpack.c.h.b16 %v4248
        %v4784 = vunpack.c.l.b16 %v4249
        %v4785 = vunpack.c.h.b16 %v4249
        %v4786 = vunpack.c.l.b16 %v4250
        %v4787 = vunpack.c.h.b16 %v4250
        %v4788 = vunpack.c.l.b16 %v4251
        %v4789 = vunpack.c.h.b16 %v4251
        %v4790 = vunpack.c.l.b16 %v4252
        %v4791 = vunpack.c.h.b16 %v4252
        %v4792 = vunpack.c.l.b16 %v4253
        %v4793 = vunpack.c.h.b16 %v4253
        %v4794 = vunpack.c.l.b16 %v4254
        %v4795 = vunpack.c.h.b16 %v4254
        %v4796 = vunpack.c.l.b16 %v4255
        %v4797 = vunpack.c.h.b16 %v4255
        %v4798 = vunpack.c.l.b16 %v4256
        %v4799 = vunpack.c.h.b16 %v4256
        %v4800 = vunpack.c.l.b16 %v4257
        %v4801 = vunpack.c.h.b16 %v4257
        %v4802 = vunpack.c.l.b16 %v4258
        %v4803 = vunpack.c.h.b16 %v4258
        %v4804 = vunpack.c.l.b16 %v4259
        %v4805 = vunpack.c.h.b16 %v4259
        %v4806 = vunpack.c.l.b16 %v4260
        %v4807 = vunpack.c.h.b16 %v4260
        %v4808 = vunpack.c.l.b16 %v4261
        %v4809 = vunpack.c.h.b16 %v4261
        %v4810 = vunpack.c.l.b16 %v4262
        %v4811 = vunpack.c.h.b16 %v4262
        %v4812 = vunpack.c.l.b16 %v4263
        %v4813 = vunpack.c.h.b16 %v4263
        %v4814 = vunpack.c.l.b16 %v4264
        %v4815 = vunpack.c.h.b16 %v4264
        %v4816 = vunpack.c.l.b16 %v4265
        %v4817 = vunpack.c.h.b16 %v4265
        %v4818 = vunpack.c.l.b16 %v4266
        %v4819 = vunpack.c.h.b16 %v4266
        %v4820 = vunpack.c.l.b16 %v4267
        %v4821 = vunpack.c.h.b16 %v4267
        %v4822 = vunpack.c.l.b16 %v4268
        %v4823 = vunpack.c.h.b16 %v4268
        %v4824 = vunpack.c.l.b16 %v4269
        %v4825 = vunpack.c.h.b16 %v4269
        %v4826 = vunpack.c.l.b16 %v4270
        %v4827 = vunpack.c.h.b16 %v4270
        %v4828 = vunpack.c.l.b16 %v4271
        %v4829 = vunpack.c.h.b16 %v4271
        %v4830 = vunpack.c.l.b16 %v4272
        %v4831 = vunpack.c.h.b16 %v4272
        %v4832 = vunpack.c.l.b16 %v4273
        %v4833 = vunpack.c.h.b16 %v4273
        %v4834 = vunpack.c.l.b16 %v4274
        %v4835 = vunpack.c.h.b16 %v4274
        %v4836 = vunpack.c.l.b16 %v4275
        %v4837 = vunpack.c.h.b16 %v4275
        %v4838 = vunpack.c.l.b16 %v4276
        %v4839 = vunpack.c.h.b16 %v4276
        %v4840 = vunpack.c.l.b16 %v4277
        %v4841 = vunpack.c.h.b16 %v4277
        %v4842 = vunpack.c.l.b16 %v4278
        %v4843 = vunpack.c.h.b16 %v4278
        %v4844 = vunpack.c.l.b16 %v4279
        %v4845 = vunpack.c.h.b16 %v4279
        %v4846 = vunpack.c.l.b16 %v4280
        %v4847 = vunpack.c.h.b16 %v4280
        %v4848 = vunpack.c.l.b16 %v4281
        %v4849 = vunpack.c.h.b16 %v4281
        %v4850 = vunpack.c.l.b16 %v4282
        %v4851 = vunpack.c.h.b16 %v4282
        %v4852 = vunpack.c.l.b16 %v4283
        %v4853 = vunpack.c.h.b16 %v4283
        %v4854 = vunpack.c.l.b16 %v4284
        %v4855 = vunpack.c.h.b16 %v4284
        %v4856 = vunpack.c.l.b16 %v4285
        %v4857 = vunpack.c.h.b16 %v4285
        %v4858 = vunpack.c.l.b16 %v4286
        %v4859 = vunpack.c.h.b16 %v4286
        %v4860 = vunpack.c.l.b16 %v4287
        %v4861 = vunpack.c.h.b16 %v4287
        %v4862 = vunpack.c.l.b16 %v4288
        %v4863 = vunpack.c.h.b16 %v4288
        %v4864 = vunpack.c.l.b16 %v4289
        %v4865 = vunpack.c.h.b16 %v4289
        %v4866 = vunpack.c.l.b16 %v4290
        %v4867 = vunpack.c.h.b16 %v4290
        %v4868 = vunpack.c.l.b16 %v4291
        %v4869 = vunpack.c.h.b16 %v4291
        %v4870 = vunpack.c.l.b16 %v4292
        %v4871 = vunpack.c.h.b16 %v4292
        %v4872 = vunpack.c.l.b16 %v4293
        %v4873 = vunpack.c.h.b16 %v4293
        %v4874 = vunpack.c.l.b16 %v4294
        %v4875 = vunpack.c.h.b16 %v4294
        %v4876 = vunpack.c.l.b16 %v4295
        %v4877 = vunpack.c.h.b16 %v4295
        %v4878 = vunpack.c.l.b16 %v4296
        %v4879 = vunpack.c.h.b16 %v4296
        %v4880 = vunpack.c.l.b16 %v4297
        %v4881 = vunpack.c.h.b16 %v4297
        %v4882 = vunpack.c.l.b16 %v4298
        %v4883 = vunpack.c.h.b16 %v4298
        %v4884 = vunpack.c.l.b16 %v4299
        %v4885 = vunpack.c.h.b16 %v4299
        %v4886 = vunpack.c.l.b16 %v4300
        %v4887 = vunpack.c.h.b16 %v4300
        %v4888 = vunpack.c.l.b16 %v4301
        %v4889 = vunpack.c.h.b16 %v4301
        %v4890 = vunpack.c.l.b16 %v4302
        %v4891 = vunpack.c.h.b16 %v4302
        %v4892 = vunpack.c.l.b16 %v4303
        %v4893 = vunpack.c.h.b16 %v4303
        %v4894 = vunpack.c.l.b16 %v4304
        %v4895 = vunpack.c.h.b16 %v4304
        %v4896 = vunpack.c.l.b16 %v4305
        %v4897 = vunpack.c.h.b16 %v4305
        %v4898 = vunpack.c.l.b16 %v4306
        %v4899 = vunpack.c.h.b16 %v4306
        %v4900 = vunpack.c.l.b16 %v4307
        %v4901 = vunpack.c.h.b16 %v4307
        %v4902 = vunpack.c.l.b16 %v4308
        %v4903 = vunpack.c.h.b16 %v4308
        %v4904 = vunpack.c.l.b16 %v4309
        %v4905 = vunpack.c.h.b16 %v4309
        %v4906 = vunpack.c.l.b16 %v4310
        %v4907 = vunpack.c.h.b16 %v4310
        %v4908 = vunpack.c.l.b16 %v4311
        %v4909 = vunpack.c.h.b16 %v4311
        %v4910 = vunpack.c.l.b16 %v4312
        %v4911 = vunpack.c.h.b16 %v4312
        %v4912 = vunpack.c.l.b16 %v4313
        %v4913 = vunpack.c.h.b16 %v4313
        %v4914 = vunpack.c.l.b16 %v4314
        %v4915 = vunpack.c.h.b16 %v4314
        %v4916 = vunpack.c.l.b16 %v4315
        %v4917 = vunpack.c.h.b16 %v4315
        %v4918 = vunpack.c.l.b16 %v4316
        %v4919 = vunpack.c.h.b16 %v4316
        %v4920 = vunpack.c.l.b16 %v4317
        %v4921 = vunpack.c.h.b16 %v4317
        %v4922 = vunpack.c.l.b16 %v4318
        %v4923 = vunpack.c.h.b16 %v4318
        %v4924 = vunpack.c.l.b16 %v4319
        %v4925 = vunpack.c.h.b16 %v4319
        %v4926 = vunpack.c.l.b16 %v4320
        %v4927 = vunpack.c.h.b16 %v4320
        %v4928 = vunpack.c.l.b16 %v4321
        %v4929 = vunpack.c.h.b16 %v4321
        %v4930 = vunpack.c.l.b16 %v4322
        %v4931 = vunpack.c.h.b16 %v4322
        %v4932 = vunpack.c.l.b16 %v4323
        %v4933 = vunpack.c.h.b16 %v4323
        %v4934 = vunpack.c.l.b16 %v4324
        %v4935 = vunpack.c.h.b16 %v4324
        %v4936 = vunpack.c.l.b16 %v4325
        %v4937 = vunpack.c.h.b16 %v4325
        %v4938 = vunpack.c.l.b16 %v4326
        %v4939 = vunpack.c.h.b16 %v4326
        %v4940 = vunpack.c.l.b16 %v4327
        %v4941 = vunpack.c.h.b16 %v4327
        %v4942 = vunpack.c.l.b16 %v4328
        %v4943 = vunpack.c.h.b16 %v4328
        %v4944 = vunpack.c.l.b16 %v4329
        %v4945 = vunpack.c.h.b16 %v4329
        %v4946 = vunpack.c.l.b16 %v4330
        %v4947 = vunpack.c.h.b16 %v4330
        %v4948 = vunpack.c.l.b16 %v4331
        %v4949 = vunpack.c.h.b16 %v4331
        %v4950 = vunpack.c.l.b16 %v4332
        %v4951 = vunpack.c.h.b16 %v4332
        %v4952 = vunpack.c.l.b16 %v4333
        %v4953 = vunpack.c.h.b16 %v4333
        %v4954 = vunpack.c.l.b16 %v4334
        %v4955 = vunpack.c.h.b16 %v4334
        %v4956 = vunpack.c.l.b16 %v4335
        %v4957 = vunpack.c.h.b16 %v4335
        %v4958 = vunpack.c.l.b16 %v4336
        %v4959 = vunpack.c.h.b16 %v4336
        %v4960 = vunpack.c.l.b16 %v4337
        %v4961 = vunpack.c.h.b16 %v4337
        %v4962 = vunpack.c.l.b16 %v4338
        %v4963 = vunpack.c.h.b16 %v4338
        %v4964 = vunpack.c.l.b16 %v4339
        %v4965 = vunpack.c.h.b16 %v4339
        %v4966 = vunpack.c.l.b16 %v4340
        %v4967 = vunpack.c.h.b16 %v4340
        %v4968 = vunpack.c.l.b16 %v4341
        %v4969 = vunpack.c.h.b16 %v4341
        %v4970 = vunpack.c.l.b16 %v4342
        %v4971 = vunpack.c.h.b16 %v4342
        %v4972 = vunpack.c.l.b16 %v4343
        %v4973 = vunpack.c.h.b16 %v4343
        %v4974 = vunpack.c.l.b16 %v4344
        %v4975 = vunpack.c.h.b16 %v4344
        %v4976 = vunpack.c.l.b16 %v4345
        %v4977 = vunpack.c.h.b16 %v4345
        %v4978 = vunpack.c.l.b16 %v4346
        %v4979 = vunpack.c.h.b16 %v4346
        %v4980 = vunpack.c.l.b16 %v4347
        %v4981 = vunpack.c.h.b16 %v4347
        %v4982 = vunpack.c.l.b16 %v4348
        %v4983 = vunpack.c.h.b16 %v4348
        %v4984 = vunpack.c.l.b16 %v4349
        %v4985 = vunpack.c.h.b16 %v4349
        %v4986 = vunpack.c.l.b16 %v4350
        %v4987 = vunpack.c.h.b16 %v4350
        %v4988 = vunpack.c.l.b16 %v4351
        %v4989 = vunpack.c.h.b16 %v4351
        %v4990 = vunpack.c.l.b16 %v4352
        %v4991 = vunpack.c.h.b16 %v4352
        %v4992 = vunpack.c.l.b16 %v4353
        %v4993 = vunpack.c.h.b16 %v4353
        %v4994 = vunpack.c.l.b16 %v4354
        %v4995 = vunpack.c.h.b16 %v4354
        %v4996 = vunpack.c.l.b16 %v4355
        %v4997 = vunpack.c.h.b16 %v4355
        %v4998 = vunpack.c.l.b16 %v4356
        %v4999 = vunpack.c.h.b16 %v4356
        %v5000 = vunpack.c.l.b16 %v4357
        %v5001 = vunpack.c.h.b16 %v4357
        %v5002 = vunpack.c.l.b16 %v4358
        %v5003 = vunpack.c.h.b16 %v4358
        %v5004 = vunpack.c.l.b16 %v4359
        %v5005 = vunpack.c.h.b16 %v4359
        %v5006 = vunpack.c.l.b16 %v4360
        %v5007 = vunpack.c.h.b16 %v4360
        %v5008 = vunpack.c.l.b16 %v4361
        %v5009 = vunpack.c.h.b16 %v4361
        %v5010 = vunpack.c.l.b16 %v4362
        %v5011 = vunpack.c.h.b16 %v4362
        %v5012 = vunpack.c.l.b16 %v4363
        %v5013 = vunpack.c.h.b16 %v4363
        %v5014 = vunpack.c.l.b16 %v4364
        %v5015 = vunpack.c.h.b16 %v4364
        %v5016 = vunpack.c.l.b16 %v4365
        %v5017 = vunpack.c.h.b16 %v4365
        %v5018 = vunpack.c.l.b16 %v4366
        %v5019 = vunpack.c.h.b16 %v4366
        %v5020 = vunpack.c.l.b16 %v4367
        %v5021 = vunpack.c.h.b16 %v4367
        %v5022 = vunpack.c.l.b16 %v4368
        %v5023 = vunpack.c.h.b16 %v4368
        %v5024 = vunpack.c.l.b16 %v4369
        %v5025 = vunpack.c.h.b16 %v4369
        %v5026 = vunpack.c.l.b16 %v4370
        %v5027 = vunpack.c.h.b16 %v4370
        %v5028 = vunpack.c.l.b16 %v4371
        %v5029 = vunpack.c.h.b16 %v4371
        %v5030 = vunpack.c.l.b16 %v4372
        %v5031 = vunpack.c.h.b16 %v4372
        %v5032 = vunpack.c.l.b16 %v4373
        %v5033 = vunpack.c.h.b16 %v4373
        %v5034 = vunpack.c.l.b16 %v4374
        %v5035 = vunpack.c.h.b16 %v4374
        %v5036 = vunpack.c.l.b16 %v4375
        %v5037 = vunpack.c.h.b16 %v4375
        %v5038 = vunpack.c.l.b16 %v4376
        %v5039 = vunpack.c.h.b16 %v4376
        %v5040 = vunpack.c.l.b16 %v4377
        %v5041 = vunpack.c.h.b16 %v4377
        %v5042 = vunpack.c.l.b16 %v4378
        %v5043 = vunpack.c.h.b16 %v4378
        %v5044 = vunpack.c.l.b16 %v4379
        %v5045 = vunpack.c.h.b16 %v4379
        %v5046 = vunpack.c.l.b16 %v4380
        %v5047 = vunpack.c.h.b16 %v4380
        %v5048 = vunpack.c.l.b16 %v4381
        %v5049 = vunpack.c.h.b16 %v4381
        %v5050 = vunpack.c.l.b16 %v4382
        %v5051 = vunpack.c.h.b16 %v4382
        %v5052 = vunpack.c.l.b16 %v4383
        %v5053 = vunpack.c.h.b16 %v4383
        %v5054 = vunpack.c.l.b16 %v4384
        %v5055 = vunpack.c.h.b16 %v4384
        %v5056 = vunpack.c.l.b16 %v4385
        %v5057 = vunpack.c.h.b16 %v4385
        %v5058 = vunpack.c.l.b16 %v4386
        %v5059 = vunpack.c.h.b16 %v4386
        %v5060 = vunpack.c.l.b16 %v4387
        %v5061 = vunpack.c.h.b16 %v4387
        %v5062 = vunpack.c.l.b16 %v4388
        %v5063 = vunpack.c.h.b16 %v4388
        %v5064 = vunpack.c.l.b16 %v4389
        %v5065 = vunpack.c.h.b16 %v4389
        %v5066 = vunpack.c.l.b16 %v4390
        %v5067 = vunpack.c.h.b16 %v4390
        %v5068 = vunpack.c.l.b16 %v4391
        %v5069 = vunpack.c.h.b16 %v4391
        %v5070 = vunpack.c.l.b16 %v4392
        %v5071 = vunpack.c.h.b16 %v4392
        %v5072 = vunpack.c.l.b16 %v4393
        %v5073 = vunpack.c.h.b16 %v4393
        %v5074 = vunpack.c.l.b16 %v4394
        %v5075 = vunpack.c.h.b16 %v4394
        %v5076 = vunpack.c.l.b16 %v4395
        %v5077 = vunpack.c.h.b16 %v4395
        %v5078 = vunpack.c.l.b16 %v4396
        %v5079 = vunpack.c.h.b16 %v4396
        %v5080 = vunpack.c.l.b16 %v4397
        %v5081 = vunpack.c.h.b16 %v4397
        %v5082 = vunpack.c.l.b16 %v4398
        %v5083 = vunpack.c.h.b16 %v4398
        %v5084 = vunpack.c.l.b16 %v4399
        %v5085 = vunpack.c.h.b16 %v4399
        %v5086 = vunpack.c.l.b16 %v4400
        %v5087 = vunpack.c.h.b16 %v4400
        %v5088 = vunpack.c.l.b16 %v4401
        %v5089 = vunpack.c.h.b16 %v4401
        %v5090 = vunpack.c.l.b16 %v4402
        %v5091 = vunpack.c.h.b16 %v4402
        %v5092 = vunpack.c.l.b16 %v4403
        %v5093 = vunpack.c.h.b16 %v4403
        %v5094 = vunpack.c.l.b16 %v4404
        %v5095 = vunpack.c.h.b16 %v4404
        %v5096 = vunpack.c.l.b16 %v4405
        %v5097 = vunpack.c.h.b16 %v4405
        %v5098 = vunpack.c.l.b16 %v4406
        %v5099 = vunpack.c.h.b16 %v4406
        %v5100 = vunpack.c.l.b16 %v4407
        %v5101 = vunpack.c.h.b16 %v4407
        %v5102 = vunpack.c.l.b16 %v4408
        %v5103 = vunpack.c.h.b16 %v4408
        %v5104 = vunpack.c.l.b16 %v4409
        %v5105 = vunpack.c.h.b16 %v4409
        %v5106 = vunpack.c.l.b16 %v4410
        %v5107 = vunpack.c.h.b16 %v4410
        %v5108 = vunpack.c.l.b16 %v4411
        %v5109 = vunpack.c.h.b16 %v4411
        %v5110 = vunpack.c.l.b16 %v4412
        %v5111 = vunpack.c.h.b16 %v4412
        %v5112 = vunpack.c.l.b16 %v4413
        %v5113 = vunpack.c.h.b16 %v4413
        %v5114 = vunpack.c.l.b16 %v4414
        %v5115 = vunpack.c.h.b16 %v4414
        %v5116 = vunpack.c.l.b16 %v4415
        %v5117 = vunpack.c.h.b16 %v4415
        %v5118 = vunpack.c.l.b16 %v4416
        %v5119 = vunpack.c.h.b16 %v4416
        %v5120 = vunpack.c.l.b16 %v4417
        %v5121 = vunpack.c.h.b16 %v4417
        %v5122 = vunpack.c.l.b16 %v4418
        %v5123 = vunpack.c.h.b16 %v4418
        %v5124 = vunpack.c.l.b16 %v4419
        %v5125 = vunpack.c.h.b16 %v4419
        %v5126 = vunpack.c.l.b16 %v4420
        %v5127 = vunpack.c.h.b16 %v4420
        %v5128 = vunpack.c.l.b16 %v4421
        %v5129 = vunpack.c.h.b16 %v4421
        %v5130 = vunpack.c.l.b16 %v4422
        %v5131 = vunpack.c.h.b16 %v4422
        %v5132 = vunpack.c.l.b16 %v4423
        %v5133 = vunpack.c.h.b16 %v4423
        %v5134 = vunpack.c.l.b16 %v4424
        %v5135 = vunpack.c.h.b16 %v4424
        %v5136 = vunpack.c.l.b16 %v4425
        %v5137 = vunpack.c.h.b16 %v4425
        %v5138 = vunpack.c.l.b16 %v4426
        %v5139 = vunpack.c.h.b16 %v4426
        %v5140 = vunpack.c.l.b16 %v4427
        %v5141 = vunpack.c.h.b16 %v4427
        %v5142 = vunpack.c.l.b16 %v4428
        %v5143 = vunpack.c.h.b16 %v4428
        %v5144 = vunpack.c.l.b16 %v4429
        %v5145 = vunpack.c.h.b16 %v4429
        %v5146 = vunpack.c.l.b16 %v4430
        %v5147 = vunpack.c.h.b16 %v4430
        %v5148 = vunpack.c.l.b16 %v4431
        %v5149 = vunpack.c.h.b16 %v4431
        %v5150 = vunpack.c.l.b16 %v4432
        %v5151 = vunpack.c.h.b16 %v4432
        %v5152 = vunpack.c.l.b16 %v4433
        %v5153 = vunpack.c.h.b16 %v4433
        %v5154 = vunpack.c.l.b16 %v4434
        %v5155 = vunpack.c.h.b16 %v4434
        %v5156 = vunpack.c.l.b16 %v4435
        %v5157 = vunpack.c.h.b16 %v4435
        %v5158 = vunpack.c.l.b16 %v4436
        %v5159 = vunpack.c.h.b16 %v4436
        %v5160 = vunpack.c.l.b16 %v4437
        %v5161 = vunpack.c.h.b16 %v4437
        %v5162 = vunpack.c.l.b16 %v4438
        %v5163 = vunpack.c.h.b16 %v4438
        %v5164 = vunpack.c.l.b16 %v4439
        %v5165 = vunpack.c.h.b16 %v4439
        %v5166 = vunpack.c.l.b16 %v4440
        %v5167 = vunpack.c.h.b16 %v4440
        %v5168 = vunpack.c.l.b16 %v4441
        %v5169 = vunpack.c.h.b16 %v4441
        %v5170 = vunpack.c.l.b16 %v4442
        %v5171 = vunpack.c.h.b16 %v4442
        %v5172 = vunpack.c.l.b16 %v4443
        %v5173 = vunpack.c.h.b16 %v4443
        %v5174 = vunpack.c.l.b16 %v4444
        %v5175 = vunpack.c.h.b16 %v4444
        %v5176 = vunpack.c.l.b16 %v4445
        %v5177 = vunpack.c.h.b16 %v4445
        %v5178 = vunpack.c.l.b16 %v4446
        %v5179 = vunpack.c.h.b16 %v4446
        %v5180 = vunpack.c.l.b16 %v4447
        %v5181 = vunpack.c.h.b16 %v4447
        %v5182 = vunpack.c.l.b16 %v4448
        %v5183 = vunpack.c.h.b16 %v4448
        %v5184 = vunpack.c.l.b16 %v4449
        %v5185 = vunpack.c.h.b16 %v4449
        %v5186 = vunpack.c.l.b16 %v4450
        %v5187 = vunpack.c.h.b16 %v4450
        %v5188 = vunpack.c.l.b16 %v4451
        %v5189 = vunpack.c.h.b16 %v4451
        %v5190 = vunpack.c.l.b16 %v4452
        %v5191 = vunpack.c.h.b16 %v4452
        %v5192 = vunpack.c.l.b16 %v4453
        %v5193 = vunpack.c.h.b16 %v4453
        %v5194 = vunpack.c.l.b16 %v4454
        %v5195 = vunpack.c.h.b16 %v4454
        %v5196 = vunpack.c.l.b16 %v4455
        %v5197 = vunpack.c.h.b16 %v4455
        %v5198 = vunpack.c.l.b16 %v4456
        %v5199 = vunpack.c.h.b16 %v4456
        %v5200 = vunpack.c.l.b16 %v4457
        %v5201 = vunpack.c.h.b16 %v4457
        %v5202 = vunpack.c.l.b16 %v4458
        %v5203 = vunpack.c.h.b16 %v4458
        %v5204 = vunpack.c.l.b16 %v4459
        %v5205 = vunpack.c.h.b16 %v4459
        %v5206 = vunpack.c.l.b16 %v4460
        %v5207 = vunpack.c.h.b16 %v4460
        %v5208 = vunpack.c.l.b16 %v4461
        %v5209 = vunpack.c.h.b16 %v4461
        %v5210 = vunpack.c.l.b16 %v4462
        %v5211 = vunpack.c.h.b16 %v4462
        %v5212 = vunpack.c.l.b16 %v4463
        %v5213 = vunpack.c.h.b16 %v4463
        %v5214 = vunpack.c.l.b16 %v4464
        %v5215 = vunpack.c.h.b16 %v4464
        %v5216 = vunpack.c.l.b16 %v4465
        %v5217 = vunpack.c.h.b16 %v4465
        %v5218 = vunpack.c.l.b16 %v4466
        %v5219 = vunpack.c.h.b16 %v4466
        %v5220 = vunpack.c.l.b16 %v4467
        %v5221 = vunpack.c.h.b16 %v4467
        %v5222 = vunpack.c.l.b16 %v4468
        %v5223 = vunpack.c.h.b16 %v4468
        %v5224 = vunpack.c.l.b16 %v4469
        %v5225 = vunpack.c.h.b16 %v4469
        %v5226 = vunpack.c.l.b16 %v4470
        %v5227 = vunpack.c.h.b16 %v4470
        %v5228 = vunpack.c.l.b16 %v4471
        %v5229 = vunpack.c.h.b16 %v4471
        %v5230 = vunpack.c.l.b16 %v4472
        %v5231 = vunpack.c.h.b16 %v4472
        %v5232 = vunpack.c.l.b16 %v4473
        %v5233 = vunpack.c.h.b16 %v4473
        %v5234 = vunpack.c.l.b16 %v4474
        %v5235 = vunpack.c.h.b16 %v4474
        %v5236 = vunpack.c.l.b16 %v4475
        %v5237 = vunpack.c.h.b16 %v4475
        %v5238 = vunpack.c.l.b16 %v4476
        %v5239 = vunpack.c.h.b16 %v4476
        %v5240 = vunpack.c.l.b16 %v4477
        %v5241 = vunpack.c.h.b16 %v4477
        %v5242 = vunpack.c.l.b16 %v4478
        %v5243 = vunpack.c.h.b16 %v4478
        %v5244 = vunpack.c.l.b16 %v4479
        %v5245 = vunpack.c.h.b16 %v4479
        %v5246 = vunpack.c.l.b16 %v4480
        %v5247 = vunpack.c.h.b16 %v4480
        %v5248 = vunpack.c.l.b16 %v4481
        %v5249 = vunpack.c.h.b16 %v4481
        %v5250 = vunpack.c.l.b16 %v4482
        %v5251 = vunpack.c.h.b16 %v4482
        %v5252 = vunpack.c.l.b16 %v4483
        %v5253 = vunpack.c.h.b16 %v4483
        %v5254 = vunpack.c.l.b16 %v4484
        %v5255 = vunpack.c.h.b16 %v4484
        %v5256 = vunpack.c.l.b16 %v4485
        %v5257 = vunpack.c.h.b16 %v4485
        %v5258 = vunpack.c.l.b16 %v4486
        %v5259 = vunpack.c.h.b16 %v4486
        %v5260 = vunpack.c.l.b16 %v4487
        %v5261 = vunpack.c.h.b16 %v4487
        %v5262 = vunpack.c.l.b16 %v4488
        %v5263 = vunpack.c.h.b16 %v4488
        %v5264 = vunpack.c.l.b16 %v4489
        %v5265 = vunpack.c.h.b16 %v4489
        %v5266 = vunpack.c.l.b16 %v4490
        %v5267 = vunpack.c.h.b16 %v4490
        %v5268 = vunpack.c.l.b16 %v4491
        %v5269 = vunpack.c.h.b16 %v4491
        %v5270 = vunpack.c.l.b16 %v4492
        %v5271 = vunpack.c.h.b16 %v4492
        %v5272 = vunpack.c.l.b16 %v4493
        %v5273 = vunpack.c.h.b16 %v4493
        %v5274 = vunpack.c.l.b16 %v4494
        %v5275 = vunpack.c.h.b16 %v4494
        %v5276 = vunpack.c.l.b16 %v4495
        %v5277 = vunpack.c.h.b16 %v4495
        %v5278 = vunpack.c.l.b16 %v4496
        %v5279 = vunpack.c.h.b16 %v4496
        %v5280 = vunpack.c.l.b16 %v4497
        %v5281 = vunpack.c.h.b16 %v4497
        %v5282 = vunpack.c.l.b16 %v4498
        %v5283 = vunpack.c.h.b16 %v4498
        %v5284 = vunpack.c.l.b16 %v4499
        %v5285 = vunpack.c.h.b16 %v4499
        %v5286 = vunpack.c.l.b16 %v4500
        %v5287 = vunpack.c.h.b16 %v4500
        %v5288 = vunpack.c.l.b16 %v4501
        %v5289 = vunpack.c.h.b16 %v4501
        %v5290 = vunpack.c.l.b16 %v4502
        %v5291 = vunpack.c.h.b16 %v4502
        %v5292 = vunpack.c.l.b16 %v4503
        %v5293 = vunpack.c.h.b16 %v4503
        %v5294 = vpack.c.b16 %v4784, %v4782
        %v5295 = vpack.c.b16 %v4785, %v4783
        %v5296 = vpack.c.b16 %v4788, %v4786
        %v5297 = vpack.c.b16 %v4789, %v4787
        %v5298 = vpack.c.b16 %v4792, %v4790
        %v5299 = vpack.c.b16 %v4793, %v4791
        %v5300 = vpack.c.b16 %v4796, %v4794
        %v5301 = vpack.c.b16 %v4797, %v4795
        %v5302 = vpack.c.b16 %v4800, %v4798
        %v5303 = vpack.c.b16 %v4801, %v4799
        %v5304 = vpack.c.b16 %v4804, %v4802
        %v5305 = vpack.c.b16 %v4805, %v4803
        %v5306 = vpack.c.b16 %v4808, %v4806
        %v5307 = vpack.c.b16 %v4809, %v4807
        %v5308 = vpack.c.b16 %v4812, %v4810
        %v5309 = vpack.c.b16 %v4813, %v4811
        %v5310 = vpack.c.b16 %v4816, %v4814
        %v5311 = vpack.c.b16 %v4817, %v4815
        %v5312 = vpack.c.b16 %v4820, %v4818
        %v5313 = vpack.c.b16 %v4821, %v4819
        %v5314 = vpack.c.b16 %v4824, %v4822
        %v5315 = vpack.c.b16 %v4825, %v4823
        %v5316 = vpack.c.b16 %v4828, %v4826
        %v5317 = vpack.c.b16 %v4829, %v4827
        %v5318 = vpack.c.b16 %v4832, %v4830
        %v5319 = vpack.c.b16 %v4833, %v4831
        %v5320 = vpack.c.b16 %v4836, %v4834
        %v5321 = vpack.c.b16 %v4837, %v4835
        %v5322 = vpack.c.b16 %v4840, %v4838
        %v5323 = vpack.c.b16 %v4841, %v4839
        %v5324 = vpack.c.b16 %v4844, %v4842
        %v5325 = vpack.c.b16 %v4845, %v4843
        %v5326 = vpack.c.b16 %v4848, %v4846
        %v5327 = vpack.c.b16 %v4849, %v4847
        %v5328 = vpack.c.b16 %v4852, %v4850
        %v5329 = vpack.c.b16 %v4853, %v4851
        %v5330 = vpack.c.b16 %v4856, %v4854
        %v5331 = vpack.c.b16 %v4857, %v4855
        %v5332 = vpack.c.b16 %v4860, %v4858
        %v5333 = vpack.c.b16 %v4861, %v4859
        %v5334 = vpack.c.b16 %v4864, %v4862
        %v5335 = vpack.c.b16 %v4865, %v4863
        %v5336 = vpack.c.b16 %v4868, %v4866
        %v5337 = vpack.c.b16 %v4869, %v4867
        %v5338 = vpack.c.b16 %v4872, %v4870
        %v5339 = vpack.c.b16 %v4873, %v4871
        %v5340 = vpack.c.b16 %v4876, %v4874
        %v5341 = vpack.c.b16 %v4877, %v4875
        %v5342 = vpack.c.b16 %v4880, %v4878
        %v5343 = vpack.c.b16 %v4881, %v4879
        %v5344 = vpack.c.b16 %v4884, %v4882
        %v5345 = vpack.c.b16 %v4885, %v4883
        %v5346 = vpack.c.b16 %v4888, %v4886
        %v5347 = vpack.c.b16 %v4889, %v4887
        %v5348 = vpack.c.b16 %v4892, %v4890
        %v5349 = vpack.c.b16 %v4893, %v4891
        %v5350 = vpack.c.b16 %v4896, %v4894
        %v5351 = vpack.c.b16 %v4897, %v4895
        %v5352 = vpack.c.b16 %v4900, %v4898
        %v5353 = vpack.c.b16 %v4901, %v4899
        %v5354 = vpack.c.b16 %v4904, %v4902
        %v5355 = vpack.c.b16 %v4905, %v4903
        %v5356 = vpack.c.b16 %v4908, %v4906
        %v5357 = vpack.c.b16 %v4909, %v4907
        %v5358 = vpack.c.b16 %v4912, %v4910
        %v5359 = vpack.c.b16 %v4913, %v4911
        %v5360 = vpack.c.b16 %v4916, %v4914
        %v5361 = vpack.c.b16 %v4917, %v4915
        %v5362 = vpack.c.b16 %v4920, %v4918
        %v5363 = vpack.c.b16 %v4921, %v4919
        %v5364 = vpack.c.b16 %v4924, %v4922
        %v5365 = vpack.c.b16 %v4925, %v4923
        %v5366 = vpack.c.b16 %v4928, %v4926
        %v5367 = vpack.c.b16 %v4929, %v4927
        %v5368 = vpack.c.b16 %v4932, %v4930
        %v5369 = vpack.c.b16 %v4933, %v4931
        %v5370 = vpack.c.b16 %v4936, %v4934
        %v5371 = vpack.c.b16 %v4937, %v4935
        %v5372 = vpack.c.b16 %v4940, %v4938
        %v5373 = vpack.c.b16 %v4941, %v4939
        %v5374 = vpack.c.b16 %v4944, %v4942
        %v5375 = vpack.c.b16 %v4945, %v4943
        %v5376 = vpack.c.b16 %v4948, %v4946
        %v5377 = vpack.c.b16 %v4949, %v4947
        %v5378 = vpack.c.b16 %v4952, %v4950
        %v5379 = vpack.c.b16 %v4953, %v4951
        %v5380 = vpack.c.b16 %v4956, %v4954
        %v5381 = vpack.c.b16 %v4957, %v4955
        %v5382 = vpack.c.b16 %v4960, %v4958
        %v5383 = vpack.c.b16 %v4961, %v4959
        %v5384 = vpack.c.b16 %v4964, %v4962
        %v5385 = vpack.c.b16 %v4965, %v4963
        %v5386 = vpack.c.b16 %v4968, %v4966
        %v5387 = vpack.c.b16 %v4969, %v4967
        %v5388 = vpack.c.b16 %v4972, %v4970
        %v5389 = vpack.c.b16 %v4973, %v4971
        %v5390 = vpack.c.b16 %v4976, %v4974
        %v5391 = vpack.c.b16 %v4977, %v4975
        %v5392 = vpack.c.b16 %v4980, %v4978
        %v5393 = vpack.c.b16 %v4981, %v4979
        %v5394 = vpack.c.b16 %v4984, %v4982
        %v5395 = vpack.c.b16 %v4985, %v4983
        %v5396 = vpack.c.b16 %v4988, %v4986
        %v5397 = vpack.c.b16 %v4989, %v4987
        %v5398 = vpack.c.b16 %v4992, %v4990
        %v5399 = vpack.c.b16 %v4993, %v4991
        %v5400 = vpack.c.b16 %v4996, %v4994
        %v5401 = vpack.c.b16 %v4997, %v4995
        %v5402 = vpack.c.b16 %v5000, %v4998
        %v5403 = vpack.c.b16 %v5001, %v4999
        %v5404 = vpack.c.b16 %v5004, %v5002
        %v5405 = vpack.c.b16 %v5005, %v5003
        %v5406 = vpack.c.b16 %v5008, %v5006
        %v5407 = vpack.c.b16 %v5009, %v5007
        %v5408 = vpack.c.b16 %v5012, %v5010
        %v5409 = vpack.c.b16 %v5013, %v5011
        %v5410 = vpack.c.b16 %v5016, %v5014
        %v5411 = vpack.c.b16 %v5017, %v5015
        %v5412 = vpack.c.b16 %v5020, %v5018
        %v5413 = vpack.c.b16 %v5021, %v5019
        %v5414 = vpack.c.b16 %v5024, %v5022
        %v5415 = vpack.c.b16 %v5025, %v5023
        %v5416 = vpack.c.b16 %v5028, %v5026
        %v5417 = vpack.c.b16 %v5029, %v5027
        %v5418 = vpack.c.b16 %v5032, %v5030
        %v5419 = vpack.c.b16 %v5033, %v5031
        %v5420 = vpack.c.b16 %v5036, %v5034
        %v5421 = vpack.c.b16 %v5037, %v5035
        %v5422 = vpack.c.b16 %v5040, %v5038
        %v5423 = vpack.c.b16 %v5041, %v5039
        %v5424 = vpack.c.b16 %v5044, %v5042
        %v5425 = vpack.c.b16 %v5045, %v5043
        %v5426 = vpack.c.b16 %v5048, %v5046
        %v5427 = vpack.c.b16 %v5049, %v5047
        %v5428 = vpack.c.b16 %v5052, %v5050
        %v5429 = vpack.c.b16 %v5053, %v5051
        %v5430 = vpack.c.b16 %v5056, %v5054
        %v5431 = vpack.c.b16 %v5057, %v5055
        %v5432 = vpack.c.b16 %v5060, %v5058
        %v5433 = vpack.c.b16 %v5061, %v5059
        %v5434 = vpack.c.b16 %v5064, %v5062
        %v5435 = vpack.c.b16 %v5065, %v5063
        %v5436 = vpack.c.b16 %v5068, %v5066
        %v5437 = vpack.c.b16 %v5069, %v5067
        %v5438 = vpack.c.b16 %v5072, %v5070
        %v5439 = vpack.c.b16 %v5073, %v5071
        %v5440 = vpack.c.b16 %v5076, %v5074
        %v5441 = vpack.c.b16 %v5077, %v5075
        %v5442 = vpack.c.b16 %v5080, %v5078
        %v5443 = vpack.c.b16 %v5081, %v5079
        %v5444 = vpack.c.b16 %v5084, %v5082
        %v5445 = vpack.c.b16 %v5085, %v5083
        %v5446 = vpack.c.b16 %v5088, %v5086
        %v5447 = vpack.c.b16 %v5089, %v5087
        %v5448 = vpack.c.b16 %v5092, %v5090
        %v5449 = vpack.c.b16 %v5093, %v5091
        %v5450 = vpack.c.b16 %v5096, %v5094
        %v5451 = vpack.c.b16 %v5097, %v5095
        %v5452 = vpack.c.b16 %v5100, %v5098
        %v5453 = vpack.c.b16 %v5101, %v5099
        %v5454 = vpack.c.b16 %v5104, %v5102
        %v5455 = vpack.c.b16 %v5105, %v5103
        %v5456 = vpack.c.b16 %v5108, %v5106
        %v5457 = vpack.c.b16 %v5109, %v5107
        %v5458 = vpack.c.b16 %v5112, %v5110
        %v5459 = vpack.c.b16 %v5113, %v5111
        %v5460 = vpack.c.b16 %v5116, %v5114
        %v5461 = vpack.c.b16 %v5117, %v5115
        %v5462 = vpack.c.b16 %v5120, %v5118
        %v5463 = vpack.c.b16 %v5121, %v5119
        %v5464 = vpack.c.b16 %v5124, %v5122
        %v5465 = vpack.c.b16 %v5125, %v5123
        %v5466 = vpack.c.b16 %v5128, %v5126
        %v5467 = vpack.c.b16 %v5129, %v5127
        %v5468 = vpack.c.b16 %v5132, %v5130
        %v5469 = vpack.c.b16 %v5133, %v5131
        %v5470 = vpack.c.b16 %v5136, %v5134
        %v5471 = vpack.c.b16 %v5137, %v5135
        %v5472 = vpack.c.b16 %v5140, %v5138
        %v5473 = vpack.c.b16 %v5141, %v5139
        %v5474 = vpack.c.b16 %v5144, %v5142
        %v5475 = vpack.c.b16 %v5145, %v5143
        %v5476 = vpack.c.b16 %v5148, %v5146
        %v5477 = vpack.c.b16 %v5149, %v5147
        %v5478 = vpack.c.b16 %v5152, %v5150
        %v5479 = vpack.c.b16 %v5153, %v5151
        %v5480 = vpack.c.b16 %v5156, %v5154
        %v5481 = vpack.c.b16 %v5157, %v5155
        %v5482 = vpack.c.b16 %v5160, %v5158
        %v5483 = vpack.c.b16 %v5161, %v5159
        %v5484 = vpack.c.b16 %v5164, %v5162
        %v5485 = vpack.c.b16 %v5165, %v5163
        %v5486 = vpack.c.b16 %v5168, %v5166
        %v5487 = vpack.c.b16 %v5169, %v5167
        %v5488 = vpack.c.b16 %v5172, %v5170
        %v5489 = vpack.c.b16 %v5173, %v5171
        %v5490 = vpack.c.b16 %v5176, %v5174
        %v5491 = vpack.c.b16 %v5177, %v5175
        %v5492 = vpack.c.b16 %v5180, %v5178
        %v5493 = vpack.c.b16 %v5181, %v5179
        %v5494 = vpack.c.b16 %v5184, %v5182
        %v5495 = vpack.c.b16 %v5185, %v5183
        %v5496 = vpack.c.b16 %v5188, %v5186
        %v5497 = vpack.c.b16 %v5189, %v5187
        %v5498 = vpack.c.b16 %v5192, %v5190
        %v5499 = vpack.c.b16 %v5193, %v5191
        %v5500 = vpack.c.b16 %v5196, %v5194
        %v5501 = vpack.c.b16 %v5197, %v5195
        %v5502 = vpack.c.b16 %v5200, %v5198
        %v5503 = vpack.c.b16 %v5201, %v5199
        %v5504 = vpack.c.b16 %v5204, %v5202
        %v5505 = vpack.c.b16 %v5205, %v5203
        %v5506 = vpack.c.b16 %v5208, %v5206
        %v5507 = vpack.c.b16 %v5209, %v5207
        %v5508 = vpack.c.b16 %v5212, %v5210
        %v5509 = vpack.c.b16 %v5213, %v5211
        %v5510 = vpack.c.b16 %v5216, %v5214
        %v5511 = vpack.c.b16 %v5217, %v5215
        %v5512 = vpack.c.b16 %v5220, %v5218
        %v5513 = vpack.c.b16 %v5221, %v5219
        %v5514 = vpack.c.b16 %v5224, %v5222
        %v5515 = vpack.c.b16 %v5225, %v5223
        %v5516 = vpack.c.b16 %v5228, %v5226
        %v5517 = vpack.c.b16 %v5229, %v5227
        %v5518 = vpack.c.b16 %v5232, %v5230
        %v5519 = vpack.c.b16 %v5233, %v5231
        %v5520 = vpack.c.b16 %v5236, %v5234
        %v5521 = vpack.c.b16 %v5237, %v5235
        %v5522 = vpack.c.b16 %v5240, %v5238
        %v5523 = vpack.c.b16 %v5241, %v5239
        %v5524 = vpack.c.b16 %v5244, %v5242
        %v5525 = vpack.c.b16 %v5245, %v5243
        %v5526 = vpack.c.b16 %v5248, %v5246
        %v5527 = vpack.c.b16 %v5249, %v5247
        %v5528 = vpack.c.b16 %v5252, %v5250
        %v5529 = vpack.c.b16 %v5253, %v5251
        %v5530 = vpack.c.b16 %v5256, %v5254
        %v5531 = vpack.c.b16 %v5257, %v5255
        %v5532 = vpack.c.b16 %v5260, %v5258
        %v5533 = vpack.c.b16 %v5261, %v5259
        %v5534 = vpack.c.b16 %v5264, %v5262
        %v5535 = vpack.c.b16 %v5265, %v5263
        %v5536 = vpack.c.b16 %v5268, %v5266
        %v5537 = vpack.c.b16 %v5269, %v5267
        %v5538 = vpack.c.b16 %v5272, %v5270
        %v5539 = vpack.c.b16 %v5273, %v5271
        %v5540 = vpack.c.b16 %v5276, %v5274
        %v5541 = vpack.c.b16 %v5277, %v5275
        %v5542 = vpack.c.b16 %v5280, %v5278
        %v5543 = vpack.c.b16 %v5281, %v5279
        %v5544 = vpack.c.b16 %v5284, %v5282
        %v5545 = vpack.c.b16 %v5285, %v5283
        %v5546 = vpack.c.b16 %v5288, %v5286
        %v5547 = vpack.c.b16 %v5289, %v5287
        %v5548 = vpack.c.b16 %v5292, %v5290
        %v5549 = vpack.c.b16 %v5293, %v5291
        %5806 = vmatpush.bf16.msra.mxu0 %v5308
        %5807 = vmatpush.bf16.msra.mxu0 %v5306
        %5808 = vmatpush.bf16.msra.mxu0 %v5304
        %5809 = vmatpush.bf16.msra.mxu0 %v5302
        %5810 = vmatpush.bf16.msra.mxu0 %v5300
        %5811 = vmatpush.bf16.msra.mxu0 %v5298
        %5812 = vmatpush.bf16.msra.mxu0 %v5296
        %5813 = vmatpush.bf16.msra.mxu0 %v5294
        %5814 = vmatmul.bf16.gmra.mxu0 %v4504
        %v5815 = vpop.f32.mrf.mxu0
        %v5816 = vadd.f32 %v4522, %v5815
        %v5817 = vpop.f32.mrf.mxu0
        %5818 = vdwg.mxu0
        %5819 = vmatpush.bf16.msra.mxu0 %v5324
        %5820 = vmatpush.bf16.msra.mxu0 %v5322
        %5821 = vmatpush.bf16.msra.mxu0 %v5320
        %5822 = vmatpush.bf16.msra.mxu0 %v5318
        %5823 = vmatpush.bf16.msra.mxu0 %v5316
        %5824 = vmatpush.bf16.msra.mxu0 %v5314
        %5825 = vmatpush.bf16.msra.mxu0 %v5312
        %5826 = vmatpush.bf16.msra.mxu0 %v5310
        %5827 = vmatmul.bf16.gmra.mxu0 %v4505
        %v5828 = vpop.f32.mrf.mxu0
        %v5829 = vadd.f32 %v5816, %v5828
        %v5830 = vpop.f32.mrf.mxu0
        %5831 = vdwg.mxu0
        %5832 = vmatpush.bf16.msra.mxu0 %v5340
        %5833 = vmatpush.bf16.msra.mxu0 %v5338
        %5834 = vmatpush.bf16.msra.mxu0 %v5336
        %5835 = vmatpush.bf16.msra.mxu0 %v5334
        %5836 = vmatpush.bf16.msra.mxu0 %v5332
        %5837 = vmatpush.bf16.msra.mxu0 %v5330
        %5838 = vmatpush.bf16.msra.mxu0 %v5328
        %5839 = vmatpush.bf16.msra.mxu0 %v5326
        %5840 = vmatmul.bf16.gmra.mxu0 %v4506
        %v5841 = vpop.f32.mrf.mxu0
        %v5842 = vadd.f32 %v5829, %v5841
        %v5843 = vpop.f32.mrf.mxu0
        %5844 = vdwg.mxu0
        %5845 = vmatpush.bf16.msra.mxu0 %v5356
        %5846 = vmatpush.bf16.msra.mxu0 %v5354
        %5847 = vmatpush.bf16.msra.mxu0 %v5352
        %5848 = vmatpush.bf16.msra.mxu0 %v5350
        %5849 = vmatpush.bf16.msra.mxu0 %v5348
        %5850 = vmatpush.bf16.msra.mxu0 %v5346
        %5851 = vmatpush.bf16.msra.mxu0 %v5344
        %5852 = vmatpush.bf16.msra.mxu0 %v5342
        %5853 = vmatmul.bf16.gmra.mxu0 %v4507
        %v5854 = vpop.f32.mrf.mxu0
        %v5855 = vadd.f32 %v5842, %v5854
        %v5856 = vpop.f32.mrf.mxu0
        %5857 = vdwg.mxu0
        %5858 = vmatpush.bf16.msra.mxu0 %v5372
        %5859 = vmatpush.bf16.msra.mxu0 %v5370
        %5860 = vmatpush.bf16.msra.mxu0 %v5368
        %5861 = vmatpush.bf16.msra.mxu0 %v5366
        %5862 = vmatpush.bf16.msra.mxu0 %v5364
        %5863 = vmatpush.bf16.msra.mxu0 %v5362
        %5864 = vmatpush.bf16.msra.mxu0 %v5360
        %5865 = vmatpush.bf16.msra.mxu0 %v5358
        %5866 = vmatmul.bf16.gmra.mxu0 %v4508
        %v5867 = vpop.f32.mrf.mxu0
        %v5868 = vadd.f32 %v5855, %v5867
        %v5869 = vpop.f32.mrf.mxu0
        %5870 = vdwg.mxu0
        %5871 = vmatpush.bf16.msra.mxu0 %v5388
        %5872 = vmatpush.bf16.msra.mxu0 %v5386
        %5873 = vmatpush.bf16.msra.mxu0 %v5384
        %5874 = vmatpush.bf16.msra.mxu0 %v5382
        %5875 = vmatpush.bf16.msra.mxu0 %v5380
        %5876 = vmatpush.bf16.msra.mxu0 %v5378
        %5877 = vmatpush.bf16.msra.mxu0 %v5376
        %5878 = vmatpush.bf16.msra.mxu0 %v5374
        %5879 = vmatmul.bf16.gmra.mxu0 %v4509
        %v5880 = vpop.f32.mrf.mxu0
        %v5881 = vadd.f32 %v5868, %v5880
        %v5882 = vpop.f32.mrf.mxu0
        %5883 = vdwg.mxu0
        %5884 = vmatpush.bf16.msra.mxu0 %v5404
        %5885 = vmatpush.bf16.msra.mxu0 %v5402
        %5886 = vmatpush.bf16.msra.mxu0 %v5400
        %5887 = vmatpush.bf16.msra.mxu0 %v5398
        %5888 = vmatpush.bf16.msra.mxu0 %v5396
        %5889 = vmatpush.bf16.msra.mxu0 %v5394
        %5890 = vmatpush.bf16.msra.mxu0 %v5392
        %5891 = vmatpush.bf16.msra.mxu0 %v5390
        %5892 = vmatmul.bf16.gmra.mxu0 %v4510
        %v5893 = vpop.f32.mrf.mxu0
        %v5894 = vadd.f32 %v5881, %v5893
        %v5895 = vpop.f32.mrf.mxu0
        %5896 = vdwg.mxu0
        %5897 = vmatpush.bf16.msra.mxu0 %v5420
        %5898 = vmatpush.bf16.msra.mxu0 %v5418
        %5899 = vmatpush.bf16.msra.mxu0 %v5416
        %5900 = vmatpush.bf16.msra.mxu0 %v5414
        %5901 = vmatpush.bf16.msra.mxu0 %v5412
        %5902 = vmatpush.bf16.msra.mxu0 %v5410
        %5903 = vmatpush.bf16.msra.mxu0 %v5408
        %5904 = vmatpush.bf16.msra.mxu0 %v5406
        %5905 = vmatmul.bf16.gmra.mxu0 %v4511
        %v5906 = vpop.f32.mrf.mxu0
        %v5907 = vadd.f32 %v5894, %v5906
        %v5908 = vpop.f32.mrf.mxu0
        %5909 = vdwg.mxu0
        %5910 = vmatpush.bf16.msra.mxu0 %v5436
        %5911 = vmatpush.bf16.msra.mxu0 %v5434
        %5912 = vmatpush.bf16.msra.mxu0 %v5432
        %5913 = vmatpush.bf16.msra.mxu0 %v5430
        %5914 = vmatpush.bf16.msra.mxu0 %v5428
        %5915 = vmatpush.bf16.msra.mxu0 %v5426
        %5916 = vmatpush.bf16.msra.mxu0 %v5424
        %5917 = vmatpush.bf16.msra.mxu0 %v5422
        %5918 = vmatmul.bf16.gmra.mxu0 %v4512
        %v5919 = vpop.f32.mrf.mxu0
        %v5920 = vadd.f32 %v5907, %v5919
        %v5921 = vpop.f32.mrf.mxu0
        %5922 = vdwg.mxu0
        %5923 = vmatpush.bf16.msra.mxu0 %v5452
        %5924 = vmatpush.bf16.msra.mxu0 %v5450
        %5925 = vmatpush.bf16.msra.mxu0 %v5448
        %5926 = vmatpush.bf16.msra.mxu0 %v5446
        %5927 = vmatpush.bf16.msra.mxu0 %v5444
        %5928 = vmatpush.bf16.msra.mxu0 %v5442
        %5929 = vmatpush.bf16.msra.mxu0 %v5440
        %5930 = vmatpush.bf16.msra.mxu0 %v5438
        %5931 = vmatmul.bf16.gmra.mxu0 %v4513
        %v5932 = vpop.f32.mrf.mxu0
        %v5933 = vadd.f32 %v5920, %v5932
        %v5934 = vpop.f32.mrf.mxu0
        %5935 = vdwg.mxu0
        %5936 = vmatpush.bf16.msra.mxu0 %v5468
        %5937 = vmatpush.bf16.msra.mxu0 %v5466
        %5938 = vmatpush.bf16.msra.mxu0 %v5464
        %5939 = vmatpush.bf16.msra.mxu0 %v5462
        %5940 = vmatpush.bf16.msra.mxu0 %v5460
        %5941 = vmatpush.bf16.msra.mxu0 %v5458
        %5942 = vmatpush.bf16.msra.mxu0 %v5456
        %5943 = vmatpush.bf16.msra.mxu0 %v5454
        %5944 = vmatmul.bf16.gmra.mxu0 %v4514
        %v5945 = vpop.f32.mrf.mxu0
        %v5946 = vadd.f32 %v5933, %v5945
        %v5947 = vpop.f32.mrf.mxu0
        %5948 = vdwg.mxu0
        %5949 = vmatpush.bf16.msra.mxu0 %v5484
        %5950 = vmatpush.bf16.msra.mxu0 %v5482
        %5951 = vmatpush.bf16.msra.mxu0 %v5480
        %5952 = vmatpush.bf16.msra.mxu0 %v5478
        %5953 = vmatpush.bf16.msra.mxu0 %v5476
        %5954 = vmatpush.bf16.msra.mxu0 %v5474
        %5955 = vmatpush.bf16.msra.mxu0 %v5472
        %5956 = vmatpush.bf16.msra.mxu0 %v5470
        %5957 = vmatmul.bf16.gmra.mxu0 %v4515
        %v5958 = vpop.f32.mrf.mxu0
        %v5959 = vadd.f32 %v5946, %v5958
        %v5960 = vpop.f32.mrf.mxu0
        %5961 = vdwg.mxu0
        %5962 = vmatpush.bf16.msra.mxu0 %v5500
        %5963 = vmatpush.bf16.msra.mxu0 %v5498
        %5964 = vmatpush.bf16.msra.mxu0 %v5496
        %5965 = vmatpush.bf16.msra.mxu0 %v5494
        %5966 = vmatpush.bf16.msra.mxu0 %v5492
        %5967 = vmatpush.bf16.msra.mxu0 %v5490
        %5968 = vmatpush.bf16.msra.mxu0 %v5488
        %5969 = vmatpush.bf16.msra.mxu0 %v5486
        %5970 = vmatmul.bf16.gmra.mxu0 %v4516
        %v5971 = vpop.f32.mrf.mxu0
        %v5972 = vadd.f32 %v5959, %v5971
        %v5973 = vpop.f32.mrf.mxu0
        %5974 = vdwg.mxu0
        %5975 = vmatpush.bf16.msra.mxu0 %v5516
        %5976 = vmatpush.bf16.msra.mxu0 %v5514
        %5977 = vmatpush.bf16.msra.mxu0 %v5512
        %5978 = vmatpush.bf16.msra.mxu0 %v5510
        %5979 = vmatpush.bf16.msra.mxu0 %v5508
        %5980 = vmatpush.bf16.msra.mxu0 %v5506
        %5981 = vmatpush.bf16.msra.mxu0 %v5504
        %5982 = vmatpush.bf16.msra.mxu0 %v5502
        %5983 = vmatmul.bf16.gmra.mxu0 %v4517
        %v5984 = vpop.f32.mrf.mxu0
        %v5985 = vadd.f32 %v5972, %v5984
        %v5986 = vpop.f32.mrf.mxu0
        %5987 = vdwg.mxu0
        %5988 = vmatpush.bf16.msra.mxu0 %v5532
        %5989 = vmatpush.bf16.msra.mxu0 %v5530
        %5990 = vmatpush.bf16.msra.mxu0 %v5528
        %5991 = vmatpush.bf16.msra.mxu0 %v5526
        %5992 = vmatpush.bf16.msra.mxu0 %v5524
        %5993 = vmatpush.bf16.msra.mxu0 %v5522
        %5994 = vmatpush.bf16.msra.mxu0 %v5520
        %5995 = vmatpush.bf16.msra.mxu0 %v5518
        %5996 = vmatmul.bf16.gmra.mxu0 %v4518
        %v5997 = vpop.f32.mrf.mxu0
        %v5998 = vadd.f32 %v5985, %v5997
        %v5999 = vpop.f32.mrf.mxu0
        %6000 = vdwg.mxu0
        %6001 = vmatpush.bf16.msra.mxu0 %v5548
        %6002 = vmatpush.bf16.msra.mxu0 %v5546
        %6003 = vmatpush.bf16.msra.mxu0 %v5544
        %6004 = vmatpush.bf16.msra.mxu0 %v5542
        %6005 = vmatpush.bf16.msra.mxu0 %v5540
        %6006 = vmatpush.bf16.msra.mxu0 %v5538
        %6007 = vmatpush.bf16.msra.mxu0 %v5536
        %6008 = vmatpush.bf16.msra.mxu0 %v5534
        %6009 = vmatmul.bf16.gmra.mxu0 %v4519
        %v6010 = vpop.f32.mrf.mxu0
        %v6011 = vadd.f32 %v5998, %v6010
        %v6012 = vpop.f32.mrf.mxu0
        %6013 = vdwg.mxu0
        %6014 = vmatpush.bf16.msra.mxu0 %v5309
        %6015 = vmatpush.bf16.msra.mxu0 %v5307
        %6016 = vmatpush.bf16.msra.mxu0 %v5305
        %6017 = vmatpush.bf16.msra.mxu0 %v5303
        %6018 = vmatpush.bf16.msra.mxu0 %v5301
        %6019 = vmatpush.bf16.msra.mxu0 %v5299
        %6020 = vmatpush.bf16.msra.mxu0 %v5297
        %6021 = vmatpush.bf16.msra.mxu0 %v5295
        %6022 = vmatmul.bf16.gmra.mxu0 %v4504
        %v6023 = vpop.f32.mrf.mxu0
        %v6024 = vadd.f32 %v4523, %v6023
        %v6025 = vpop.f32.mrf.mxu0
        %6026 = vdwg.mxu0
        %6027 = vmatpush.bf16.msra.mxu0 %v5325
        %6028 = vmatpush.bf16.msra.mxu0 %v5323
        %6029 = vmatpush.bf16.msra.mxu0 %v5321
        %6030 = vmatpush.bf16.msra.mxu0 %v5319
        %6031 = vmatpush.bf16.msra.mxu0 %v5317
        %6032 = vmatpush.bf16.msra.mxu0 %v5315
        %6033 = vmatpush.bf16.msra.mxu0 %v5313
        %6034 = vmatpush.bf16.msra.mxu0 %v5311
        %6035 = vmatmul.bf16.gmra.mxu0 %v4505
        %v6036 = vpop.f32.mrf.mxu0
        %v6037 = vadd.f32 %v6024, %v6036
        %v6038 = vpop.f32.mrf.mxu0
        %6039 = vdwg.mxu0
        %6040 = vmatpush.bf16.msra.mxu0 %v5341
        %6041 = vmatpush.bf16.msra.mxu0 %v5339
        %6042 = vmatpush.bf16.msra.mxu0 %v5337
        %6043 = vmatpush.bf16.msra.mxu0 %v5335
        %6044 = vmatpush.bf16.msra.mxu0 %v5333
        %6045 = vmatpush.bf16.msra.mxu0 %v5331
        %6046 = vmatpush.bf16.msra.mxu0 %v5329
        %6047 = vmatpush.bf16.msra.mxu0 %v5327
        %6048 = vmatmul.bf16.gmra.mxu0 %v4506
        %v6049 = vpop.f32.mrf.mxu0
        %v6050 = vadd.f32 %v6037, %v6049
        %v6051 = vpop.f32.mrf.mxu0
        %6052 = vdwg.mxu0
        %6053 = vmatpush.bf16.msra.mxu0 %v5357
        %6054 = vmatpush.bf16.msra.mxu0 %v5355
        %6055 = vmatpush.bf16.msra.mxu0 %v5353
        %6056 = vmatpush.bf16.msra.mxu0 %v5351
        %6057 = vmatpush.bf16.msra.mxu0 %v5349
        %6058 = vmatpush.bf16.msra.mxu0 %v5347
        %6059 = vmatpush.bf16.msra.mxu0 %v5345
        %6060 = vmatpush.bf16.msra.mxu0 %v5343
        %6061 = vmatmul.bf16.gmra.mxu0 %v4507
        %v6062 = vpop.f32.mrf.mxu0
        %v6063 = vadd.f32 %v6050, %v6062
        %v6064 = vpop.f32.mrf.mxu0
        %6065 = vdwg.mxu0
        %6066 = vmatpush.bf16.msra.mxu0 %v5373
        %6067 = vmatpush.bf16.msra.mxu0 %v5371
        %6068 = vmatpush.bf16.msra.mxu0 %v5369
        %6069 = vmatpush.bf16.msra.mxu0 %v5367
        %6070 = vmatpush.bf16.msra.mxu0 %v5365
        %6071 = vmatpush.bf16.msra.mxu0 %v5363
        %6072 = vmatpush.bf16.msra.mxu0 %v5361
        %6073 = vmatpush.bf16.msra.mxu0 %v5359
        %6074 = vmatmul.bf16.gmra.mxu0 %v4508
        %v6075 = vpop.f32.mrf.mxu0
        %v6076 = vadd.f32 %v6063, %v6075
        %v6077 = vpop.f32.mrf.mxu0
        %6078 = vdwg.mxu0
        %6079 = vmatpush.bf16.msra.mxu0 %v5389
        %6080 = vmatpush.bf16.msra.mxu0 %v5387
        %6081 = vmatpush.bf16.msra.mxu0 %v5385
        %6082 = vmatpush.bf16.msra.mxu0 %v5383
        %6083 = vmatpush.bf16.msra.mxu0 %v5381
        %6084 = vmatpush.bf16.msra.mxu0 %v5379
        %6085 = vmatpush.bf16.msra.mxu0 %v5377
        %6086 = vmatpush.bf16.msra.mxu0 %v5375
        %6087 = vmatmul.bf16.gmra.mxu0 %v4509
        %v6088 = vpop.f32.mrf.mxu0
        %v6089 = vadd.f32 %v6076, %v6088
        %v6090 = vpop.f32.mrf.mxu0
        %6091 = vdwg.mxu0
        %6092 = vmatpush.bf16.msra.mxu0 %v5405
        %6093 = vmatpush.bf16.msra.mxu0 %v5403
        %6094 = vmatpush.bf16.msra.mxu0 %v5401
        %6095 = vmatpush.bf16.msra.mxu0 %v5399
        %6096 = vmatpush.bf16.msra.mxu0 %v5397
        %6097 = vmatpush.bf16.msra.mxu0 %v5395
        %6098 = vmatpush.bf16.msra.mxu0 %v5393
        %6099 = vmatpush.bf16.msra.mxu0 %v5391
        %6100 = vmatmul.bf16.gmra.mxu0 %v4510
        %v6101 = vpop.f32.mrf.mxu0
        %v6102 = vadd.f32 %v6089, %v6101
        %v6103 = vpop.f32.mrf.mxu0
        %6104 = vdwg.mxu0
        %6105 = vmatpush.bf16.msra.mxu0 %v5421
        %6106 = vmatpush.bf16.msra.mxu0 %v5419
        %6107 = vmatpush.bf16.msra.mxu0 %v5417
        %6108 = vmatpush.bf16.msra.mxu0 %v5415
        %6109 = vmatpush.bf16.msra.mxu0 %v5413
        %6110 = vmatpush.bf16.msra.mxu0 %v5411
        %6111 = vmatpush.bf16.msra.mxu0 %v5409
        %6112 = vmatpush.bf16.msra.mxu0 %v5407
        %6113 = vmatmul.bf16.gmra.mxu0 %v4511
        %v6114 = vpop.f32.mrf.mxu0
        %v6115 = vadd.f32 %v6102, %v6114
        %v6116 = vpop.f32.mrf.mxu0
        %6117 = vdwg.mxu0
        %6118 = vmatpush.bf16.msra.mxu0 %v5437
        %6119 = vmatpush.bf16.msra.mxu0 %v5435
        %6120 = vmatpush.bf16.msra.mxu0 %v5433
        %6121 = vmatpush.bf16.msra.mxu0 %v5431
        %6122 = vmatpush.bf16.msra.mxu0 %v5429
        %6123 = vmatpush.bf16.msra.mxu0 %v5427
        %6124 = vmatpush.bf16.msra.mxu0 %v5425
        %6125 = vmatpush.bf16.msra.mxu0 %v5423
        %6126 = vmatmul.bf16.gmra.mxu0 %v4512
        %v6127 = vpop.f32.mrf.mxu0
        %v6128 = vadd.f32 %v6115, %v6127
        %v6129 = vpop.f32.mrf.mxu0
        %6130 = vdwg.mxu0
        %6131 = vmatpush.bf16.msra.mxu0 %v5453
        %6132 = vmatpush.bf16.msra.mxu0 %v5451
        %6133 = vmatpush.bf16.msra.mxu0 %v5449
        %6134 = vmatpush.bf16.msra.mxu0 %v5447
        %6135 = vmatpush.bf16.msra.mxu0 %v5445
        %6136 = vmatpush.bf16.msra.mxu0 %v5443
        %6137 = vmatpush.bf16.msra.mxu0 %v5441
        %6138 = vmatpush.bf16.msra.mxu0 %v5439
        %6139 = vmatmul.bf16.gmra.mxu0 %v4513
        %v6140 = vpop.f32.mrf.mxu0
        %v6141 = vadd.f32 %v6128, %v6140
        %v6142 = vpop.f32.mrf.mxu0
        %6143 = vdwg.mxu0
        %6144 = vmatpush.bf16.msra.mxu0 %v5469
        %6145 = vmatpush.bf16.msra.mxu0 %v5467
        %6146 = vmatpush.bf16.msra.mxu0 %v5465
        %6147 = vmatpush.bf16.msra.mxu0 %v5463
        %6148 = vmatpush.bf16.msra.mxu0 %v5461
        %6149 = vmatpush.bf16.msra.mxu0 %v5459
        %6150 = vmatpush.bf16.msra.mxu0 %v5457
        %6151 = vmatpush.bf16.msra.mxu0 %v5455
        %6152 = vmatmul.bf16.gmra.mxu0 %v4514
        %v6153 = vpop.f32.mrf.mxu0
        %v6154 = vadd.f32 %v6141, %v6153
        %v6155 = vpop.f32.mrf.mxu0
        %6156 = vdwg.mxu0
        %6157 = vmatpush.bf16.msra.mxu0 %v5485
        %6158 = vmatpush.bf16.msra.mxu0 %v5483
        %6159 = vmatpush.bf16.msra.mxu0 %v5481
        %6160 = vmatpush.bf16.msra.mxu0 %v5479
        %6161 = vmatpush.bf16.msra.mxu0 %v5477
        %6162 = vmatpush.bf16.msra.mxu0 %v5475
        %6163 = vmatpush.bf16.msra.mxu0 %v5473
        %6164 = vmatpush.bf16.msra.mxu0 %v5471
        %6165 = vmatmul.bf16.gmra.mxu0 %v4515
        %v6166 = vpop.f32.mrf.mxu0
        %v6167 = vadd.f32 %v6154, %v6166
        %v6168 = vpop.f32.mrf.mxu0
        %6169 = vdwg.mxu0
        %6170 = vmatpush.bf16.msra.mxu0 %v5501
        %6171 = vmatpush.bf16.msra.mxu0 %v5499
        %6172 = vmatpush.bf16.msra.mxu0 %v5497
        %6173 = vmatpush.bf16.msra.mxu0 %v5495
        %6174 = vmatpush.bf16.msra.mxu0 %v5493
        %6175 = vmatpush.bf16.msra.mxu0 %v5491
        %6176 = vmatpush.bf16.msra.mxu0 %v5489
        %6177 = vmatpush.bf16.msra.mxu0 %v5487
        %6178 = vmatmul.bf16.gmra.mxu0 %v4516
        %v6179 = vpop.f32.mrf.mxu0
        %v6180 = vadd.f32 %v6167, %v6179
        %v6181 = vpop.f32.mrf.mxu0
        %6182 = vdwg.mxu0
        %6183 = vmatpush.bf16.msra.mxu0 %v5517
        %6184 = vmatpush.bf16.msra.mxu0 %v5515
        %6185 = vmatpush.bf16.msra.mxu0 %v5513
        %6186 = vmatpush.bf16.msra.mxu0 %v5511
        %6187 = vmatpush.bf16.msra.mxu0 %v5509
        %6188 = vmatpush.bf16.msra.mxu0 %v5507
        %6189 = vmatpush.bf16.msra.mxu0 %v5505
        %6190 = vmatpush.bf16.msra.mxu0 %v5503
        %6191 = vmatmul.bf16.gmra.mxu0 %v4517
        %v6192 = vpop.f32.mrf.mxu0
        %v6193 = vadd.f32 %v6180, %v6192
        %v6194 = vpop.f32.mrf.mxu0
        %6195 = vdwg.mxu0
        %6196 = vmatpush.bf16.msra.mxu0 %v5533
        %6197 = vmatpush.bf16.msra.mxu0 %v5531
        %6198 = vmatpush.bf16.msra.mxu0 %v5529
        %6199 = vmatpush.bf16.msra.mxu0 %v5527
        %6200 = vmatpush.bf16.msra.mxu0 %v5525
        %6201 = vmatpush.bf16.msra.mxu0 %v5523
        %6202 = vmatpush.bf16.msra.mxu0 %v5521
        %6203 = vmatpush.bf16.msra.mxu0 %v5519
        %6204 = vmatmul.bf16.gmra.mxu0 %v4518
        %v6205 = vpop.f32.mrf.mxu0
        %v6206 = vadd.f32 %v6193, %v6205
        %v6207 = vpop.f32.mrf.mxu0
        %6208 = vdwg.mxu0
        %6209 = vmatpush.bf16.msra.mxu0 %v5549
        %6210 = vmatpush.bf16.msra.mxu0 %v5547
        %6211 = vmatpush.bf16.msra.mxu0 %v5545
        %6212 = vmatpush.bf16.msra.mxu0 %v5543
        %6213 = vmatpush.bf16.msra.mxu0 %v5541
        %6214 = vmatpush.bf16.msra.mxu0 %v5539
        %6215 = vmatpush.bf16.msra.mxu0 %v5537
        %6216 = vmatpush.bf16.msra.mxu0 %v5535
        %6217 = vmatmul.bf16.gmra.mxu0 %v4519
        %v6218 = vpop.f32.mrf.mxu0
        %v6219 = vadd.f32 %v6206, %v6218
        %v6220 = vpop.f32.mrf.mxu0
        %6221 = vdwg.mxu0
        %v6222 = vadd.f32 %v2240, %v6011
        %v6223 = vadd.f32 %v2241, %v6219
        %v6224 = vld [vmem:[#allocation22] sm:$0x3]
        %v6225 = vld [vmem:[#allocation24] sm:$0x3]
        %v6226 = vadd.f32 %v6222, %v6223
        %6227 = vadd.xlane.f32.xlu0 %v6226
        %v6228 = vpop.xlane.xlu0 %6227
        %v6229 = vmul.f32 %v6228, %v2205
        %v6230 = vsub.f32 %v6222, %v6229
        %v6231 = vsub.f32 %v6223, %v6229
        %v6232 = vmul.f32 %v6230, %v6230
        %v6233 = vmul.f32 %v6231, %v6231
        %v6234 = vadd.f32 %v6232, %v6233
        %6235 = vadd.xlane.f32.xlu0 %v6234
        %v6236 = vpop.xlane.xlu0 %6235
        %v6237 = vmul.f32 %v6236, %v2205
        %v6238 = vadd.f32 %v6237, 1e-05
        %v6239 = vrsqrt.pop %v6238
        %v6240 = vmul.f32 %v6239, %v6238
        %v6241 = vmul.f32 %v6240, %v6239
        %v6242 = vmul.f32 0.5, %v6241
        %v6243 = vsub.f32 1.5, %v6242
        %v6244 = vmul.f32 %v6239, %v6243
        %vm6245 = vweird.f32 %v6238
        %vm6246 = vweird.f32 %v6239
        %vm6247 = vmor %vm6245, %vm6246
        %v6248 = vsel %vm6247, %v6239, %v6244
        %v6249 = vmul.f32 %v6230, %v6248
        %v6250 = vmul.f32 %v6231, %v6248
        %v6252 = vperm.slane %v6224, 0
        %v6253 = vperm.slane %v6224, 1
        %v6256 = vmul.f32 %v6249, %v6252
        %v6257 = vmul.f32 %v6250, %v6253
        %v6259 = vperm.slane %v6225, 0
        %v6260 = vperm.slane %v6225, 1
        %v6263 = vadd.f32 %v6256, %v6259
        %v6264 = vadd.f32 %v6257, %v6260
        %s6265 = scalar_lea.vmem [#allocation7], 768
        %v6266 = vld [vmem:[%s6265] sm:$0xff]
        %v6267 = vld [vmem:[%s6265 + $0x8] sm:$0xff]
        %v6268 = vld [vmem:[%s6265 + $0x10] sm:$0xff]
        %v6269 = vld [vmem:[%s6265 + $0x18] sm:$0xff]
        %v6270 = vld [vmem:[%s6265 + $0x20] sm:$0xff]
        %v6271 = vld [vmem:[%s6265 + $0x28] sm:$0xff]
        %v6272 = vld [vmem:[%s6265 + $0x30] sm:$0xff]
        %v6273 = vld [vmem:[%s6265 + $0x38] sm:$0xff]
        %v6274 = vld [vmem:[%s6265 + $0x40] sm:$0xff]
        %v6275 = vld [vmem:[%s6265 + $0x48] sm:$0xff]
        %v6276 = vld [vmem:[%s6265 + $0x50] sm:$0xff]
        %v6277 = vld [vmem:[%s6265 + $0x58] sm:$0xff]
        %v6278 = vld [vmem:[%s6265 + $0x60] sm:$0xff]
        %v6279 = vld [vmem:[%s6265 + $0x68] sm:$0xff]
        %v6280 = vld [vmem:[%s6265 + $0x70] sm:$0xff]
        %v6281 = vld [vmem:[%s6265 + $0x78] sm:$0xff]
        %v6282 = vld [vmem:[%s6265 + $0x80] sm:$0xff]
        %v6283 = vld [vmem:[%s6265 + $0x88] sm:$0xff]
        %v6284 = vld [vmem:[%s6265 + $0x90] sm:$0xff]
        %v6285 = vld [vmem:[%s6265 + $0x98] sm:$0xff]
        %v6286 = vld [vmem:[%s6265 + $0xa0] sm:$0xff]
        %v6287 = vld [vmem:[%s6265 + $0xa8] sm:$0xff]
        %v6288 = vld [vmem:[%s6265 + $0xb0] sm:$0xff]
        %v6289 = vld [vmem:[%s6265 + $0xb8] sm:$0xff]
        %v6290 = vld [vmem:[%s6265 + $0xc0] sm:$0xff]
        %v6291 = vld [vmem:[%s6265 + $0xc8] sm:$0xff]
        %v6292 = vld [vmem:[%s6265 + $0xd0] sm:$0xff]
        %v6293 = vld [vmem:[%s6265 + $0xd8] sm:$0xff]
        %v6294 = vld [vmem:[%s6265 + $0xe0] sm:$0xff]
        %v6295 = vld [vmem:[%s6265 + $0xe8] sm:$0xff]
        %v6296 = vld [vmem:[%s6265 + $0xf0] sm:$0xff]
        %v6297 = vld [vmem:[%s6265 + $0xf8] sm:$0xff]
        %v6298 = vld [vmem:[%s6265 + $0x100] sm:$0xff]
        %v6299 = vld [vmem:[%s6265 + $0x108] sm:$0xff]
        %v6300 = vld [vmem:[%s6265 + $0x110] sm:$0xff]
        %v6301 = vld [vmem:[%s6265 + $0x118] sm:$0xff]
        %v6302 = vld [vmem:[%s6265 + $0x120] sm:$0xff]
        %v6303 = vld [vmem:[%s6265 + $0x128] sm:$0xff]
        %v6304 = vld [vmem:[%s6265 + $0x130] sm:$0xff]
        %v6305 = vld [vmem:[%s6265 + $0x138] sm:$0xff]
        %v6306 = vld [vmem:[%s6265 + $0x140] sm:$0xff]
        %v6307 = vld [vmem:[%s6265 + $0x148] sm:$0xff]
        %v6308 = vld [vmem:[%s6265 + $0x150] sm:$0xff]
        %v6309 = vld [vmem:[%s6265 + $0x158] sm:$0xff]
        %v6310 = vld [vmem:[%s6265 + $0x160] sm:$0xff]
        %v6311 = vld [vmem:[%s6265 + $0x168] sm:$0xff]
        %v6312 = vld [vmem:[%s6265 + $0x170] sm:$0xff]
        %v6313 = vld [vmem:[%s6265 + $0x178] sm:$0xff]
        %v6314 = vld [vmem:[%s6265 + $0x180] sm:$0xff]
        %v6315 = vld [vmem:[%s6265 + $0x188] sm:$0xff]
        %v6316 = vld [vmem:[%s6265 + $0x190] sm:$0xff]
        %v6317 = vld [vmem:[%s6265 + $0x198] sm:$0xff]
        %v6318 = vld [vmem:[%s6265 + $0x1a0] sm:$0xff]
        %v6319 = vld [vmem:[%s6265 + $0x1a8] sm:$0xff]
        %v6320 = vld [vmem:[%s6265 + $0x1b0] sm:$0xff]
        %v6321 = vld [vmem:[%s6265 + $0x1b8] sm:$0xff]
        %v6322 = vld [vmem:[%s6265 + $0x1c0] sm:$0xff]
        %v6323 = vld [vmem:[%s6265 + $0x1c8] sm:$0xff]
        %v6324 = vld [vmem:[%s6265 + $0x1d0] sm:$0xff]
        %v6325 = vld [vmem:[%s6265 + $0x1d8] sm:$0xff]
        %v6326 = vld [vmem:[%s6265 + $0x1e0] sm:$0xff]
        %v6327 = vld [vmem:[%s6265 + $0x1e8] sm:$0xff]
        %v6328 = vld [vmem:[%s6265 + $0x1f0] sm:$0xff]
        %v6329 = vld [vmem:[%s6265 + $0x1f8] sm:$0xff]
        %v6330 = vld [vmem:[%s6265 + $0x200] sm:$0xff]
        %v6331 = vld [vmem:[%s6265 + $0x208] sm:$0xff]
        %v6332 = vld [vmem:[%s6265 + $0x210] sm:$0xff]
        %v6333 = vld [vmem:[%s6265 + $0x218] sm:$0xff]
        %v6334 = vld [vmem:[%s6265 + $0x220] sm:$0xff]
        %v6335 = vld [vmem:[%s6265 + $0x228] sm:$0xff]
        %v6336 = vld [vmem:[%s6265 + $0x230] sm:$0xff]
        %v6337 = vld [vmem:[%s6265 + $0x238] sm:$0xff]
        %v6338 = vld [vmem:[%s6265 + $0x240] sm:$0xff]
        %v6339 = vld [vmem:[%s6265 + $0x248] sm:$0xff]
        %v6340 = vld [vmem:[%s6265 + $0x250] sm:$0xff]
        %v6341 = vld [vmem:[%s6265 + $0x258] sm:$0xff]
        %v6342 = vld [vmem:[%s6265 + $0x260] sm:$0xff]
        %v6343 = vld [vmem:[%s6265 + $0x268] sm:$0xff]
        %v6344 = vld [vmem:[%s6265 + $0x270] sm:$0xff]
        %v6345 = vld [vmem:[%s6265 + $0x278] sm:$0xff]
        %v6346 = vld [vmem:[%s6265 + $0x280] sm:$0xff]
        %v6347 = vld [vmem:[%s6265 + $0x288] sm:$0xff]
        %v6348 = vld [vmem:[%s6265 + $0x290] sm:$0xff]
        %v6349 = vld [vmem:[%s6265 + $0x298] sm:$0xff]
        %v6350 = vld [vmem:[%s6265 + $0x2a0] sm:$0xff]
        %v6351 = vld [vmem:[%s6265 + $0x2a8] sm:$0xff]
        %v6352 = vld [vmem:[%s6265 + $0x2b0] sm:$0xff]
        %v6353 = vld [vmem:[%s6265 + $0x2b8] sm:$0xff]
        %v6354 = vld [vmem:[%s6265 + $0x2c0] sm:$0xff]
        %v6355 = vld [vmem:[%s6265 + $0x2c8] sm:$0xff]
        %v6356 = vld [vmem:[%s6265 + $0x2d0] sm:$0xff]
        %v6357 = vld [vmem:[%s6265 + $0x2d8] sm:$0xff]
        %v6358 = vld [vmem:[%s6265 + $0x2e0] sm:$0xff]
        %v6359 = vld [vmem:[%s6265 + $0x2e8] sm:$0xff]
        %v6360 = vld [vmem:[%s6265 + $0x2f0] sm:$0xff]
        %v6361 = vld [vmem:[%s6265 + $0x2f8] sm:$0xff]
        %v6362 = vpack.c.bf16 %v6263, %v6263
        %v6363 = vpack.c.bf16 %v6264, %v6264
        %s6364 = scalar_lea.vmem [#allocation9], 6
        %v6365 = vld [vmem:[%s6364] sm:$0x3f]
        %v6367 = vperm.slane %v6365, 0
        %v6368 = vperm.slane %v6365, 1
        %v6369 = vperm.slane %v6365, 2
        %v6370 = vperm.slane %v6365, 3
        %v6371 = vperm.slane %v6365, 4
        %v6372 = vperm.slane %v6365, 5
        %v6475 = vunpack.c.l.b16 %v6266
        %v6476 = vunpack.c.h.b16 %v6266
        %v6477 = vunpack.c.l.b16 %v6267
        %v6478 = vunpack.c.h.b16 %v6267
        %v6479 = vunpack.c.l.b16 %v6268
        %v6480 = vunpack.c.h.b16 %v6268
        %v6481 = vunpack.c.l.b16 %v6269
        %v6482 = vunpack.c.h.b16 %v6269
        %v6483 = vunpack.c.l.b16 %v6270
        %v6484 = vunpack.c.h.b16 %v6270
        %v6485 = vunpack.c.l.b16 %v6271
        %v6486 = vunpack.c.h.b16 %v6271
        %v6487 = vunpack.c.l.b16 %v6272
        %v6488 = vunpack.c.h.b16 %v6272
        %v6489 = vunpack.c.l.b16 %v6273
        %v6490 = vunpack.c.h.b16 %v6273
        %v6491 = vunpack.c.l.b16 %v6274
        %v6492 = vunpack.c.h.b16 %v6274
        %v6493 = vunpack.c.l.b16 %v6275
        %v6494 = vunpack.c.h.b16 %v6275
        %v6495 = vunpack.c.l.b16 %v6276
        %v6496 = vunpack.c.h.b16 %v6276
        %v6497 = vunpack.c.l.b16 %v6277
        %v6498 = vunpack.c.h.b16 %v6277
        %v6499 = vunpack.c.l.b16 %v6278
        %v6500 = vunpack.c.h.b16 %v6278
        %v6501 = vunpack.c.l.b16 %v6279
        %v6502 = vunpack.c.h.b16 %v6279
        %v6503 = vunpack.c.l.b16 %v6280
        %v6504 = vunpack.c.h.b16 %v6280
        %v6505 = vunpack.c.l.b16 %v6281
        %v6506 = vunpack.c.h.b16 %v6281
        %v6507 = vunpack.c.l.b16 %v6282
        %v6508 = vunpack.c.h.b16 %v6282
        %v6509 = vunpack.c.l.b16 %v6283
        %v6510 = vunpack.c.h.b16 %v6283
        %v6511 = vunpack.c.l.b16 %v6284
        %v6512 = vunpack.c.h.b16 %v6284
        %v6513 = vunpack.c.l.b16 %v6285
        %v6514 = vunpack.c.h.b16 %v6285
        %v6515 = vunpack.c.l.b16 %v6286
        %v6516 = vunpack.c.h.b16 %v6286
        %v6517 = vunpack.c.l.b16 %v6287
        %v6518 = vunpack.c.h.b16 %v6287
        %v6519 = vunpack.c.l.b16 %v6288
        %v6520 = vunpack.c.h.b16 %v6288
        %v6521 = vunpack.c.l.b16 %v6289
        %v6522 = vunpack.c.h.b16 %v6289
        %v6523 = vunpack.c.l.b16 %v6290
        %v6524 = vunpack.c.h.b16 %v6290
        %v6525 = vunpack.c.l.b16 %v6291
        %v6526 = vunpack.c.h.b16 %v6291
        %v6527 = vunpack.c.l.b16 %v6292
        %v6528 = vunpack.c.h.b16 %v6292
        %v6529 = vunpack.c.l.b16 %v6293
        %v6530 = vunpack.c.h.b16 %v6293
        %v6531 = vunpack.c.l.b16 %v6294
        %v6532 = vunpack.c.h.b16 %v6294
        %v6533 = vunpack.c.l.b16 %v6295
        %v6534 = vunpack.c.h.b16 %v6295
        %v6535 = vunpack.c.l.b16 %v6296
        %v6536 = vunpack.c.h.b16 %v6296
        %v6537 = vunpack.c.l.b16 %v6297
        %v6538 = vunpack.c.h.b16 %v6297
        %v6539 = vunpack.c.l.b16 %v6298
        %v6540 = vunpack.c.h.b16 %v6298
        %v6541 = vunpack.c.l.b16 %v6299
        %v6542 = vunpack.c.h.b16 %v6299
        %v6543 = vunpack.c.l.b16 %v6300
        %v6544 = vunpack.c.h.b16 %v6300
        %v6545 = vunpack.c.l.b16 %v6301
        %v6546 = vunpack.c.h.b16 %v6301
        %v6547 = vunpack.c.l.b16 %v6302
        %v6548 = vunpack.c.h.b16 %v6302
        %v6549 = vunpack.c.l.b16 %v6303
        %v6550 = vunpack.c.h.b16 %v6303
        %v6551 = vunpack.c.l.b16 %v6304
        %v6552 = vunpack.c.h.b16 %v6304
        %v6553 = vunpack.c.l.b16 %v6305
        %v6554 = vunpack.c.h.b16 %v6305
        %v6555 = vunpack.c.l.b16 %v6306
        %v6556 = vunpack.c.h.b16 %v6306
        %v6557 = vunpack.c.l.b16 %v6307
        %v6558 = vunpack.c.h.b16 %v6307
        %v6559 = vunpack.c.l.b16 %v6308
        %v6560 = vunpack.c.h.b16 %v6308
        %v6561 = vunpack.c.l.b16 %v6309
        %v6562 = vunpack.c.h.b16 %v6309
        %v6563 = vunpack.c.l.b16 %v6310
        %v6564 = vunpack.c.h.b16 %v6310
        %v6565 = vunpack.c.l.b16 %v6311
        %v6566 = vunpack.c.h.b16 %v6311
        %v6567 = vunpack.c.l.b16 %v6312
        %v6568 = vunpack.c.h.b16 %v6312
        %v6569 = vunpack.c.l.b16 %v6313
        %v6570 = vunpack.c.h.b16 %v6313
        %v6571 = vunpack.c.l.b16 %v6314
        %v6572 = vunpack.c.h.b16 %v6314
        %v6573 = vunpack.c.l.b16 %v6315
        %v6574 = vunpack.c.h.b16 %v6315
        %v6575 = vunpack.c.l.b16 %v6316
        %v6576 = vunpack.c.h.b16 %v6316
        %v6577 = vunpack.c.l.b16 %v6317
        %v6578 = vunpack.c.h.b16 %v6317
        %v6579 = vunpack.c.l.b16 %v6318
        %v6580 = vunpack.c.h.b16 %v6318
        %v6581 = vunpack.c.l.b16 %v6319
        %v6582 = vunpack.c.h.b16 %v6319
        %v6583 = vunpack.c.l.b16 %v6320
        %v6584 = vunpack.c.h.b16 %v6320
        %v6585 = vunpack.c.l.b16 %v6321
        %v6586 = vunpack.c.h.b16 %v6321
        %v6587 = vunpack.c.l.b16 %v6322
        %v6588 = vunpack.c.h.b16 %v6322
        %v6589 = vunpack.c.l.b16 %v6323
        %v6590 = vunpack.c.h.b16 %v6323
        %v6591 = vunpack.c.l.b16 %v6324
        %v6592 = vunpack.c.h.b16 %v6324
        %v6593 = vunpack.c.l.b16 %v6325
        %v6594 = vunpack.c.h.b16 %v6325
        %v6595 = vunpack.c.l.b16 %v6326
        %v6596 = vunpack.c.h.b16 %v6326
        %v6597 = vunpack.c.l.b16 %v6327
        %v6598 = vunpack.c.h.b16 %v6327
        %v6599 = vunpack.c.l.b16 %v6328
        %v6600 = vunpack.c.h.b16 %v6328
        %v6601 = vunpack.c.l.b16 %v6329
        %v6602 = vunpack.c.h.b16 %v6329
        %v6603 = vunpack.c.l.b16 %v6330
        %v6604 = vunpack.c.h.b16 %v6330
        %v6605 = vunpack.c.l.b16 %v6331
        %v6606 = vunpack.c.h.b16 %v6331
        %v6607 = vunpack.c.l.b16 %v6332
        %v6608 = vunpack.c.h.b16 %v6332
        %v6609 = vunpack.c.l.b16 %v6333
        %v6610 = vunpack.c.h.b16 %v6333
        %v6611 = vunpack.c.l.b16 %v6334
        %v6612 = vunpack.c.h.b16 %v6334
        %v6613 = vunpack.c.l.b16 %v6335
        %v6614 = vunpack.c.h.b16 %v6335
        %v6615 = vunpack.c.l.b16 %v6336
        %v6616 = vunpack.c.h.b16 %v6336
        %v6617 = vunpack.c.l.b16 %v6337
        %v6618 = vunpack.c.h.b16 %v6337
        %v6619 = vunpack.c.l.b16 %v6338
        %v6620 = vunpack.c.h.b16 %v6338
        %v6621 = vunpack.c.l.b16 %v6339
        %v6622 = vunpack.c.h.b16 %v6339
        %v6623 = vunpack.c.l.b16 %v6340
        %v6624 = vunpack.c.h.b16 %v6340
        %v6625 = vunpack.c.l.b16 %v6341
        %v6626 = vunpack.c.h.b16 %v6341
        %v6627 = vunpack.c.l.b16 %v6342
        %v6628 = vunpack.c.h.b16 %v6342
        %v6629 = vunpack.c.l.b16 %v6343
        %v6630 = vunpack.c.h.b16 %v6343
        %v6631 = vunpack.c.l.b16 %v6344
        %v6632 = vunpack.c.h.b16 %v6344
        %v6633 = vunpack.c.l.b16 %v6345
        %v6634 = vunpack.c.h.b16 %v6345
        %v6635 = vunpack.c.l.b16 %v6346
        %v6636 = vunpack.c.h.b16 %v6346
        %v6637 = vunpack.c.l.b16 %v6347
        %v6638 = vunpack.c.h.b16 %v6347
        %v6639 = vunpack.c.l.b16 %v6348
        %v6640 = vunpack.c.h.b16 %v6348
        %v6641 = vunpack.c.l.b16 %v6349
        %v6642 = vunpack.c.h.b16 %v6349
        %v6643 = vunpack.c.l.b16 %v6350
        %v6644 = vunpack.c.h.b16 %v6350
        %v6645 = vunpack.c.l.b16 %v6351
        %v6646 = vunpack.c.h.b16 %v6351
        %v6647 = vunpack.c.l.b16 %v6352
        %v6648 = vunpack.c.h.b16 %v6352
        %v6649 = vunpack.c.l.b16 %v6353
        %v6650 = vunpack.c.h.b16 %v6353
        %v6651 = vunpack.c.l.b16 %v6354
        %v6652 = vunpack.c.h.b16 %v6354
        %v6653 = vunpack.c.l.b16 %v6355
        %v6654 = vunpack.c.h.b16 %v6355
        %v6655 = vunpack.c.l.b16 %v6356
        %v6656 = vunpack.c.h.b16 %v6356
        %v6657 = vunpack.c.l.b16 %v6357
        %v6658 = vunpack.c.h.b16 %v6357
        %v6659 = vunpack.c.l.b16 %v6358
        %v6660 = vunpack.c.h.b16 %v6358
        %v6661 = vunpack.c.l.b16 %v6359
        %v6662 = vunpack.c.h.b16 %v6359
        %v6663 = vunpack.c.l.b16 %v6360
        %v6664 = vunpack.c.h.b16 %v6360
        %v6665 = vunpack.c.l.b16 %v6361
        %v6666 = vunpack.c.h.b16 %v6361
        %v6667 = vpack.c.b16 %v6481, %v6475
        %v6668 = vpack.c.b16 %v6482, %v6476
        %v6669 = vpack.c.b16 %v6483, %v6477
        %v6670 = vpack.c.b16 %v6484, %v6478
        %v6671 = vpack.c.b16 %v6485, %v6479
        %v6672 = vpack.c.b16 %v6486, %v6480
        %v6673 = vpack.c.b16 %v6493, %v6487
        %v6674 = vpack.c.b16 %v6494, %v6488
        %v6675 = vpack.c.b16 %v6495, %v6489
        %v6676 = vpack.c.b16 %v6496, %v6490
        %v6677 = vpack.c.b16 %v6497, %v6491
        %v6678 = vpack.c.b16 %v6498, %v6492
        %v6679 = vpack.c.b16 %v6505, %v6499
        %v6680 = vpack.c.b16 %v6506, %v6500
        %v6681 = vpack.c.b16 %v6507, %v6501
        %v6682 = vpack.c.b16 %v6508, %v6502
        %v6683 = vpack.c.b16 %v6509, %v6503
        %v6684 = vpack.c.b16 %v6510, %v6504
        %v6685 = vpack.c.b16 %v6517, %v6511
        %v6686 = vpack.c.b16 %v6518, %v6512
        %v6687 = vpack.c.b16 %v6519, %v6513
        %v6688 = vpack.c.b16 %v6520, %v6514
        %v6689 = vpack.c.b16 %v6521, %v6515
        %v6690 = vpack.c.b16 %v6522, %v6516
        %v6691 = vpack.c.b16 %v6529, %v6523
        %v6692 = vpack.c.b16 %v6530, %v6524
        %v6693 = vpack.c.b16 %v6531, %v6525
        %v6694 = vpack.c.b16 %v6532, %v6526
        %v6695 = vpack.c.b16 %v6533, %v6527
        %v6696 = vpack.c.b16 %v6534, %v6528
        %v6697 = vpack.c.b16 %v6541, %v6535
        %v6698 = vpack.c.b16 %v6542, %v6536
        %v6699 = vpack.c.b16 %v6543, %v6537
        %v6700 = vpack.c.b16 %v6544, %v6538
        %v6701 = vpack.c.b16 %v6545, %v6539
        %v6702 = vpack.c.b16 %v6546, %v6540
        %v6703 = vpack.c.b16 %v6553, %v6547
        %v6704 = vpack.c.b16 %v6554, %v6548
        %v6705 = vpack.c.b16 %v6555, %v6549
        %v6706 = vpack.c.b16 %v6556, %v6550
        %v6707 = vpack.c.b16 %v6557, %v6551
        %v6708 = vpack.c.b16 %v6558, %v6552
        %v6709 = vpack.c.b16 %v6565, %v6559
        %v6710 = vpack.c.b16 %v6566, %v6560
        %v6711 = vpack.c.b16 %v6567, %v6561
        %v6712 = vpack.c.b16 %v6568, %v6562
        %v6713 = vpack.c.b16 %v6569, %v6563
        %v6714 = vpack.c.b16 %v6570, %v6564
        %v6715 = vpack.c.b16 %v6577, %v6571
        %v6716 = vpack.c.b16 %v6578, %v6572
        %v6717 = vpack.c.b16 %v6579, %v6573
        %v6718 = vpack.c.b16 %v6580, %v6574
        %v6719 = vpack.c.b16 %v6581, %v6575
        %v6720 = vpack.c.b16 %v6582, %v6576
        %v6721 = vpack.c.b16 %v6589, %v6583
        %v6722 = vpack.c.b16 %v6590, %v6584
        %v6723 = vpack.c.b16 %v6591, %v6585
        %v6724 = vpack.c.b16 %v6592, %v6586
        %v6725 = vpack.c.b16 %v6593, %v6587
        %v6726 = vpack.c.b16 %v6594, %v6588
        %v6727 = vpack.c.b16 %v6601, %v6595
        %v6728 = vpack.c.b16 %v6602, %v6596
        %v6729 = vpack.c.b16 %v6603, %v6597
        %v6730 = vpack.c.b16 %v6604, %v6598
        %v6731 = vpack.c.b16 %v6605, %v6599
        %v6732 = vpack.c.b16 %v6606, %v6600
        %v6733 = vpack.c.b16 %v6613, %v6607
        %v6734 = vpack.c.b16 %v6614, %v6608
        %v6735 = vpack.c.b16 %v6615, %v6609
        %v6736 = vpack.c.b16 %v6616, %v6610
        %v6737 = vpack.c.b16 %v6617, %v6611
        %v6738 = vpack.c.b16 %v6618, %v6612
        %v6739 = vpack.c.b16 %v6625, %v6619
        %v6740 = vpack.c.b16 %v6626, %v6620
        %v6741 = vpack.c.b16 %v6627, %v6621
        %v6742 = vpack.c.b16 %v6628, %v6622
        %v6743 = vpack.c.b16 %v6629, %v6623
        %v6744 = vpack.c.b16 %v6630, %v6624
        %v6745 = vpack.c.b16 %v6637, %v6631
        %v6746 = vpack.c.b16 %v6638, %v6632
        %v6747 = vpack.c.b16 %v6639, %v6633
        %v6748 = vpack.c.b16 %v6640, %v6634
        %v6749 = vpack.c.b16 %v6641, %v6635
        %v6750 = vpack.c.b16 %v6642, %v6636
        %v6751 = vpack.c.b16 %v6649, %v6643
        %v6752 = vpack.c.b16 %v6650, %v6644
        %v6753 = vpack.c.b16 %v6651, %v6645
        %v6754 = vpack.c.b16 %v6652, %v6646
        %v6755 = vpack.c.b16 %v6653, %v6647
        %v6756 = vpack.c.b16 %v6654, %v6648
        %v6757 = vpack.c.b16 %v6661, %v6655
        %v6758 = vpack.c.b16 %v6662, %v6656
        %v6759 = vpack.c.b16 %v6663, %v6657
        %v6760 = vpack.c.b16 %v6664, %v6658
        %v6761 = vpack.c.b16 %v6665, %v6659
        %v6762 = vpack.c.b16 %v6666, %v6660
        %6859 = vmatpush.bf16.msra.mxu0 %v6709
        %6860 = vmatpush.bf16.msra.mxu0 %v6703
        %6861 = vmatpush.bf16.msra.mxu0 %v6697
        %6862 = vmatpush.bf16.msra.mxu0 %v6691
        %6863 = vmatpush.bf16.msra.mxu0 %v6685
        %6864 = vmatpush.bf16.msra.mxu0 %v6679
        %6865 = vmatpush.bf16.msra.mxu0 %v6673
        %6866 = vmatpush.bf16.msra.mxu0 %v6667
        %6867 = vmatmul.bf16.gmra.mxu0 %v6362
        %v6868 = vpop.f32.mrf.mxu0
        %v6869 = vadd.f32 %v6367, %v6868
        %v6870 = vpop.f32.mrf.mxu0
        %6871 = vdwg.mxu0
        %6872 = vmatpush.bf16.msra.mxu0 %v6757
        %6873 = vmatpush.bf16.msra.mxu0 %v6751
        %6874 = vmatpush.bf16.msra.mxu0 %v6745
        %6875 = vmatpush.bf16.msra.mxu0 %v6739
        %6876 = vmatpush.bf16.msra.mxu0 %v6733
        %6877 = vmatpush.bf16.msra.mxu0 %v6727
        %6878 = vmatpush.bf16.msra.mxu0 %v6721
        %6879 = vmatpush.bf16.msra.mxu0 %v6715
        %6880 = vmatmul.bf16.gmra.mxu0 %v6363
        %v6881 = vpop.f32.mrf.mxu0
        %v6882 = vadd.f32 %v6869, %v6881
        %v6883 = vpop.f32.mrf.mxu0
        %6884 = vdwg.mxu0
        %6885 = vmatpush.bf16.msra.mxu0 %v6710
        %6886 = vmatpush.bf16.msra.mxu0 %v6704
        %6887 = vmatpush.bf16.msra.mxu0 %v6698
        %6888 = vmatpush.bf16.msra.mxu0 %v6692
        %6889 = vmatpush.bf16.msra.mxu0 %v6686
        %6890 = vmatpush.bf16.msra.mxu0 %v6680
        %6891 = vmatpush.bf16.msra.mxu0 %v6674
        %6892 = vmatpush.bf16.msra.mxu0 %v6668
        %6893 = vmatmul.bf16.gmra.mxu0 %v6362
        %v6894 = vpop.f32.mrf.mxu0
        %v6895 = vadd.f32 %v6368, %v6894
        %v6896 = vpop.f32.mrf.mxu0
        %6897 = vdwg.mxu0
        %6898 = vmatpush.bf16.msra.mxu0 %v6758
        %6899 = vmatpush.bf16.msra.mxu0 %v6752
        %6900 = vmatpush.bf16.msra.mxu0 %v6746
        %6901 = vmatpush.bf16.msra.mxu0 %v6740
        %6902 = vmatpush.bf16.msra.mxu0 %v6734
        %6903 = vmatpush.bf16.msra.mxu0 %v6728
        %6904 = vmatpush.bf16.msra.mxu0 %v6722
        %6905 = vmatpush.bf16.msra.mxu0 %v6716
        %6906 = vmatmul.bf16.gmra.mxu0 %v6363
        %v6907 = vpop.f32.mrf.mxu0
        %v6908 = vadd.f32 %v6895, %v6907
        %v6909 = vpop.f32.mrf.mxu0
        %6910 = vdwg.mxu0
        %6911 = vmatpush.bf16.msra.mxu0 %v6711
        %6912 = vmatpush.bf16.msra.mxu0 %v6705
        %6913 = vmatpush.bf16.msra.mxu0 %v6699
        %6914 = vmatpush.bf16.msra.mxu0 %v6693
        %6915 = vmatpush.bf16.msra.mxu0 %v6687
        %6916 = vmatpush.bf16.msra.mxu0 %v6681
        %6917 = vmatpush.bf16.msra.mxu0 %v6675
        %6918 = vmatpush.bf16.msra.mxu0 %v6669
        %6919 = vmatmul.bf16.gmra.mxu0 %v6362
        %v6920 = vpop.f32.mrf.mxu0
        %v6921 = vadd.f32 %v6369, %v6920
        %v6922 = vpop.f32.mrf.mxu0
        %6923 = vdwg.mxu0
        %6924 = vmatpush.bf16.msra.mxu0 %v6759
        %6925 = vmatpush.bf16.msra.mxu0 %v6753
        %6926 = vmatpush.bf16.msra.mxu0 %v6747
        %6927 = vmatpush.bf16.msra.mxu0 %v6741
        %6928 = vmatpush.bf16.msra.mxu0 %v6735
        %6929 = vmatpush.bf16.msra.mxu0 %v6729
        %6930 = vmatpush.bf16.msra.mxu0 %v6723
        %6931 = vmatpush.bf16.msra.mxu0 %v6717
        %6932 = vmatmul.bf16.gmra.mxu0 %v6363
        %v6933 = vpop.f32.mrf.mxu0
        %v6934 = vadd.f32 %v6921, %v6933
        %v6935 = vpop.f32.mrf.mxu0
        %6936 = vdwg.mxu0
        %6937 = vmatpush.bf16.msra.mxu0 %v6712
        %6938 = vmatpush.bf16.msra.mxu0 %v6706
        %6939 = vmatpush.bf16.msra.mxu0 %v6700
        %6940 = vmatpush.bf16.msra.mxu0 %v6694
        %6941 = vmatpush.bf16.msra.mxu0 %v6688
        %6942 = vmatpush.bf16.msra.mxu0 %v6682
        %6943 = vmatpush.bf16.msra.mxu0 %v6676
        %6944 = vmatpush.bf16.msra.mxu0 %v6670
        %6945 = vmatmul.bf16.gmra.mxu0 %v6362
        %v6946 = vpop.f32.mrf.mxu0
        %v6947 = vadd.f32 %v6370, %v6946
        %v6948 = vpop.f32.mrf.mxu0
        %6949 = vdwg.mxu0
        %6950 = vmatpush.bf16.msra.mxu0 %v6760
        %6951 = vmatpush.bf16.msra.mxu0 %v6754
        %6952 = vmatpush.bf16.msra.mxu0 %v6748
        %6953 = vmatpush.bf16.msra.mxu0 %v6742
        %6954 = vmatpush.bf16.msra.mxu0 %v6736
        %6955 = vmatpush.bf16.msra.mxu0 %v6730
        %6956 = vmatpush.bf16.msra.mxu0 %v6724
        %6957 = vmatpush.bf16.msra.mxu0 %v6718
        %6958 = vmatmul.bf16.gmra.mxu0 %v6363
        %v6959 = vpop.f32.mrf.mxu0
        %v6960 = vadd.f32 %v6947, %v6959
        %v6961 = vpop.f32.mrf.mxu0
        %6962 = vdwg.mxu0
        %6963 = vmatpush.bf16.msra.mxu0 %v6713
        %6964 = vmatpush.bf16.msra.mxu0 %v6707
        %6965 = vmatpush.bf16.msra.mxu0 %v6701
        %6966 = vmatpush.bf16.msra.mxu0 %v6695
        %6967 = vmatpush.bf16.msra.mxu0 %v6689
        %6968 = vmatpush.bf16.msra.mxu0 %v6683
        %6969 = vmatpush.bf16.msra.mxu0 %v6677
        %6970 = vmatpush.bf16.msra.mxu0 %v6671
        %6971 = vmatmul.bf16.gmra.mxu0 %v6362
        %v6972 = vpop.f32.mrf.mxu0
        %v6973 = vadd.f32 %v6371, %v6972
        %v6974 = vpop.f32.mrf.mxu0
        %6975 = vdwg.mxu0
        %6976 = vmatpush.bf16.msra.mxu0 %v6761
        %6977 = vmatpush.bf16.msra.mxu0 %v6755
        %6978 = vmatpush.bf16.msra.mxu0 %v6749
        %6979 = vmatpush.bf16.msra.mxu0 %v6743
        %6980 = vmatpush.bf16.msra.mxu0 %v6737
        %6981 = vmatpush.bf16.msra.mxu0 %v6731
        %6982 = vmatpush.bf16.msra.mxu0 %v6725
        %6983 = vmatpush.bf16.msra.mxu0 %v6719
        %6984 = vmatmul.bf16.gmra.mxu0 %v6363
        %v6985 = vpop.f32.mrf.mxu0
        %v6986 = vadd.f32 %v6973, %v6985
        %v6987 = vpop.f32.mrf.mxu0
        %6988 = vdwg.mxu0
        %6989 = vmatpush.bf16.msra.mxu0 %v6714
        %6990 = vmatpush.bf16.msra.mxu0 %v6708
        %6991 = vmatpush.bf16.msra.mxu0 %v6702
        %6992 = vmatpush.bf16.msra.mxu0 %v6696
        %6993 = vmatpush.bf16.msra.mxu0 %v6690
        %6994 = vmatpush.bf16.msra.mxu0 %v6684
        %6995 = vmatpush.bf16.msra.mxu0 %v6678
        %6996 = vmatpush.bf16.msra.mxu0 %v6672
        %6997 = vmatmul.bf16.gmra.mxu0 %v6362
        %v6998 = vpop.f32.mrf.mxu0
        %v6999 = vadd.f32 %v6372, %v6998
        %v7000 = vpop.f32.mrf.mxu0
        %7001 = vdwg.mxu0
        %7002 = vmatpush.bf16.msra.mxu0 %v6762
        %7003 = vmatpush.bf16.msra.mxu0 %v6756
        %7004 = vmatpush.bf16.msra.mxu0 %v6750
        %7005 = vmatpush.bf16.msra.mxu0 %v6744
        %7006 = vmatpush.bf16.msra.mxu0 %v6738
        %7007 = vmatpush.bf16.msra.mxu0 %v6732
        %7008 = vmatpush.bf16.msra.mxu0 %v6726
        %7009 = vmatpush.bf16.msra.mxu0 %v6720
        %7010 = vmatmul.bf16.gmra.mxu0 %v6363
        %v7011 = vpop.f32.mrf.mxu0
        %v7012 = vadd.f32 %v6999, %v7011
        %v7013 = vpop.f32.mrf.mxu0
        %7014 = vdwg.mxu0
        %s7015 = scalar_lea.vmem [#allocation10], 256
        %v7016 = vld [vmem:[%s7015] sm:$0xff]
        %v7017 = vld [vmem:[%s7015 + $0x8] sm:$0xff]
        %v7018 = vld [vmem:[%s7015 + $0x10] sm:$0xff]
        %v7019 = vld [vmem:[%s7015 + $0x18] sm:$0xff]
        %v7020 = vld [vmem:[%s7015 + $0x20] sm:$0xff]
        %v7021 = vld [vmem:[%s7015 + $0x28] sm:$0xff]
        %v7022 = vld [vmem:[%s7015 + $0x30] sm:$0xff]
        %v7023 = vld [vmem:[%s7015 + $0x38] sm:$0xff]
        %v7024 = vld [vmem:[%s7015 + $0x40] sm:$0xff]
        %v7025 = vld [vmem:[%s7015 + $0x48] sm:$0xff]
        %v7026 = vld [vmem:[%s7015 + $0x50] sm:$0xff]
        %v7027 = vld [vmem:[%s7015 + $0x58] sm:$0xff]
        %v7028 = vld [vmem:[%s7015 + $0x60] sm:$0xff]
        %v7029 = vld [vmem:[%s7015 + $0x68] sm:$0xff]
        %v7030 = vld [vmem:[%s7015 + $0x70] sm:$0xff]
        %v7031 = vld [vmem:[%s7015 + $0x78] sm:$0xff]
        %v7032 = vld [vmem:[%s7015 + $0x80] sm:$0xff]
        %v7033 = vld [vmem:[%s7015 + $0x88] sm:$0xff]
        %v7034 = vld [vmem:[%s7015 + $0x90] sm:$0xff]
        %v7035 = vld [vmem:[%s7015 + $0x98] sm:$0xff]
        %v7036 = vld [vmem:[%s7015 + $0xa0] sm:$0xff]
        %v7037 = vld [vmem:[%s7015 + $0xa8] sm:$0xff]
        %v7038 = vld [vmem:[%s7015 + $0xb0] sm:$0xff]
        %v7039 = vld [vmem:[%s7015 + $0xb8] sm:$0xff]
        %v7040 = vld [vmem:[%s7015 + $0xc0] sm:$0xff]
        %v7041 = vld [vmem:[%s7015 + $0xc8] sm:$0xff]
        %v7042 = vld [vmem:[%s7015 + $0xd0] sm:$0xff]
        %v7043 = vld [vmem:[%s7015 + $0xd8] sm:$0xff]
        %v7044 = vld [vmem:[%s7015 + $0xe0] sm:$0xff]
        %v7045 = vld [vmem:[%s7015 + $0xe8] sm:$0xff]
        %v7046 = vld [vmem:[%s7015 + $0xf0] sm:$0xff]
        %v7047 = vld [vmem:[%s7015 + $0xf8] sm:$0xff]
        %v7048 = vpack.c.bf16 %v6882, %v6882
        %v7049 = vpack.c.bf16 %v6934, %v6934
        %v7050 = vpack.c.bf16 %v6986, %v6986
        %v7052 = vsel %vm1672, %v7048, 0
        %v7055 = vsel %vm1672, %v7049, 0
        %7057 = vmatpush.bf16.xpose.msra.mxu0 0
        %7058 = vmatpush.bf16.xpose.msra.mxu0 0
        %7059 = vmatpush.bf16.xpose.msra.mxu0 0
        %7060 = vmatpush.bf16.xpose.msra.mxu0 0
        %7061 = vmatpush.bf16.xpose.msra.mxu0 0
        %7062 = vmatpush.bf16.xpose.msra.mxu0 0
        %7063 = vmatpush.bf16.xpose.msra.mxu0 0
        %7064 = vmatpush.bf16.xpose.msra.mxu0 %v7055
        %7065 = vmatmul.bf16.gmra.mxu0 %v7052
        %v7066 = vpop.f32.mrf.mxu0
        %v7067 = vadd.f32 0.0, %v7066
        %v7068 = vpop.f32.mrf.mxu0
        %7069 = vdwg.mxu0
        %v7070 = vmul.f32 %v7067, 0.125
        %v7071 = vsel %vm1693, %v7070, -inf
        %7072 = vmax.xlane.f32.xlu0 %v7071
        %v7073 = vpop.xlane.xlu0 %7072
        %v7074 = vsub.f32 %v7070, %v7073
        %v7075 = vmul.f32 %v7074, 1.442695
        %v7076 = vpow.pop %v7075
        %v7077 = vsel %vm1693, %v7076, 0.0
        %7078 = vadd.xlane.f32.xlu0 %v7077
        %v7079 = vpop.xlane.xlu0 %7078
        %v7080 = vrcp.pop %v7079
        %v7081 = vmul.f32 %v7076, %v7080
        %v7082 = vpack.c.bf16 %v7081, %v7081
        %v7084 = vsel %vm1693, %v7082, 0
        %v7087 = vsel %vm1709, %v7050, 0
        %7089 = vmatpush.bf16.msra.mxu0 0
        %7090 = vmatpush.bf16.msra.mxu0 0
        %7091 = vmatpush.bf16.msra.mxu0 0
        %7092 = vmatpush.bf16.msra.mxu0 0
        %7093 = vmatpush.bf16.msra.mxu0 0
        %7094 = vmatpush.bf16.msra.mxu0 0
        %7095 = vmatpush.bf16.msra.mxu0 0
        %7096 = vmatpush.bf16.msra.mxu0 %v7087
        %7097 = vmatmul.bf16.gmra.mxu0 %v7084
        %v7098 = vpop.f32.mrf.mxu0
        %v7099 = vadd.f32 0.0, %v7098
        %v7100 = vpop.f32.mrf.mxu0
        %7101 = vdwg.mxu0
        %v7102 = vpack.c.bf16 %v7099, %v7099
        %7104 = vrot.lane.b32.xlu0 %v7048, 64
        %v7105 = vpop.permute.xlu0 %7104
        %7107 = vrot.lane.b32.xlu0 %v7049, 64
        %v7108 = vpop.permute.xlu0 %7107
        %v7110 = vsel %vm1672, %v7105, 0
        %v7113 = vsel %vm1672, %v7108, 0
        %7115 = vmatpush.bf16.xpose.msra.mxu0 0
        %7116 = vmatpush.bf16.xpose.msra.mxu0 0
        %7117 = vmatpush.bf16.xpose.msra.mxu0 0
        %7118 = vmatpush.bf16.xpose.msra.mxu0 0
        %7119 = vmatpush.bf16.xpose.msra.mxu0 0
        %7120 = vmatpush.bf16.xpose.msra.mxu0 0
        %7121 = vmatpush.bf16.xpose.msra.mxu0 0
        %7122 = vmatpush.bf16.xpose.msra.mxu0 %v7113
        %7123 = vmatmul.bf16.gmra.mxu0 %v7110
        %v7124 = vpop.f32.mrf.mxu0
        %v7125 = vadd.f32 0.0, %v7124
        %v7126 = vpop.f32.mrf.mxu0
        %7127 = vdwg.mxu0
        %v7128 = vmul.f32 %v7125, 0.125
        %v7129 = vsel %vm1693, %v7128, -inf
        %7130 = vmax.xlane.f32.xlu0 %v7129
        %v7131 = vpop.xlane.xlu0 %7130
        %v7132 = vsub.f32 %v7128, %v7131
        %v7133 = vmul.f32 %v7132, 1.442695
        %v7134 = vpow.pop %v7133
        %v7135 = vsel %vm1693, %v7134, 0.0
        %7136 = vadd.xlane.f32.xlu0 %v7135
        %v7137 = vpop.xlane.xlu0 %7136
        %v7138 = vrcp.pop %v7137
        %v7139 = vmul.f32 %v7134, %v7138
        %v7140 = vpack.c.bf16 %v7139, %v7139
        %7142 = vrot.lane.b32.xlu0 %v7050, 64
        %v7143 = vpop.permute.xlu0 %7142
        %v7145 = vsel %vm1693, %v7140, 0
        %v7148 = vsel %vm1709, %v7143, 0
        %7150 = vmatpush.bf16.msra.mxu0 0
        %7151 = vmatpush.bf16.msra.mxu0 0
        %7152 = vmatpush.bf16.msra.mxu0 0
        %7153 = vmatpush.bf16.msra.mxu0 0
        %7154 = vmatpush.bf16.msra.mxu0 0
        %7155 = vmatpush.bf16.msra.mxu0 0
        %7156 = vmatpush.bf16.msra.mxu0 0
        %7157 = vmatpush.bf16.msra.mxu0 %v7148
        %7158 = vmatmul.bf16.gmra.mxu0 %v7145
        %v7159 = vpop.f32.mrf.mxu0
        %v7160 = vadd.f32 0.0, %v7159
        %v7161 = vpop.f32.mrf.mxu0
        %7162 = vdwg.mxu0
        %v7163 = vpack.c.bf16 %v7160, %v7160
        %v7172 = vunpack.c.l.b16 %v7024
        %v7173 = vunpack.c.h.b16 %v7024
        %v7174 = vunpack.c.l.b16 %v7025
        %v7175 = vunpack.c.h.b16 %v7025
        %v7176 = vunpack.c.l.b16 %v7026
        %v7177 = vunpack.c.h.b16 %v7026
        %v7178 = vunpack.c.l.b16 %v7027
        %v7179 = vunpack.c.h.b16 %v7027
        %v7180 = vunpack.c.l.b16 %v7028
        %v7181 = vunpack.c.h.b16 %v7028
        %v7182 = vunpack.c.l.b16 %v7029
        %v7183 = vunpack.c.h.b16 %v7029
        %v7184 = vunpack.c.l.b16 %v7030
        %v7185 = vunpack.c.h.b16 %v7030
        %v7186 = vunpack.c.l.b16 %v7031
        %v7187 = vunpack.c.h.b16 %v7031
        %v7188 = vpack.c.b16 %v7174, %v7172
        %v7189 = vpack.c.b16 %v7175, %v7173
        %v7190 = vpack.c.b16 %v7178, %v7176
        %v7191 = vpack.c.b16 %v7179, %v7177
        %v7192 = vpack.c.b16 %v7182, %v7180
        %v7193 = vpack.c.b16 %v7183, %v7181
        %v7194 = vpack.c.b16 %v7186, %v7184
        %v7195 = vpack.c.b16 %v7187, %v7185
        %v7205 = vsel %vm1672, %v7163, 0
        %7207 = vmatpush.bf16.msra.mxu0 0
        %7208 = vmatpush.bf16.msra.mxu0 0
        %7209 = vmatpush.bf16.msra.mxu0 0
        %7210 = vmatpush.bf16.msra.mxu0 0
        %7211 = vmatpush.bf16.msra.mxu0 %v7194
        %7212 = vmatpush.bf16.msra.mxu0 %v7192
        %7213 = vmatpush.bf16.msra.mxu0 %v7190
        %7214 = vmatpush.bf16.msra.mxu0 %v7188
        %7215 = vmatmul.bf16.gmra.mxu0 %v7205
        %v7216 = vpop.f32.mrf.mxu0
        %v7217 = vadd.f32 0.0, %v7216
        %v7218 = vpop.f32.mrf.mxu0
        %7219 = vdwg.mxu0
        %7220 = vmatpush.bf16.msra.mxu0 0
        %7221 = vmatpush.bf16.msra.mxu0 0
        %7222 = vmatpush.bf16.msra.mxu0 0
        %7223 = vmatpush.bf16.msra.mxu0 0
        %7224 = vmatpush.bf16.msra.mxu0 %v7195
        %7225 = vmatpush.bf16.msra.mxu0 %v7193
        %7226 = vmatpush.bf16.msra.mxu0 %v7191
        %7227 = vmatpush.bf16.msra.mxu0 %v7189
        %7228 = vmatmul.bf16.gmra.mxu0 %v7205
        %v7229 = vpop.f32.mrf.mxu0
        %v7230 = vadd.f32 0.0, %v7229
        %v7231 = vpop.f32.mrf.mxu0
        %7232 = vdwg.mxu0
        %v7241 = vunpack.c.l.b16 %v7016
        %v7242 = vunpack.c.h.b16 %v7016
        %v7243 = vunpack.c.l.b16 %v7017
        %v7244 = vunpack.c.h.b16 %v7017
        %v7245 = vunpack.c.l.b16 %v7018
        %v7246 = vunpack.c.h.b16 %v7018
        %v7247 = vunpack.c.l.b16 %v7019
        %v7248 = vunpack.c.h.b16 %v7019
        %v7249 = vunpack.c.l.b16 %v7020
        %v7250 = vunpack.c.h.b16 %v7020
        %v7251 = vunpack.c.l.b16 %v7021
        %v7252 = vunpack.c.h.b16 %v7021
        %v7253 = vunpack.c.l.b16 %v7022
        %v7254 = vunpack.c.h.b16 %v7022
        %v7255 = vunpack.c.l.b16 %v7023
        %v7256 = vunpack.c.h.b16 %v7023
        %v7257 = vpack.c.b16 %v7243, %v7241
        %v7258 = vpack.c.b16 %v7244, %v7242
        %v7259 = vpack.c.b16 %v7247, %v7245
        %v7260 = vpack.c.b16 %v7248, %v7246
        %v7261 = vpack.c.b16 %v7251, %v7249
        %v7262 = vpack.c.b16 %v7252, %v7250
        %v7263 = vpack.c.b16 %v7255, %v7253
        %v7264 = vpack.c.b16 %v7256, %v7254
        %v7274 = vsel %vm1672, %v7102, 0
        %7276 = vmatpush.bf16.msra.mxu0 0
        %7277 = vmatpush.bf16.msra.mxu0 0
        %7278 = vmatpush.bf16.msra.mxu0 0
        %7279 = vmatpush.bf16.msra.mxu0 0
        %7280 = vmatpush.bf16.msra.mxu0 %v7263
        %7281 = vmatpush.bf16.msra.mxu0 %v7261
        %7282 = vmatpush.bf16.msra.mxu0 %v7259
        %7283 = vmatpush.bf16.msra.mxu0 %v7257
        %7284 = vmatmul.bf16.gmra.mxu0 %v7274
        %v7285 = vpop.f32.mrf.mxu0
        %v7286 = vadd.f32 %v7217, %v7285
        %v7287 = vpop.f32.mrf.mxu0
        %7288 = vdwg.mxu0
        %7289 = vmatpush.bf16.msra.mxu0 0
        %7290 = vmatpush.bf16.msra.mxu0 0
        %7291 = vmatpush.bf16.msra.mxu0 0
        %7292 = vmatpush.bf16.msra.mxu0 0
        %7293 = vmatpush.bf16.msra.mxu0 %v7264
        %7294 = vmatpush.bf16.msra.mxu0 %v7262
        %7295 = vmatpush.bf16.msra.mxu0 %v7260
        %7296 = vmatpush.bf16.msra.mxu0 %v7258
        %7297 = vmatmul.bf16.gmra.mxu0 %v7274
        %v7298 = vpop.f32.mrf.mxu0
        %v7299 = vadd.f32 %v7230, %v7298
        %v7300 = vpop.f32.mrf.mxu0
        %7301 = vdwg.mxu0
        %v7302 = vpack.c.bf16 %v6908, %v6908
        %v7303 = vpack.c.bf16 %v6960, %v6960
        %v7304 = vpack.c.bf16 %v7012, %v7012
        %v7306 = vsel %vm1672, %v7302, 0
        %v7309 = vsel %vm1672, %v7303, 0
        %7311 = vmatpush.bf16.xpose.msra.mxu0 0
        %7312 = vmatpush.bf16.xpose.msra.mxu0 0
        %7313 = vmatpush.bf16.xpose.msra.mxu0 0
        %7314 = vmatpush.bf16.xpose.msra.mxu0 0
        %7315 = vmatpush.bf16.xpose.msra.mxu0 0
        %7316 = vmatpush.bf16.xpose.msra.mxu0 0
        %7317 = vmatpush.bf16.xpose.msra.mxu0 0
        %7318 = vmatpush.bf16.xpose.msra.mxu0 %v7309
        %7319 = vmatmul.bf16.gmra.mxu0 %v7306
        %v7320 = vpop.f32.mrf.mxu0
        %v7321 = vadd.f32 0.0, %v7320
        %v7322 = vpop.f32.mrf.mxu0
        %7323 = vdwg.mxu0
        %v7324 = vmul.f32 %v7321, 0.125
        %v7325 = vsel %vm1693, %v7324, -inf
        %7326 = vmax.xlane.f32.xlu0 %v7325
        %v7327 = vpop.xlane.xlu0 %7326
        %v7328 = vsub.f32 %v7324, %v7327
        %v7329 = vmul.f32 %v7328, 1.442695
        %v7330 = vpow.pop %v7329
        %v7331 = vsel %vm1693, %v7330, 0.0
        %7332 = vadd.xlane.f32.xlu0 %v7331
        %v7333 = vpop.xlane.xlu0 %7332
        %v7334 = vrcp.pop %v7333
        %v7335 = vmul.f32 %v7330, %v7334
        %v7336 = vpack.c.bf16 %v7335, %v7335
        %v7338 = vsel %vm1693, %v7336, 0
        %v7341 = vsel %vm1709, %v7304, 0
        %7343 = vmatpush.bf16.msra.mxu0 0
        %7344 = vmatpush.bf16.msra.mxu0 0
        %7345 = vmatpush.bf16.msra.mxu0 0
        %7346 = vmatpush.bf16.msra.mxu0 0
        %7347 = vmatpush.bf16.msra.mxu0 0
        %7348 = vmatpush.bf16.msra.mxu0 0
        %7349 = vmatpush.bf16.msra.mxu0 0
        %7350 = vmatpush.bf16.msra.mxu0 %v7341
        %7351 = vmatmul.bf16.gmra.mxu0 %v7338
        %v7352 = vpop.f32.mrf.mxu0
        %v7353 = vadd.f32 0.0, %v7352
        %v7354 = vpop.f32.mrf.mxu0
        %7355 = vdwg.mxu0
        %v7356 = vpack.c.bf16 %v7353, %v7353
        %v7365 = vunpack.c.l.b16 %v7032
        %v7366 = vunpack.c.h.b16 %v7032
        %v7367 = vunpack.c.l.b16 %v7033
        %v7368 = vunpack.c.h.b16 %v7033
        %v7369 = vunpack.c.l.b16 %v7034
        %v7370 = vunpack.c.h.b16 %v7034
        %v7371 = vunpack.c.l.b16 %v7035
        %v7372 = vunpack.c.h.b16 %v7035
        %v7373 = vunpack.c.l.b16 %v7036
        %v7374 = vunpack.c.h.b16 %v7036
        %v7375 = vunpack.c.l.b16 %v7037
        %v7376 = vunpack.c.h.b16 %v7037
        %v7377 = vunpack.c.l.b16 %v7038
        %v7378 = vunpack.c.h.b16 %v7038
        %v7379 = vunpack.c.l.b16 %v7039
        %v7380 = vunpack.c.h.b16 %v7039
        %v7381 = vpack.c.b16 %v7367, %v7365
        %v7382 = vpack.c.b16 %v7368, %v7366
        %v7383 = vpack.c.b16 %v7371, %v7369
        %v7384 = vpack.c.b16 %v7372, %v7370
        %v7385 = vpack.c.b16 %v7375, %v7373
        %v7386 = vpack.c.b16 %v7376, %v7374
        %v7387 = vpack.c.b16 %v7379, %v7377
        %v7388 = vpack.c.b16 %v7380, %v7378
        %v7398 = vsel %vm1672, %v7356, 0
        %7400 = vmatpush.bf16.msra.mxu0 0
        %7401 = vmatpush.bf16.msra.mxu0 0
        %7402 = vmatpush.bf16.msra.mxu0 0
        %7403 = vmatpush.bf16.msra.mxu0 0
        %7404 = vmatpush.bf16.msra.mxu0 %v7387
        %7405 = vmatpush.bf16.msra.mxu0 %v7385
        %7406 = vmatpush.bf16.msra.mxu0 %v7383
        %7407 = vmatpush.bf16.msra.mxu0 %v7381
        %7408 = vmatmul.bf16.gmra.mxu0 %v7398
        %v7409 = vpop.f32.mrf.mxu0
        %v7410 = vadd.f32 0.0, %v7409
        %v7411 = vpop.f32.mrf.mxu0
        %7412 = vdwg.mxu0
        %7413 = vmatpush.bf16.msra.mxu0 0
        %7414 = vmatpush.bf16.msra.mxu0 0
        %7415 = vmatpush.bf16.msra.mxu0 0
        %7416 = vmatpush.bf16.msra.mxu0 0
        %7417 = vmatpush.bf16.msra.mxu0 %v7388
        %7418 = vmatpush.bf16.msra.mxu0 %v7386
        %7419 = vmatpush.bf16.msra.mxu0 %v7384
        %7420 = vmatpush.bf16.msra.mxu0 %v7382
        %7421 = vmatmul.bf16.gmra.mxu0 %v7398
        %v7422 = vpop.f32.mrf.mxu0
        %v7423 = vadd.f32 0.0, %v7422
        %v7424 = vpop.f32.mrf.mxu0
        %7425 = vdwg.mxu0
        %v7426 = vadd.f32 %v7286, %v7410
        %v7427 = vadd.f32 %v7299, %v7423
        %7429 = vrot.lane.b32.xlu0 %v7302, 64
        %v7430 = vpop.permute.xlu0 %7429
        %7432 = vrot.lane.b32.xlu0 %v7303, 64
        %v7433 = vpop.permute.xlu0 %7432
        %v7435 = vsel %vm1672, %v7430, 0
        %v7438 = vsel %vm1672, %v7433, 0
        %7440 = vmatpush.bf16.xpose.msra.mxu0 0
        %7441 = vmatpush.bf16.xpose.msra.mxu0 0
        %7442 = vmatpush.bf16.xpose.msra.mxu0 0
        %7443 = vmatpush.bf16.xpose.msra.mxu0 0
        %7444 = vmatpush.bf16.xpose.msra.mxu0 0
        %7445 = vmatpush.bf16.xpose.msra.mxu0 0
        %7446 = vmatpush.bf16.xpose.msra.mxu0 0
        %7447 = vmatpush.bf16.xpose.msra.mxu0 %v7438
        %7448 = vmatmul.bf16.gmra.mxu0 %v7435
        %v7449 = vpop.f32.mrf.mxu0
        %v7450 = vadd.f32 0.0, %v7449
        %v7451 = vpop.f32.mrf.mxu0
        %7452 = vdwg.mxu0
        %v7453 = vmul.f32 %v7450, 0.125
        %v7454 = vsel %vm1693, %v7453, -inf
        %7455 = vmax.xlane.f32.xlu0 %v7454
        %v7456 = vpop.xlane.xlu0 %7455
        %v7457 = vsub.f32 %v7453, %v7456
        %v7458 = vmul.f32 %v7457, 1.442695
        %v7459 = vpow.pop %v7458
        %v7460 = vsel %vm1693, %v7459, 0.0
        %7461 = vadd.xlane.f32.xlu0 %v7460
        %v7462 = vpop.xlane.xlu0 %7461
        %v7463 = vrcp.pop %v7462
        %v7464 = vmul.f32 %v7459, %v7463
        %v7465 = vpack.c.bf16 %v7464, %v7464
        %7467 = vrot.lane.b32.xlu0 %v7304, 64
        %v7468 = vpop.permute.xlu0 %7467
        %v7470 = vsel %vm1693, %v7465, 0
        %v7473 = vsel %vm1709, %v7468, 0
        %7475 = vmatpush.bf16.msra.mxu0 0
        %7476 = vmatpush.bf16.msra.mxu0 0
        %7477 = vmatpush.bf16.msra.mxu0 0
        %7478 = vmatpush.bf16.msra.mxu0 0
        %7479 = vmatpush.bf16.msra.mxu0 0
        %7480 = vmatpush.bf16.msra.mxu0 0
        %7481 = vmatpush.bf16.msra.mxu0 0
        %7482 = vmatpush.bf16.msra.mxu0 %v7473
        %7483 = vmatmul.bf16.gmra.mxu0 %v7470
        %v7484 = vpop.f32.mrf.mxu0
        %v7485 = vadd.f32 0.0, %v7484
        %v7486 = vpop.f32.mrf.mxu0
        %7487 = vdwg.mxu0
        %v7488 = vpack.c.bf16 %v7485, %v7485
        %v7497 = vunpack.c.l.b16 %v7040
        %v7498 = vunpack.c.h.b16 %v7040
        %v7499 = vunpack.c.l.b16 %v7041
        %v7500 = vunpack.c.h.b16 %v7041
        %v7501 = vunpack.c.l.b16 %v7042
        %v7502 = vunpack.c.h.b16 %v7042
        %v7503 = vunpack.c.l.b16 %v7043
        %v7504 = vunpack.c.h.b16 %v7043
        %v7505 = vunpack.c.l.b16 %v7044
        %v7506 = vunpack.c.h.b16 %v7044
        %v7507 = vunpack.c.l.b16 %v7045
        %v7508 = vunpack.c.h.b16 %v7045
        %v7509 = vunpack.c.l.b16 %v7046
        %v7510 = vunpack.c.h.b16 %v7046
        %v7511 = vunpack.c.l.b16 %v7047
        %v7512 = vunpack.c.h.b16 %v7047
        %v7513 = vpack.c.b16 %v7499, %v7497
        %v7514 = vpack.c.b16 %v7500, %v7498
        %v7515 = vpack.c.b16 %v7503, %v7501
        %v7516 = vpack.c.b16 %v7504, %v7502
        %v7517 = vpack.c.b16 %v7507, %v7505
        %v7518 = vpack.c.b16 %v7508, %v7506
        %v7519 = vpack.c.b16 %v7511, %v7509
        %v7520 = vpack.c.b16 %v7512, %v7510
        %v7530 = vsel %vm1672, %v7488, 0
        %7532 = vmatpush.bf16.msra.mxu0 0
        %7533 = vmatpush.bf16.msra.mxu0 0
        %7534 = vmatpush.bf16.msra.mxu0 0
        %7535 = vmatpush.bf16.msra.mxu0 0
        %7536 = vmatpush.bf16.msra.mxu0 %v7519
        %7537 = vmatpush.bf16.msra.mxu0 %v7517
        %7538 = vmatpush.bf16.msra.mxu0 %v7515
        %7539 = vmatpush.bf16.msra.mxu0 %v7513
        %7540 = vmatmul.bf16.gmra.mxu0 %v7530
        %v7541 = vpop.f32.mrf.mxu0
        %v7542 = vadd.f32 0.0, %v7541
        %v7543 = vpop.f32.mrf.mxu0
        %7544 = vdwg.mxu0
        %7545 = vmatpush.bf16.msra.mxu0 0
        %7546 = vmatpush.bf16.msra.mxu0 0
        %7547 = vmatpush.bf16.msra.mxu0 0
        %7548 = vmatpush.bf16.msra.mxu0 0
        %7549 = vmatpush.bf16.msra.mxu0 %v7520
        %7550 = vmatpush.bf16.msra.mxu0 %v7518
        %7551 = vmatpush.bf16.msra.mxu0 %v7516
        %7552 = vmatpush.bf16.msra.mxu0 %v7514
        %7553 = vmatmul.bf16.gmra.mxu0 %v7530
        %v7554 = vpop.f32.mrf.mxu0
        %v7555 = vadd.f32 0.0, %v7554
        %v7556 = vpop.f32.mrf.mxu0
        %7557 = vdwg.mxu0
        %v7558 = vadd.f32 %v7426, %v7542
        %v7559 = vadd.f32 %v7427, %v7555
        %s7560 = scalar_lea.vmem [#allocation12], 2
        %v7561 = vld [vmem:[%s7560] sm:$0x3]
        %v7563 = vperm.slane %v7561, 0
        %v7564 = vperm.slane %v7561, 1
        %v7567 = vadd.f32 %v7558, %v7563
        %v7568 = vadd.f32 %v7559, %v7564
        %v7569 = vadd.f32 %v6263, %v7567
        %v7570 = vadd.f32 %v6264, %v7568
        %s7571 = scalar_lea.vmem [#allocation13], 2
        %v7572 = vld [vmem:[%s7571] sm:$0x3]
        %s7573 = scalar_lea.vmem [#allocation15], 2
        %v7574 = vld [vmem:[%s7573] sm:$0x3]
        %v7575 = vadd.f32 %v7569, %v7570
        %7576 = vadd.xlane.f32.xlu0 %v7575
        %v7577 = vpop.xlane.xlu0 %7576
        %v7578 = vmul.f32 %v7577, %v2205
        %v7579 = vsub.f32 %v7569, %v7578
        %v7580 = vsub.f32 %v7570, %v7578
        %v7581 = vmul.f32 %v7579, %v7579
        %v7582 = vmul.f32 %v7580, %v7580
        %v7583 = vadd.f32 %v7581, %v7582
        %7584 = vadd.xlane.f32.xlu0 %v7583
        %v7585 = vpop.xlane.xlu0 %7584
        %v7586 = vmul.f32 %v7585, %v2205
        %v7587 = vadd.f32 %v7586, 1e-05
        %v7588 = vrsqrt.pop %v7587
        %v7589 = vmul.f32 %v7588, %v7587
        %v7590 = vmul.f32 %v7589, %v7588
        %v7591 = vmul.f32 0.5, %v7590
        %v7592 = vsub.f32 1.5, %v7591
        %v7593 = vmul.f32 %v7588, %v7592
        %vm7594 = vweird.f32 %v7587
        %vm7595 = vweird.f32 %v7588
        %vm7596 = vmor %vm7594, %vm7595
        %v7597 = vsel %vm7596, %v7588, %v7593
        %v7598 = vmul.f32 %v7579, %v7597
        %v7599 = vmul.f32 %v7580, %v7597
        %v7601 = vperm.slane %v7572, 0
        %v7602 = vperm.slane %v7572, 1
        %v7605 = vmul.f32 %v7598, %v7601
        %v7606 = vmul.f32 %v7599, %v7602
        %v7608 = vperm.slane %v7574, 0
        %v7609 = vperm.slane %v7574, 1
        %v7612 = vadd.f32 %v7605, %v7608
        %v7613 = vadd.f32 %v7606, %v7609
        %s7614 = scalar_lea.vmem [#allocation16], 2048
        %v7615 = vld [vmem:[%s7614] sm:$0xff]
        %v7616 = vld [vmem:[%s7614 + $0x8] sm:$0xff]
        %v7617 = vld [vmem:[%s7614 + $0x10] sm:$0xff]
        %v7618 = vld [vmem:[%s7614 + $0x18] sm:$0xff]
        %v7619 = vld [vmem:[%s7614 + $0x20] sm:$0xff]
        %v7620 = vld [vmem:[%s7614 + $0x28] sm:$0xff]
        %v7621 = vld [vmem:[%s7614 + $0x30] sm:$0xff]
        %v7622 = vld [vmem:[%s7614 + $0x38] sm:$0xff]
        %v7623 = vld [vmem:[%s7614 + $0x40] sm:$0xff]
        %v7624 = vld [vmem:[%s7614 + $0x48] sm:$0xff]
        %v7625 = vld [vmem:[%s7614 + $0x50] sm:$0xff]
        %v7626 = vld [vmem:[%s7614 + $0x58] sm:$0xff]
        %v7627 = vld [vmem:[%s7614 + $0x60] sm:$0xff]
        %v7628 = vld [vmem:[%s7614 + $0x68] sm:$0xff]
        %v7629 = vld [vmem:[%s7614 + $0x70] sm:$0xff]
        %v7630 = vld [vmem:[%s7614 + $0x78] sm:$0xff]
        %v7631 = vld [vmem:[%s7614 + $0x80] sm:$0xff]
        %v7632 = vld [vmem:[%s7614 + $0x88] sm:$0xff]
        %v7633 = vld [vmem:[%s7614 + $0x90] sm:$0xff]
        %v7634 = vld [vmem:[%s7614 + $0x98] sm:$0xff]
        %v7635 = vld [vmem:[%s7614 + $0xa0] sm:$0xff]
        %v7636 = vld [vmem:[%s7614 + $0xa8] sm:$0xff]
        %v7637 = vld [vmem:[%s7614 + $0xb0] sm:$0xff]
        %v7638 = vld [vmem:[%s7614 + $0xb8] sm:$0xff]
        %v7639 = vld [vmem:[%s7614 + $0xc0] sm:$0xff]
        %v7640 = vld [vmem:[%s7614 + $0xc8] sm:$0xff]
        %v7641 = vld [vmem:[%s7614 + $0xd0] sm:$0xff]
        %v7642 = vld [vmem:[%s7614 + $0xd8] sm:$0xff]
        %v7643 = vld [vmem:[%s7614 + $0xe0] sm:$0xff]
        %v7644 = vld [vmem:[%s7614 + $0xe8] sm:$0xff]
        %v7645 = vld [vmem:[%s7614 + $0xf0] sm:$0xff]
        %v7646 = vld [vmem:[%s7614 + $0xf8] sm:$0xff]
        %v7647 = vld [vmem:[%s7614 + $0x100] sm:$0xff]
        %v7648 = vld [vmem:[%s7614 + $0x108] sm:$0xff]
        %v7649 = vld [vmem:[%s7614 + $0x110] sm:$0xff]
        %v7650 = vld [vmem:[%s7614 + $0x118] sm:$0xff]
        %v7651 = vld [vmem:[%s7614 + $0x120] sm:$0xff]
        %v7652 = vld [vmem:[%s7614 + $0x128] sm:$0xff]
        %v7653 = vld [vmem:[%s7614 + $0x130] sm:$0xff]
        %v7654 = vld [vmem:[%s7614 + $0x138] sm:$0xff]
        %v7655 = vld [vmem:[%s7614 + $0x140] sm:$0xff]
        %v7656 = vld [vmem:[%s7614 + $0x148] sm:$0xff]
        %v7657 = vld [vmem:[%s7614 + $0x150] sm:$0xff]
        %v7658 = vld [vmem:[%s7614 + $0x158] sm:$0xff]
        %v7659 = vld [vmem:[%s7614 + $0x160] sm:$0xff]
        %v7660 = vld [vmem:[%s7614 + $0x168] sm:$0xff]
        %v7661 = vld [vmem:[%s7614 + $0x170] sm:$0xff]
        %v7662 = vld [vmem:[%s7614 + $0x178] sm:$0xff]
        %v7663 = vld [vmem:[%s7614 + $0x180] sm:$0xff]
        %v7664 = vld [vmem:[%s7614 + $0x188] sm:$0xff]
        %v7665 = vld [vmem:[%s7614 + $0x190] sm:$0xff]
        %v7666 = vld [vmem:[%s7614 + $0x198] sm:$0xff]
        %v7667 = vld [vmem:[%s7614 + $0x1a0] sm:$0xff]
        %v7668 = vld [vmem:[%s7614 + $0x1a8] sm:$0xff]
        %v7669 = vld [vmem:[%s7614 + $0x1b0] sm:$0xff]
        %v7670 = vld [vmem:[%s7614 + $0x1b8] sm:$0xff]
        %v7671 = vld [vmem:[%s7614 + $0x1c0] sm:$0xff]
        %v7672 = vld [vmem:[%s7614 + $0x1c8] sm:$0xff]
        %v7673 = vld [vmem:[%s7614 + $0x1d0] sm:$0xff]
        %v7674 = vld [vmem:[%s7614 + $0x1d8] sm:$0xff]
        %v7675 = vld [vmem:[%s7614 + $0x1e0] sm:$0xff]
        %v7676 = vld [vmem:[%s7614 + $0x1e8] sm:$0xff]
        %v7677 = vld [vmem:[%s7614 + $0x1f0] sm:$0xff]
        %v7678 = vld [vmem:[%s7614 + $0x1f8] sm:$0xff]
        %v7679 = vld [vmem:[%s7614 + $0x200] sm:$0xff]
        %v7680 = vld [vmem:[%s7614 + $0x208] sm:$0xff]
        %v7681 = vld [vmem:[%s7614 + $0x210] sm:$0xff]
        %v7682 = vld [vmem:[%s7614 + $0x218] sm:$0xff]
        %v7683 = vld [vmem:[%s7614 + $0x220] sm:$0xff]
        %v7684 = vld [vmem:[%s7614 + $0x228] sm:$0xff]
        %v7685 = vld [vmem:[%s7614 + $0x230] sm:$0xff]
        %v7686 = vld [vmem:[%s7614 + $0x238] sm:$0xff]
        %v7687 = vld [vmem:[%s7614 + $0x240] sm:$0xff]
        %v7688 = vld [vmem:[%s7614 + $0x248] sm:$0xff]
        %v7689 = vld [vmem:[%s7614 + $0x250] sm:$0xff]
        %v7690 = vld [vmem:[%s7614 + $0x258] sm:$0xff]
        %v7691 = vld [vmem:[%s7614 + $0x260] sm:$0xff]
        %v7692 = vld [vmem:[%s7614 + $0x268] sm:$0xff]
        %v7693 = vld [vmem:[%s7614 + $0x270] sm:$0xff]
        %v7694 = vld [vmem:[%s7614 + $0x278] sm:$0xff]
        %v7695 = vld [vmem:[%s7614 + $0x280] sm:$0xff]
        %v7696 = vld [vmem:[%s7614 + $0x288] sm:$0xff]
        %v7697 = vld [vmem:[%s7614 + $0x290] sm:$0xff]
        %v7698 = vld [vmem:[%s7614 + $0x298] sm:$0xff]
        %v7699 = vld [vmem:[%s7614 + $0x2a0] sm:$0xff]
        %v7700 = vld [vmem:[%s7614 + $0x2a8] sm:$0xff]
        %v7701 = vld [vmem:[%s7614 + $0x2b0] sm:$0xff]
        %v7702 = vld [vmem:[%s7614 + $0x2b8] sm:$0xff]
        %v7703 = vld [vmem:[%s7614 + $0x2c0] sm:$0xff]
        %v7704 = vld [vmem:[%s7614 + $0x2c8] sm:$0xff]
        %v7705 = vld [vmem:[%s7614 + $0x2d0] sm:$0xff]
        %v7706 = vld [vmem:[%s7614 + $0x2d8] sm:$0xff]
        %v7707 = vld [vmem:[%s7614 + $0x2e0] sm:$0xff]
        %v7708 = vld [vmem:[%s7614 + $0x2e8] sm:$0xff]
        %v7709 = vld [vmem:[%s7614 + $0x2f0] sm:$0xff]
        %v7710 = vld [vmem:[%s7614 + $0x2f8] sm:$0xff]
        %v7711 = vld [vmem:[%s7614 + $0x300] sm:$0xff]
        %v7712 = vld [vmem:[%s7614 + $0x308] sm:$0xff]
        %v7713 = vld [vmem:[%s7614 + $0x310] sm:$0xff]
        %v7714 = vld [vmem:[%s7614 + $0x318] sm:$0xff]
        %v7715 = vld [vmem:[%s7614 + $0x320] sm:$0xff]
        %v7716 = vld [vmem:[%s7614 + $0x328] sm:$0xff]
        %v7717 = vld [vmem:[%s7614 + $0x330] sm:$0xff]
        %v7718 = vld [vmem:[%s7614 + $0x338] sm:$0xff]
        %v7719 = vld [vmem:[%s7614 + $0x340] sm:$0xff]
        %v7720 = vld [vmem:[%s7614 + $0x348] sm:$0xff]
        %v7721 = vld [vmem:[%s7614 + $0x350] sm:$0xff]
        %v7722 = vld [vmem:[%s7614 + $0x358] sm:$0xff]
        %v7723 = vld [vmem:[%s7614 + $0x360] sm:$0xff]
        %v7724 = vld [vmem:[%s7614 + $0x368] sm:$0xff]
        %v7725 = vld [vmem:[%s7614 + $0x370] sm:$0xff]
        %v7726 = vld [vmem:[%s7614 + $0x378] sm:$0xff]
        %v7727 = vld [vmem:[%s7614 + $0x380] sm:$0xff]
        %v7728 = vld [vmem:[%s7614 + $0x388] sm:$0xff]
        %v7729 = vld [vmem:[%s7614 + $0x390] sm:$0xff]
        %v7730 = vld [vmem:[%s7614 + $0x398] sm:$0xff]
        %v7731 = vld [vmem:[%s7614 + $0x3a0] sm:$0xff]
        %v7732 = vld [vmem:[%s7614 + $0x3a8] sm:$0xff]
        %v7733 = vld [vmem:[%s7614 + $0x3b0] sm:$0xff]
        %v7734 = vld [vmem:[%s7614 + $0x3b8] sm:$0xff]
        %v7735 = vld [vmem:[%s7614 + $0x3c0] sm:$0xff]
        %v7736 = vld [vmem:[%s7614 + $0x3c8] sm:$0xff]
        %v7737 = vld [vmem:[%s7614 + $0x3d0] sm:$0xff]
        %v7738 = vld [vmem:[%s7614 + $0x3d8] sm:$0xff]
        %v7739 = vld [vmem:[%s7614 + $0x3e0] sm:$0xff]
        %v7740 = vld [vmem:[%s7614 + $0x3e8] sm:$0xff]
        %v7741 = vld [vmem:[%s7614 + $0x3f0] sm:$0xff]
        %v7742 = vld [vmem:[%s7614 + $0x3f8] sm:$0xff]
        %v7743 = vld [vmem:[%s7614 + $0x400] sm:$0xff]
        %v7744 = vld [vmem:[%s7614 + $0x408] sm:$0xff]
        %v7745 = vld [vmem:[%s7614 + $0x410] sm:$0xff]
        %v7746 = vld [vmem:[%s7614 + $0x418] sm:$0xff]
        %v7747 = vld [vmem:[%s7614 + $0x420] sm:$0xff]
        %v7748 = vld [vmem:[%s7614 + $0x428] sm:$0xff]
        %v7749 = vld [vmem:[%s7614 + $0x430] sm:$0xff]
        %v7750 = vld [vmem:[%s7614 + $0x438] sm:$0xff]
        %v7751 = vld [vmem:[%s7614 + $0x440] sm:$0xff]
        %v7752 = vld [vmem:[%s7614 + $0x448] sm:$0xff]
        %v7753 = vld [vmem:[%s7614 + $0x450] sm:$0xff]
        %v7754 = vld [vmem:[%s7614 + $0x458] sm:$0xff]
        %v7755 = vld [vmem:[%s7614 + $0x460] sm:$0xff]
        %v7756 = vld [vmem:[%s7614 + $0x468] sm:$0xff]
        %v7757 = vld [vmem:[%s7614 + $0x470] sm:$0xff]
        %v7758 = vld [vmem:[%s7614 + $0x478] sm:$0xff]
        %v7759 = vld [vmem:[%s7614 + $0x480] sm:$0xff]
        %v7760 = vld [vmem:[%s7614 + $0x488] sm:$0xff]
        %v7761 = vld [vmem:[%s7614 + $0x490] sm:$0xff]
        %v7762 = vld [vmem:[%s7614 + $0x498] sm:$0xff]
        %v7763 = vld [vmem:[%s7614 + $0x4a0] sm:$0xff]
        %v7764 = vld [vmem:[%s7614 + $0x4a8] sm:$0xff]
        %v7765 = vld [vmem:[%s7614 + $0x4b0] sm:$0xff]
        %v7766 = vld [vmem:[%s7614 + $0x4b8] sm:$0xff]
        %v7767 = vld [vmem:[%s7614 + $0x4c0] sm:$0xff]
        %v7768 = vld [vmem:[%s7614 + $0x4c8] sm:$0xff]
        %v7769 = vld [vmem:[%s7614 + $0x4d0] sm:$0xff]
        %v7770 = vld [vmem:[%s7614 + $0x4d8] sm:$0xff]
        %v7771 = vld [vmem:[%s7614 + $0x4e0] sm:$0xff]
        %v7772 = vld [vmem:[%s7614 + $0x4e8] sm:$0xff]
        %v7773 = vld [vmem:[%s7614 + $0x4f0] sm:$0xff]
        %v7774 = vld [vmem:[%s7614 + $0x4f8] sm:$0xff]
        %v7775 = vld [vmem:[%s7614 + $0x500] sm:$0xff]
        %v7776 = vld [vmem:[%s7614 + $0x508] sm:$0xff]
        %v7777 = vld [vmem:[%s7614 + $0x510] sm:$0xff]
        %v7778 = vld [vmem:[%s7614 + $0x518] sm:$0xff]
        %v7779 = vld [vmem:[%s7614 + $0x520] sm:$0xff]
        %v7780 = vld [vmem:[%s7614 + $0x528] sm:$0xff]
        %v7781 = vld [vmem:[%s7614 + $0x530] sm:$0xff]
        %v7782 = vld [vmem:[%s7614 + $0x538] sm:$0xff]
        %v7783 = vld [vmem:[%s7614 + $0x540] sm:$0xff]
        %v7784 = vld [vmem:[%s7614 + $0x548] sm:$0xff]
        %v7785 = vld [vmem:[%s7614 + $0x550] sm:$0xff]
        %v7786 = vld [vmem:[%s7614 + $0x558] sm:$0xff]
        %v7787 = vld [vmem:[%s7614 + $0x560] sm:$0xff]
        %v7788 = vld [vmem:[%s7614 + $0x568] sm:$0xff]
        %v7789 = vld [vmem:[%s7614 + $0x570] sm:$0xff]
        %v7790 = vld [vmem:[%s7614 + $0x578] sm:$0xff]
        %v7791 = vld [vmem:[%s7614 + $0x580] sm:$0xff]
        %v7792 = vld [vmem:[%s7614 + $0x588] sm:$0xff]
        %v7793 = vld [vmem:[%s7614 + $0x590] sm:$0xff]
        %v7794 = vld [vmem:[%s7614 + $0x598] sm:$0xff]
        %v7795 = vld [vmem:[%s7614 + $0x5a0] sm:$0xff]
        %v7796 = vld [vmem:[%s7614 + $0x5a8] sm:$0xff]
        %v7797 = vld [vmem:[%s7614 + $0x5b0] sm:$0xff]
        %v7798 = vld [vmem:[%s7614 + $0x5b8] sm:$0xff]
        %v7799 = vld [vmem:[%s7614 + $0x5c0] sm:$0xff]
        %v7800 = vld [vmem:[%s7614 + $0x5c8] sm:$0xff]
        %v7801 = vld [vmem:[%s7614 + $0x5d0] sm:$0xff]
        %v7802 = vld [vmem:[%s7614 + $0x5d8] sm:$0xff]
        %v7803 = vld [vmem:[%s7614 + $0x5e0] sm:$0xff]
        %v7804 = vld [vmem:[%s7614 + $0x5e8] sm:$0xff]
        %v7805 = vld [vmem:[%s7614 + $0x5f0] sm:$0xff]
        %v7806 = vld [vmem:[%s7614 + $0x5f8] sm:$0xff]
        %v7807 = vld [vmem:[%s7614 + $0x600] sm:$0xff]
        %v7808 = vld [vmem:[%s7614 + $0x608] sm:$0xff]
        %v7809 = vld [vmem:[%s7614 + $0x610] sm:$0xff]
        %v7810 = vld [vmem:[%s7614 + $0x618] sm:$0xff]
        %v7811 = vld [vmem:[%s7614 + $0x620] sm:$0xff]
        %v7812 = vld [vmem:[%s7614 + $0x628] sm:$0xff]
        %v7813 = vld [vmem:[%s7614 + $0x630] sm:$0xff]
        %v7814 = vld [vmem:[%s7614 + $0x638] sm:$0xff]
        %v7815 = vld [vmem:[%s7614 + $0x640] sm:$0xff]
        %v7816 = vld [vmem:[%s7614 + $0x648] sm:$0xff]
        %v7817 = vld [vmem:[%s7614 + $0x650] sm:$0xff]
        %v7818 = vld [vmem:[%s7614 + $0x658] sm:$0xff]
        %v7819 = vld [vmem:[%s7614 + $0x660] sm:$0xff]
        %v7820 = vld [vmem:[%s7614 + $0x668] sm:$0xff]
        %v7821 = vld [vmem:[%s7614 + $0x670] sm:$0xff]
        %v7822 = vld [vmem:[%s7614 + $0x678] sm:$0xff]
        %v7823 = vld [vmem:[%s7614 + $0x680] sm:$0xff]
        %v7824 = vld [vmem:[%s7614 + $0x688] sm:$0xff]
        %v7825 = vld [vmem:[%s7614 + $0x690] sm:$0xff]
        %v7826 = vld [vmem:[%s7614 + $0x698] sm:$0xff]
        %v7827 = vld [vmem:[%s7614 + $0x6a0] sm:$0xff]
        %v7828 = vld [vmem:[%s7614 + $0x6a8] sm:$0xff]
        %v7829 = vld [vmem:[%s7614 + $0x6b0] sm:$0xff]
        %v7830 = vld [vmem:[%s7614 + $0x6b8] sm:$0xff]
        %v7831 = vld [vmem:[%s7614 + $0x6c0] sm:$0xff]
        %v7832 = vld [vmem:[%s7614 + $0x6c8] sm:$0xff]
        %v7833 = vld [vmem:[%s7614 + $0x6d0] sm:$0xff]
        %v7834 = vld [vmem:[%s7614 + $0x6d8] sm:$0xff]
        %v7835 = vld [vmem:[%s7614 + $0x6e0] sm:$0xff]
        %v7836 = vld [vmem:[%s7614 + $0x6e8] sm:$0xff]
        %v7837 = vld [vmem:[%s7614 + $0x6f0] sm:$0xff]
        %v7838 = vld [vmem:[%s7614 + $0x6f8] sm:$0xff]
        %v7839 = vld [vmem:[%s7614 + $0x700] sm:$0xff]
        %v7840 = vld [vmem:[%s7614 + $0x708] sm:$0xff]
        %v7841 = vld [vmem:[%s7614 + $0x710] sm:$0xff]
        %v7842 = vld [vmem:[%s7614 + $0x718] sm:$0xff]
        %v7843 = vld [vmem:[%s7614 + $0x720] sm:$0xff]
        %v7844 = vld [vmem:[%s7614 + $0x728] sm:$0xff]
        %v7845 = vld [vmem:[%s7614 + $0x730] sm:$0xff]
        %v7846 = vld [vmem:[%s7614 + $0x738] sm:$0xff]
        %v7847 = vld [vmem:[%s7614 + $0x740] sm:$0xff]
        %v7848 = vld [vmem:[%s7614 + $0x748] sm:$0xff]
        %v7849 = vld [vmem:[%s7614 + $0x750] sm:$0xff]
        %v7850 = vld [vmem:[%s7614 + $0x758] sm:$0xff]
        %v7851 = vld [vmem:[%s7614 + $0x760] sm:$0xff]
        %v7852 = vld [vmem:[%s7614 + $0x768] sm:$0xff]
        %v7853 = vld [vmem:[%s7614 + $0x770] sm:$0xff]
        %v7854 = vld [vmem:[%s7614 + $0x778] sm:$0xff]
        %v7855 = vld [vmem:[%s7614 + $0x780] sm:$0xff]
        %v7856 = vld [vmem:[%s7614 + $0x788] sm:$0xff]
        %v7857 = vld [vmem:[%s7614 + $0x790] sm:$0xff]
        %v7858 = vld [vmem:[%s7614 + $0x798] sm:$0xff]
        %v7859 = vld [vmem:[%s7614 + $0x7a0] sm:$0xff]
        %v7860 = vld [vmem:[%s7614 + $0x7a8] sm:$0xff]
        %v7861 = vld [vmem:[%s7614 + $0x7b0] sm:$0xff]
        %v7862 = vld [vmem:[%s7614 + $0x7b8] sm:$0xff]
        %v7863 = vld [vmem:[%s7614 + $0x7c0] sm:$0xff]
        %v7864 = vld [vmem:[%s7614 + $0x7c8] sm:$0xff]
        %v7865 = vld [vmem:[%s7614 + $0x7d0] sm:$0xff]
        %v7866 = vld [vmem:[%s7614 + $0x7d8] sm:$0xff]
        %v7867 = vld [vmem:[%s7614 + $0x7e0] sm:$0xff]
        %v7868 = vld [vmem:[%s7614 + $0x7e8] sm:$0xff]
        %v7869 = vld [vmem:[%s7614 + $0x7f0] sm:$0xff]
        %v7870 = vld [vmem:[%s7614 + $0x7f8] sm:$0xff]
        %v7871 = vpack.c.bf16 %v7612, %v7612
        %v7872 = vpack.c.bf16 %v7613, %v7613
        %s7873 = scalar_lea.vmem [#allocation18], 16
        %v7874 = vld [vmem:[%s7873] sm:$0xff]
        %v7875 = vld [vmem:[%s7873 + $0x8] sm:$0xff]
        %v7878 = vperm.slane %v7874, 0
        %v7879 = vperm.slane %v7874, 1
        %v7880 = vperm.slane %v7874, 2
        %v7881 = vperm.slane %v7874, 3
        %v7882 = vperm.slane %v7874, 4
        %v7883 = vperm.slane %v7874, 5
        %v7884 = vperm.slane %v7874, 6
        %v7885 = vperm.slane %v7874, 7
        %v7886 = vperm.slane %v7875, 0
        %v7887 = vperm.slane %v7875, 1
        %v7888 = vperm.slane %v7875, 2
        %v7889 = vperm.slane %v7875, 3
        %v7890 = vperm.slane %v7875, 4
        %v7891 = vperm.slane %v7875, 5
        %v7892 = vperm.slane %v7875, 6
        %v7893 = vperm.slane %v7875, 7
        %v8166 = vunpack.c.l.b16 %v7615
        %v8167 = vunpack.c.h.b16 %v7615
        %v8168 = vunpack.c.l.b16 %v7616
        %v8169 = vunpack.c.h.b16 %v7616
        %v8170 = vunpack.c.l.b16 %v7617
        %v8171 = vunpack.c.h.b16 %v7617
        %v8172 = vunpack.c.l.b16 %v7618
        %v8173 = vunpack.c.h.b16 %v7618
        %v8174 = vunpack.c.l.b16 %v7619
        %v8175 = vunpack.c.h.b16 %v7619
        %v8176 = vunpack.c.l.b16 %v7620
        %v8177 = vunpack.c.h.b16 %v7620
        %v8178 = vunpack.c.l.b16 %v7621
        %v8179 = vunpack.c.h.b16 %v7621
        %v8180 = vunpack.c.l.b16 %v7622
        %v8181 = vunpack.c.h.b16 %v7622
        %v8182 = vunpack.c.l.b16 %v7623
        %v8183 = vunpack.c.h.b16 %v7623
        %v8184 = vunpack.c.l.b16 %v7624
        %v8185 = vunpack.c.h.b16 %v7624
        %v8186 = vunpack.c.l.b16 %v7625
        %v8187 = vunpack.c.h.b16 %v7625
        %v8188 = vunpack.c.l.b16 %v7626
        %v8189 = vunpack.c.h.b16 %v7626
        %v8190 = vunpack.c.l.b16 %v7627
        %v8191 = vunpack.c.h.b16 %v7627
        %v8192 = vunpack.c.l.b16 %v7628
        %v8193 = vunpack.c.h.b16 %v7628
        %v8194 = vunpack.c.l.b16 %v7629
        %v8195 = vunpack.c.h.b16 %v7629
        %v8196 = vunpack.c.l.b16 %v7630
        %v8197 = vunpack.c.h.b16 %v7630
        %v8198 = vunpack.c.l.b16 %v7631
        %v8199 = vunpack.c.h.b16 %v7631
        %v8200 = vunpack.c.l.b16 %v7632
        %v8201 = vunpack.c.h.b16 %v7632
        %v8202 = vunpack.c.l.b16 %v7633
        %v8203 = vunpack.c.h.b16 %v7633
        %v8204 = vunpack.c.l.b16 %v7634
        %v8205 = vunpack.c.h.b16 %v7634
        %v8206 = vunpack.c.l.b16 %v7635
        %v8207 = vunpack.c.h.b16 %v7635
        %v8208 = vunpack.c.l.b16 %v7636
        %v8209 = vunpack.c.h.b16 %v7636
        %v8210 = vunpack.c.l.b16 %v7637
        %v8211 = vunpack.c.h.b16 %v7637
        %v8212 = vunpack.c.l.b16 %v7638
        %v8213 = vunpack.c.h.b16 %v7638
        %v8214 = vunpack.c.l.b16 %v7639
        %v8215 = vunpack.c.h.b16 %v7639
        %v8216 = vunpack.c.l.b16 %v7640
        %v8217 = vunpack.c.h.b16 %v7640
        %v8218 = vunpack.c.l.b16 %v7641
        %v8219 = vunpack.c.h.b16 %v7641
        %v8220 = vunpack.c.l.b16 %v7642
        %v8221 = vunpack.c.h.b16 %v7642
        %v8222 = vunpack.c.l.b16 %v7643
        %v8223 = vunpack.c.h.b16 %v7643
        %v8224 = vunpack.c.l.b16 %v7644
        %v8225 = vunpack.c.h.b16 %v7644
        %v8226 = vunpack.c.l.b16 %v7645
        %v8227 = vunpack.c.h.b16 %v7645
        %v8228 = vunpack.c.l.b16 %v7646
        %v8229 = vunpack.c.h.b16 %v7646
        %v8230 = vunpack.c.l.b16 %v7647
        %v8231 = vunpack.c.h.b16 %v7647
        %v8232 = vunpack.c.l.b16 %v7648
        %v8233 = vunpack.c.h.b16 %v7648
        %v8234 = vunpack.c.l.b16 %v7649
        %v8235 = vunpack.c.h.b16 %v7649
        %v8236 = vunpack.c.l.b16 %v7650
        %v8237 = vunpack.c.h.b16 %v7650
        %v8238 = vunpack.c.l.b16 %v7651
        %v8239 = vunpack.c.h.b16 %v7651
        %v8240 = vunpack.c.l.b16 %v7652
        %v8241 = vunpack.c.h.b16 %v7652
        %v8242 = vunpack.c.l.b16 %v7653
        %v8243 = vunpack.c.h.b16 %v7653
        %v8244 = vunpack.c.l.b16 %v7654
        %v8245 = vunpack.c.h.b16 %v7654
        %v8246 = vunpack.c.l.b16 %v7655
        %v8247 = vunpack.c.h.b16 %v7655
        %v8248 = vunpack.c.l.b16 %v7656
        %v8249 = vunpack.c.h.b16 %v7656
        %v8250 = vunpack.c.l.b16 %v7657
        %v8251 = vunpack.c.h.b16 %v7657
        %v8252 = vunpack.c.l.b16 %v7658
        %v8253 = vunpack.c.h.b16 %v7658
        %v8254 = vunpack.c.l.b16 %v7659
        %v8255 = vunpack.c.h.b16 %v7659
        %v8256 = vunpack.c.l.b16 %v7660
        %v8257 = vunpack.c.h.b16 %v7660
        %v8258 = vunpack.c.l.b16 %v7661
        %v8259 = vunpack.c.h.b16 %v7661
        %v8260 = vunpack.c.l.b16 %v7662
        %v8261 = vunpack.c.h.b16 %v7662
        %v8262 = vunpack.c.l.b16 %v7663
        %v8263 = vunpack.c.h.b16 %v7663
        %v8264 = vunpack.c.l.b16 %v7664
        %v8265 = vunpack.c.h.b16 %v7664
        %v8266 = vunpack.c.l.b16 %v7665
        %v8267 = vunpack.c.h.b16 %v7665
        %v8268 = vunpack.c.l.b16 %v7666
        %v8269 = vunpack.c.h.b16 %v7666
        %v8270 = vunpack.c.l.b16 %v7667
        %v8271 = vunpack.c.h.b16 %v7667
        %v8272 = vunpack.c.l.b16 %v7668
        %v8273 = vunpack.c.h.b16 %v7668
        %v8274 = vunpack.c.l.b16 %v7669
        %v8275 = vunpack.c.h.b16 %v7669
        %v8276 = vunpack.c.l.b16 %v7670
        %v8277 = vunpack.c.h.b16 %v7670
        %v8278 = vunpack.c.l.b16 %v7671
        %v8279 = vunpack.c.h.b16 %v7671
        %v8280 = vunpack.c.l.b16 %v7672
        %v8281 = vunpack.c.h.b16 %v7672
        %v8282 = vunpack.c.l.b16 %v7673
        %v8283 = vunpack.c.h.b16 %v7673
        %v8284 = vunpack.c.l.b16 %v7674
        %v8285 = vunpack.c.h.b16 %v7674
        %v8286 = vunpack.c.l.b16 %v7675
        %v8287 = vunpack.c.h.b16 %v7675
        %v8288 = vunpack.c.l.b16 %v7676
        %v8289 = vunpack.c.h.b16 %v7676
        %v8290 = vunpack.c.l.b16 %v7677
        %v8291 = vunpack.c.h.b16 %v7677
        %v8292 = vunpack.c.l.b16 %v7678
        %v8293 = vunpack.c.h.b16 %v7678
        %v8294 = vunpack.c.l.b16 %v7679
        %v8295 = vunpack.c.h.b16 %v7679
        %v8296 = vunpack.c.l.b16 %v7680
        %v8297 = vunpack.c.h.b16 %v7680
        %v8298 = vunpack.c.l.b16 %v7681
        %v8299 = vunpack.c.h.b16 %v7681
        %v8300 = vunpack.c.l.b16 %v7682
        %v8301 = vunpack.c.h.b16 %v7682
        %v8302 = vunpack.c.l.b16 %v7683
        %v8303 = vunpack.c.h.b16 %v7683
        %v8304 = vunpack.c.l.b16 %v7684
        %v8305 = vunpack.c.h.b16 %v7684
        %v8306 = vunpack.c.l.b16 %v7685
        %v8307 = vunpack.c.h.b16 %v7685
        %v8308 = vunpack.c.l.b16 %v7686
        %v8309 = vunpack.c.h.b16 %v7686
        %v8310 = vunpack.c.l.b16 %v7687
        %v8311 = vunpack.c.h.b16 %v7687
        %v8312 = vunpack.c.l.b16 %v7688
        %v8313 = vunpack.c.h.b16 %v7688
        %v8314 = vunpack.c.l.b16 %v7689
        %v8315 = vunpack.c.h.b16 %v7689
        %v8316 = vunpack.c.l.b16 %v7690
        %v8317 = vunpack.c.h.b16 %v7690
        %v8318 = vunpack.c.l.b16 %v7691
        %v8319 = vunpack.c.h.b16 %v7691
        %v8320 = vunpack.c.l.b16 %v7692
        %v8321 = vunpack.c.h.b16 %v7692
        %v8322 = vunpack.c.l.b16 %v7693
        %v8323 = vunpack.c.h.b16 %v7693
        %v8324 = vunpack.c.l.b16 %v7694
        %v8325 = vunpack.c.h.b16 %v7694
        %v8326 = vunpack.c.l.b16 %v7695
        %v8327 = vunpack.c.h.b16 %v7695
        %v8328 = vunpack.c.l.b16 %v7696
        %v8329 = vunpack.c.h.b16 %v7696
        %v8330 = vunpack.c.l.b16 %v7697
        %v8331 = vunpack.c.h.b16 %v7697
        %v8332 = vunpack.c.l.b16 %v7698
        %v8333 = vunpack.c.h.b16 %v7698
        %v8334 = vunpack.c.l.b16 %v7699
        %v8335 = vunpack.c.h.b16 %v7699
        %v8336 = vunpack.c.l.b16 %v7700
        %v8337 = vunpack.c.h.b16 %v7700
        %v8338 = vunpack.c.l.b16 %v7701
        %v8339 = vunpack.c.h.b16 %v7701
        %v8340 = vunpack.c.l.b16 %v7702
        %v8341 = vunpack.c.h.b16 %v7702
        %v8342 = vunpack.c.l.b16 %v7703
        %v8343 = vunpack.c.h.b16 %v7703
        %v8344 = vunpack.c.l.b16 %v7704
        %v8345 = vunpack.c.h.b16 %v7704
        %v8346 = vunpack.c.l.b16 %v7705
        %v8347 = vunpack.c.h.b16 %v7705
        %v8348 = vunpack.c.l.b16 %v7706
        %v8349 = vunpack.c.h.b16 %v7706
        %v8350 = vunpack.c.l.b16 %v7707
        %v8351 = vunpack.c.h.b16 %v7707
        %v8352 = vunpack.c.l.b16 %v7708
        %v8353 = vunpack.c.h.b16 %v7708
        %v8354 = vunpack.c.l.b16 %v7709
        %v8355 = vunpack.c.h.b16 %v7709
        %v8356 = vunpack.c.l.b16 %v7710
        %v8357 = vunpack.c.h.b16 %v7710
        %v8358 = vunpack.c.l.b16 %v7711
        %v8359 = vunpack.c.h.b16 %v7711
        %v8360 = vunpack.c.l.b16 %v7712
        %v8361 = vunpack.c.h.b16 %v7712
        %v8362 = vunpack.c.l.b16 %v7713
        %v8363 = vunpack.c.h.b16 %v7713
        %v8364 = vunpack.c.l.b16 %v7714
        %v8365 = vunpack.c.h.b16 %v7714
        %v8366 = vunpack.c.l.b16 %v7715
        %v8367 = vunpack.c.h.b16 %v7715
        %v8368 = vunpack.c.l.b16 %v7716
        %v8369 = vunpack.c.h.b16 %v7716
        %v8370 = vunpack.c.l.b16 %v7717
        %v8371 = vunpack.c.h.b16 %v7717
        %v8372 = vunpack.c.l.b16 %v7718
        %v8373 = vunpack.c.h.b16 %v7718
        %v8374 = vunpack.c.l.b16 %v7719
        %v8375 = vunpack.c.h.b16 %v7719
        %v8376 = vunpack.c.l.b16 %v7720
        %v8377 = vunpack.c.h.b16 %v7720
        %v8378 = vunpack.c.l.b16 %v7721
        %v8379 = vunpack.c.h.b16 %v7721
        %v8380 = vunpack.c.l.b16 %v7722
        %v8381 = vunpack.c.h.b16 %v7722
        %v8382 = vunpack.c.l.b16 %v7723
        %v8383 = vunpack.c.h.b16 %v7723
        %v8384 = vunpack.c.l.b16 %v7724
        %v8385 = vunpack.c.h.b16 %v7724
        %v8386 = vunpack.c.l.b16 %v7725
        %v8387 = vunpack.c.h.b16 %v7725
        %v8388 = vunpack.c.l.b16 %v7726
        %v8389 = vunpack.c.h.b16 %v7726
        %v8390 = vunpack.c.l.b16 %v7727
        %v8391 = vunpack.c.h.b16 %v7727
        %v8392 = vunpack.c.l.b16 %v7728
        %v8393 = vunpack.c.h.b16 %v7728
        %v8394 = vunpack.c.l.b16 %v7729
        %v8395 = vunpack.c.h.b16 %v7729
        %v8396 = vunpack.c.l.b16 %v7730
        %v8397 = vunpack.c.h.b16 %v7730
        %v8398 = vunpack.c.l.b16 %v7731
        %v8399 = vunpack.c.h.b16 %v7731
        %v8400 = vunpack.c.l.b16 %v7732
        %v8401 = vunpack.c.h.b16 %v7732
        %v8402 = vunpack.c.l.b16 %v7733
        %v8403 = vunpack.c.h.b16 %v7733
        %v8404 = vunpack.c.l.b16 %v7734
        %v8405 = vunpack.c.h.b16 %v7734
        %v8406 = vunpack.c.l.b16 %v7735
        %v8407 = vunpack.c.h.b16 %v7735
        %v8408 = vunpack.c.l.b16 %v7736
        %v8409 = vunpack.c.h.b16 %v7736
        %v8410 = vunpack.c.l.b16 %v7737
        %v8411 = vunpack.c.h.b16 %v7737
        %v8412 = vunpack.c.l.b16 %v7738
        %v8413 = vunpack.c.h.b16 %v7738
        %v8414 = vunpack.c.l.b16 %v7739
        %v8415 = vunpack.c.h.b16 %v7739
        %v8416 = vunpack.c.l.b16 %v7740
        %v8417 = vunpack.c.h.b16 %v7740
        %v8418 = vunpack.c.l.b16 %v7741
        %v8419 = vunpack.c.h.b16 %v7741
        %v8420 = vunpack.c.l.b16 %v7742
        %v8421 = vunpack.c.h.b16 %v7742
        %v8422 = vunpack.c.l.b16 %v7743
        %v8423 = vunpack.c.h.b16 %v7743
        %v8424 = vunpack.c.l.b16 %v7744
        %v8425 = vunpack.c.h.b16 %v7744
        %v8426 = vunpack.c.l.b16 %v7745
        %v8427 = vunpack.c.h.b16 %v7745
        %v8428 = vunpack.c.l.b16 %v7746
        %v8429 = vunpack.c.h.b16 %v7746
        %v8430 = vunpack.c.l.b16 %v7747
        %v8431 = vunpack.c.h.b16 %v7747
        %v8432 = vunpack.c.l.b16 %v7748
        %v8433 = vunpack.c.h.b16 %v7748
        %v8434 = vunpack.c.l.b16 %v7749
        %v8435 = vunpack.c.h.b16 %v7749
        %v8436 = vunpack.c.l.b16 %v7750
        %v8437 = vunpack.c.h.b16 %v7750
        %v8438 = vunpack.c.l.b16 %v7751
        %v8439 = vunpack.c.h.b16 %v7751
        %v8440 = vunpack.c.l.b16 %v7752
        %v8441 = vunpack.c.h.b16 %v7752
        %v8442 = vunpack.c.l.b16 %v7753
        %v8443 = vunpack.c.h.b16 %v7753
        %v8444 = vunpack.c.l.b16 %v7754
        %v8445 = vunpack.c.h.b16 %v7754
        %v8446 = vunpack.c.l.b16 %v7755
        %v8447 = vunpack.c.h.b16 %v7755
        %v8448 = vunpack.c.l.b16 %v7756
        %v8449 = vunpack.c.h.b16 %v7756
        %v8450 = vunpack.c.l.b16 %v7757
        %v8451 = vunpack.c.h.b16 %v7757
        %v8452 = vunpack.c.l.b16 %v7758
        %v8453 = vunpack.c.h.b16 %v7758
        %v8454 = vunpack.c.l.b16 %v7759
        %v8455 = vunpack.c.h.b16 %v7759
        %v8456 = vunpack.c.l.b16 %v7760
        %v8457 = vunpack.c.h.b16 %v7760
        %v8458 = vunpack.c.l.b16 %v7761
        %v8459 = vunpack.c.h.b16 %v7761
        %v8460 = vunpack.c.l.b16 %v7762
        %v8461 = vunpack.c.h.b16 %v7762
        %v8462 = vunpack.c.l.b16 %v7763
        %v8463 = vunpack.c.h.b16 %v7763
        %v8464 = vunpack.c.l.b16 %v7764
        %v8465 = vunpack.c.h.b16 %v7764
        %v8466 = vunpack.c.l.b16 %v7765
        %v8467 = vunpack.c.h.b16 %v7765
        %v8468 = vunpack.c.l.b16 %v7766
        %v8469 = vunpack.c.h.b16 %v7766
        %v8470 = vunpack.c.l.b16 %v7767
        %v8471 = vunpack.c.h.b16 %v7767
        %v8472 = vunpack.c.l.b16 %v7768
        %v8473 = vunpack.c.h.b16 %v7768
        %v8474 = vunpack.c.l.b16 %v7769
        %v8475 = vunpack.c.h.b16 %v7769
        %v8476 = vunpack.c.l.b16 %v7770
        %v8477 = vunpack.c.h.b16 %v7770
        %v8478 = vunpack.c.l.b16 %v7771
        %v8479 = vunpack.c.h.b16 %v7771
        %v8480 = vunpack.c.l.b16 %v7772
        %v8481 = vunpack.c.h.b16 %v7772
        %v8482 = vunpack.c.l.b16 %v7773
        %v8483 = vunpack.c.h.b16 %v7773
        %v8484 = vunpack.c.l.b16 %v7774
        %v8485 = vunpack.c.h.b16 %v7774
        %v8486 = vunpack.c.l.b16 %v7775
        %v8487 = vunpack.c.h.b16 %v7775
        %v8488 = vunpack.c.l.b16 %v7776
        %v8489 = vunpack.c.h.b16 %v7776
        %v8490 = vunpack.c.l.b16 %v7777
        %v8491 = vunpack.c.h.b16 %v7777
        %v8492 = vunpack.c.l.b16 %v7778
        %v8493 = vunpack.c.h.b16 %v7778
        %v8494 = vunpack.c.l.b16 %v7779
        %v8495 = vunpack.c.h.b16 %v7779
        %v8496 = vunpack.c.l.b16 %v7780
        %v8497 = vunpack.c.h.b16 %v7780
        %v8498 = vunpack.c.l.b16 %v7781
        %v8499 = vunpack.c.h.b16 %v7781
        %v8500 = vunpack.c.l.b16 %v7782
        %v8501 = vunpack.c.h.b16 %v7782
        %v8502 = vunpack.c.l.b16 %v7783
        %v8503 = vunpack.c.h.b16 %v7783
        %v8504 = vunpack.c.l.b16 %v7784
        %v8505 = vunpack.c.h.b16 %v7784
        %v8506 = vunpack.c.l.b16 %v7785
        %v8507 = vunpack.c.h.b16 %v7785
        %v8508 = vunpack.c.l.b16 %v7786
        %v8509 = vunpack.c.h.b16 %v7786
        %v8510 = vunpack.c.l.b16 %v7787
        %v8511 = vunpack.c.h.b16 %v7787
        %v8512 = vunpack.c.l.b16 %v7788
        %v8513 = vunpack.c.h.b16 %v7788
        %v8514 = vunpack.c.l.b16 %v7789
        %v8515 = vunpack.c.h.b16 %v7789
        %v8516 = vunpack.c.l.b16 %v7790
        %v8517 = vunpack.c.h.b16 %v7790
        %v8518 = vunpack.c.l.b16 %v7791
        %v8519 = vunpack.c.h.b16 %v7791
        %v8520 = vunpack.c.l.b16 %v7792
        %v8521 = vunpack.c.h.b16 %v7792
        %v8522 = vunpack.c.l.b16 %v7793
        %v8523 = vunpack.c.h.b16 %v7793
        %v8524 = vunpack.c.l.b16 %v7794
        %v8525 = vunpack.c.h.b16 %v7794
        %v8526 = vunpack.c.l.b16 %v7795
        %v8527 = vunpack.c.h.b16 %v7795
        %v8528 = vunpack.c.l.b16 %v7796
        %v8529 = vunpack.c.h.b16 %v7796
        %v8530 = vunpack.c.l.b16 %v7797
        %v8531 = vunpack.c.h.b16 %v7797
        %v8532 = vunpack.c.l.b16 %v7798
        %v8533 = vunpack.c.h.b16 %v7798
        %v8534 = vunpack.c.l.b16 %v7799
        %v8535 = vunpack.c.h.b16 %v7799
        %v8536 = vunpack.c.l.b16 %v7800
        %v8537 = vunpack.c.h.b16 %v7800
        %v8538 = vunpack.c.l.b16 %v7801
        %v8539 = vunpack.c.h.b16 %v7801
        %v8540 = vunpack.c.l.b16 %v7802
        %v8541 = vunpack.c.h.b16 %v7802
        %v8542 = vunpack.c.l.b16 %v7803
        %v8543 = vunpack.c.h.b16 %v7803
        %v8544 = vunpack.c.l.b16 %v7804
        %v8545 = vunpack.c.h.b16 %v7804
        %v8546 = vunpack.c.l.b16 %v7805
        %v8547 = vunpack.c.h.b16 %v7805
        %v8548 = vunpack.c.l.b16 %v7806
        %v8549 = vunpack.c.h.b16 %v7806
        %v8550 = vunpack.c.l.b16 %v7807
        %v8551 = vunpack.c.h.b16 %v7807
        %v8552 = vunpack.c.l.b16 %v7808
        %v8553 = vunpack.c.h.b16 %v7808
        %v8554 = vunpack.c.l.b16 %v7809
        %v8555 = vunpack.c.h.b16 %v7809
        %v8556 = vunpack.c.l.b16 %v7810
        %v8557 = vunpack.c.h.b16 %v7810
        %v8558 = vunpack.c.l.b16 %v7811
        %v8559 = vunpack.c.h.b16 %v7811
        %v8560 = vunpack.c.l.b16 %v7812
        %v8561 = vunpack.c.h.b16 %v7812
        %v8562 = vunpack.c.l.b16 %v7813
        %v8563 = vunpack.c.h.b16 %v7813
        %v8564 = vunpack.c.l.b16 %v7814
        %v8565 = vunpack.c.h.b16 %v7814
        %v8566 = vunpack.c.l.b16 %v7815
        %v8567 = vunpack.c.h.b16 %v7815
        %v8568 = vunpack.c.l.b16 %v7816
        %v8569 = vunpack.c.h.b16 %v7816
        %v8570 = vunpack.c.l.b16 %v7817
        %v8571 = vunpack.c.h.b16 %v7817
        %v8572 = vunpack.c.l.b16 %v7818
        %v8573 = vunpack.c.h.b16 %v7818
        %v8574 = vunpack.c.l.b16 %v7819
        %v8575 = vunpack.c.h.b16 %v7819
        %v8576 = vunpack.c.l.b16 %v7820
        %v8577 = vunpack.c.h.b16 %v7820
        %v8578 = vunpack.c.l.b16 %v7821
        %v8579 = vunpack.c.h.b16 %v7821
        %v8580 = vunpack.c.l.b16 %v7822
        %v8581 = vunpack.c.h.b16 %v7822
        %v8582 = vunpack.c.l.b16 %v7823
        %v8583 = vunpack.c.h.b16 %v7823
        %v8584 = vunpack.c.l.b16 %v7824
        %v8585 = vunpack.c.h.b16 %v7824
        %v8586 = vunpack.c.l.b16 %v7825
        %v8587 = vunpack.c.h.b16 %v7825
        %v8588 = vunpack.c.l.b16 %v7826
        %v8589 = vunpack.c.h.b16 %v7826
        %v8590 = vunpack.c.l.b16 %v7827
        %v8591 = vunpack.c.h.b16 %v7827
        %v8592 = vunpack.c.l.b16 %v7828
        %v8593 = vunpack.c.h.b16 %v7828
        %v8594 = vunpack.c.l.b16 %v7829
        %v8595 = vunpack.c.h.b16 %v7829
        %v8596 = vunpack.c.l.b16 %v7830
        %v8597 = vunpack.c.h.b16 %v7830
        %v8598 = vunpack.c.l.b16 %v7831
        %v8599 = vunpack.c.h.b16 %v7831
        %v8600 = vunpack.c.l.b16 %v7832
        %v8601 = vunpack.c.h.b16 %v7832
        %v8602 = vunpack.c.l.b16 %v7833
        %v8603 = vunpack.c.h.b16 %v7833
        %v8604 = vunpack.c.l.b16 %v7834
        %v8605 = vunpack.c.h.b16 %v7834
        %v8606 = vunpack.c.l.b16 %v7835
        %v8607 = vunpack.c.h.b16 %v7835
        %v8608 = vunpack.c.l.b16 %v7836
        %v8609 = vunpack.c.h.b16 %v7836
        %v8610 = vunpack.c.l.b16 %v7837
        %v8611 = vunpack.c.h.b16 %v7837
        %v8612 = vunpack.c.l.b16 %v7838
        %v8613 = vunpack.c.h.b16 %v7838
        %v8614 = vunpack.c.l.b16 %v7839
        %v8615 = vunpack.c.h.b16 %v7839
        %v8616 = vunpack.c.l.b16 %v7840
        %v8617 = vunpack.c.h.b16 %v7840
        %v8618 = vunpack.c.l.b16 %v7841
        %v8619 = vunpack.c.h.b16 %v7841
        %v8620 = vunpack.c.l.b16 %v7842
        %v8621 = vunpack.c.h.b16 %v7842
        %v8622 = vunpack.c.l.b16 %v7843
        %v8623 = vunpack.c.h.b16 %v7843
        %v8624 = vunpack.c.l.b16 %v7844
        %v8625 = vunpack.c.h.b16 %v7844
        %v8626 = vunpack.c.l.b16 %v7845
        %v8627 = vunpack.c.h.b16 %v7845
        %v8628 = vunpack.c.l.b16 %v7846
        %v8629 = vunpack.c.h.b16 %v7846
        %v8630 = vunpack.c.l.b16 %v7847
        %v8631 = vunpack.c.h.b16 %v7847
        %v8632 = vunpack.c.l.b16 %v7848
        %v8633 = vunpack.c.h.b16 %v7848
        %v8634 = vunpack.c.l.b16 %v7849
        %v8635 = vunpack.c.h.b16 %v7849
        %v8636 = vunpack.c.l.b16 %v7850
        %v8637 = vunpack.c.h.b16 %v7850
        %v8638 = vunpack.c.l.b16 %v7851
        %v8639 = vunpack.c.h.b16 %v7851
        %v8640 = vunpack.c.l.b16 %v7852
        %v8641 = vunpack.c.h.b16 %v7852
        %v8642 = vunpack.c.l.b16 %v7853
        %v8643 = vunpack.c.h.b16 %v7853
        %v8644 = vunpack.c.l.b16 %v7854
        %v8645 = vunpack.c.h.b16 %v7854
        %v8646 = vunpack.c.l.b16 %v7855
        %v8647 = vunpack.c.h.b16 %v7855
        %v8648 = vunpack.c.l.b16 %v7856
        %v8649 = vunpack.c.h.b16 %v7856
        %v8650 = vunpack.c.l.b16 %v7857
        %v8651 = vunpack.c.h.b16 %v7857
        %v8652 = vunpack.c.l.b16 %v7858
        %v8653 = vunpack.c.h.b16 %v7858
        %v8654 = vunpack.c.l.b16 %v7859
        %v8655 = vunpack.c.h.b16 %v7859
        %v8656 = vunpack.c.l.b16 %v7860
        %v8657 = vunpack.c.h.b16 %v7860
        %v8658 = vunpack.c.l.b16 %v7861
        %v8659 = vunpack.c.h.b16 %v7861
        %v8660 = vunpack.c.l.b16 %v7862
        %v8661 = vunpack.c.h.b16 %v7862
        %v8662 = vunpack.c.l.b16 %v7863
        %v8663 = vunpack.c.h.b16 %v7863
        %v8664 = vunpack.c.l.b16 %v7864
        %v8665 = vunpack.c.h.b16 %v7864
        %v8666 = vunpack.c.l.b16 %v7865
        %v8667 = vunpack.c.h.b16 %v7865
        %v8668 = vunpack.c.l.b16 %v7866
        %v8669 = vunpack.c.h.b16 %v7866
        %v8670 = vunpack.c.l.b16 %v7867
        %v8671 = vunpack.c.h.b16 %v7867
        %v8672 = vunpack.c.l.b16 %v7868
        %v8673 = vunpack.c.h.b16 %v7868
        %v8674 = vunpack.c.l.b16 %v7869
        %v8675 = vunpack.c.h.b16 %v7869
        %v8676 = vunpack.c.l.b16 %v7870
        %v8677 = vunpack.c.h.b16 %v7870
        %v8678 = vpack.c.b16 %v8182, %v8166
        %v8679 = vpack.c.b16 %v8183, %v8167
        %v8680 = vpack.c.b16 %v8184, %v8168
        %v8681 = vpack.c.b16 %v8185, %v8169
        %v8682 = vpack.c.b16 %v8186, %v8170
        %v8683 = vpack.c.b16 %v8187, %v8171
        %v8684 = vpack.c.b16 %v8188, %v8172
        %v8685 = vpack.c.b16 %v8189, %v8173
        %v8686 = vpack.c.b16 %v8190, %v8174
        %v8687 = vpack.c.b16 %v8191, %v8175
        %v8688 = vpack.c.b16 %v8192, %v8176
        %v8689 = vpack.c.b16 %v8193, %v8177
        %v8690 = vpack.c.b16 %v8194, %v8178
        %v8691 = vpack.c.b16 %v8195, %v8179
        %v8692 = vpack.c.b16 %v8196, %v8180
        %v8693 = vpack.c.b16 %v8197, %v8181
        %v8694 = vpack.c.b16 %v8214, %v8198
        %v8695 = vpack.c.b16 %v8215, %v8199
        %v8696 = vpack.c.b16 %v8216, %v8200
        %v8697 = vpack.c.b16 %v8217, %v8201
        %v8698 = vpack.c.b16 %v8218, %v8202
        %v8699 = vpack.c.b16 %v8219, %v8203
        %v8700 = vpack.c.b16 %v8220, %v8204
        %v8701 = vpack.c.b16 %v8221, %v8205
        %v8702 = vpack.c.b16 %v8222, %v8206
        %v8703 = vpack.c.b16 %v8223, %v8207
        %v8704 = vpack.c.b16 %v8224, %v8208
        %v8705 = vpack.c.b16 %v8225, %v8209
        %v8706 = vpack.c.b16 %v8226, %v8210
        %v8707 = vpack.c.b16 %v8227, %v8211
        %v8708 = vpack.c.b16 %v8228, %v8212
        %v8709 = vpack.c.b16 %v8229, %v8213
        %v8710 = vpack.c.b16 %v8246, %v8230
        %v8711 = vpack.c.b16 %v8247, %v8231
        %v8712 = vpack.c.b16 %v8248, %v8232
        %v8713 = vpack.c.b16 %v8249, %v8233
        %v8714 = vpack.c.b16 %v8250, %v8234
        %v8715 = vpack.c.b16 %v8251, %v8235
        %v8716 = vpack.c.b16 %v8252, %v8236
        %v8717 = vpack.c.b16 %v8253, %v8237
        %v8718 = vpack.c.b16 %v8254, %v8238
        %v8719 = vpack.c.b16 %v8255, %v8239
        %v8720 = vpack.c.b16 %v8256, %v8240
        %v8721 = vpack.c.b16 %v8257, %v8241
        %v8722 = vpack.c.b16 %v8258, %v8242
        %v8723 = vpack.c.b16 %v8259, %v8243
        %v8724 = vpack.c.b16 %v8260, %v8244
        %v8725 = vpack.c.b16 %v8261, %v8245
        %v8726 = vpack.c.b16 %v8278, %v8262
        %v8727 = vpack.c.b16 %v8279, %v8263
        %v8728 = vpack.c.b16 %v8280, %v8264
        %v8729 = vpack.c.b16 %v8281, %v8265
        %v8730 = vpack.c.b16 %v8282, %v8266
        %v8731 = vpack.c.b16 %v8283, %v8267
        %v8732 = vpack.c.b16 %v8284, %v8268
        %v8733 = vpack.c.b16 %v8285, %v8269
        %v8734 = vpack.c.b16 %v8286, %v8270
        %v8735 = vpack.c.b16 %v8287, %v8271
        %v8736 = vpack.c.b16 %v8288, %v8272
        %v8737 = vpack.c.b16 %v8289, %v8273
        %v8738 = vpack.c.b16 %v8290, %v8274
        %v8739 = vpack.c.b16 %v8291, %v8275
        %v8740 = vpack.c.b16 %v8292, %v8276
        %v8741 = vpack.c.b16 %v8293, %v8277
        %v8742 = vpack.c.b16 %v8310, %v8294
        %v8743 = vpack.c.b16 %v8311, %v8295
        %v8744 = vpack.c.b16 %v8312, %v8296
        %v8745 = vpack.c.b16 %v8313, %v8297
        %v8746 = vpack.c.b16 %v8314, %v8298
        %v8747 = vpack.c.b16 %v8315, %v8299
        %v8748 = vpack.c.b16 %v8316, %v8300
        %v8749 = vpack.c.b16 %v8317, %v8301
        %v8750 = vpack.c.b16 %v8318, %v8302
        %v8751 = vpack.c.b16 %v8319, %v8303
        %v8752 = vpack.c.b16 %v8320, %v8304
        %v8753 = vpack.c.b16 %v8321, %v8305
        %v8754 = vpack.c.b16 %v8322, %v8306
        %v8755 = vpack.c.b16 %v8323, %v8307
        %v8756 = vpack.c.b16 %v8324, %v8308
        %v8757 = vpack.c.b16 %v8325, %v8309
        %v8758 = vpack.c.b16 %v8342, %v8326
        %v8759 = vpack.c.b16 %v8343, %v8327
        %v8760 = vpack.c.b16 %v8344, %v8328
        %v8761 = vpack.c.b16 %v8345, %v8329
        %v8762 = vpack.c.b16 %v8346, %v8330
        %v8763 = vpack.c.b16 %v8347, %v8331
        %v8764 = vpack.c.b16 %v8348, %v8332
        %v8765 = vpack.c.b16 %v8349, %v8333
        %v8766 = vpack.c.b16 %v8350, %v8334
        %v8767 = vpack.c.b16 %v8351, %v8335
        %v8768 = vpack.c.b16 %v8352, %v8336
        %v8769 = vpack.c.b16 %v8353, %v8337
        %v8770 = vpack.c.b16 %v8354, %v8338
        %v8771 = vpack.c.b16 %v8355, %v8339
        %v8772 = vpack.c.b16 %v8356, %v8340
        %v8773 = vpack.c.b16 %v8357, %v8341
        %v8774 = vpack.c.b16 %v8374, %v8358
        %v8775 = vpack.c.b16 %v8375, %v8359
        %v8776 = vpack.c.b16 %v8376, %v8360
        %v8777 = vpack.c.b16 %v8377, %v8361
        %v8778 = vpack.c.b16 %v8378, %v8362
        %v8779 = vpack.c.b16 %v8379, %v8363
        %v8780 = vpack.c.b16 %v8380, %v8364
        %v8781 = vpack.c.b16 %v8381, %v8365
        %v8782 = vpack.c.b16 %v8382, %v8366
        %v8783 = vpack.c.b16 %v8383, %v8367
        %v8784 = vpack.c.b16 %v8384, %v8368
        %v8785 = vpack.c.b16 %v8385, %v8369
        %v8786 = vpack.c.b16 %v8386, %v8370
        %v8787 = vpack.c.b16 %v8387, %v8371
        %v8788 = vpack.c.b16 %v8388, %v8372
        %v8789 = vpack.c.b16 %v8389, %v8373
        %v8790 = vpack.c.b16 %v8406, %v8390
        %v8791 = vpack.c.b16 %v8407, %v8391
        %v8792 = vpack.c.b16 %v8408, %v8392
        %v8793 = vpack.c.b16 %v8409, %v8393
        %v8794 = vpack.c.b16 %v8410, %v8394
        %v8795 = vpack.c.b16 %v8411, %v8395
        %v8796 = vpack.c.b16 %v8412, %v8396
        %v8797 = vpack.c.b16 %v8413, %v8397
        %v8798 = vpack.c.b16 %v8414, %v8398
        %v8799 = vpack.c.b16 %v8415, %v8399
        %v8800 = vpack.c.b16 %v8416, %v8400
        %v8801 = vpack.c.b16 %v8417, %v8401
        %v8802 = vpack.c.b16 %v8418, %v8402
        %v8803 = vpack.c.b16 %v8419, %v8403
        %v8804 = vpack.c.b16 %v8420, %v8404
        %v8805 = vpack.c.b16 %v8421, %v8405
        %v8806 = vpack.c.b16 %v8438, %v8422
        %v8807 = vpack.c.b16 %v8439, %v8423
        %v8808 = vpack.c.b16 %v8440, %v8424
        %v8809 = vpack.c.b16 %v8441, %v8425
        %v8810 = vpack.c.b16 %v8442, %v8426
        %v8811 = vpack.c.b16 %v8443, %v8427
        %v8812 = vpack.c.b16 %v8444, %v8428
        %v8813 = vpack.c.b16 %v8445, %v8429
        %v8814 = vpack.c.b16 %v8446, %v8430
        %v8815 = vpack.c.b16 %v8447, %v8431
        %v8816 = vpack.c.b16 %v8448, %v8432
        %v8817 = vpack.c.b16 %v8449, %v8433
        %v8818 = vpack.c.b16 %v8450, %v8434
        %v8819 = vpack.c.b16 %v8451, %v8435
        %v8820 = vpack.c.b16 %v8452, %v8436
        %v8821 = vpack.c.b16 %v8453, %v8437
        %v8822 = vpack.c.b16 %v8470, %v8454
        %v8823 = vpack.c.b16 %v8471, %v8455
        %v8824 = vpack.c.b16 %v8472, %v8456
        %v8825 = vpack.c.b16 %v8473, %v8457
        %v8826 = vpack.c.b16 %v8474, %v8458
        %v8827 = vpack.c.b16 %v8475, %v8459
        %v8828 = vpack.c.b16 %v8476, %v8460
        %v8829 = vpack.c.b16 %v8477, %v8461
        %v8830 = vpack.c.b16 %v8478, %v8462
        %v8831 = vpack.c.b16 %v8479, %v8463
        %v8832 = vpack.c.b16 %v8480, %v8464
        %v8833 = vpack.c.b16 %v8481, %v8465
        %v8834 = vpack.c.b16 %v8482, %v8466
        %v8835 = vpack.c.b16 %v8483, %v8467
        %v8836 = vpack.c.b16 %v8484, %v8468
        %v8837 = vpack.c.b16 %v8485, %v8469
        %v8838 = vpack.c.b16 %v8502, %v8486
        %v8839 = vpack.c.b16 %v8503, %v8487
        %v8840 = vpack.c.b16 %v8504, %v8488
        %v8841 = vpack.c.b16 %v8505, %v8489
        %v8842 = vpack.c.b16 %v8506, %v8490
        %v8843 = vpack.c.b16 %v8507, %v8491
        %v8844 = vpack.c.b16 %v8508, %v8492
        %v8845 = vpack.c.b16 %v8509, %v8493
        %v8846 = vpack.c.b16 %v8510, %v8494
        %v8847 = vpack.c.b16 %v8511, %v8495
        %v8848 = vpack.c.b16 %v8512, %v8496
        %v8849 = vpack.c.b16 %v8513, %v8497
        %v8850 = vpack.c.b16 %v8514, %v8498
        %v8851 = vpack.c.b16 %v8515, %v8499
        %v8852 = vpack.c.b16 %v8516, %v8500
        %v8853 = vpack.c.b16 %v8517, %v8501
        %v8854 = vpack.c.b16 %v8534, %v8518
        %v8855 = vpack.c.b16 %v8535, %v8519
        %v8856 = vpack.c.b16 %v8536, %v8520
        %v8857 = vpack.c.b16 %v8537, %v8521
        %v8858 = vpack.c.b16 %v8538, %v8522
        %v8859 = vpack.c.b16 %v8539, %v8523
        %v8860 = vpack.c.b16 %v8540, %v8524
        %v8861 = vpack.c.b16 %v8541, %v8525
        %v8862 = vpack.c.b16 %v8542, %v8526
        %v8863 = vpack.c.b16 %v8543, %v8527
        %v8864 = vpack.c.b16 %v8544, %v8528
        %v8865 = vpack.c.b16 %v8545, %v8529
        %v8866 = vpack.c.b16 %v8546, %v8530
        %v8867 = vpack.c.b16 %v8547, %v8531
        %v8868 = vpack.c.b16 %v8548, %v8532
        %v8869 = vpack.c.b16 %v8549, %v8533
        %v8870 = vpack.c.b16 %v8566, %v8550
        %v8871 = vpack.c.b16 %v8567, %v8551
        %v8872 = vpack.c.b16 %v8568, %v8552
        %v8873 = vpack.c.b16 %v8569, %v8553
        %v8874 = vpack.c.b16 %v8570, %v8554
        %v8875 = vpack.c.b16 %v8571, %v8555
        %v8876 = vpack.c.b16 %v8572, %v8556
        %v8877 = vpack.c.b16 %v8573, %v8557
        %v8878 = vpack.c.b16 %v8574, %v8558
        %v8879 = vpack.c.b16 %v8575, %v8559
        %v8880 = vpack.c.b16 %v8576, %v8560
        %v8881 = vpack.c.b16 %v8577, %v8561
        %v8882 = vpack.c.b16 %v8578, %v8562
        %v8883 = vpack.c.b16 %v8579, %v8563
        %v8884 = vpack.c.b16 %v8580, %v8564
        %v8885 = vpack.c.b16 %v8581, %v8565
        %v8886 = vpack.c.b16 %v8598, %v8582
        %v8887 = vpack.c.b16 %v8599, %v8583
        %v8888 = vpack.c.b16 %v8600, %v8584
        %v8889 = vpack.c.b16 %v8601, %v8585
        %v8890 = vpack.c.b16 %v8602, %v8586
        %v8891 = vpack.c.b16 %v8603, %v8587
        %v8892 = vpack.c.b16 %v8604, %v8588
        %v8893 = vpack.c.b16 %v8605, %v8589
        %v8894 = vpack.c.b16 %v8606, %v8590
        %v8895 = vpack.c.b16 %v8607, %v8591
        %v8896 = vpack.c.b16 %v8608, %v8592
        %v8897 = vpack.c.b16 %v8609, %v8593
        %v8898 = vpack.c.b16 %v8610, %v8594
        %v8899 = vpack.c.b16 %v8611, %v8595
        %v8900 = vpack.c.b16 %v8612, %v8596
        %v8901 = vpack.c.b16 %v8613, %v8597
        %v8902 = vpack.c.b16 %v8630, %v8614
        %v8903 = vpack.c.b16 %v8631, %v8615
        %v8904 = vpack.c.b16 %v8632, %v8616
        %v8905 = vpack.c.b16 %v8633, %v8617
        %v8906 = vpack.c.b16 %v8634, %v8618
        %v8907 = vpack.c.b16 %v8635, %v8619
        %v8908 = vpack.c.b16 %v8636, %v8620
        %v8909 = vpack.c.b16 %v8637, %v8621
        %v8910 = vpack.c.b16 %v8638, %v8622
        %v8911 = vpack.c.b16 %v8639, %v8623
        %v8912 = vpack.c.b16 %v8640, %v8624
        %v8913 = vpack.c.b16 %v8641, %v8625
        %v8914 = vpack.c.b16 %v8642, %v8626
        %v8915 = vpack.c.b16 %v8643, %v8627
        %v8916 = vpack.c.b16 %v8644, %v8628
        %v8917 = vpack.c.b16 %v8645, %v8629
        %v8918 = vpack.c.b16 %v8662, %v8646
        %v8919 = vpack.c.b16 %v8663, %v8647
        %v8920 = vpack.c.b16 %v8664, %v8648
        %v8921 = vpack.c.b16 %v8665, %v8649
        %v8922 = vpack.c.b16 %v8666, %v8650
        %v8923 = vpack.c.b16 %v8667, %v8651
        %v8924 = vpack.c.b16 %v8668, %v8652
        %v8925 = vpack.c.b16 %v8669, %v8653
        %v8926 = vpack.c.b16 %v8670, %v8654
        %v8927 = vpack.c.b16 %v8671, %v8655
        %v8928 = vpack.c.b16 %v8672, %v8656
        %v8929 = vpack.c.b16 %v8673, %v8657
        %v8930 = vpack.c.b16 %v8674, %v8658
        %v8931 = vpack.c.b16 %v8675, %v8659
        %v8932 = vpack.c.b16 %v8676, %v8660
        %v8933 = vpack.c.b16 %v8677, %v8661
        %9190 = vmatpush.bf16.msra.mxu0 %v8790
        %9191 = vmatpush.bf16.msra.mxu0 %v8774
        %9192 = vmatpush.bf16.msra.mxu0 %v8758
        %9193 = vmatpush.bf16.msra.mxu0 %v8742
        %9194 = vmatpush.bf16.msra.mxu0 %v8726
        %9195 = vmatpush.bf16.msra.mxu0 %v8710
        %9196 = vmatpush.bf16.msra.mxu0 %v8694
        %9197 = vmatpush.bf16.msra.mxu0 %v8678
        %9198 = vmatmul.bf16.gmra.mxu0 %v7871
        %v9199 = vpop.f32.mrf.mxu0
        %v9200 = vadd.f32 %v7878, %v9199
        %v9201 = vpop.f32.mrf.mxu0
        %9202 = vdwg.mxu0
        %9203 = vmatpush.bf16.msra.mxu0 %v8918
        %9204 = vmatpush.bf16.msra.mxu0 %v8902
        %9205 = vmatpush.bf16.msra.mxu0 %v8886
        %9206 = vmatpush.bf16.msra.mxu0 %v8870
        %9207 = vmatpush.bf16.msra.mxu0 %v8854
        %9208 = vmatpush.bf16.msra.mxu0 %v8838
        %9209 = vmatpush.bf16.msra.mxu0 %v8822
        %9210 = vmatpush.bf16.msra.mxu0 %v8806
        %9211 = vmatmul.bf16.gmra.mxu0 %v7872
        %v9212 = vpop.f32.mrf.mxu0
        %v9213 = vadd.f32 %v9200, %v9212
        %v9214 = vpop.f32.mrf.mxu0
        %9215 = vdwg.mxu0
        %9216 = vmatpush.bf16.msra.mxu0 %v8791
        %9217 = vmatpush.bf16.msra.mxu0 %v8775
        %9218 = vmatpush.bf16.msra.mxu0 %v8759
        %9219 = vmatpush.bf16.msra.mxu0 %v8743
        %9220 = vmatpush.bf16.msra.mxu0 %v8727
        %9221 = vmatpush.bf16.msra.mxu0 %v8711
        %9222 = vmatpush.bf16.msra.mxu0 %v8695
        %9223 = vmatpush.bf16.msra.mxu0 %v8679
        %9224 = vmatmul.bf16.gmra.mxu0 %v7871
        %v9225 = vpop.f32.mrf.mxu0
        %v9226 = vadd.f32 %v7879, %v9225
        %v9227 = vpop.f32.mrf.mxu0
        %9228 = vdwg.mxu0
        %9229 = vmatpush.bf16.msra.mxu0 %v8919
        %9230 = vmatpush.bf16.msra.mxu0 %v8903
        %9231 = vmatpush.bf16.msra.mxu0 %v8887
        %9232 = vmatpush.bf16.msra.mxu0 %v8871
        %9233 = vmatpush.bf16.msra.mxu0 %v8855
        %9234 = vmatpush.bf16.msra.mxu0 %v8839
        %9235 = vmatpush.bf16.msra.mxu0 %v8823
        %9236 = vmatpush.bf16.msra.mxu0 %v8807
        %9237 = vmatmul.bf16.gmra.mxu0 %v7872
        %v9238 = vpop.f32.mrf.mxu0
        %v9239 = vadd.f32 %v9226, %v9238
        %v9240 = vpop.f32.mrf.mxu0
        %9241 = vdwg.mxu0
        %9242 = vmatpush.bf16.msra.mxu0 %v8792
        %9243 = vmatpush.bf16.msra.mxu0 %v8776
        %9244 = vmatpush.bf16.msra.mxu0 %v8760
        %9245 = vmatpush.bf16.msra.mxu0 %v8744
        %9246 = vmatpush.bf16.msra.mxu0 %v8728
        %9247 = vmatpush.bf16.msra.mxu0 %v8712
        %9248 = vmatpush.bf16.msra.mxu0 %v8696
        %9249 = vmatpush.bf16.msra.mxu0 %v8680
        %9250 = vmatmul.bf16.gmra.mxu0 %v7871
        %v9251 = vpop.f32.mrf.mxu0
        %v9252 = vadd.f32 %v7880, %v9251
        %v9253 = vpop.f32.mrf.mxu0
        %9254 = vdwg.mxu0
        %9255 = vmatpush.bf16.msra.mxu0 %v8920
        %9256 = vmatpush.bf16.msra.mxu0 %v8904
        %9257 = vmatpush.bf16.msra.mxu0 %v8888
        %9258 = vmatpush.bf16.msra.mxu0 %v8872
        %9259 = vmatpush.bf16.msra.mxu0 %v8856
        %9260 = vmatpush.bf16.msra.mxu0 %v8840
        %9261 = vmatpush.bf16.msra.mxu0 %v8824
        %9262 = vmatpush.bf16.msra.mxu0 %v8808
        %9263 = vmatmul.bf16.gmra.mxu0 %v7872
        %v9264 = vpop.f32.mrf.mxu0
        %v9265 = vadd.f32 %v9252, %v9264
        %v9266 = vpop.f32.mrf.mxu0
        %9267 = vdwg.mxu0
        %9268 = vmatpush.bf16.msra.mxu0 %v8793
        %9269 = vmatpush.bf16.msra.mxu0 %v8777
        %9270 = vmatpush.bf16.msra.mxu0 %v8761
        %9271 = vmatpush.bf16.msra.mxu0 %v8745
        %9272 = vmatpush.bf16.msra.mxu0 %v8729
        %9273 = vmatpush.bf16.msra.mxu0 %v8713
        %9274 = vmatpush.bf16.msra.mxu0 %v8697
        %9275 = vmatpush.bf16.msra.mxu0 %v8681
        %9276 = vmatmul.bf16.gmra.mxu0 %v7871
        %v9277 = vpop.f32.mrf.mxu0
        %v9278 = vadd.f32 %v7881, %v9277
        %v9279 = vpop.f32.mrf.mxu0
        %9280 = vdwg.mxu0
        %9281 = vmatpush.bf16.msra.mxu0 %v8921
        %9282 = vmatpush.bf16.msra.mxu0 %v8905
        %9283 = vmatpush.bf16.msra.mxu0 %v8889
        %9284 = vmatpush.bf16.msra.mxu0 %v8873
        %9285 = vmatpush.bf16.msra.mxu0 %v8857
        %9286 = vmatpush.bf16.msra.mxu0 %v8841
        %9287 = vmatpush.bf16.msra.mxu0 %v8825
        %9288 = vmatpush.bf16.msra.mxu0 %v8809
        %9289 = vmatmul.bf16.gmra.mxu0 %v7872
        %v9290 = vpop.f32.mrf.mxu0
        %v9291 = vadd.f32 %v9278, %v9290
        %v9292 = vpop.f32.mrf.mxu0
        %9293 = vdwg.mxu0
        %9294 = vmatpush.bf16.msra.mxu0 %v8794
        %9295 = vmatpush.bf16.msra.mxu0 %v8778
        %9296 = vmatpush.bf16.msra.mxu0 %v8762
        %9297 = vmatpush.bf16.msra.mxu0 %v8746
        %9298 = vmatpush.bf16.msra.mxu0 %v8730
        %9299 = vmatpush.bf16.msra.mxu0 %v8714
        %9300 = vmatpush.bf16.msra.mxu0 %v8698
        %9301 = vmatpush.bf16.msra.mxu0 %v8682
        %9302 = vmatmul.bf16.gmra.mxu0 %v7871
        %v9303 = vpop.f32.mrf.mxu0
        %v9304 = vadd.f32 %v7882, %v9303
        %v9305 = vpop.f32.mrf.mxu0
        %9306 = vdwg.mxu0
        %9307 = vmatpush.bf16.msra.mxu0 %v8922
        %9308 = vmatpush.bf16.msra.mxu0 %v8906
        %9309 = vmatpush.bf16.msra.mxu0 %v8890
        %9310 = vmatpush.bf16.msra.mxu0 %v8874
        %9311 = vmatpush.bf16.msra.mxu0 %v8858
        %9312 = vmatpush.bf16.msra.mxu0 %v8842
        %9313 = vmatpush.bf16.msra.mxu0 %v8826
        %9314 = vmatpush.bf16.msra.mxu0 %v8810
        %9315 = vmatmul.bf16.gmra.mxu0 %v7872
        %v9316 = vpop.f32.mrf.mxu0
        %v9317 = vadd.f32 %v9304, %v9316
        %v9318 = vpop.f32.mrf.mxu0
        %9319 = vdwg.mxu0
        %9320 = vmatpush.bf16.msra.mxu0 %v8795
        %9321 = vmatpush.bf16.msra.mxu0 %v8779
        %9322 = vmatpush.bf16.msra.mxu0 %v8763
        %9323 = vmatpush.bf16.msra.mxu0 %v8747
        %9324 = vmatpush.bf16.msra.mxu0 %v8731
        %9325 = vmatpush.bf16.msra.mxu0 %v8715
        %9326 = vmatpush.bf16.msra.mxu0 %v8699
        %9327 = vmatpush.bf16.msra.mxu0 %v8683
        %9328 = vmatmul.bf16.gmra.mxu0 %v7871
        %v9329 = vpop.f32.mrf.mxu0
        %v9330 = vadd.f32 %v7883, %v9329
        %v9331 = vpop.f32.mrf.mxu0
        %9332 = vdwg.mxu0
        %9333 = vmatpush.bf16.msra.mxu0 %v8923
        %9334 = vmatpush.bf16.msra.mxu0 %v8907
        %9335 = vmatpush.bf16.msra.mxu0 %v8891
        %9336 = vmatpush.bf16.msra.mxu0 %v8875
        %9337 = vmatpush.bf16.msra.mxu0 %v8859
        %9338 = vmatpush.bf16.msra.mxu0 %v8843
        %9339 = vmatpush.bf16.msra.mxu0 %v8827
        %9340 = vmatpush.bf16.msra.mxu0 %v8811
        %9341 = vmatmul.bf16.gmra.mxu0 %v7872
        %v9342 = vpop.f32.mrf.mxu0
        %v9343 = vadd.f32 %v9330, %v9342
        %v9344 = vpop.f32.mrf.mxu0
        %9345 = vdwg.mxu0
        %9346 = vmatpush.bf16.msra.mxu0 %v8796
        %9347 = vmatpush.bf16.msra.mxu0 %v8780
        %9348 = vmatpush.bf16.msra.mxu0 %v8764
        %9349 = vmatpush.bf16.msra.mxu0 %v8748
        %9350 = vmatpush.bf16.msra.mxu0 %v8732
        %9351 = vmatpush.bf16.msra.mxu0 %v8716
        %9352 = vmatpush.bf16.msra.mxu0 %v8700
        %9353 = vmatpush.bf16.msra.mxu0 %v8684
        %9354 = vmatmul.bf16.gmra.mxu0 %v7871
        %v9355 = vpop.f32.mrf.mxu0
        %v9356 = vadd.f32 %v7884, %v9355
        %v9357 = vpop.f32.mrf.mxu0
        %9358 = vdwg.mxu0
        %9359 = vmatpush.bf16.msra.mxu0 %v8924
        %9360 = vmatpush.bf16.msra.mxu0 %v8908
        %9361 = vmatpush.bf16.msra.mxu0 %v8892
        %9362 = vmatpush.bf16.msra.mxu0 %v8876
        %9363 = vmatpush.bf16.msra.mxu0 %v8860
        %9364 = vmatpush.bf16.msra.mxu0 %v8844
        %9365 = vmatpush.bf16.msra.mxu0 %v8828
        %9366 = vmatpush.bf16.msra.mxu0 %v8812
        %9367 = vmatmul.bf16.gmra.mxu0 %v7872
        %v9368 = vpop.f32.mrf.mxu0
        %v9369 = vadd.f32 %v9356, %v9368
        %v9370 = vpop.f32.mrf.mxu0
        %9371 = vdwg.mxu0
        %9372 = vmatpush.bf16.msra.mxu0 %v8797
        %9373 = vmatpush.bf16.msra.mxu0 %v8781
        %9374 = vmatpush.bf16.msra.mxu0 %v8765
        %9375 = vmatpush.bf16.msra.mxu0 %v8749
        %9376 = vmatpush.bf16.msra.mxu0 %v8733
        %9377 = vmatpush.bf16.msra.mxu0 %v8717
        %9378 = vmatpush.bf16.msra.mxu0 %v8701
        %9379 = vmatpush.bf16.msra.mxu0 %v8685
        %9380 = vmatmul.bf16.gmra.mxu0 %v7871
        %v9381 = vpop.f32.mrf.mxu0
        %v9382 = vadd.f32 %v7885, %v9381
        %v9383 = vpop.f32.mrf.mxu0
        %9384 = vdwg.mxu0
        %9385 = vmatpush.bf16.msra.mxu0 %v8925
        %9386 = vmatpush.bf16.msra.mxu0 %v8909
        %9387 = vmatpush.bf16.msra.mxu0 %v8893
        %9388 = vmatpush.bf16.msra.mxu0 %v8877
        %9389 = vmatpush.bf16.msra.mxu0 %v8861
        %9390 = vmatpush.bf16.msra.mxu0 %v8845
        %9391 = vmatpush.bf16.msra.mxu0 %v8829
        %9392 = vmatpush.bf16.msra.mxu0 %v8813
        %9393 = vmatmul.bf16.gmra.mxu0 %v7872
        %v9394 = vpop.f32.mrf.mxu0
        %v9395 = vadd.f32 %v9382, %v9394
        %v9396 = vpop.f32.mrf.mxu0
        %9397 = vdwg.mxu0
        %9398 = vmatpush.bf16.msra.mxu0 %v8798
        %9399 = vmatpush.bf16.msra.mxu0 %v8782
        %9400 = vmatpush.bf16.msra.mxu0 %v8766
        %9401 = vmatpush.bf16.msra.mxu0 %v8750
        %9402 = vmatpush.bf16.msra.mxu0 %v8734
        %9403 = vmatpush.bf16.msra.mxu0 %v8718
        %9404 = vmatpush.bf16.msra.mxu0 %v8702
        %9405 = vmatpush.bf16.msra.mxu0 %v8686
        %9406 = vmatmul.bf16.gmra.mxu0 %v7871
        %v9407 = vpop.f32.mrf.mxu0
        %v9408 = vadd.f32 %v7886, %v9407
        %v9409 = vpop.f32.mrf.mxu0
        %9410 = vdwg.mxu0
        %9411 = vmatpush.bf16.msra.mxu0 %v8926
        %9412 = vmatpush.bf16.msra.mxu0 %v8910
        %9413 = vmatpush.bf16.msra.mxu0 %v8894
        %9414 = vmatpush.bf16.msra.mxu0 %v8878
        %9415 = vmatpush.bf16.msra.mxu0 %v8862
        %9416 = vmatpush.bf16.msra.mxu0 %v8846
        %9417 = vmatpush.bf16.msra.mxu0 %v8830
        %9418 = vmatpush.bf16.msra.mxu0 %v8814
        %9419 = vmatmul.bf16.gmra.mxu0 %v7872
        %v9420 = vpop.f32.mrf.mxu0
        %v9421 = vadd.f32 %v9408, %v9420
        %v9422 = vpop.f32.mrf.mxu0
        %9423 = vdwg.mxu0
        %9424 = vmatpush.bf16.msra.mxu0 %v8799
        %9425 = vmatpush.bf16.msra.mxu0 %v8783
        %9426 = vmatpush.bf16.msra.mxu0 %v8767
        %9427 = vmatpush.bf16.msra.mxu0 %v8751
        %9428 = vmatpush.bf16.msra.mxu0 %v8735
        %9429 = vmatpush.bf16.msra.mxu0 %v8719
        %9430 = vmatpush.bf16.msra.mxu0 %v8703
        %9431 = vmatpush.bf16.msra.mxu0 %v8687
        %9432 = vmatmul.bf16.gmra.mxu0 %v7871
        %v9433 = vpop.f32.mrf.mxu0
        %v9434 = vadd.f32 %v7887, %v9433
        %v9435 = vpop.f32.mrf.mxu0
        %9436 = vdwg.mxu0
        %9437 = vmatpush.bf16.msra.mxu0 %v8927
        %9438 = vmatpush.bf16.msra.mxu0 %v8911
        %9439 = vmatpush.bf16.msra.mxu0 %v8895
        %9440 = vmatpush.bf16.msra.mxu0 %v8879
        %9441 = vmatpush.bf16.msra.mxu0 %v8863
        %9442 = vmatpush.bf16.msra.mxu0 %v8847
        %9443 = vmatpush.bf16.msra.mxu0 %v8831
        %9444 = vmatpush.bf16.msra.mxu0 %v8815
        %9445 = vmatmul.bf16.gmra.mxu0 %v7872
        %v9446 = vpop.f32.mrf.mxu0
        %v9447 = vadd.f32 %v9434, %v9446
        %v9448 = vpop.f32.mrf.mxu0
        %9449 = vdwg.mxu0
        %9450 = vmatpush.bf16.msra.mxu0 %v8800
        %9451 = vmatpush.bf16.msra.mxu0 %v8784
        %9452 = vmatpush.bf16.msra.mxu0 %v8768
        %9453 = vmatpush.bf16.msra.mxu0 %v8752
        %9454 = vmatpush.bf16.msra.mxu0 %v8736
        %9455 = vmatpush.bf16.msra.mxu0 %v8720
        %9456 = vmatpush.bf16.msra.mxu0 %v8704
        %9457 = vmatpush.bf16.msra.mxu0 %v8688
        %9458 = vmatmul.bf16.gmra.mxu0 %v7871
        %v9459 = vpop.f32.mrf.mxu0
        %v9460 = vadd.f32 %v7888, %v9459
        %v9461 = vpop.f32.mrf.mxu0
        %9462 = vdwg.mxu0
        %9463 = vmatpush.bf16.msra.mxu0 %v8928
        %9464 = vmatpush.bf16.msra.mxu0 %v8912
        %9465 = vmatpush.bf16.msra.mxu0 %v8896
        %9466 = vmatpush.bf16.msra.mxu0 %v8880
        %9467 = vmatpush.bf16.msra.mxu0 %v8864
        %9468 = vmatpush.bf16.msra.mxu0 %v8848
        %9469 = vmatpush.bf16.msra.mxu0 %v8832
        %9470 = vmatpush.bf16.msra.mxu0 %v8816
        %9471 = vmatmul.bf16.gmra.mxu0 %v7872
        %v9472 = vpop.f32.mrf.mxu0
        %v9473 = vadd.f32 %v9460, %v9472
        %v9474 = vpop.f32.mrf.mxu0
        %9475 = vdwg.mxu0
        %9476 = vmatpush.bf16.msra.mxu0 %v8801
        %9477 = vmatpush.bf16.msra.mxu0 %v8785
        %9478 = vmatpush.bf16.msra.mxu0 %v8769
        %9479 = vmatpush.bf16.msra.mxu0 %v8753
        %9480 = vmatpush.bf16.msra.mxu0 %v8737
        %9481 = vmatpush.bf16.msra.mxu0 %v8721
        %9482 = vmatpush.bf16.msra.mxu0 %v8705
        %9483 = vmatpush.bf16.msra.mxu0 %v8689
        %9484 = vmatmul.bf16.gmra.mxu0 %v7871
        %v9485 = vpop.f32.mrf.mxu0
        %v9486 = vadd.f32 %v7889, %v9485
        %v9487 = vpop.f32.mrf.mxu0
        %9488 = vdwg.mxu0
        %9489 = vmatpush.bf16.msra.mxu0 %v8929
        %9490 = vmatpush.bf16.msra.mxu0 %v8913
        %9491 = vmatpush.bf16.msra.mxu0 %v8897
        %9492 = vmatpush.bf16.msra.mxu0 %v8881
        %9493 = vmatpush.bf16.msra.mxu0 %v8865
        %9494 = vmatpush.bf16.msra.mxu0 %v8849
        %9495 = vmatpush.bf16.msra.mxu0 %v8833
        %9496 = vmatpush.bf16.msra.mxu0 %v8817
        %9497 = vmatmul.bf16.gmra.mxu0 %v7872
        %v9498 = vpop.f32.mrf.mxu0
        %v9499 = vadd.f32 %v9486, %v9498
        %v9500 = vpop.f32.mrf.mxu0
        %9501 = vdwg.mxu0
        %9502 = vmatpush.bf16.msra.mxu0 %v8802
        %9503 = vmatpush.bf16.msra.mxu0 %v8786
        %9504 = vmatpush.bf16.msra.mxu0 %v8770
        %9505 = vmatpush.bf16.msra.mxu0 %v8754
        %9506 = vmatpush.bf16.msra.mxu0 %v8738
        %9507 = vmatpush.bf16.msra.mxu0 %v8722
        %9508 = vmatpush.bf16.msra.mxu0 %v8706
        %9509 = vmatpush.bf16.msra.mxu0 %v8690
        %9510 = vmatmul.bf16.gmra.mxu0 %v7871
        %v9511 = vpop.f32.mrf.mxu0
        %v9512 = vadd.f32 %v7890, %v9511
        %v9513 = vpop.f32.mrf.mxu0
        %9514 = vdwg.mxu0
        %9515 = vmatpush.bf16.msra.mxu0 %v8930
        %9516 = vmatpush.bf16.msra.mxu0 %v8914
        %9517 = vmatpush.bf16.msra.mxu0 %v8898
        %9518 = vmatpush.bf16.msra.mxu0 %v8882
        %9519 = vmatpush.bf16.msra.mxu0 %v8866
        %9520 = vmatpush.bf16.msra.mxu0 %v8850
        %9521 = vmatpush.bf16.msra.mxu0 %v8834
        %9522 = vmatpush.bf16.msra.mxu0 %v8818
        %9523 = vmatmul.bf16.gmra.mxu0 %v7872
        %v9524 = vpop.f32.mrf.mxu0
        %v9525 = vadd.f32 %v9512, %v9524
        %v9526 = vpop.f32.mrf.mxu0
        %9527 = vdwg.mxu0
        %9528 = vmatpush.bf16.msra.mxu0 %v8803
        %9529 = vmatpush.bf16.msra.mxu0 %v8787
        %9530 = vmatpush.bf16.msra.mxu0 %v8771
        %9531 = vmatpush.bf16.msra.mxu0 %v8755
        %9532 = vmatpush.bf16.msra.mxu0 %v8739
        %9533 = vmatpush.bf16.msra.mxu0 %v8723
        %9534 = vmatpush.bf16.msra.mxu0 %v8707
        %9535 = vmatpush.bf16.msra.mxu0 %v8691
        %9536 = vmatmul.bf16.gmra.mxu0 %v7871
        %v9537 = vpop.f32.mrf.mxu0
        %v9538 = vadd.f32 %v7891, %v9537
        %v9539 = vpop.f32.mrf.mxu0
        %9540 = vdwg.mxu0
        %9541 = vmatpush.bf16.msra.mxu0 %v8931
        %9542 = vmatpush.bf16.msra.mxu0 %v8915
        %9543 = vmatpush.bf16.msra.mxu0 %v8899
        %9544 = vmatpush.bf16.msra.mxu0 %v8883
        %9545 = vmatpush.bf16.msra.mxu0 %v8867
        %9546 = vmatpush.bf16.msra.mxu0 %v8851
        %9547 = vmatpush.bf16.msra.mxu0 %v8835
        %9548 = vmatpush.bf16.msra.mxu0 %v8819
        %9549 = vmatmul.bf16.gmra.mxu0 %v7872
        %v9550 = vpop.f32.mrf.mxu0
        %v9551 = vadd.f32 %v9538, %v9550
        %v9552 = vpop.f32.mrf.mxu0
        %9553 = vdwg.mxu0
        %9554 = vmatpush.bf16.msra.mxu0 %v8804
        %9555 = vmatpush.bf16.msra.mxu0 %v8788
        %9556 = vmatpush.bf16.msra.mxu0 %v8772
        %9557 = vmatpush.bf16.msra.mxu0 %v8756
        %9558 = vmatpush.bf16.msra.mxu0 %v8740
        %9559 = vmatpush.bf16.msra.mxu0 %v8724
        %9560 = vmatpush.bf16.msra.mxu0 %v8708
        %9561 = vmatpush.bf16.msra.mxu0 %v8692
        %9562 = vmatmul.bf16.gmra.mxu0 %v7871
        %v9563 = vpop.f32.mrf.mxu0
        %v9564 = vadd.f32 %v7892, %v9563
        %v9565 = vpop.f32.mrf.mxu0
        %9566 = vdwg.mxu0
        %9567 = vmatpush.bf16.msra.mxu0 %v8932
        %9568 = vmatpush.bf16.msra.mxu0 %v8916
        %9569 = vmatpush.bf16.msra.mxu0 %v8900
        %9570 = vmatpush.bf16.msra.mxu0 %v8884
        %9571 = vmatpush.bf16.msra.mxu0 %v8868
        %9572 = vmatpush.bf16.msra.mxu0 %v8852
        %9573 = vmatpush.bf16.msra.mxu0 %v8836
        %9574 = vmatpush.bf16.msra.mxu0 %v8820
        %9575 = vmatmul.bf16.gmra.mxu0 %v7872
        %v9576 = vpop.f32.mrf.mxu0
        %v9577 = vadd.f32 %v9564, %v9576
        %v9578 = vpop.f32.mrf.mxu0
        %9579 = vdwg.mxu0
        %9580 = vmatpush.bf16.msra.mxu0 %v8805
        %9581 = vmatpush.bf16.msra.mxu0 %v8789
        %9582 = vmatpush.bf16.msra.mxu0 %v8773
        %9583 = vmatpush.bf16.msra.mxu0 %v8757
        %9584 = vmatpush.bf16.msra.mxu0 %v8741
        %9585 = vmatpush.bf16.msra.mxu0 %v8725
        %9586 = vmatpush.bf16.msra.mxu0 %v8709
        %9587 = vmatpush.bf16.msra.mxu0 %v8693
        %9588 = vmatmul.bf16.gmra.mxu0 %v7871
        %v9589 = vpop.f32.mrf.mxu0
        %v9590 = vadd.f32 %v7893, %v9589
        %v9591 = vpop.f32.mrf.mxu0
        %9592 = vdwg.mxu0
        %9593 = vmatpush.bf16.msra.mxu0 %v8933
        %9594 = vmatpush.bf16.msra.mxu0 %v8917
        %9595 = vmatpush.bf16.msra.mxu0 %v8901
        %9596 = vmatpush.bf16.msra.mxu0 %v8885
        %9597 = vmatpush.bf16.msra.mxu0 %v8869
        %9598 = vmatpush.bf16.msra.mxu0 %v8853
        %9599 = vmatpush.bf16.msra.mxu0 %v8837
        %9600 = vmatpush.bf16.msra.mxu0 %v8821
        %9601 = vmatmul.bf16.gmra.mxu0 %v7872
        %v9602 = vpop.f32.mrf.mxu0
        %v9603 = vadd.f32 %v9590, %v9602
        %v9604 = vpop.f32.mrf.mxu0
        %9605 = vdwg.mxu0
        %v9606 = vmax.f32 %v9213, 0.0
        %v9607 = vmax.f32 %v9239, 0.0
        %v9608 = vmax.f32 %v9265, 0.0
        %v9609 = vmax.f32 %v9291, 0.0
        %v9610 = vmax.f32 %v9317, 0.0
        %v9611 = vmax.f32 %v9343, 0.0
        %v9612 = vmax.f32 %v9369, 0.0
        %v9613 = vmax.f32 %v9395, 0.0
        %v9614 = vmax.f32 %v9421, 0.0
        %v9615 = vmax.f32 %v9447, 0.0
        %v9616 = vmax.f32 %v9473, 0.0
        %v9617 = vmax.f32 %v9499, 0.0
        %v9618 = vmax.f32 %v9525, 0.0
        %v9619 = vmax.f32 %v9551, 0.0
        %v9620 = vmax.f32 %v9577, 0.0
        %v9621 = vmax.f32 %v9603, 0.0
        %s9622 = scalar_lea.vmem [#allocation19], 2048
        %v9623 = vld [vmem:[%s9622] sm:$0xff]
        %v9624 = vld [vmem:[%s9622 + $0x8] sm:$0xff]
        %v9625 = vld [vmem:[%s9622 + $0x10] sm:$0xff]
        %v9626 = vld [vmem:[%s9622 + $0x18] sm:$0xff]
        %v9627 = vld [vmem:[%s9622 + $0x20] sm:$0xff]
        %v9628 = vld [vmem:[%s9622 + $0x28] sm:$0xff]
        %v9629 = vld [vmem:[%s9622 + $0x30] sm:$0xff]
        %v9630 = vld [vmem:[%s9622 + $0x38] sm:$0xff]
        %v9631 = vld [vmem:[%s9622 + $0x40] sm:$0xff]
        %v9632 = vld [vmem:[%s9622 + $0x48] sm:$0xff]
        %v9633 = vld [vmem:[%s9622 + $0x50] sm:$0xff]
        %v9634 = vld [vmem:[%s9622 + $0x58] sm:$0xff]
        %v9635 = vld [vmem:[%s9622 + $0x60] sm:$0xff]
        %v9636 = vld [vmem:[%s9622 + $0x68] sm:$0xff]
        %v9637 = vld [vmem:[%s9622 + $0x70] sm:$0xff]
        %v9638 = vld [vmem:[%s9622 + $0x78] sm:$0xff]
        %v9639 = vld [vmem:[%s9622 + $0x80] sm:$0xff]
        %v9640 = vld [vmem:[%s9622 + $0x88] sm:$0xff]
        %v9641 = vld [vmem:[%s9622 + $0x90] sm:$0xff]
        %v9642 = vld [vmem:[%s9622 + $0x98] sm:$0xff]
        %v9643 = vld [vmem:[%s9622 + $0xa0] sm:$0xff]
        %v9644 = vld [vmem:[%s9622 + $0xa8] sm:$0xff]
        %v9645 = vld [vmem:[%s9622 + $0xb0] sm:$0xff]
        %v9646 = vld [vmem:[%s9622 + $0xb8] sm:$0xff]
        %v9647 = vld [vmem:[%s9622 + $0xc0] sm:$0xff]
        %v9648 = vld [vmem:[%s9622 + $0xc8] sm:$0xff]
        %v9649 = vld [vmem:[%s9622 + $0xd0] sm:$0xff]
        %v9650 = vld [vmem:[%s9622 + $0xd8] sm:$0xff]
        %v9651 = vld [vmem:[%s9622 + $0xe0] sm:$0xff]
        %v9652 = vld [vmem:[%s9622 + $0xe8] sm:$0xff]
        %v9653 = vld [vmem:[%s9622 + $0xf0] sm:$0xff]
        %v9654 = vld [vmem:[%s9622 + $0xf8] sm:$0xff]
        %v9655 = vld [vmem:[%s9622 + $0x100] sm:$0xff]
        %v9656 = vld [vmem:[%s9622 + $0x108] sm:$0xff]
        %v9657 = vld [vmem:[%s9622 + $0x110] sm:$0xff]
        %v9658 = vld [vmem:[%s9622 + $0x118] sm:$0xff]
        %v9659 = vld [vmem:[%s9622 + $0x120] sm:$0xff]
        %v9660 = vld [vmem:[%s9622 + $0x128] sm:$0xff]
        %v9661 = vld [vmem:[%s9622 + $0x130] sm:$0xff]
        %v9662 = vld [vmem:[%s9622 + $0x138] sm:$0xff]
        %v9663 = vld [vmem:[%s9622 + $0x140] sm:$0xff]
        %v9664 = vld [vmem:[%s9622 + $0x148] sm:$0xff]
        %v9665 = vld [vmem:[%s9622 + $0x150] sm:$0xff]
        %v9666 = vld [vmem:[%s9622 + $0x158] sm:$0xff]
        %v9667 = vld [vmem:[%s9622 + $0x160] sm:$0xff]
        %v9668 = vld [vmem:[%s9622 + $0x168] sm:$0xff]
        %v9669 = vld [vmem:[%s9622 + $0x170] sm:$0xff]
        %v9670 = vld [vmem:[%s9622 + $0x178] sm:$0xff]
        %v9671 = vld [vmem:[%s9622 + $0x180] sm:$0xff]
        %v9672 = vld [vmem:[%s9622 + $0x188] sm:$0xff]
        %v9673 = vld [vmem:[%s9622 + $0x190] sm:$0xff]
        %v9674 = vld [vmem:[%s9622 + $0x198] sm:$0xff]
        %v9675 = vld [vmem:[%s9622 + $0x1a0] sm:$0xff]
        %v9676 = vld [vmem:[%s9622 + $0x1a8] sm:$0xff]
        %v9677 = vld [vmem:[%s9622 + $0x1b0] sm:$0xff]
        %v9678 = vld [vmem:[%s9622 + $0x1b8] sm:$0xff]
        %v9679 = vld [vmem:[%s9622 + $0x1c0] sm:$0xff]
        %v9680 = vld [vmem:[%s9622 + $0x1c8] sm:$0xff]
        %v9681 = vld [vmem:[%s9622 + $0x1d0] sm:$0xff]
        %v9682 = vld [vmem:[%s9622 + $0x1d8] sm:$0xff]
        %v9683 = vld [vmem:[%s9622 + $0x1e0] sm:$0xff]
        %v9684 = vld [vmem:[%s9622 + $0x1e8] sm:$0xff]
        %v9685 = vld [vmem:[%s9622 + $0x1f0] sm:$0xff]
        %v9686 = vld [vmem:[%s9622 + $0x1f8] sm:$0xff]
        %v9687 = vld [vmem:[%s9622 + $0x200] sm:$0xff]
        %v9688 = vld [vmem:[%s9622 + $0x208] sm:$0xff]
        %v9689 = vld [vmem:[%s9622 + $0x210] sm:$0xff]
        %v9690 = vld [vmem:[%s9622 + $0x218] sm:$0xff]
        %v9691 = vld [vmem:[%s9622 + $0x220] sm:$0xff]
        %v9692 = vld [vmem:[%s9622 + $0x228] sm:$0xff]
        %v9693 = vld [vmem:[%s9622 + $0x230] sm:$0xff]
        %v9694 = vld [vmem:[%s9622 + $0x238] sm:$0xff]
        %v9695 = vld [vmem:[%s9622 + $0x240] sm:$0xff]
        %v9696 = vld [vmem:[%s9622 + $0x248] sm:$0xff]
        %v9697 = vld [vmem:[%s9622 + $0x250] sm:$0xff]
        %v9698 = vld [vmem:[%s9622 + $0x258] sm:$0xff]
        %v9699 = vld [vmem:[%s9622 + $0x260] sm:$0xff]
        %v9700 = vld [vmem:[%s9622 + $0x268] sm:$0xff]
        %v9701 = vld [vmem:[%s9622 + $0x270] sm:$0xff]
        %v9702 = vld [vmem:[%s9622 + $0x278] sm:$0xff]
        %v9703 = vld [vmem:[%s9622 + $0x280] sm:$0xff]
        %v9704 = vld [vmem:[%s9622 + $0x288] sm:$0xff]
        %v9705 = vld [vmem:[%s9622 + $0x290] sm:$0xff]
        %v9706 = vld [vmem:[%s9622 + $0x298] sm:$0xff]
        %v9707 = vld [vmem:[%s9622 + $0x2a0] sm:$0xff]
        %v9708 = vld [vmem:[%s9622 + $0x2a8] sm:$0xff]
        %v9709 = vld [vmem:[%s9622 + $0x2b0] sm:$0xff]
        %v9710 = vld [vmem:[%s9622 + $0x2b8] sm:$0xff]
        %v9711 = vld [vmem:[%s9622 + $0x2c0] sm:$0xff]
        %v9712 = vld [vmem:[%s9622 + $0x2c8] sm:$0xff]
        %v9713 = vld [vmem:[%s9622 + $0x2d0] sm:$0xff]
        %v9714 = vld [vmem:[%s9622 + $0x2d8] sm:$0xff]
        %v9715 = vld [vmem:[%s9622 + $0x2e0] sm:$0xff]
        %v9716 = vld [vmem:[%s9622 + $0x2e8] sm:$0xff]
        %v9717 = vld [vmem:[%s9622 + $0x2f0] sm:$0xff]
        %v9718 = vld [vmem:[%s9622 + $0x2f8] sm:$0xff]
        %v9719 = vld [vmem:[%s9622 + $0x300] sm:$0xff]
        %v9720 = vld [vmem:[%s9622 + $0x308] sm:$0xff]
        %v9721 = vld [vmem:[%s9622 + $0x310] sm:$0xff]
        %v9722 = vld [vmem:[%s9622 + $0x318] sm:$0xff]
        %v9723 = vld [vmem:[%s9622 + $0x320] sm:$0xff]
        %v9724 = vld [vmem:[%s9622 + $0x328] sm:$0xff]
        %v9725 = vld [vmem:[%s9622 + $0x330] sm:$0xff]
        %v9726 = vld [vmem:[%s9622 + $0x338] sm:$0xff]
        %v9727 = vld [vmem:[%s9622 + $0x340] sm:$0xff]
        %v9728 = vld [vmem:[%s9622 + $0x348] sm:$0xff]
        %v9729 = vld [vmem:[%s9622 + $0x350] sm:$0xff]
        %v9730 = vld [vmem:[%s9622 + $0x358] sm:$0xff]
        %v9731 = vld [vmem:[%s9622 + $0x360] sm:$0xff]
        %v9732 = vld [vmem:[%s9622 + $0x368] sm:$0xff]
        %v9733 = vld [vmem:[%s9622 + $0x370] sm:$0xff]
        %v9734 = vld [vmem:[%s9622 + $0x378] sm:$0xff]
        %v9735 = vld [vmem:[%s9622 + $0x380] sm:$0xff]
        %v9736 = vld [vmem:[%s9622 + $0x388] sm:$0xff]
        %v9737 = vld [vmem:[%s9622 + $0x390] sm:$0xff]
        %v9738 = vld [vmem:[%s9622 + $0x398] sm:$0xff]
        %v9739 = vld [vmem:[%s9622 + $0x3a0] sm:$0xff]
        %v9740 = vld [vmem:[%s9622 + $0x3a8] sm:$0xff]
        %v9741 = vld [vmem:[%s9622 + $0x3b0] sm:$0xff]
        %v9742 = vld [vmem:[%s9622 + $0x3b8] sm:$0xff]
        %v9743 = vld [vmem:[%s9622 + $0x3c0] sm:$0xff]
        %v9744 = vld [vmem:[%s9622 + $0x3c8] sm:$0xff]
        %v9745 = vld [vmem:[%s9622 + $0x3d0] sm:$0xff]
        %v9746 = vld [vmem:[%s9622 + $0x3d8] sm:$0xff]
        %v9747 = vld [vmem:[%s9622 + $0x3e0] sm:$0xff]
        %v9748 = vld [vmem:[%s9622 + $0x3e8] sm:$0xff]
        %v9749 = vld [vmem:[%s9622 + $0x3f0] sm:$0xff]
        %v9750 = vld [vmem:[%s9622 + $0x3f8] sm:$0xff]
        %v9751 = vld [vmem:[%s9622 + $0x400] sm:$0xff]
        %v9752 = vld [vmem:[%s9622 + $0x408] sm:$0xff]
        %v9753 = vld [vmem:[%s9622 + $0x410] sm:$0xff]
        %v9754 = vld [vmem:[%s9622 + $0x418] sm:$0xff]
        %v9755 = vld [vmem:[%s9622 + $0x420] sm:$0xff]
        %v9756 = vld [vmem:[%s9622 + $0x428] sm:$0xff]
        %v9757 = vld [vmem:[%s9622 + $0x430] sm:$0xff]
        %v9758 = vld [vmem:[%s9622 + $0x438] sm:$0xff]
        %v9759 = vld [vmem:[%s9622 + $0x440] sm:$0xff]
        %v9760 = vld [vmem:[%s9622 + $0x448] sm:$0xff]
        %v9761 = vld [vmem:[%s9622 + $0x450] sm:$0xff]
        %v9762 = vld [vmem:[%s9622 + $0x458] sm:$0xff]
        %v9763 = vld [vmem:[%s9622 + $0x460] sm:$0xff]
        %v9764 = vld [vmem:[%s9622 + $0x468] sm:$0xff]
        %v9765 = vld [vmem:[%s9622 + $0x470] sm:$0xff]
        %v9766 = vld [vmem:[%s9622 + $0x478] sm:$0xff]
        %v9767 = vld [vmem:[%s9622 + $0x480] sm:$0xff]
        %v9768 = vld [vmem:[%s9622 + $0x488] sm:$0xff]
        %v9769 = vld [vmem:[%s9622 + $0x490] sm:$0xff]
        %v9770 = vld [vmem:[%s9622 + $0x498] sm:$0xff]
        %v9771 = vld [vmem:[%s9622 + $0x4a0] sm:$0xff]
        %v9772 = vld [vmem:[%s9622 + $0x4a8] sm:$0xff]
        %v9773 = vld [vmem:[%s9622 + $0x4b0] sm:$0xff]
        %v9774 = vld [vmem:[%s9622 + $0x4b8] sm:$0xff]
        %v9775 = vld [vmem:[%s9622 + $0x4c0] sm:$0xff]
        %v9776 = vld [vmem:[%s9622 + $0x4c8] sm:$0xff]
        %v9777 = vld [vmem:[%s9622 + $0x4d0] sm:$0xff]
        %v9778 = vld [vmem:[%s9622 + $0x4d8] sm:$0xff]
        %v9779 = vld [vmem:[%s9622 + $0x4e0] sm:$0xff]
        %v9780 = vld [vmem:[%s9622 + $0x4e8] sm:$0xff]
        %v9781 = vld [vmem:[%s9622 + $0x4f0] sm:$0xff]
        %v9782 = vld [vmem:[%s9622 + $0x4f8] sm:$0xff]
        %v9783 = vld [vmem:[%s9622 + $0x500] sm:$0xff]
        %v9784 = vld [vmem:[%s9622 + $0x508] sm:$0xff]
        %v9785 = vld [vmem:[%s9622 + $0x510] sm:$0xff]
        %v9786 = vld [vmem:[%s9622 + $0x518] sm:$0xff]
        %v9787 = vld [vmem:[%s9622 + $0x520] sm:$0xff]
        %v9788 = vld [vmem:[%s9622 + $0x528] sm:$0xff]
        %v9789 = vld [vmem:[%s9622 + $0x530] sm:$0xff]
        %v9790 = vld [vmem:[%s9622 + $0x538] sm:$0xff]
        %v9791 = vld [vmem:[%s9622 + $0x540] sm:$0xff]
        %v9792 = vld [vmem:[%s9622 + $0x548] sm:$0xff]
        %v9793 = vld [vmem:[%s9622 + $0x550] sm:$0xff]
        %v9794 = vld [vmem:[%s9622 + $0x558] sm:$0xff]
        %v9795 = vld [vmem:[%s9622 + $0x560] sm:$0xff]
        %v9796 = vld [vmem:[%s9622 + $0x568] sm:$0xff]
        %v9797 = vld [vmem:[%s9622 + $0x570] sm:$0xff]
        %v9798 = vld [vmem:[%s9622 + $0x578] sm:$0xff]
        %v9799 = vld [vmem:[%s9622 + $0x580] sm:$0xff]
        %v9800 = vld [vmem:[%s9622 + $0x588] sm:$0xff]
        %v9801 = vld [vmem:[%s9622 + $0x590] sm:$0xff]
        %v9802 = vld [vmem:[%s9622 + $0x598] sm:$0xff]
        %v9803 = vld [vmem:[%s9622 + $0x5a0] sm:$0xff]
        %v9804 = vld [vmem:[%s9622 + $0x5a8] sm:$0xff]
        %v9805 = vld [vmem:[%s9622 + $0x5b0] sm:$0xff]
        %v9806 = vld [vmem:[%s9622 + $0x5b8] sm:$0xff]
        %v9807 = vld [vmem:[%s9622 + $0x5c0] sm:$0xff]
        %v9808 = vld [vmem:[%s9622 + $0x5c8] sm:$0xff]
        %v9809 = vld [vmem:[%s9622 + $0x5d0] sm:$0xff]
        %v9810 = vld [vmem:[%s9622 + $0x5d8] sm:$0xff]
        %v9811 = vld [vmem:[%s9622 + $0x5e0] sm:$0xff]
        %v9812 = vld [vmem:[%s9622 + $0x5e8] sm:$0xff]
        %v9813 = vld [vmem:[%s9622 + $0x5f0] sm:$0xff]
        %v9814 = vld [vmem:[%s9622 + $0x5f8] sm:$0xff]
        %v9815 = vld [vmem:[%s9622 + $0x600] sm:$0xff]
        %v9816 = vld [vmem:[%s9622 + $0x608] sm:$0xff]
        %v9817 = vld [vmem:[%s9622 + $0x610] sm:$0xff]
        %v9818 = vld [vmem:[%s9622 + $0x618] sm:$0xff]
        %v9819 = vld [vmem:[%s9622 + $0x620] sm:$0xff]
        %v9820 = vld [vmem:[%s9622 + $0x628] sm:$0xff]
        %v9821 = vld [vmem:[%s9622 + $0x630] sm:$0xff]
        %v9822 = vld [vmem:[%s9622 + $0x638] sm:$0xff]
        %v9823 = vld [vmem:[%s9622 + $0x640] sm:$0xff]
        %v9824 = vld [vmem:[%s9622 + $0x648] sm:$0xff]
        %v9825 = vld [vmem:[%s9622 + $0x650] sm:$0xff]
        %v9826 = vld [vmem:[%s9622 + $0x658] sm:$0xff]
        %v9827 = vld [vmem:[%s9622 + $0x660] sm:$0xff]
        %v9828 = vld [vmem:[%s9622 + $0x668] sm:$0xff]
        %v9829 = vld [vmem:[%s9622 + $0x670] sm:$0xff]
        %v9830 = vld [vmem:[%s9622 + $0x678] sm:$0xff]
        %v9831 = vld [vmem:[%s9622 + $0x680] sm:$0xff]
        %v9832 = vld [vmem:[%s9622 + $0x688] sm:$0xff]
        %v9833 = vld [vmem:[%s9622 + $0x690] sm:$0xff]
        %v9834 = vld [vmem:[%s9622 + $0x698] sm:$0xff]
        %v9835 = vld [vmem:[%s9622 + $0x6a0] sm:$0xff]
        %v9836 = vld [vmem:[%s9622 + $0x6a8] sm:$0xff]
        %v9837 = vld [vmem:[%s9622 + $0x6b0] sm:$0xff]
        %v9838 = vld [vmem:[%s9622 + $0x6b8] sm:$0xff]
        %v9839 = vld [vmem:[%s9622 + $0x6c0] sm:$0xff]
        %v9840 = vld [vmem:[%s9622 + $0x6c8] sm:$0xff]
        %v9841 = vld [vmem:[%s9622 + $0x6d0] sm:$0xff]
        %v9842 = vld [vmem:[%s9622 + $0x6d8] sm:$0xff]
        %v9843 = vld [vmem:[%s9622 + $0x6e0] sm:$0xff]
        %v9844 = vld [vmem:[%s9622 + $0x6e8] sm:$0xff]
        %v9845 = vld [vmem:[%s9622 + $0x6f0] sm:$0xff]
        %v9846 = vld [vmem:[%s9622 + $0x6f8] sm:$0xff]
        %v9847 = vld [vmem:[%s9622 + $0x700] sm:$0xff]
        %v9848 = vld [vmem:[%s9622 + $0x708] sm:$0xff]
        %v9849 = vld [vmem:[%s9622 + $0x710] sm:$0xff]
        %v9850 = vld [vmem:[%s9622 + $0x718] sm:$0xff]
        %v9851 = vld [vmem:[%s9622 + $0x720] sm:$0xff]
        %v9852 = vld [vmem:[%s9622 + $0x728] sm:$0xff]
        %v9853 = vld [vmem:[%s9622 + $0x730] sm:$0xff]
        %v9854 = vld [vmem:[%s9622 + $0x738] sm:$0xff]
        %v9855 = vld [vmem:[%s9622 + $0x740] sm:$0xff]
        %v9856 = vld [vmem:[%s9622 + $0x748] sm:$0xff]
        %v9857 = vld [vmem:[%s9622 + $0x750] sm:$0xff]
        %v9858 = vld [vmem:[%s9622 + $0x758] sm:$0xff]
        %v9859 = vld [vmem:[%s9622 + $0x760] sm:$0xff]
        %v9860 = vld [vmem:[%s9622 + $0x768] sm:$0xff]
        %v9861 = vld [vmem:[%s9622 + $0x770] sm:$0xff]
        %v9862 = vld [vmem:[%s9622 + $0x778] sm:$0xff]
        %v9863 = vld [vmem:[%s9622 + $0x780] sm:$0xff]
        %v9864 = vld [vmem:[%s9622 + $0x788] sm:$0xff]
        %v9865 = vld [vmem:[%s9622 + $0x790] sm:$0xff]
        %v9866 = vld [vmem:[%s9622 + $0x798] sm:$0xff]
        %v9867 = vld [vmem:[%s9622 + $0x7a0] sm:$0xff]
        %v9868 = vld [vmem:[%s9622 + $0x7a8] sm:$0xff]
        %v9869 = vld [vmem:[%s9622 + $0x7b0] sm:$0xff]
        %v9870 = vld [vmem:[%s9622 + $0x7b8] sm:$0xff]
        %v9871 = vld [vmem:[%s9622 + $0x7c0] sm:$0xff]
        %v9872 = vld [vmem:[%s9622 + $0x7c8] sm:$0xff]
        %v9873 = vld [vmem:[%s9622 + $0x7d0] sm:$0xff]
        %v9874 = vld [vmem:[%s9622 + $0x7d8] sm:$0xff]
        %v9875 = vld [vmem:[%s9622 + $0x7e0] sm:$0xff]
        %v9876 = vld [vmem:[%s9622 + $0x7e8] sm:$0xff]
        %v9877 = vld [vmem:[%s9622 + $0x7f0] sm:$0xff]
        %v9878 = vld [vmem:[%s9622 + $0x7f8] sm:$0xff]
        %v9879 = vpack.c.bf16 %v9606, %v9606
        %v9880 = vpack.c.bf16 %v9607, %v9607
        %v9881 = vpack.c.bf16 %v9608, %v9608
        %v9882 = vpack.c.bf16 %v9609, %v9609
        %v9883 = vpack.c.bf16 %v9610, %v9610
        %v9884 = vpack.c.bf16 %v9611, %v9611
        %v9885 = vpack.c.bf16 %v9612, %v9612
        %v9886 = vpack.c.bf16 %v9613, %v9613
        %v9887 = vpack.c.bf16 %v9614, %v9614
        %v9888 = vpack.c.bf16 %v9615, %v9615
        %v9889 = vpack.c.bf16 %v9616, %v9616
        %v9890 = vpack.c.bf16 %v9617, %v9617
        %v9891 = vpack.c.bf16 %v9618, %v9618
        %v9892 = vpack.c.bf16 %v9619, %v9619
        %v9893 = vpack.c.bf16 %v9620, %v9620
        %v9894 = vpack.c.bf16 %v9621, %v9621
        %s9895 = scalar_lea.vmem [#allocation21], 2
        %v9896 = vld [vmem:[%s9895] sm:$0x3]
        %v9898 = vperm.slane %v9896, 0
        %v9899 = vperm.slane %v9896, 1
        %v10158 = vunpack.c.l.b16 %v9623
        %v10159 = vunpack.c.h.b16 %v9623
        %v10160 = vunpack.c.l.b16 %v9624
        %v10161 = vunpack.c.h.b16 %v9624
        %v10162 = vunpack.c.l.b16 %v9625
        %v10163 = vunpack.c.h.b16 %v9625
        %v10164 = vunpack.c.l.b16 %v9626
        %v10165 = vunpack.c.h.b16 %v9626
        %v10166 = vunpack.c.l.b16 %v9627
        %v10167 = vunpack.c.h.b16 %v9627
        %v10168 = vunpack.c.l.b16 %v9628
        %v10169 = vunpack.c.h.b16 %v9628
        %v10170 = vunpack.c.l.b16 %v9629
        %v10171 = vunpack.c.h.b16 %v9629
        %v10172 = vunpack.c.l.b16 %v9630
        %v10173 = vunpack.c.h.b16 %v9630
        %v10174 = vunpack.c.l.b16 %v9631
        %v10175 = vunpack.c.h.b16 %v9631
        %v10176 = vunpack.c.l.b16 %v9632
        %v10177 = vunpack.c.h.b16 %v9632
        %v10178 = vunpack.c.l.b16 %v9633
        %v10179 = vunpack.c.h.b16 %v9633
        %v10180 = vunpack.c.l.b16 %v9634
        %v10181 = vunpack.c.h.b16 %v9634
        %v10182 = vunpack.c.l.b16 %v9635
        %v10183 = vunpack.c.h.b16 %v9635
        %v10184 = vunpack.c.l.b16 %v9636
        %v10185 = vunpack.c.h.b16 %v9636
        %v10186 = vunpack.c.l.b16 %v9637
        %v10187 = vunpack.c.h.b16 %v9637
        %v10188 = vunpack.c.l.b16 %v9638
        %v10189 = vunpack.c.h.b16 %v9638
        %v10190 = vunpack.c.l.b16 %v9639
        %v10191 = vunpack.c.h.b16 %v9639
        %v10192 = vunpack.c.l.b16 %v9640
        %v10193 = vunpack.c.h.b16 %v9640
        %v10194 = vunpack.c.l.b16 %v9641
        %v10195 = vunpack.c.h.b16 %v9641
        %v10196 = vunpack.c.l.b16 %v9642
        %v10197 = vunpack.c.h.b16 %v9642
        %v10198 = vunpack.c.l.b16 %v9643
        %v10199 = vunpack.c.h.b16 %v9643
        %v10200 = vunpack.c.l.b16 %v9644
        %v10201 = vunpack.c.h.b16 %v9644
        %v10202 = vunpack.c.l.b16 %v9645
        %v10203 = vunpack.c.h.b16 %v9645
        %v10204 = vunpack.c.l.b16 %v9646
        %v10205 = vunpack.c.h.b16 %v9646
        %v10206 = vunpack.c.l.b16 %v9647
        %v10207 = vunpack.c.h.b16 %v9647
        %v10208 = vunpack.c.l.b16 %v9648
        %v10209 = vunpack.c.h.b16 %v9648
        %v10210 = vunpack.c.l.b16 %v9649
        %v10211 = vunpack.c.h.b16 %v9649
        %v10212 = vunpack.c.l.b16 %v9650
        %v10213 = vunpack.c.h.b16 %v9650
        %v10214 = vunpack.c.l.b16 %v9651
        %v10215 = vunpack.c.h.b16 %v9651
        %v10216 = vunpack.c.l.b16 %v9652
        %v10217 = vunpack.c.h.b16 %v9652
        %v10218 = vunpack.c.l.b16 %v9653
        %v10219 = vunpack.c.h.b16 %v9653
        %v10220 = vunpack.c.l.b16 %v9654
        %v10221 = vunpack.c.h.b16 %v9654
        %v10222 = vunpack.c.l.b16 %v9655
        %v10223 = vunpack.c.h.b16 %v9655
        %v10224 = vunpack.c.l.b16 %v9656
        %v10225 = vunpack.c.h.b16 %v9656
        %v10226 = vunpack.c.l.b16 %v9657
        %v10227 = vunpack.c.h.b16 %v9657
        %v10228 = vunpack.c.l.b16 %v9658
        %v10229 = vunpack.c.h.b16 %v9658
        %v10230 = vunpack.c.l.b16 %v9659
        %v10231 = vunpack.c.h.b16 %v9659
        %v10232 = vunpack.c.l.b16 %v9660
        %v10233 = vunpack.c.h.b16 %v9660
        %v10234 = vunpack.c.l.b16 %v9661
        %v10235 = vunpack.c.h.b16 %v9661
        %v10236 = vunpack.c.l.b16 %v9662
        %v10237 = vunpack.c.h.b16 %v9662
        %v10238 = vunpack.c.l.b16 %v9663
        %v10239 = vunpack.c.h.b16 %v9663
        %v10240 = vunpack.c.l.b16 %v9664
        %v10241 = vunpack.c.h.b16 %v9664
        %v10242 = vunpack.c.l.b16 %v9665
        %v10243 = vunpack.c.h.b16 %v9665
        %v10244 = vunpack.c.l.b16 %v9666
        %v10245 = vunpack.c.h.b16 %v9666
        %v10246 = vunpack.c.l.b16 %v9667
        %v10247 = vunpack.c.h.b16 %v9667
        %v10248 = vunpack.c.l.b16 %v9668
        %v10249 = vunpack.c.h.b16 %v9668
        %v10250 = vunpack.c.l.b16 %v9669
        %v10251 = vunpack.c.h.b16 %v9669
        %v10252 = vunpack.c.l.b16 %v9670
        %v10253 = vunpack.c.h.b16 %v9670
        %v10254 = vunpack.c.l.b16 %v9671
        %v10255 = vunpack.c.h.b16 %v9671
        %v10256 = vunpack.c.l.b16 %v9672
        %v10257 = vunpack.c.h.b16 %v9672
        %v10258 = vunpack.c.l.b16 %v9673
        %v10259 = vunpack.c.h.b16 %v9673
        %v10260 = vunpack.c.l.b16 %v9674
        %v10261 = vunpack.c.h.b16 %v9674
        %v10262 = vunpack.c.l.b16 %v9675
        %v10263 = vunpack.c.h.b16 %v9675
        %v10264 = vunpack.c.l.b16 %v9676
        %v10265 = vunpack.c.h.b16 %v9676
        %v10266 = vunpack.c.l.b16 %v9677
        %v10267 = vunpack.c.h.b16 %v9677
        %v10268 = vunpack.c.l.b16 %v9678
        %v10269 = vunpack.c.h.b16 %v9678
        %v10270 = vunpack.c.l.b16 %v9679
        %v10271 = vunpack.c.h.b16 %v9679
        %v10272 = vunpack.c.l.b16 %v9680
        %v10273 = vunpack.c.h.b16 %v9680
        %v10274 = vunpack.c.l.b16 %v9681
        %v10275 = vunpack.c.h.b16 %v9681
        %v10276 = vunpack.c.l.b16 %v9682
        %v10277 = vunpack.c.h.b16 %v9682
        %v10278 = vunpack.c.l.b16 %v9683
        %v10279 = vunpack.c.h.b16 %v9683
        %v10280 = vunpack.c.l.b16 %v9684
        %v10281 = vunpack.c.h.b16 %v9684
        %v10282 = vunpack.c.l.b16 %v9685
        %v10283 = vunpack.c.h.b16 %v9685
        %v10284 = vunpack.c.l.b16 %v9686
        %v10285 = vunpack.c.h.b16 %v9686
        %v10286 = vunpack.c.l.b16 %v9687
        %v10287 = vunpack.c.h.b16 %v9687
        %v10288 = vunpack.c.l.b16 %v9688
        %v10289 = vunpack.c.h.b16 %v9688
        %v10290 = vunpack.c.l.b16 %v9689
        %v10291 = vunpack.c.h.b16 %v9689
        %v10292 = vunpack.c.l.b16 %v9690
        %v10293 = vunpack.c.h.b16 %v9690
        %v10294 = vunpack.c.l.b16 %v9691
        %v10295 = vunpack.c.h.b16 %v9691
        %v10296 = vunpack.c.l.b16 %v9692
        %v10297 = vunpack.c.h.b16 %v9692
        %v10298 = vunpack.c.l.b16 %v9693
        %v10299 = vunpack.c.h.b16 %v9693
        %v10300 = vunpack.c.l.b16 %v9694
        %v10301 = vunpack.c.h.b16 %v9694
        %v10302 = vunpack.c.l.b16 %v9695
        %v10303 = vunpack.c.h.b16 %v9695
        %v10304 = vunpack.c.l.b16 %v9696
        %v10305 = vunpack.c.h.b16 %v9696
        %v10306 = vunpack.c.l.b16 %v9697
        %v10307 = vunpack.c.h.b16 %v9697
        %v10308 = vunpack.c.l.b16 %v9698
        %v10309 = vunpack.c.h.b16 %v9698
        %v10310 = vunpack.c.l.b16 %v9699
        %v10311 = vunpack.c.h.b16 %v9699
        %v10312 = vunpack.c.l.b16 %v9700
        %v10313 = vunpack.c.h.b16 %v9700
        %v10314 = vunpack.c.l.b16 %v9701
        %v10315 = vunpack.c.h.b16 %v9701
        %v10316 = vunpack.c.l.b16 %v9702
        %v10317 = vunpack.c.h.b16 %v9702
        %v10318 = vunpack.c.l.b16 %v9703
        %v10319 = vunpack.c.h.b16 %v9703
        %v10320 = vunpack.c.l.b16 %v9704
        %v10321 = vunpack.c.h.b16 %v9704
        %v10322 = vunpack.c.l.b16 %v9705
        %v10323 = vunpack.c.h.b16 %v9705
        %v10324 = vunpack.c.l.b16 %v9706
        %v10325 = vunpack.c.h.b16 %v9706
        %v10326 = vunpack.c.l.b16 %v9707
        %v10327 = vunpack.c.h.b16 %v9707
        %v10328 = vunpack.c.l.b16 %v9708
        %v10329 = vunpack.c.h.b16 %v9708
        %v10330 = vunpack.c.l.b16 %v9709
        %v10331 = vunpack.c.h.b16 %v9709
        %v10332 = vunpack.c.l.b16 %v9710
        %v10333 = vunpack.c.h.b16 %v9710
        %v10334 = vunpack.c.l.b16 %v9711
        %v10335 = vunpack.c.h.b16 %v9711
        %v10336 = vunpack.c.l.b16 %v9712
        %v10337 = vunpack.c.h.b16 %v9712
        %v10338 = vunpack.c.l.b16 %v9713
        %v10339 = vunpack.c.h.b16 %v9713
        %v10340 = vunpack.c.l.b16 %v9714
        %v10341 = vunpack.c.h.b16 %v9714
        %v10342 = vunpack.c.l.b16 %v9715
        %v10343 = vunpack.c.h.b16 %v9715
        %v10344 = vunpack.c.l.b16 %v9716
        %v10345 = vunpack.c.h.b16 %v9716
        %v10346 = vunpack.c.l.b16 %v9717
        %v10347 = vunpack.c.h.b16 %v9717
        %v10348 = vunpack.c.l.b16 %v9718
        %v10349 = vunpack.c.h.b16 %v9718
        %v10350 = vunpack.c.l.b16 %v9719
        %v10351 = vunpack.c.h.b16 %v9719
        %v10352 = vunpack.c.l.b16 %v9720
        %v10353 = vunpack.c.h.b16 %v9720
        %v10354 = vunpack.c.l.b16 %v9721
        %v10355 = vunpack.c.h.b16 %v9721
        %v10356 = vunpack.c.l.b16 %v9722
        %v10357 = vunpack.c.h.b16 %v9722
        %v10358 = vunpack.c.l.b16 %v9723
        %v10359 = vunpack.c.h.b16 %v9723
        %v10360 = vunpack.c.l.b16 %v9724
        %v10361 = vunpack.c.h.b16 %v9724
        %v10362 = vunpack.c.l.b16 %v9725
        %v10363 = vunpack.c.h.b16 %v9725
        %v10364 = vunpack.c.l.b16 %v9726
        %v10365 = vunpack.c.h.b16 %v9726
        %v10366 = vunpack.c.l.b16 %v9727
        %v10367 = vunpack.c.h.b16 %v9727
        %v10368 = vunpack.c.l.b16 %v9728
        %v10369 = vunpack.c.h.b16 %v9728
        %v10370 = vunpack.c.l.b16 %v9729
        %v10371 = vunpack.c.h.b16 %v9729
        %v10372 = vunpack.c.l.b16 %v9730
        %v10373 = vunpack.c.h.b16 %v9730
        %v10374 = vunpack.c.l.b16 %v9731
        %v10375 = vunpack.c.h.b16 %v9731
        %v10376 = vunpack.c.l.b16 %v9732
        %v10377 = vunpack.c.h.b16 %v9732
        %v10378 = vunpack.c.l.b16 %v9733
        %v10379 = vunpack.c.h.b16 %v9733
        %v10380 = vunpack.c.l.b16 %v9734
        %v10381 = vunpack.c.h.b16 %v9734
        %v10382 = vunpack.c.l.b16 %v9735
        %v10383 = vunpack.c.h.b16 %v9735
        %v10384 = vunpack.c.l.b16 %v9736
        %v10385 = vunpack.c.h.b16 %v9736
        %v10386 = vunpack.c.l.b16 %v9737
        %v10387 = vunpack.c.h.b16 %v9737
        %v10388 = vunpack.c.l.b16 %v9738
        %v10389 = vunpack.c.h.b16 %v9738
        %v10390 = vunpack.c.l.b16 %v9739
        %v10391 = vunpack.c.h.b16 %v9739
        %v10392 = vunpack.c.l.b16 %v9740
        %v10393 = vunpack.c.h.b16 %v9740
        %v10394 = vunpack.c.l.b16 %v9741
        %v10395 = vunpack.c.h.b16 %v9741
        %v10396 = vunpack.c.l.b16 %v9742
        %v10397 = vunpack.c.h.b16 %v9742
        %v10398 = vunpack.c.l.b16 %v9743
        %v10399 = vunpack.c.h.b16 %v9743
        %v10400 = vunpack.c.l.b16 %v9744
        %v10401 = vunpack.c.h.b16 %v9744
        %v10402 = vunpack.c.l.b16 %v9745
        %v10403 = vunpack.c.h.b16 %v9745
        %v10404 = vunpack.c.l.b16 %v9746
        %v10405 = vunpack.c.h.b16 %v9746
        %v10406 = vunpack.c.l.b16 %v9747
        %v10407 = vunpack.c.h.b16 %v9747
        %v10408 = vunpack.c.l.b16 %v9748
        %v10409 = vunpack.c.h.b16 %v9748
        %v10410 = vunpack.c.l.b16 %v9749
        %v10411 = vunpack.c.h.b16 %v9749
        %v10412 = vunpack.c.l.b16 %v9750
        %v10413 = vunpack.c.h.b16 %v9750
        %v10414 = vunpack.c.l.b16 %v9751
        %v10415 = vunpack.c.h.b16 %v9751
        %v10416 = vunpack.c.l.b16 %v9752
        %v10417 = vunpack.c.h.b16 %v9752
        %v10418 = vunpack.c.l.b16 %v9753
        %v10419 = vunpack.c.h.b16 %v9753
        %v10420 = vunpack.c.l.b16 %v9754
        %v10421 = vunpack.c.h.b16 %v9754
        %v10422 = vunpack.c.l.b16 %v9755
        %v10423 = vunpack.c.h.b16 %v9755
        %v10424 = vunpack.c.l.b16 %v9756
        %v10425 = vunpack.c.h.b16 %v9756
        %v10426 = vunpack.c.l.b16 %v9757
        %v10427 = vunpack.c.h.b16 %v9757
        %v10428 = vunpack.c.l.b16 %v9758
        %v10429 = vunpack.c.h.b16 %v9758
        %v10430 = vunpack.c.l.b16 %v9759
        %v10431 = vunpack.c.h.b16 %v9759
        %v10432 = vunpack.c.l.b16 %v9760
        %v10433 = vunpack.c.h.b16 %v9760
        %v10434 = vunpack.c.l.b16 %v9761
        %v10435 = vunpack.c.h.b16 %v9761
        %v10436 = vunpack.c.l.b16 %v9762
        %v10437 = vunpack.c.h.b16 %v9762
        %v10438 = vunpack.c.l.b16 %v9763
        %v10439 = vunpack.c.h.b16 %v9763
        %v10440 = vunpack.c.l.b16 %v9764
        %v10441 = vunpack.c.h.b16 %v9764
        %v10442 = vunpack.c.l.b16 %v9765
        %v10443 = vunpack.c.h.b16 %v9765
        %v10444 = vunpack.c.l.b16 %v9766
        %v10445 = vunpack.c.h.b16 %v9766
        %v10446 = vunpack.c.l.b16 %v9767
        %v10447 = vunpack.c.h.b16 %v9767
        %v10448 = vunpack.c.l.b16 %v9768
        %v10449 = vunpack.c.h.b16 %v9768
        %v10450 = vunpack.c.l.b16 %v9769
        %v10451 = vunpack.c.h.b16 %v9769
        %v10452 = vunpack.c.l.b16 %v9770
        %v10453 = vunpack.c.h.b16 %v9770
        %v10454 = vunpack.c.l.b16 %v9771
        %v10455 = vunpack.c.h.b16 %v9771
        %v10456 = vunpack.c.l.b16 %v9772
        %v10457 = vunpack.c.h.b16 %v9772
        %v10458 = vunpack.c.l.b16 %v9773
        %v10459 = vunpack.c.h.b16 %v9773
        %v10460 = vunpack.c.l.b16 %v9774
        %v10461 = vunpack.c.h.b16 %v9774
        %v10462 = vunpack.c.l.b16 %v9775
        %v10463 = vunpack.c.h.b16 %v9775
        %v10464 = vunpack.c.l.b16 %v9776
        %v10465 = vunpack.c.h.b16 %v9776
        %v10466 = vunpack.c.l.b16 %v9777
        %v10467 = vunpack.c.h.b16 %v9777
        %v10468 = vunpack.c.l.b16 %v9778
        %v10469 = vunpack.c.h.b16 %v9778
        %v10470 = vunpack.c.l.b16 %v9779
        %v10471 = vunpack.c.h.b16 %v9779
        %v10472 = vunpack.c.l.b16 %v9780
        %v10473 = vunpack.c.h.b16 %v9780
        %v10474 = vunpack.c.l.b16 %v9781
        %v10475 = vunpack.c.h.b16 %v9781
        %v10476 = vunpack.c.l.b16 %v9782
        %v10477 = vunpack.c.h.b16 %v9782
        %v10478 = vunpack.c.l.b16 %v9783
        %v10479 = vunpack.c.h.b16 %v9783
        %v10480 = vunpack.c.l.b16 %v9784
        %v10481 = vunpack.c.h.b16 %v9784
        %v10482 = vunpack.c.l.b16 %v9785
        %v10483 = vunpack.c.h.b16 %v9785
        %v10484 = vunpack.c.l.b16 %v9786
        %v10485 = vunpack.c.h.b16 %v9786
        %v10486 = vunpack.c.l.b16 %v9787
        %v10487 = vunpack.c.h.b16 %v9787
        %v10488 = vunpack.c.l.b16 %v9788
        %v10489 = vunpack.c.h.b16 %v9788
        %v10490 = vunpack.c.l.b16 %v9789
        %v10491 = vunpack.c.h.b16 %v9789
        %v10492 = vunpack.c.l.b16 %v9790
        %v10493 = vunpack.c.h.b16 %v9790
        %v10494 = vunpack.c.l.b16 %v9791
        %v10495 = vunpack.c.h.b16 %v9791
        %v10496 = vunpack.c.l.b16 %v9792
        %v10497 = vunpack.c.h.b16 %v9792
        %v10498 = vunpack.c.l.b16 %v9793
        %v10499 = vunpack.c.h.b16 %v9793
        %v10500 = vunpack.c.l.b16 %v9794
        %v10501 = vunpack.c.h.b16 %v9794
        %v10502 = vunpack.c.l.b16 %v9795
        %v10503 = vunpack.c.h.b16 %v9795
        %v10504 = vunpack.c.l.b16 %v9796
        %v10505 = vunpack.c.h.b16 %v9796
        %v10506 = vunpack.c.l.b16 %v9797
        %v10507 = vunpack.c.h.b16 %v9797
        %v10508 = vunpack.c.l.b16 %v9798
        %v10509 = vunpack.c.h.b16 %v9798
        %v10510 = vunpack.c.l.b16 %v9799
        %v10511 = vunpack.c.h.b16 %v9799
        %v10512 = vunpack.c.l.b16 %v9800
        %v10513 = vunpack.c.h.b16 %v9800
        %v10514 = vunpack.c.l.b16 %v9801
        %v10515 = vunpack.c.h.b16 %v9801
        %v10516 = vunpack.c.l.b16 %v9802
        %v10517 = vunpack.c.h.b16 %v9802
        %v10518 = vunpack.c.l.b16 %v9803
        %v10519 = vunpack.c.h.b16 %v9803
        %v10520 = vunpack.c.l.b16 %v9804
        %v10521 = vunpack.c.h.b16 %v9804
        %v10522 = vunpack.c.l.b16 %v9805
        %v10523 = vunpack.c.h.b16 %v9805
        %v10524 = vunpack.c.l.b16 %v9806
        %v10525 = vunpack.c.h.b16 %v9806
        %v10526 = vunpack.c.l.b16 %v9807
        %v10527 = vunpack.c.h.b16 %v9807
        %v10528 = vunpack.c.l.b16 %v9808
        %v10529 = vunpack.c.h.b16 %v9808
        %v10530 = vunpack.c.l.b16 %v9809
        %v10531 = vunpack.c.h.b16 %v9809
        %v10532 = vunpack.c.l.b16 %v9810
        %v10533 = vunpack.c.h.b16 %v9810
        %v10534 = vunpack.c.l.b16 %v9811
        %v10535 = vunpack.c.h.b16 %v9811
        %v10536 = vunpack.c.l.b16 %v9812
        %v10537 = vunpack.c.h.b16 %v9812
        %v10538 = vunpack.c.l.b16 %v9813
        %v10539 = vunpack.c.h.b16 %v9813
        %v10540 = vunpack.c.l.b16 %v9814
        %v10541 = vunpack.c.h.b16 %v9814
        %v10542 = vunpack.c.l.b16 %v9815
        %v10543 = vunpack.c.h.b16 %v9815
        %v10544 = vunpack.c.l.b16 %v9816
        %v10545 = vunpack.c.h.b16 %v9816
        %v10546 = vunpack.c.l.b16 %v9817
        %v10547 = vunpack.c.h.b16 %v9817
        %v10548 = vunpack.c.l.b16 %v9818
        %v10549 = vunpack.c.h.b16 %v9818
        %v10550 = vunpack.c.l.b16 %v9819
        %v10551 = vunpack.c.h.b16 %v9819
        %v10552 = vunpack.c.l.b16 %v9820
        %v10553 = vunpack.c.h.b16 %v9820
        %v10554 = vunpack.c.l.b16 %v9821
        %v10555 = vunpack.c.h.b16 %v9821
        %v10556 = vunpack.c.l.b16 %v9822
        %v10557 = vunpack.c.h.b16 %v9822
        %v10558 = vunpack.c.l.b16 %v9823
        %v10559 = vunpack.c.h.b16 %v9823
        %v10560 = vunpack.c.l.b16 %v9824
        %v10561 = vunpack.c.h.b16 %v9824
        %v10562 = vunpack.c.l.b16 %v9825
        %v10563 = vunpack.c.h.b16 %v9825
        %v10564 = vunpack.c.l.b16 %v9826
        %v10565 = vunpack.c.h.b16 %v9826
        %v10566 = vunpack.c.l.b16 %v9827
        %v10567 = vunpack.c.h.b16 %v9827
        %v10568 = vunpack.c.l.b16 %v9828
        %v10569 = vunpack.c.h.b16 %v9828
        %v10570 = vunpack.c.l.b16 %v9829
        %v10571 = vunpack.c.h.b16 %v9829
        %v10572 = vunpack.c.l.b16 %v9830
        %v10573 = vunpack.c.h.b16 %v9830
        %v10574 = vunpack.c.l.b16 %v9831
        %v10575 = vunpack.c.h.b16 %v9831
        %v10576 = vunpack.c.l.b16 %v9832
        %v10577 = vunpack.c.h.b16 %v9832
        %v10578 = vunpack.c.l.b16 %v9833
        %v10579 = vunpack.c.h.b16 %v9833
        %v10580 = vunpack.c.l.b16 %v9834
        %v10581 = vunpack.c.h.b16 %v9834
        %v10582 = vunpack.c.l.b16 %v9835
        %v10583 = vunpack.c.h.b16 %v9835
        %v10584 = vunpack.c.l.b16 %v9836
        %v10585 = vunpack.c.h.b16 %v9836
        %v10586 = vunpack.c.l.b16 %v9837
        %v10587 = vunpack.c.h.b16 %v9837
        %v10588 = vunpack.c.l.b16 %v9838
        %v10589 = vunpack.c.h.b16 %v9838
        %v10590 = vunpack.c.l.b16 %v9839
        %v10591 = vunpack.c.h.b16 %v9839
        %v10592 = vunpack.c.l.b16 %v9840
        %v10593 = vunpack.c.h.b16 %v9840
        %v10594 = vunpack.c.l.b16 %v9841
        %v10595 = vunpack.c.h.b16 %v9841
        %v10596 = vunpack.c.l.b16 %v9842
        %v10597 = vunpack.c.h.b16 %v9842
        %v10598 = vunpack.c.l.b16 %v9843
        %v10599 = vunpack.c.h.b16 %v9843
        %v10600 = vunpack.c.l.b16 %v9844
        %v10601 = vunpack.c.h.b16 %v9844
        %v10602 = vunpack.c.l.b16 %v9845
        %v10603 = vunpack.c.h.b16 %v9845
        %v10604 = vunpack.c.l.b16 %v9846
        %v10605 = vunpack.c.h.b16 %v9846
        %v10606 = vunpack.c.l.b16 %v9847
        %v10607 = vunpack.c.h.b16 %v9847
        %v10608 = vunpack.c.l.b16 %v9848
        %v10609 = vunpack.c.h.b16 %v9848
        %v10610 = vunpack.c.l.b16 %v9849
        %v10611 = vunpack.c.h.b16 %v9849
        %v10612 = vunpack.c.l.b16 %v9850
        %v10613 = vunpack.c.h.b16 %v9850
        %v10614 = vunpack.c.l.b16 %v9851
        %v10615 = vunpack.c.h.b16 %v9851
        %v10616 = vunpack.c.l.b16 %v9852
        %v10617 = vunpack.c.h.b16 %v9852
        %v10618 = vunpack.c.l.b16 %v9853
        %v10619 = vunpack.c.h.b16 %v9853
        %v10620 = vunpack.c.l.b16 %v9854
        %v10621 = vunpack.c.h.b16 %v9854
        %v10622 = vunpack.c.l.b16 %v9855
        %v10623 = vunpack.c.h.b16 %v9855
        %v10624 = vunpack.c.l.b16 %v9856
        %v10625 = vunpack.c.h.b16 %v9856
        %v10626 = vunpack.c.l.b16 %v9857
        %v10627 = vunpack.c.h.b16 %v9857
        %v10628 = vunpack.c.l.b16 %v9858
        %v10629 = vunpack.c.h.b16 %v9858
        %v10630 = vunpack.c.l.b16 %v9859
        %v10631 = vunpack.c.h.b16 %v9859
        %v10632 = vunpack.c.l.b16 %v9860
        %v10633 = vunpack.c.h.b16 %v9860
        %v10634 = vunpack.c.l.b16 %v9861
        %v10635 = vunpack.c.h.b16 %v9861
        %v10636 = vunpack.c.l.b16 %v9862
        %v10637 = vunpack.c.h.b16 %v9862
        %v10638 = vunpack.c.l.b16 %v9863
        %v10639 = vunpack.c.h.b16 %v9863
        %v10640 = vunpack.c.l.b16 %v9864
        %v10641 = vunpack.c.h.b16 %v9864
        %v10642 = vunpack.c.l.b16 %v9865
        %v10643 = vunpack.c.h.b16 %v9865
        %v10644 = vunpack.c.l.b16 %v9866
        %v10645 = vunpack.c.h.b16 %v9866
        %v10646 = vunpack.c.l.b16 %v9867
        %v10647 = vunpack.c.h.b16 %v9867
        %v10648 = vunpack.c.l.b16 %v9868
        %v10649 = vunpack.c.h.b16 %v9868
        %v10650 = vunpack.c.l.b16 %v9869
        %v10651 = vunpack.c.h.b16 %v9869
        %v10652 = vunpack.c.l.b16 %v9870
        %v10653 = vunpack.c.h.b16 %v9870
        %v10654 = vunpack.c.l.b16 %v9871
        %v10655 = vunpack.c.h.b16 %v9871
        %v10656 = vunpack.c.l.b16 %v9872
        %v10657 = vunpack.c.h.b16 %v9872
        %v10658 = vunpack.c.l.b16 %v9873
        %v10659 = vunpack.c.h.b16 %v9873
        %v10660 = vunpack.c.l.b16 %v9874
        %v10661 = vunpack.c.h.b16 %v9874
        %v10662 = vunpack.c.l.b16 %v9875
        %v10663 = vunpack.c.h.b16 %v9875
        %v10664 = vunpack.c.l.b16 %v9876
        %v10665 = vunpack.c.h.b16 %v9876
        %v10666 = vunpack.c.l.b16 %v9877
        %v10667 = vunpack.c.h.b16 %v9877
        %v10668 = vunpack.c.l.b16 %v9878
        %v10669 = vunpack.c.h.b16 %v9878
        %v10670 = vpack.c.b16 %v10160, %v10158
        %v10671 = vpack.c.b16 %v10161, %v10159
        %v10672 = vpack.c.b16 %v10164, %v10162
        %v10673 = vpack.c.b16 %v10165, %v10163
        %v10674 = vpack.c.b16 %v10168, %v10166
        %v10675 = vpack.c.b16 %v10169, %v10167
        %v10676 = vpack.c.b16 %v10172, %v10170
        %v10677 = vpack.c.b16 %v10173, %v10171
        %v10678 = vpack.c.b16 %v10176, %v10174
        %v10679 = vpack.c.b16 %v10177, %v10175
        %v10680 = vpack.c.b16 %v10180, %v10178
        %v10681 = vpack.c.b16 %v10181, %v10179
        %v10682 = vpack.c.b16 %v10184, %v10182
        %v10683 = vpack.c.b16 %v10185, %v10183
        %v10684 = vpack.c.b16 %v10188, %v10186
        %v10685 = vpack.c.b16 %v10189, %v10187
        %v10686 = vpack.c.b16 %v10192, %v10190
        %v10687 = vpack.c.b16 %v10193, %v10191
        %v10688 = vpack.c.b16 %v10196, %v10194
        %v10689 = vpack.c.b16 %v10197, %v10195
        %v10690 = vpack.c.b16 %v10200, %v10198
        %v10691 = vpack.c.b16 %v10201, %v10199
        %v10692 = vpack.c.b16 %v10204, %v10202
        %v10693 = vpack.c.b16 %v10205, %v10203
        %v10694 = vpack.c.b16 %v10208, %v10206
        %v10695 = vpack.c.b16 %v10209, %v10207
        %v10696 = vpack.c.b16 %v10212, %v10210
        %v10697 = vpack.c.b16 %v10213, %v10211
        %v10698 = vpack.c.b16 %v10216, %v10214
        %v10699 = vpack.c.b16 %v10217, %v10215
        %v10700 = vpack.c.b16 %v10220, %v10218
        %v10701 = vpack.c.b16 %v10221, %v10219
        %v10702 = vpack.c.b16 %v10224, %v10222
        %v10703 = vpack.c.b16 %v10225, %v10223
        %v10704 = vpack.c.b16 %v10228, %v10226
        %v10705 = vpack.c.b16 %v10229, %v10227
        %v10706 = vpack.c.b16 %v10232, %v10230
        %v10707 = vpack.c.b16 %v10233, %v10231
        %v10708 = vpack.c.b16 %v10236, %v10234
        %v10709 = vpack.c.b16 %v10237, %v10235
        %v10710 = vpack.c.b16 %v10240, %v10238
        %v10711 = vpack.c.b16 %v10241, %v10239
        %v10712 = vpack.c.b16 %v10244, %v10242
        %v10713 = vpack.c.b16 %v10245, %v10243
        %v10714 = vpack.c.b16 %v10248, %v10246
        %v10715 = vpack.c.b16 %v10249, %v10247
        %v10716 = vpack.c.b16 %v10252, %v10250
        %v10717 = vpack.c.b16 %v10253, %v10251
        %v10718 = vpack.c.b16 %v10256, %v10254
        %v10719 = vpack.c.b16 %v10257, %v10255
        %v10720 = vpack.c.b16 %v10260, %v10258
        %v10721 = vpack.c.b16 %v10261, %v10259
        %v10722 = vpack.c.b16 %v10264, %v10262
        %v10723 = vpack.c.b16 %v10265, %v10263
        %v10724 = vpack.c.b16 %v10268, %v10266
        %v10725 = vpack.c.b16 %v10269, %v10267
        %v10726 = vpack.c.b16 %v10272, %v10270
        %v10727 = vpack.c.b16 %v10273, %v10271
        %v10728 = vpack.c.b16 %v10276, %v10274
        %v10729 = vpack.c.b16 %v10277, %v10275
        %v10730 = vpack.c.b16 %v10280, %v10278
        %v10731 = vpack.c.b16 %v10281, %v10279
        %v10732 = vpack.c.b16 %v10284, %v10282
        %v10733 = vpack.c.b16 %v10285, %v10283
        %v10734 = vpack.c.b16 %v10288, %v10286
        %v10735 = vpack.c.b16 %v10289, %v10287
        %v10736 = vpack.c.b16 %v10292, %v10290
        %v10737 = vpack.c.b16 %v10293, %v10291
        %v10738 = vpack.c.b16 %v10296, %v10294
        %v10739 = vpack.c.b16 %v10297, %v10295
        %v10740 = vpack.c.b16 %v10300, %v10298
        %v10741 = vpack.c.b16 %v10301, %v10299
        %v10742 = vpack.c.b16 %v10304, %v10302
        %v10743 = vpack.c.b16 %v10305, %v10303
        %v10744 = vpack.c.b16 %v10308, %v10306
        %v10745 = vpack.c.b16 %v10309, %v10307
        %v10746 = vpack.c.b16 %v10312, %v10310
        %v10747 = vpack.c.b16 %v10313, %v10311
        %v10748 = vpack.c.b16 %v10316, %v10314
        %v10749 = vpack.c.b16 %v10317, %v10315
        %v10750 = vpack.c.b16 %v10320, %v10318
        %v10751 = vpack.c.b16 %v10321, %v10319
        %v10752 = vpack.c.b16 %v10324, %v10322
        %v10753 = vpack.c.b16 %v10325, %v10323
        %v10754 = vpack.c.b16 %v10328, %v10326
        %v10755 = vpack.c.b16 %v10329, %v10327
        %v10756 = vpack.c.b16 %v10332, %v10330
        %v10757 = vpack.c.b16 %v10333, %v10331
        %v10758 = vpack.c.b16 %v10336, %v10334
        %v10759 = vpack.c.b16 %v10337, %v10335
        %v10760 = vpack.c.b16 %v10340, %v10338
        %v10761 = vpack.c.b16 %v10341, %v10339
        %v10762 = vpack.c.b16 %v10344, %v10342
        %v10763 = vpack.c.b16 %v10345, %v10343
        %v10764 = vpack.c.b16 %v10348, %v10346
        %v10765 = vpack.c.b16 %v10349, %v10347
        %v10766 = vpack.c.b16 %v10352, %v10350
        %v10767 = vpack.c.b16 %v10353, %v10351
        %v10768 = vpack.c.b16 %v10356, %v10354
        %v10769 = vpack.c.b16 %v10357, %v10355
        %v10770 = vpack.c.b16 %v10360, %v10358
        %v10771 = vpack.c.b16 %v10361, %v10359
        %v10772 = vpack.c.b16 %v10364, %v10362
        %v10773 = vpack.c.b16 %v10365, %v10363
        %v10774 = vpack.c.b16 %v10368, %v10366
        %v10775 = vpack.c.b16 %v10369, %v10367
        %v10776 = vpack.c.b16 %v10372, %v10370
        %v10777 = vpack.c.b16 %v10373, %v10371
        %v10778 = vpack.c.b16 %v10376, %v10374
        %v10779 = vpack.c.b16 %v10377, %v10375
        %v10780 = vpack.c.b16 %v10380, %v10378
        %v10781 = vpack.c.b16 %v10381, %v10379
        %v10782 = vpack.c.b16 %v10384, %v10382
        %v10783 = vpack.c.b16 %v10385, %v10383
        %v10784 = vpack.c.b16 %v10388, %v10386
        %v10785 = vpack.c.b16 %v10389, %v10387
        %v10786 = vpack.c.b16 %v10392, %v10390
        %v10787 = vpack.c.b16 %v10393, %v10391
        %v10788 = vpack.c.b16 %v10396, %v10394
        %v10789 = vpack.c.b16 %v10397, %v10395
        %v10790 = vpack.c.b16 %v10400, %v10398
        %v10791 = vpack.c.b16 %v10401, %v10399
        %v10792 = vpack.c.b16 %v10404, %v10402
        %v10793 = vpack.c.b16 %v10405, %v10403
        %v10794 = vpack.c.b16 %v10408, %v10406
        %v10795 = vpack.c.b16 %v10409, %v10407
        %v10796 = vpack.c.b16 %v10412, %v10410
        %v10797 = vpack.c.b16 %v10413, %v10411
        %v10798 = vpack.c.b16 %v10416, %v10414
        %v10799 = vpack.c.b16 %v10417, %v10415
        %v10800 = vpack.c.b16 %v10420, %v10418
        %v10801 = vpack.c.b16 %v10421, %v10419
        %v10802 = vpack.c.b16 %v10424, %v10422
        %v10803 = vpack.c.b16 %v10425, %v10423
        %v10804 = vpack.c.b16 %v10428, %v10426
        %v10805 = vpack.c.b16 %v10429, %v10427
        %v10806 = vpack.c.b16 %v10432, %v10430
        %v10807 = vpack.c.b16 %v10433, %v10431
        %v10808 = vpack.c.b16 %v10436, %v10434
        %v10809 = vpack.c.b16 %v10437, %v10435
        %v10810 = vpack.c.b16 %v10440, %v10438
        %v10811 = vpack.c.b16 %v10441, %v10439
        %v10812 = vpack.c.b16 %v10444, %v10442
        %v10813 = vpack.c.b16 %v10445, %v10443
        %v10814 = vpack.c.b16 %v10448, %v10446
        %v10815 = vpack.c.b16 %v10449, %v10447
        %v10816 = vpack.c.b16 %v10452, %v10450
        %v10817 = vpack.c.b16 %v10453, %v10451
        %v10818 = vpack.c.b16 %v10456, %v10454
        %v10819 = vpack.c.b16 %v10457, %v10455
        %v10820 = vpack.c.b16 %v10460, %v10458
        %v10821 = vpack.c.b16 %v10461, %v10459
        %v10822 = vpack.c.b16 %v10464, %v10462
        %v10823 = vpack.c.b16 %v10465, %v10463
        %v10824 = vpack.c.b16 %v10468, %v10466
        %v10825 = vpack.c.b16 %v10469, %v10467
        %v10826 = vpack.c.b16 %v10472, %v10470
        %v10827 = vpack.c.b16 %v10473, %v10471
        %v10828 = vpack.c.b16 %v10476, %v10474
        %v10829 = vpack.c.b16 %v10477, %v10475
        %v10830 = vpack.c.b16 %v10480, %v10478
        %v10831 = vpack.c.b16 %v10481, %v10479
        %v10832 = vpack.c.b16 %v10484, %v10482
        %v10833 = vpack.c.b16 %v10485, %v10483
        %v10834 = vpack.c.b16 %v10488, %v10486
        %v10835 = vpack.c.b16 %v10489, %v10487
        %v10836 = vpack.c.b16 %v10492, %v10490
        %v10837 = vpack.c.b16 %v10493, %v10491
        %v10838 = vpack.c.b16 %v10496, %v10494
        %v10839 = vpack.c.b16 %v10497, %v10495
        %v10840 = vpack.c.b16 %v10500, %v10498
        %v10841 = vpack.c.b16 %v10501, %v10499
        %v10842 = vpack.c.b16 %v10504, %v10502
        %v10843 = vpack.c.b16 %v10505, %v10503
        %v10844 = vpack.c.b16 %v10508, %v10506
        %v10845 = vpack.c.b16 %v10509, %v10507
        %v10846 = vpack.c.b16 %v10512, %v10510
        %v10847 = vpack.c.b16 %v10513, %v10511
        %v10848 = vpack.c.b16 %v10516, %v10514
        %v10849 = vpack.c.b16 %v10517, %v10515
        %v10850 = vpack.c.b16 %v10520, %v10518
        %v10851 = vpack.c.b16 %v10521, %v10519
        %v10852 = vpack.c.b16 %v10524, %v10522
        %v10853 = vpack.c.b16 %v10525, %v10523
        %v10854 = vpack.c.b16 %v10528, %v10526
        %v10855 = vpack.c.b16 %v10529, %v10527
        %v10856 = vpack.c.b16 %v10532, %v10530
        %v10857 = vpack.c.b16 %v10533, %v10531
        %v10858 = vpack.c.b16 %v10536, %v10534
        %v10859 = vpack.c.b16 %v10537, %v10535
        %v10860 = vpack.c.b16 %v10540, %v10538
        %v10861 = vpack.c.b16 %v10541, %v10539
        %v10862 = vpack.c.b16 %v10544, %v10542
        %v10863 = vpack.c.b16 %v10545, %v10543
        %v10864 = vpack.c.b16 %v10548, %v10546
        %v10865 = vpack.c.b16 %v10549, %v10547
        %v10866 = vpack.c.b16 %v10552, %v10550
        %v10867 = vpack.c.b16 %v10553, %v10551
        %v10868 = vpack.c.b16 %v10556, %v10554
        %v10869 = vpack.c.b16 %v10557, %v10555
        %v10870 = vpack.c.b16 %v10560, %v10558
        %v10871 = vpack.c.b16 %v10561, %v10559
        %v10872 = vpack.c.b16 %v10564, %v10562
        %v10873 = vpack.c.b16 %v10565, %v10563
        %v10874 = vpack.c.b16 %v10568, %v10566
        %v10875 = vpack.c.b16 %v10569, %v10567
        %v10876 = vpack.c.b16 %v10572, %v10570
        %v10877 = vpack.c.b16 %v10573, %v10571
        %v10878 = vpack.c.b16 %v10576, %v10574
        %v10879 = vpack.c.b16 %v10577, %v10575
        %v10880 = vpack.c.b16 %v10580, %v10578
        %v10881 = vpack.c.b16 %v10581, %v10579
        %v10882 = vpack.c.b16 %v10584, %v10582
        %v10883 = vpack.c.b16 %v10585, %v10583
        %v10884 = vpack.c.b16 %v10588, %v10586
        %v10885 = vpack.c.b16 %v10589, %v10587
        %v10886 = vpack.c.b16 %v10592, %v10590
        %v10887 = vpack.c.b16 %v10593, %v10591
        %v10888 = vpack.c.b16 %v10596, %v10594
        %v10889 = vpack.c.b16 %v10597, %v10595
        %v10890 = vpack.c.b16 %v10600, %v10598
        %v10891 = vpack.c.b16 %v10601, %v10599
        %v10892 = vpack.c.b16 %v10604, %v10602
        %v10893 = vpack.c.b16 %v10605, %v10603
        %v10894 = vpack.c.b16 %v10608, %v10606
        %v10895 = vpack.c.b16 %v10609, %v10607
        %v10896 = vpack.c.b16 %v10612, %v10610
        %v10897 = vpack.c.b16 %v10613, %v10611
        %v10898 = vpack.c.b16 %v10616, %v10614
        %v10899 = vpack.c.b16 %v10617, %v10615
        %v10900 = vpack.c.b16 %v10620, %v10618
        %v10901 = vpack.c.b16 %v10621, %v10619
        %v10902 = vpack.c.b16 %v10624, %v10622
        %v10903 = vpack.c.b16 %v10625, %v10623
        %v10904 = vpack.c.b16 %v10628, %v10626
        %v10905 = vpack.c.b16 %v10629, %v10627
        %v10906 = vpack.c.b16 %v10632, %v10630
        %v10907 = vpack.c.b16 %v10633, %v10631
        %v10908 = vpack.c.b16 %v10636, %v10634
        %v10909 = vpack.c.b16 %v10637, %v10635
        %v10910 = vpack.c.b16 %v10640, %v10638
        %v10911 = vpack.c.b16 %v10641, %v10639
        %v10912 = vpack.c.b16 %v10644, %v10642
        %v10913 = vpack.c.b16 %v10645, %v10643
        %v10914 = vpack.c.b16 %v10648, %v10646
        %v10915 = vpack.c.b16 %v10649, %v10647
        %v10916 = vpack.c.b16 %v10652, %v10650
        %v10917 = vpack.c.b16 %v10653, %v10651
        %v10918 = vpack.c.b16 %v10656, %v10654
        %v10919 = vpack.c.b16 %v10657, %v10655
        %v10920 = vpack.c.b16 %v10660, %v10658
        %v10921 = vpack.c.b16 %v10661, %v10659
        %v10922 = vpack.c.b16 %v10664, %v10662
        %v10923 = vpack.c.b16 %v10665, %v10663
        %v10924 = vpack.c.b16 %v10668, %v10666
        %v10925 = vpack.c.b16 %v10669, %v10667
        %11182 = vmatpush.bf16.msra.mxu0 %v10684
        %11183 = vmatpush.bf16.msra.mxu0 %v10682
        %11184 = vmatpush.bf16.msra.mxu0 %v10680
        %11185 = vmatpush.bf16.msra.mxu0 %v10678
        %11186 = vmatpush.bf16.msra.mxu0 %v10676
        %11187 = vmatpush.bf16.msra.mxu0 %v10674
        %11188 = vmatpush.bf16.msra.mxu0 %v10672
        %11189 = vmatpush.bf16.msra.mxu0 %v10670
        %11190 = vmatmul.bf16.gmra.mxu0 %v9879
        %v11191 = vpop.f32.mrf.mxu0
        %v11192 = vadd.f32 %v9898, %v11191
        %v11193 = vpop.f32.mrf.mxu0
        %11194 = vdwg.mxu0
        %11195 = vmatpush.bf16.msra.mxu0 %v10700
        %11196 = vmatpush.bf16.msra.mxu0 %v10698
        %11197 = vmatpush.bf16.msra.mxu0 %v10696
        %11198 = vmatpush.bf16.msra.mxu0 %v10694
        %11199 = vmatpush.bf16.msra.mxu0 %v10692
        %11200 = vmatpush.bf16.msra.mxu0 %v10690
        %11201 = vmatpush.bf16.msra.mxu0 %v10688
        %11202 = vmatpush.bf16.msra.mxu0 %v10686
        %11203 = vmatmul.bf16.gmra.mxu0 %v9880
        %v11204 = vpop.f32.mrf.mxu0
        %v11205 = vadd.f32 %v11192, %v11204
        %v11206 = vpop.f32.mrf.mxu0
        %11207 = vdwg.mxu0
        %11208 = vmatpush.bf16.msra.mxu0 %v10716
        %11209 = vmatpush.bf16.msra.mxu0 %v10714
        %11210 = vmatpush.bf16.msra.mxu0 %v10712
        %11211 = vmatpush.bf16.msra.mxu0 %v10710
        %11212 = vmatpush.bf16.msra.mxu0 %v10708
        %11213 = vmatpush.bf16.msra.mxu0 %v10706
        %11214 = vmatpush.bf16.msra.mxu0 %v10704
        %11215 = vmatpush.bf16.msra.mxu0 %v10702
        %11216 = vmatmul.bf16.gmra.mxu0 %v9881
        %v11217 = vpop.f32.mrf.mxu0
        %v11218 = vadd.f32 %v11205, %v11217
        %v11219 = vpop.f32.mrf.mxu0
        %11220 = vdwg.mxu0
        %11221 = vmatpush.bf16.msra.mxu0 %v10732
        %11222 = vmatpush.bf16.msra.mxu0 %v10730
        %11223 = vmatpush.bf16.msra.mxu0 %v10728
        %11224 = vmatpush.bf16.msra.mxu0 %v10726
        %11225 = vmatpush.bf16.msra.mxu0 %v10724
        %11226 = vmatpush.bf16.msra.mxu0 %v10722
        %11227 = vmatpush.bf16.msra.mxu0 %v10720
        %11228 = vmatpush.bf16.msra.mxu0 %v10718
        %11229 = vmatmul.bf16.gmra.mxu0 %v9882
        %v11230 = vpop.f32.mrf.mxu0
        %v11231 = vadd.f32 %v11218, %v11230
        %v11232 = vpop.f32.mrf.mxu0
        %11233 = vdwg.mxu0
        %11234 = vmatpush.bf16.msra.mxu0 %v10748
        %11235 = vmatpush.bf16.msra.mxu0 %v10746
        %11236 = vmatpush.bf16.msra.mxu0 %v10744
        %11237 = vmatpush.bf16.msra.mxu0 %v10742
        %11238 = vmatpush.bf16.msra.mxu0 %v10740
        %11239 = vmatpush.bf16.msra.mxu0 %v10738
        %11240 = vmatpush.bf16.msra.mxu0 %v10736
        %11241 = vmatpush.bf16.msra.mxu0 %v10734
        %11242 = vmatmul.bf16.gmra.mxu0 %v9883
        %v11243 = vpop.f32.mrf.mxu0
        %v11244 = vadd.f32 %v11231, %v11243
        %v11245 = vpop.f32.mrf.mxu0
        %11246 = vdwg.mxu0
        %11247 = vmatpush.bf16.msra.mxu0 %v10764
        %11248 = vmatpush.bf16.msra.mxu0 %v10762
        %11249 = vmatpush.bf16.msra.mxu0 %v10760
        %11250 = vmatpush.bf16.msra.mxu0 %v10758
        %11251 = vmatpush.bf16.msra.mxu0 %v10756
        %11252 = vmatpush.bf16.msra.mxu0 %v10754
        %11253 = vmatpush.bf16.msra.mxu0 %v10752
        %11254 = vmatpush.bf16.msra.mxu0 %v10750
        %11255 = vmatmul.bf16.gmra.mxu0 %v9884
        %v11256 = vpop.f32.mrf.mxu0
        %v11257 = vadd.f32 %v11244, %v11256
        %v11258 = vpop.f32.mrf.mxu0
        %11259 = vdwg.mxu0
        %11260 = vmatpush.bf16.msra.mxu0 %v10780
        %11261 = vmatpush.bf16.msra.mxu0 %v10778
        %11262 = vmatpush.bf16.msra.mxu0 %v10776
        %11263 = vmatpush.bf16.msra.mxu0 %v10774
        %11264 = vmatpush.bf16.msra.mxu0 %v10772
        %11265 = vmatpush.bf16.msra.mxu0 %v10770
        %11266 = vmatpush.bf16.msra.mxu0 %v10768
        %11267 = vmatpush.bf16.msra.mxu0 %v10766
        %11268 = vmatmul.bf16.gmra.mxu0 %v9885
        %v11269 = vpop.f32.mrf.mxu0
        %v11270 = vadd.f32 %v11257, %v11269
        %v11271 = vpop.f32.mrf.mxu0
        %11272 = vdwg.mxu0
        %11273 = vmatpush.bf16.msra.mxu0 %v10796
        %11274 = vmatpush.bf16.msra.mxu0 %v10794
        %11275 = vmatpush.bf16.msra.mxu0 %v10792
        %11276 = vmatpush.bf16.msra.mxu0 %v10790
        %11277 = vmatpush.bf16.msra.mxu0 %v10788
        %11278 = vmatpush.bf16.msra.mxu0 %v10786
        %11279 = vmatpush.bf16.msra.mxu0 %v10784
        %11280 = vmatpush.bf16.msra.mxu0 %v10782
        %11281 = vmatmul.bf16.gmra.mxu0 %v9886
        %v11282 = vpop.f32.mrf.mxu0
        %v11283 = vadd.f32 %v11270, %v11282
        %v11284 = vpop.f32.mrf.mxu0
        %11285 = vdwg.mxu0
        %11286 = vmatpush.bf16.msra.mxu0 %v10812
        %11287 = vmatpush.bf16.msra.mxu0 %v10810
        %11288 = vmatpush.bf16.msra.mxu0 %v10808
        %11289 = vmatpush.bf16.msra.mxu0 %v10806
        %11290 = vmatpush.bf16.msra.mxu0 %v10804
        %11291 = vmatpush.bf16.msra.mxu0 %v10802
        %11292 = vmatpush.bf16.msra.mxu0 %v10800
        %11293 = vmatpush.bf16.msra.mxu0 %v10798
        %11294 = vmatmul.bf16.gmra.mxu0 %v9887
        %v11295 = vpop.f32.mrf.mxu0
        %v11296 = vadd.f32 %v11283, %v11295
        %v11297 = vpop.f32.mrf.mxu0
        %11298 = vdwg.mxu0
        %11299 = vmatpush.bf16.msra.mxu0 %v10828
        %11300 = vmatpush.bf16.msra.mxu0 %v10826
        %11301 = vmatpush.bf16.msra.mxu0 %v10824
        %11302 = vmatpush.bf16.msra.mxu0 %v10822
        %11303 = vmatpush.bf16.msra.mxu0 %v10820
        %11304 = vmatpush.bf16.msra.mxu0 %v10818
        %11305 = vmatpush.bf16.msra.mxu0 %v10816
        %11306 = vmatpush.bf16.msra.mxu0 %v10814
        %11307 = vmatmul.bf16.gmra.mxu0 %v9888
        %v11308 = vpop.f32.mrf.mxu0
        %v11309 = vadd.f32 %v11296, %v11308
        %v11310 = vpop.f32.mrf.mxu0
        %11311 = vdwg.mxu0
        %11312 = vmatpush.bf16.msra.mxu0 %v10844
        %11313 = vmatpush.bf16.msra.mxu0 %v10842
        %11314 = vmatpush.bf16.msra.mxu0 %v10840
        %11315 = vmatpush.bf16.msra.mxu0 %v10838
        %11316 = vmatpush.bf16.msra.mxu0 %v10836
        %11317 = vmatpush.bf16.msra.mxu0 %v10834
        %11318 = vmatpush.bf16.msra.mxu0 %v10832
        %11319 = vmatpush.bf16.msra.mxu0 %v10830
        %11320 = vmatmul.bf16.gmra.mxu0 %v9889
        %v11321 = vpop.f32.mrf.mxu0
        %v11322 = vadd.f32 %v11309, %v11321
        %v11323 = vpop.f32.mrf.mxu0
        %11324 = vdwg.mxu0
        %11325 = vmatpush.bf16.msra.mxu0 %v10860
        %11326 = vmatpush.bf16.msra.mxu0 %v10858
        %11327 = vmatpush.bf16.msra.mxu0 %v10856
        %11328 = vmatpush.bf16.msra.mxu0 %v10854
        %11329 = vmatpush.bf16.msra.mxu0 %v10852
        %11330 = vmatpush.bf16.msra.mxu0 %v10850
        %11331 = vmatpush.bf16.msra.mxu0 %v10848
        %11332 = vmatpush.bf16.msra.mxu0 %v10846
        %11333 = vmatmul.bf16.gmra.mxu0 %v9890
        %v11334 = vpop.f32.mrf.mxu0
        %v11335 = vadd.f32 %v11322, %v11334
        %v11336 = vpop.f32.mrf.mxu0
        %11337 = vdwg.mxu0
        %11338 = vmatpush.bf16.msra.mxu0 %v10876
        %11339 = vmatpush.bf16.msra.mxu0 %v10874
        %11340 = vmatpush.bf16.msra.mxu0 %v10872
        %11341 = vmatpush.bf16.msra.mxu0 %v10870
        %11342 = vmatpush.bf16.msra.mxu0 %v10868
        %11343 = vmatpush.bf16.msra.mxu0 %v10866
        %11344 = vmatpush.bf16.msra.mxu0 %v10864
        %11345 = vmatpush.bf16.msra.mxu0 %v10862
        %11346 = vmatmul.bf16.gmra.mxu0 %v9891
        %v11347 = vpop.f32.mrf.mxu0
        %v11348 = vadd.f32 %v11335, %v11347
        %v11349 = vpop.f32.mrf.mxu0
        %11350 = vdwg.mxu0
        %11351 = vmatpush.bf16.msra.mxu0 %v10892
        %11352 = vmatpush.bf16.msra.mxu0 %v10890
        %11353 = vmatpush.bf16.msra.mxu0 %v10888
        %11354 = vmatpush.bf16.msra.mxu0 %v10886
        %11355 = vmatpush.bf16.msra.mxu0 %v10884
        %11356 = vmatpush.bf16.msra.mxu0 %v10882
        %11357 = vmatpush.bf16.msra.mxu0 %v10880
        %11358 = vmatpush.bf16.msra.mxu0 %v10878
        %11359 = vmatmul.bf16.gmra.mxu0 %v9892
        %v11360 = vpop.f32.mrf.mxu0
        %v11361 = vadd.f32 %v11348, %v11360
        %v11362 = vpop.f32.mrf.mxu0
        %11363 = vdwg.mxu0
        %11364 = vmatpush.bf16.msra.mxu0 %v10908
        %11365 = vmatpush.bf16.msra.mxu0 %v10906
        %11366 = vmatpush.bf16.msra.mxu0 %v10904
        %11367 = vmatpush.bf16.msra.mxu0 %v10902
        %11368 = vmatpush.bf16.msra.mxu0 %v10900
        %11369 = vmatpush.bf16.msra.mxu0 %v10898
        %11370 = vmatpush.bf16.msra.mxu0 %v10896
        %11371 = vmatpush.bf16.msra.mxu0 %v10894
        %11372 = vmatmul.bf16.gmra.mxu0 %v9893
        %v11373 = vpop.f32.mrf.mxu0
        %v11374 = vadd.f32 %v11361, %v11373
        %v11375 = vpop.f32.mrf.mxu0
        %11376 = vdwg.mxu0
        %11377 = vmatpush.bf16.msra.mxu0 %v10924
        %11378 = vmatpush.bf16.msra.mxu0 %v10922
        %11379 = vmatpush.bf16.msra.mxu0 %v10920
        %11380 = vmatpush.bf16.msra.mxu0 %v10918
        %11381 = vmatpush.bf16.msra.mxu0 %v10916
        %11382 = vmatpush.bf16.msra.mxu0 %v10914
        %11383 = vmatpush.bf16.msra.mxu0 %v10912
        %11384 = vmatpush.bf16.msra.mxu0 %v10910
        %11385 = vmatmul.bf16.gmra.mxu0 %v9894
        %v11386 = vpop.f32.mrf.mxu0
        %v11387 = vadd.f32 %v11374, %v11386
        %v11388 = vpop.f32.mrf.mxu0
        %11389 = vdwg.mxu0
        %11390 = vmatpush.bf16.msra.mxu0 %v10685
        %11391 = vmatpush.bf16.msra.mxu0 %v10683
        %11392 = vmatpush.bf16.msra.mxu0 %v10681
        %11393 = vmatpush.bf16.msra.mxu0 %v10679
        %11394 = vmatpush.bf16.msra.mxu0 %v10677
        %11395 = vmatpush.bf16.msra.mxu0 %v10675
        %11396 = vmatpush.bf16.msra.mxu0 %v10673
        %11397 = vmatpush.bf16.msra.mxu0 %v10671
        %11398 = vmatmul.bf16.gmra.mxu0 %v9879
        %v11399 = vpop.f32.mrf.mxu0
        %v11400 = vadd.f32 %v9899, %v11399
        %v11401 = vpop.f32.mrf.mxu0
        %11402 = vdwg.mxu0
        %11403 = vmatpush.bf16.msra.mxu0 %v10701
        %11404 = vmatpush.bf16.msra.mxu0 %v10699
        %11405 = vmatpush.bf16.msra.mxu0 %v10697
        %11406 = vmatpush.bf16.msra.mxu0 %v10695
        %11407 = vmatpush.bf16.msra.mxu0 %v10693
        %11408 = vmatpush.bf16.msra.mxu0 %v10691
        %11409 = vmatpush.bf16.msra.mxu0 %v10689
        %11410 = vmatpush.bf16.msra.mxu0 %v10687
        %11411 = vmatmul.bf16.gmra.mxu0 %v9880
        %v11412 = vpop.f32.mrf.mxu0
        %v11413 = vadd.f32 %v11400, %v11412
        %v11414 = vpop.f32.mrf.mxu0
        %11415 = vdwg.mxu0
        %11416 = vmatpush.bf16.msra.mxu0 %v10717
        %11417 = vmatpush.bf16.msra.mxu0 %v10715
        %11418 = vmatpush.bf16.msra.mxu0 %v10713
        %11419 = vmatpush.bf16.msra.mxu0 %v10711
        %11420 = vmatpush.bf16.msra.mxu0 %v10709
        %11421 = vmatpush.bf16.msra.mxu0 %v10707
        %11422 = vmatpush.bf16.msra.mxu0 %v10705
        %11423 = vmatpush.bf16.msra.mxu0 %v10703
        %11424 = vmatmul.bf16.gmra.mxu0 %v9881
        %v11425 = vpop.f32.mrf.mxu0
        %v11426 = vadd.f32 %v11413, %v11425
        %v11427 = vpop.f32.mrf.mxu0
        %11428 = vdwg.mxu0
        %11429 = vmatpush.bf16.msra.mxu0 %v10733
        %11430 = vmatpush.bf16.msra.mxu0 %v10731
        %11431 = vmatpush.bf16.msra.mxu0 %v10729
        %11432 = vmatpush.bf16.msra.mxu0 %v10727
        %11433 = vmatpush.bf16.msra.mxu0 %v10725
        %11434 = vmatpush.bf16.msra.mxu0 %v10723
        %11435 = vmatpush.bf16.msra.mxu0 %v10721
        %11436 = vmatpush.bf16.msra.mxu0 %v10719
        %11437 = vmatmul.bf16.gmra.mxu0 %v9882
        %v11438 = vpop.f32.mrf.mxu0
        %v11439 = vadd.f32 %v11426, %v11438
        %v11440 = vpop.f32.mrf.mxu0
        %11441 = vdwg.mxu0
        %11442 = vmatpush.bf16.msra.mxu0 %v10749
        %11443 = vmatpush.bf16.msra.mxu0 %v10747
        %11444 = vmatpush.bf16.msra.mxu0 %v10745
        %11445 = vmatpush.bf16.msra.mxu0 %v10743
        %11446 = vmatpush.bf16.msra.mxu0 %v10741
        %11447 = vmatpush.bf16.msra.mxu0 %v10739
        %11448 = vmatpush.bf16.msra.mxu0 %v10737
        %11449 = vmatpush.bf16.msra.mxu0 %v10735
        %11450 = vmatmul.bf16.gmra.mxu0 %v9883
        %v11451 = vpop.f32.mrf.mxu0
        %v11452 = vadd.f32 %v11439, %v11451
        %v11453 = vpop.f32.mrf.mxu0
        %11454 = vdwg.mxu0
        %11455 = vmatpush.bf16.msra.mxu0 %v10765
        %11456 = vmatpush.bf16.msra.mxu0 %v10763
        %11457 = vmatpush.bf16.msra.mxu0 %v10761
        %11458 = vmatpush.bf16.msra.mxu0 %v10759
        %11459 = vmatpush.bf16.msra.mxu0 %v10757
        %11460 = vmatpush.bf16.msra.mxu0 %v10755
        %11461 = vmatpush.bf16.msra.mxu0 %v10753
        %11462 = vmatpush.bf16.msra.mxu0 %v10751
        %11463 = vmatmul.bf16.gmra.mxu0 %v9884
        %v11464 = vpop.f32.mrf.mxu0
        %v11465 = vadd.f32 %v11452, %v11464
        %v11466 = vpop.f32.mrf.mxu0
        %11467 = vdwg.mxu0
        %11468 = vmatpush.bf16.msra.mxu0 %v10781
        %11469 = vmatpush.bf16.msra.mxu0 %v10779
        %11470 = vmatpush.bf16.msra.mxu0 %v10777
        %11471 = vmatpush.bf16.msra.mxu0 %v10775
        %11472 = vmatpush.bf16.msra.mxu0 %v10773
        %11473 = vmatpush.bf16.msra.mxu0 %v10771
        %11474 = vmatpush.bf16.msra.mxu0 %v10769
        %11475 = vmatpush.bf16.msra.mxu0 %v10767
        %11476 = vmatmul.bf16.gmra.mxu0 %v9885
        %v11477 = vpop.f32.mrf.mxu0
        %v11478 = vadd.f32 %v11465, %v11477
        %v11479 = vpop.f32.mrf.mxu0
        %11480 = vdwg.mxu0
        %11481 = vmatpush.bf16.msra.mxu0 %v10797
        %11482 = vmatpush.bf16.msra.mxu0 %v10795
        %11483 = vmatpush.bf16.msra.mxu0 %v10793
        %11484 = vmatpush.bf16.msra.mxu0 %v10791
        %11485 = vmatpush.bf16.msra.mxu0 %v10789
        %11486 = vmatpush.bf16.msra.mxu0 %v10787
        %11487 = vmatpush.bf16.msra.mxu0 %v10785
        %11488 = vmatpush.bf16.msra.mxu0 %v10783
        %11489 = vmatmul.bf16.gmra.mxu0 %v9886
        %v11490 = vpop.f32.mrf.mxu0
        %v11491 = vadd.f32 %v11478, %v11490
        %v11492 = vpop.f32.mrf.mxu0
        %11493 = vdwg.mxu0
        %11494 = vmatpush.bf16.msra.mxu0 %v10813
        %11495 = vmatpush.bf16.msra.mxu0 %v10811
        %11496 = vmatpush.bf16.msra.mxu0 %v10809
        %11497 = vmatpush.bf16.msra.mxu0 %v10807
        %11498 = vmatpush.bf16.msra.mxu0 %v10805
        %11499 = vmatpush.bf16.msra.mxu0 %v10803
        %11500 = vmatpush.bf16.msra.mxu0 %v10801
        %11501 = vmatpush.bf16.msra.mxu0 %v10799
        %11502 = vmatmul.bf16.gmra.mxu0 %v9887
        %v11503 = vpop.f32.mrf.mxu0
        %v11504 = vadd.f32 %v11491, %v11503
        %v11505 = vpop.f32.mrf.mxu0
        %11506 = vdwg.mxu0
        %11507 = vmatpush.bf16.msra.mxu0 %v10829
        %11508 = vmatpush.bf16.msra.mxu0 %v10827
        %11509 = vmatpush.bf16.msra.mxu0 %v10825
        %11510 = vmatpush.bf16.msra.mxu0 %v10823
        %11511 = vmatpush.bf16.msra.mxu0 %v10821
        %11512 = vmatpush.bf16.msra.mxu0 %v10819
        %11513 = vmatpush.bf16.msra.mxu0 %v10817
        %11514 = vmatpush.bf16.msra.mxu0 %v10815
        %11515 = vmatmul.bf16.gmra.mxu0 %v9888
        %v11516 = vpop.f32.mrf.mxu0
        %v11517 = vadd.f32 %v11504, %v11516
        %v11518 = vpop.f32.mrf.mxu0
        %11519 = vdwg.mxu0
        %11520 = vmatpush.bf16.msra.mxu0 %v10845
        %11521 = vmatpush.bf16.msra.mxu0 %v10843
        %11522 = vmatpush.bf16.msra.mxu0 %v10841
        %11523 = vmatpush.bf16.msra.mxu0 %v10839
        %11524 = vmatpush.bf16.msra.mxu0 %v10837
        %11525 = vmatpush.bf16.msra.mxu0 %v10835
        %11526 = vmatpush.bf16.msra.mxu0 %v10833
        %11527 = vmatpush.bf16.msra.mxu0 %v10831
        %11528 = vmatmul.bf16.gmra.mxu0 %v9889
        %v11529 = vpop.f32.mrf.mxu0
        %v11530 = vadd.f32 %v11517, %v11529
        %v11531 = vpop.f32.mrf.mxu0
        %11532 = vdwg.mxu0
        %11533 = vmatpush.bf16.msra.mxu0 %v10861
        %11534 = vmatpush.bf16.msra.mxu0 %v10859
        %11535 = vmatpush.bf16.msra.mxu0 %v10857
        %11536 = vmatpush.bf16.msra.mxu0 %v10855
        %11537 = vmatpush.bf16.msra.mxu0 %v10853
        %11538 = vmatpush.bf16.msra.mxu0 %v10851
        %11539 = vmatpush.bf16.msra.mxu0 %v10849
        %11540 = vmatpush.bf16.msra.mxu0 %v10847
        %11541 = vmatmul.bf16.gmra.mxu0 %v9890
        %v11542 = vpop.f32.mrf.mxu0
        %v11543 = vadd.f32 %v11530, %v11542
        %v11544 = vpop.f32.mrf.mxu0
        %11545 = vdwg.mxu0
        %11546 = vmatpush.bf16.msra.mxu0 %v10877
        %11547 = vmatpush.bf16.msra.mxu0 %v10875
        %11548 = vmatpush.bf16.msra.mxu0 %v10873
        %11549 = vmatpush.bf16.msra.mxu0 %v10871
        %11550 = vmatpush.bf16.msra.mxu0 %v10869
        %11551 = vmatpush.bf16.msra.mxu0 %v10867
        %11552 = vmatpush.bf16.msra.mxu0 %v10865
        %11553 = vmatpush.bf16.msra.mxu0 %v10863
        %11554 = vmatmul.bf16.gmra.mxu0 %v9891
        %v11555 = vpop.f32.mrf.mxu0
        %v11556 = vadd.f32 %v11543, %v11555
        %v11557 = vpop.f32.mrf.mxu0
        %11558 = vdwg.mxu0
        %11559 = vmatpush.bf16.msra.mxu0 %v10893
        %11560 = vmatpush.bf16.msra.mxu0 %v10891
        %11561 = vmatpush.bf16.msra.mxu0 %v10889
        %11562 = vmatpush.bf16.msra.mxu0 %v10887
        %11563 = vmatpush.bf16.msra.mxu0 %v10885
        %11564 = vmatpush.bf16.msra.mxu0 %v10883
        %11565 = vmatpush.bf16.msra.mxu0 %v10881
        %11566 = vmatpush.bf16.msra.mxu0 %v10879
        %11567 = vmatmul.bf16.gmra.mxu0 %v9892
        %v11568 = vpop.f32.mrf.mxu0
        %v11569 = vadd.f32 %v11556, %v11568
        %v11570 = vpop.f32.mrf.mxu0
        %11571 = vdwg.mxu0
        %11572 = vmatpush.bf16.msra.mxu0 %v10909
        %11573 = vmatpush.bf16.msra.mxu0 %v10907
        %11574 = vmatpush.bf16.msra.mxu0 %v10905
        %11575 = vmatpush.bf16.msra.mxu0 %v10903
        %11576 = vmatpush.bf16.msra.mxu0 %v10901
        %11577 = vmatpush.bf16.msra.mxu0 %v10899
        %11578 = vmatpush.bf16.msra.mxu0 %v10897
        %11579 = vmatpush.bf16.msra.mxu0 %v10895
        %11580 = vmatmul.bf16.gmra.mxu0 %v9893
        %v11581 = vpop.f32.mrf.mxu0
        %v11582 = vadd.f32 %v11569, %v11581
        %v11583 = vpop.f32.mrf.mxu0
        %11584 = vdwg.mxu0
        %11585 = vmatpush.bf16.msra.mxu0 %v10925
        %11586 = vmatpush.bf16.msra.mxu0 %v10923
        %11587 = vmatpush.bf16.msra.mxu0 %v10921
        %11588 = vmatpush.bf16.msra.mxu0 %v10919
        %11589 = vmatpush.bf16.msra.mxu0 %v10917
        %11590 = vmatpush.bf16.msra.mxu0 %v10915
        %11591 = vmatpush.bf16.msra.mxu0 %v10913
        %11592 = vmatpush.bf16.msra.mxu0 %v10911
        %11593 = vmatmul.bf16.gmra.mxu0 %v9894
        %v11594 = vpop.f32.mrf.mxu0
        %v11595 = vadd.f32 %v11582, %v11594
        %v11596 = vpop.f32.mrf.mxu0
        %11597 = vdwg.mxu0
        %v11598 = vadd.f32 %v7612, %v11387
        %v11599 = vadd.f32 %v7613, %v11595
        %s11600 = scalar_lea.vmem [#allocation22], 2
        %v11601 = vld [vmem:[%s11600] sm:$0x3]
        %s11602 = scalar_lea.vmem [#allocation24], 2
        %v11603 = vld [vmem:[%s11602] sm:$0x3]
        %v11604 = vadd.f32 %v11598, %v11599
        %11605 = vadd.xlane.f32.xlu0 %v11604
        %v11606 = vpop.xlane.xlu0 %11605
        %v11607 = vmul.f32 %v11606, %v2205
        %v11608 = vsub.f32 %v11598, %v11607
        %v11609 = vsub.f32 %v11599, %v11607
        %v11610 = vmul.f32 %v11608, %v11608
        %v11611 = vmul.f32 %v11609, %v11609
        %v11612 = vadd.f32 %v11610, %v11611
        %11613 = vadd.xlane.f32.xlu0 %v11612
        %v11614 = vpop.xlane.xlu0 %11613
        %v11615 = vmul.f32 %v11614, %v2205
        %v11616 = vadd.f32 %v11615, 1e-05
        %v11617 = vrsqrt.pop %v11616
        %v11618 = vmul.f32 %v11617, %v11616
        %v11619 = vmul.f32 %v11618, %v11617
        %v11620 = vmul.f32 0.5, %v11619
        %v11621 = vsub.f32 1.5, %v11620
        %v11622 = vmul.f32 %v11617, %v11621
        %vm11623 = vweird.f32 %v11616
        %vm11624 = vweird.f32 %v11617
        %vm11625 = vmor %vm11623, %vm11624
        %v11626 = vsel %vm11625, %v11617, %v11622
        %v11627 = vmul.f32 %v11608, %v11626
        %v11628 = vmul.f32 %v11609, %v11626
        %v11630 = vperm.slane %v11601, 0
        %v11631 = vperm.slane %v11601, 1
        %v11634 = vmul.f32 %v11627, %v11630
        %v11635 = vmul.f32 %v11628, %v11631
        %v11637 = vperm.slane %v11603, 0
        %v11638 = vperm.slane %v11603, 1
        %v11641 = vadd.f32 %v11634, %v11637
        %v11642 = vadd.f32 %v11635, %v11638
        %v11643 = vld [vmem:[#allocation25] sm:$0xf]
        %v11644 = vld [vmem:[#allocation25 + $0x4] sm:$0xf]
        %v11645 = vld [vmem:[#allocation25 + $0x8] sm:$0xf]
        %v11646 = vld [vmem:[#allocation25 + $0xc] sm:$0xf]
        %v11647 = vld [vmem:[#allocation25 + $0x10] sm:$0xf]
        %v11648 = vld [vmem:[#allocation25 + $0x14] sm:$0xf]
        %v11649 = vld [vmem:[#allocation25 + $0x18] sm:$0xf]
        %v11650 = vld [vmem:[#allocation25 + $0x1c] sm:$0xf]
        %v11651 = vld [vmem:[#allocation25 + $0x20] sm:$0xf]
        %v11652 = vld [vmem:[#allocation25 + $0x24] sm:$0xf]
        %v11653 = vld [vmem:[#allocation25 + $0x28] sm:$0xf]
        %v11654 = vld [vmem:[#allocation25 + $0x2c] sm:$0xf]
        %v11655 = vld [vmem:[#allocation25 + $0x30] sm:$0xf]
        %v11656 = vld [vmem:[#allocation25 + $0x34] sm:$0xf]
        %v11657 = vld [vmem:[#allocation25 + $0x38] sm:$0xf]
        %v11658 = vld [vmem:[#allocation25 + $0x3c] sm:$0xf]
        %v11659 = vld [vmem:[#allocation25 + $0x40] sm:$0xf]
        %v11660 = vld [vmem:[#allocation25 + $0x44] sm:$0xf]
        %v11661 = vld [vmem:[#allocation25 + $0x48] sm:$0xf]
        %v11662 = vld [vmem:[#allocation25 + $0x4c] sm:$0xf]
        %v11663 = vld [vmem:[#allocation25 + $0x50] sm:$0xf]
        %v11664 = vld [vmem:[#allocation25 + $0x54] sm:$0xf]
        %v11665 = vld [vmem:[#allocation25 + $0x58] sm:$0xf]
        %v11666 = vld [vmem:[#allocation25 + $0x5c] sm:$0xf]
        %v11667 = vld [vmem:[#allocation25 + $0x60] sm:$0xf]
        %v11668 = vld [vmem:[#allocation25 + $0x64] sm:$0xf]
        %v11669 = vld [vmem:[#allocation25 + $0x68] sm:$0xf]
        %v11670 = vld [vmem:[#allocation25 + $0x6c] sm:$0xf]
        %v11671 = vld [vmem:[#allocation25 + $0x70] sm:$0xf]
        %v11672 = vld [vmem:[#allocation25 + $0x74] sm:$0xf]
        %v11673 = vld [vmem:[#allocation25 + $0x78] sm:$0xf]
        %v11674 = vld [vmem:[#allocation25 + $0x7c] sm:$0xf]
        %v11675 = vpack.c.bf16 %v11641, %v11641
        %v11676 = vpack.c.bf16 %v11642, %v11642
        %v11677 = vld [vmem:[#allocation27] sm:$0x1]
        %v11679 = vperm.slane %v11677, 0
        %v11713 = vunpack.c.l.b16 %v11643
        %v11714 = vunpack.c.l.b16 %v11644
        %v11715 = vunpack.c.l.b16 %v11645
        %v11716 = vunpack.c.l.b16 %v11646
        %v11717 = vunpack.c.l.b16 %v11647
        %v11718 = vunpack.c.l.b16 %v11648
        %v11719 = vunpack.c.l.b16 %v11649
        %v11720 = vunpack.c.l.b16 %v11650
        %v11721 = vunpack.c.l.b16 %v11651
        %v11722 = vunpack.c.l.b16 %v11652
        %v11723 = vunpack.c.l.b16 %v11653
        %v11724 = vunpack.c.l.b16 %v11654
        %v11725 = vunpack.c.l.b16 %v11655
        %v11726 = vunpack.c.l.b16 %v11656
        %v11727 = vunpack.c.l.b16 %v11657
        %v11728 = vunpack.c.l.b16 %v11658
        %v11729 = vunpack.c.l.b16 %v11659
        %v11730 = vunpack.c.l.b16 %v11660
        %v11731 = vunpack.c.l.b16 %v11661
        %v11732 = vunpack.c.l.b16 %v11662
        %v11733 = vunpack.c.l.b16 %v11663
        %v11734 = vunpack.c.l.b16 %v11664
        %v11735 = vunpack.c.l.b16 %v11665
        %v11736 = vunpack.c.l.b16 %v11666
        %v11737 = vunpack.c.l.b16 %v11667
        %v11738 = vunpack.c.l.b16 %v11668
        %v11739 = vunpack.c.l.b16 %v11669
        %v11740 = vunpack.c.l.b16 %v11670
        %v11741 = vunpack.c.l.b16 %v11671
        %v11742 = vunpack.c.l.b16 %v11672
        %v11743 = vunpack.c.l.b16 %v11673
        %v11744 = vunpack.c.l.b16 %v11674
        %v11745 = vpack.c.b16 %v11714, %v11713
        %v11746 = vpack.c.b16 %v11716, %v11715
        %v11747 = vpack.c.b16 %v11718, %v11717
        %v11748 = vpack.c.b16 %v11720, %v11719
        %v11749 = vpack.c.b16 %v11722, %v11721
        %v11750 = vpack.c.b16 %v11724, %v11723
        %v11751 = vpack.c.b16 %v11726, %v11725
        %v11752 = vpack.c.b16 %v11728, %v11727
        %v11753 = vpack.c.b16 %v11730, %v11729
        %v11754 = vpack.c.b16 %v11732, %v11731
        %v11755 = vpack.c.b16 %v11734, %v11733
        %v11756 = vpack.c.b16 %v11736, %v11735
        %v11757 = vpack.c.b16 %v11738, %v11737
        %v11758 = vpack.c.b16 %v11740, %v11739
        %v11759 = vpack.c.b16 %v11742, %v11741
        %v11760 = vpack.c.b16 %v11744, %v11743
        %11777 = vmatpush.bf16.msra.mxu0 %v11752
        %11778 = vmatpush.bf16.msra.mxu0 %v11751
        %11779 = vmatpush.bf16.msra.mxu0 %v11750
        %11780 = vmatpush.bf16.msra.mxu0 %v11749
        %11781 = vmatpush.bf16.msra.mxu0 %v11748
        %11782 = vmatpush.bf16.msra.mxu0 %v11747
        %11783 = vmatpush.bf16.msra.mxu0 %v11746
        %11784 = vmatpush.bf16.msra.mxu0 %v11745
        %11785 = vmatmul.bf16.gmra.mxu0 %v11675
        %v11786 = vpop.f32.mrf.mxu0
        %v11787 = vadd.f32 %v11679, %v11786
        %v11788 = vpop.f32.mrf.mxu0
        %11789 = vdwg.mxu0
        %11790 = vmatpush.bf16.msra.mxu0 %v11760
        %11791 = vmatpush.bf16.msra.mxu0 %v11759
        %11792 = vmatpush.bf16.msra.mxu0 %v11758
        %11793 = vmatpush.bf16.msra.mxu0 %v11757
        %11794 = vmatpush.bf16.msra.mxu0 %v11756
        %11795 = vmatpush.bf16.msra.mxu0 %v11755
        %11796 = vmatpush.bf16.msra.mxu0 %v11754
        %11797 = vmatpush.bf16.msra.mxu0 %v11753
        %11798 = vmatmul.bf16.gmra.mxu0 %v11676
        %v11799 = vpop.f32.mrf.mxu0
        %v11800 = vadd.f32 %v11787, %v11799
        %v11801 = vpop.f32.mrf.mxu0
        %11802 = vdwg.mxu0
        %11803 = vst [vmem:[%s825] sm:$0xff] %v11800
        %p11804 = scmp.lt.s32.totalorder %s39, 1
        %s11805 = scalar_select %p11804, %s39, 1
        %s11806 = smul.addr %s11805, 8
        %s11807 = scalar_lea.vmem %s17, %s11806
        // Predicated region
        $region157: #{transformer_forward.1} parent=87 // pred_check
          %p11808 = pneg %p419
        $region158: #{transformer_forward.1} parent=87 // pred_check_branch
          %11810 = sbr.rel (%p11808) target = $region160
        $region159: #{transformer_forward.1} parent=87 // pred_region
          _
        $region160: #{transformer_forward.1} parent=87 // pred_fallthru
          _
      $region88: #{transformer_forward.1} parent=5 // pred_fallthru
        _
      %p11811 = scmp.le.s32.totalorder 2, %s34
      // Predicated region
      $region161: #{transformer_forward.1} parent=5 // pred_check
        %p11812 = pneg %p11811
      $region162: #{transformer_forward.1} parent=5 // pred_check_branch
        %11814 = sbr.rel (%p11812) target = $region164
      $region163: #{transformer_forward.1} parent=5 // pred_region
        %s11815 = ssub.s32 %s34, 2
        // Predicated region
        $region165: #{transformer_forward.1} parent=163 // pred_check
          %p11816 = pneg %p425
        $region166: #{transformer_forward.1} parent=163 // pred_check_branch
          %11818 = sbr.rel (%p11816) target = $region168
        $region167: #{transformer_forward.1} parent=163 // pred_region
          %p11819 = scmp.lt.s32.totalorder %s40, 1
          %s11820 = scalar_select %p11819, %s40, 1
          %s11821 = smul.addr %s11820, 8
          %s11822 = scalar_lea.vmem %s17, %s11821
        $region168: #{transformer_forward.1} parent=163 // pred_fallthru
          _
      $region164: #{transformer_forward.1} parent=5 // pred_fallthru
        _
    $region6: #{transformer_forward.1} parent=1 // loop_footer
      %s38 = sadd.s32 1, %s34
    $region7: #{transformer_forward.1} parent=1 // loop_footer_branch
      %33 = sbr.rel target = $region3
    $region8: #{transformer_forward.1} parent=1 // loop_exit
      _
    %11823 = vsyncpa [#allocation3], 1
    %s11824 = scalar_lea.sflag [#allocation3], 1
    %11825 = vsyncpa %s11824, 1
    %11826 = vsyncpa [#allocation5], 1
    %11827 = vsyncpa [#allocation8], 1
    %11828 = vsyncpa [#allocation11], 1
    %11829 = vsyncpa [#allocation14], 1
    %11830 = vsyncpa [#allocation17], 1
    %11831 = vsyncpa [#allocation20], 1
    %11832 = vsyncpa [#allocation23], 1
    %11833 = vsyncpa [#allocation26], 1

</llo_original>
